<compile_context>
chip_gen: v5e
topology: v5e:2x2
jax: 0.10.0
libtpu: 0.0.40
codegen_flags: <defaults>
</compile_context>

<pallas_src>
import functools

import jax
import jax.numpy as jnp
from jax.experimental import pallas as pl
from jax.experimental.pallas import tpu as pltpu

F_PAD = 128          # conv filter count padded 50 -> 128 (lane-dense, full MXU N)
K1_PAD = 128         # conv1 contraction (9*Cin + 1 bias column) zero-padded
LRELU_SLOPE = 0.01   # nn.LeakyReLU() default negative slope
MC = 128             # M-chunk (rows) for conv1/conv2 matmuls (bounds vreg use)


def _round_up(x, m):
    return (x + m - 1) // m * m


def _fused_kernel(xc_ref, w1_ref, w2_ref, b2_ref, o_ref, y1s_ref, a2s_ref, *,
                  B, H, W, Ho, Wo, C, Mp, MA):
    """One grid step == B images.  conv1 + conv2 + 3x2 maxpool, all in VMEM.

    xc_ref : (1, B*Mp, K1_PAD)  im2col on the padded (H+2)x(W+2) grid, flat;
                                border rows all-zero; a constant-1 column
                                carries the conv1 bias.
    w1_ref : (K1_PAD, Fp)       conv1 weights (+ bias row), im2col order
    w2_ref : (9, Fp, Fp)        conv2 weights, tap-major (t = 3*dy + dx)
    b2_ref : (1, Fp)
    o_ref  : (B, Ho, 2*Wo-1, Fp)  height-pooled rows, pairwise width max;
                                  wrapper keeps every other column.
    y1s_ref: VMEM (S, Fp)       conv1 activation, flat padded layout
    a2s_ref: VMEM (MA, Fp)      conv2 activation, flat layout
    """
    Fp = o_ref.shape[-1]
    Wp = o_ref.shape[-2]          # = 2*Wo - 1
    BMp = B * Mp
    S = y1s_ref.shape[0]

    # Slack rows (>= B*Mp) are only read while computing discarded conv2 rows;
    # keep them deterministic with one tiny store (no full-scratch clear).
    if S > BMp:
        y1s_ref[pl.ds(BMp, S - BMp), :] = jnp.zeros((S - BMp, Fp), jnp.float32)

    # ---- conv1 (+bias via the constant-1 column) + LeakyReLU ---------------
    # One matmul per 128-row chunk of the flat padded grid; each chunk result
    # goes back with a single dense, 8-aligned store.  Border rows of xc are
    # all zero, so lrelu(0 matmul) == 0 == conv2's 'same' zero padding.
    for m0 in range(0, BMp, MC):
        mc = min(MC, BMp - m0)
        z = jnp.dot(xc_ref[0, pl.ds(m0, mc), :], w1_ref[...],
                    preferred_element_type=jnp.float32)
        y1s_ref[pl.ds(m0, mc), :] = jnp.where(z > 0, z, LRELU_SLOPE * z)

    # ---- conv2: 9 contiguous-slab matmuls per 128-row M chunk --------------
    # A[k] = sum_t y1s[k + dy*C + dx] @ w2[t]; valid outputs sit at
    # k = b*Mp + i*C + j with j < W (the two extra columns per row are junk
    # and never read).  Register accumulator is 16 vregs -> no spills.
    # TODO(synk): on v6e/v7x, pairs of taps could be stacked along K (K=256)
    # to fill the 2x256 MXU depth; kept at K=128 for v5e and simplicity.
    b2 = b2_ref[...]
    for m0 in range(0, MA, MC):
        mc = min(MC, MA - m0)
        acc = jnp.zeros((mc, Fp), jnp.float32)
        for dy in range(3):
            for dx in range(3):
                lhs = y1s_ref[pl.ds(m0 + dy * C + dx, mc), :]
                acc = acc + jnp.dot(lhs, w2_ref[3 * dy + dx],
                                    preferred_element_type=jnp.float32)
        a2 = acc + b2
        a2s_ref[pl.ds(m0, mc), :] = jnp.where(a2 > 0, a2, LRELU_SLOPE * a2)

    # ---- MaxPool2d((3, 2)), floor mode -------------------------------------
    # Per (image, pooled row): three contiguous (2*Wo, Fp) loads, register
    # maxes (height pool), shifted-slice max (width pairs), one dense store.
    # m[2*ow] holds the pooled value; the wrapper slices even columns.
    for b in range(B):
        for oh in range(Ho):
            base = b * Mp + 3 * oh * C
            h = a2s_ref[pl.ds(base, 2 * Wo), :]
            h = jnp.maximum(h, a2s_ref[pl.ds(base + C, 2 * Wo), :])
            h = jnp.maximum(h, a2s_ref[pl.ds(base + 2 * C, 2 * Wo), :])
            m = jnp.maximum(h[:Wp, :], h[1:Wp + 1, :])
            o_ref[b, oh, :, :] = m.astype(o_ref.dtype)


def _im2col_padded_grid(x_nchw):
    """NCHW -> (N, (H+2)*(W+2), K1_PAD) im2col on the PADDED output grid.

    Row (pi, pj) holds the 9*Cin conv1 input features for output position
    (pi-1, pj-1) plus a trailing 1.0 (bias column); border rows are all zero.
    """
    N, Cin, H, W = x_nchw.shape
    K = 9 * Cin + 1
    assert K <= K1_PAD, "increase K1_PAD for this channel count"
    x = jnp.transpose(x_nchw, (0, 2, 3, 1))                       # NHWC
    xp = jnp.pad(x, ((0, 0), (1, 1), (1, 1), (0, 0)))             # 'same' pad
    cols = [xp[:, dy:dy + H, dx:dx + W, :]
            for dy in range(3) for dx in range(3)]                # t = 3*dy+dx
    feats = jnp.concatenate(cols + [jnp.ones((N, H, W, 1), x.dtype)], axis=-1)
    feats = jnp.pad(feats, ((0, 0), (1, 1), (1, 1), (0, 0)))      # zero border
    feats = feats.reshape(N, (H + 2) * (W + 2), K)
    return jnp.pad(feats, ((0, 0), (0, 0), (0, K1_PAD - K)))


def _pack_params(params):
    """HWIO params -> matmul-ready, zero-padded (K1_PAD / F_PAD) layouts."""
    f = params["w1"].shape[-1]
    cin = params["w1"].shape[-2]
    assert f <= F_PAD
    k1 = 9 * cin + 1
    w1 = jnp.concatenate(
        [params["w1"].reshape(9 * cin, f), params["b1"].reshape(1, f)], axis=0)
    w1 = jnp.pad(w1, ((0, K1_PAD - k1), (0, F_PAD - f)))          # (+bias row)
    w2 = jnp.pad(params["w2"],
                 ((0, 0), (0, 0), (0, F_PAD - f), (0, F_PAD - f)))
    w2 = w2.reshape(9, F_PAD, F_PAD)                              # tap-major
    b2 = jnp.pad(params["b2"], (0, F_PAD - f)).reshape(1, F_PAD)
    return w1, w2, b2


def last_conv_layer(x_nchw, params, *, batch_tile=None):
    N, Cin, H, W = x_nchw.shape
    F = params["w1"].shape[-1]
    Ho, Wo = H // 3, W // 2
    C = W + 2                                  # padded row width
    Mp = (H + 2) * C                           # padded grid size per image
    Wp = 2 * Wo - 1                            # kernel output width (pre-slice)

    if batch_tile is None:
        batch_tile = 4 if N % 4 == 0 else (2 if N % 2 == 0 else 1)
    B = batch_tile
    assert N % B == 0
    G = N // B
    BMp = B * Mp
    MA = _round_up(BMp - 2 * C - 2, 8)         # conv2 rows computed per step
    S = _round_up(MA + 2 * C + 2, 8)           # conv1 scratch rows (w/ slack)

    xc = _im2col_padded_grid(x_nchw).reshape(G, BMp, K1_PAD)
    w1m, w2m, b2p = _pack_params(params)

    kernel = functools.partial(_fused_kernel, B=B, H=H, W=W, Ho=Ho, Wo=Wo,
                               C=C, Mp=Mp, MA=MA)
    out = pl.pallas_call(
        kernel,
        out_shape=jax.ShapeDtypeStruct((N, Ho, Wp, F_PAD), x_nchw.dtype),
        grid_spec=pltpu.PrefetchScalarGridSpec(
            num_scalar_prefetch=0,
            grid=(G,),
            in_specs=[
                pl.BlockSpec((1, BMp, K1_PAD), lambda g: (g, 0, 0)),
                # Constant-index weight blocks below; pipeline_mode=pl.Buffered(1)
                # would drop their redundant double buffer (VMEM hygiene only --
                # total residency here is ~3 MiB, far under every generation).
                pl.BlockSpec((K1_PAD, F_PAD), lambda g: (0, 0)),
                pl.BlockSpec((9, F_PAD, F_PAD), lambda g: (0, 0, 0)),
                pl.BlockSpec((1, F_PAD), lambda g: (0, 0)),
            ],
            out_specs=pl.BlockSpec((B, Ho, Wp, F_PAD), lambda g: (g, 0, 0, 0)),
            scratch_shapes=[
                pltpu.VMEM((S, F_PAD), jnp.float32),    # conv1 act (flat, padded)
                pltpu.VMEM((MA, F_PAD), jnp.float32),   # conv2 act (flat)
            ],
        ),
        compiler_params=pltpu.CompilerParams(
            dimension_semantics=("parallel",)),   # batch steps across TCs
    )(xc, w1m, w2m, b2p)

    y = out[:, :, ::2, :F]                        # width-pool columns + drop pad
    return jnp.transpose(y, (0, 3, 1, 2))         # NHWC -> NCHW


def init_params(key, in_channels, filters=50):
    def xavier_conv(k, cin, cout):
        # matches torch.nn.init.xavier_uniform_(gain=1) on (cout, cin, 3, 3)
        fan_in, fan_out = cin * 9, cout * 9
        bound = (6.0 / (fan_in + fan_out)) ** 0.5
        w_oihw = jax.random.uniform(k, (cout, cin, 3, 3), jnp.float32,
                                    -bound, bound)
        return jnp.transpose(w_oihw, (2, 3, 1, 0))   # OIHW -> HWIO

    k1, k2 = jax.random.split(key)
    return {
        "w1": xavier_conv(k1, in_channels, filters),
        "b1": jnp.zeros((filters,), jnp.float32),    # init.constant_(bias, 0)
        "w2": xavier_conv(k2, filters, filters),
        "b2": jnp.zeros((filters,), jnp.float32),
    }


def _reference(x_nchw, params):
    """Pure-JAX reference of the PyTorch forward (for a correctness check)."""
    dn = ("NHWC", "HWIO", "NHWC")
    x = jnp.transpose(x_nchw, (0, 2, 3, 1))
    y = jax.lax.conv_general_dilated(x, params["w1"], (1, 1), "SAME",
                                     dimension_numbers=dn,
                                     precision=jax.lax.Precision.HIGHEST)
    y = y + params["b1"]
    y = jnp.where(y > 0, y, LRELU_SLOPE * y)
    y = jax.lax.conv_general_dilated(y, params["w2"], (1, 1), "SAME",
                                     dimension_numbers=dn,
                                     precision=jax.lax.Precision.HIGHEST)
    y = y + params["b2"]
    y = jnp.where(y > 0, y, LRELU_SLOPE * y)
    y = jax.lax.reduce_window(y, -jnp.inf, jax.lax.max,
                              (1, 3, 2, 1), (1, 3, 2, 1), "VALID")
    return jnp.transpose(y, (0, 3, 1, 2))


if __name__ == "__main__":
    key = jax.random.PRNGKey(0)
    kx, kp = jax.random.split(key)
    x = jax.random.normal(kx, (2, 4, 16, 16), jnp.float32)   # NCHW input
    params = init_params(kp, in_channels=4, filters=50)

    fwd = jax.jit(last_conv_layer)
    out = jax.block_until_ready(fwd(x, params))
    assert out.shape == (2, 50, 5, 8), out.shape             # (N, F, 16//3, 16//2)

    ref = jax.block_until_ready(_reference(x, params))
    max_err = float(jnp.max(jnp.abs(out - ref)))
    assert jnp.allclose(out, ref, rtol=5e-3, atol=5e-3), max_err

    print("KERNEL_OK")
</pallas_src>

<mosaic_0001>
module attributes {stable_mosaic.version = 11 : i64} {
  func.func @_fused_kernel(%arg0: i32, %arg1: memref<1x648x128xf32, #tpu.memory_space<vmem>>, %arg2: memref<128x128xf32, #tpu.memory_space<vmem>>, %arg3: memref<9x128x128xf32, #tpu.memory_space<vmem>>, %arg4: memref<1x128xf32, #tpu.memory_space<vmem>>, %arg5: memref<2x5x15x128xf32, #tpu.memory_space<vmem>>, %arg6: memref<656x128xf32, #tpu.memory_space<vmem>>, %arg7: memref<616x128xf32, #tpu.memory_space<vmem>>) attributes {dimension_semantics = [#tpu.dimension_semantics<parallel>], iteration_bounds = array<i64: 1>, scalar_prefetch = 0 : i64, scratch_operands = 2 : i64, tpu.core_type = #tpu.core_type<tc>, window_params = [{transform_indices = @transform_0, window_bounds = array<i64: 1, 648, 128>}, {pipeline_mode = #tpu.pipeline_mode<synchronous>, transform_indices = @transform_1, window_bounds = array<i64: 128, 128>}, {pipeline_mode = #tpu.pipeline_mode<synchronous>, transform_indices = @transform_2, window_bounds = array<i64: 9, 128, 128>}, {pipeline_mode = #tpu.pipeline_mode<synchronous>, transform_indices = @transform_3, window_bounds = array<i64: 1, 128>}, {transform_indices = @transform_4, window_bounds = array<i64: 2, 5, 15, 128>}]} {
    %cst = arith.constant 0.000000e+00 : f32
    %0 = vector.broadcast %cst : f32 to vector<8x128xf32>
    %c648 = arith.constant 648 : index
    %c0 = arith.constant 0 : index
    %1 = vector.load %arg6[%c648, %c0] : memref<656x128xf32, #tpu.memory_space<vmem>>, vector<8x128xf32>
    tpu.vector_store %arg6[%c648, %c0], %0 {strides = array<i32>} : memref<656x128xf32, #tpu.memory_space<vmem>>, vector<8x128xf32>,
    %c0_0 = arith.constant 0 : index
    %c0_1 = arith.constant 0 : index
    %c0_2 = arith.constant 0 : index
    %2 = vector.load %arg1[%c0_0, %c0_1, %c0_2] : memref<1x648x128xf32, #tpu.memory_space<vmem>>, vector<1x128x128xf32>
    %3 = vector.shape_cast %2 : vector<1x128x128xf32> to vector<128x128xf32>
    %c0_3 = arith.constant 0 : index
    %c0_4 = arith.constant 0 : index
    %4 = vector.load %arg2[%c0_3, %c0_4] : memref<128x128xf32, #tpu.memory_space<vmem>>, vector<128x128xf32>
    %cst_5 = arith.constant dense<0.000000e+00> : vector<128x128xf32>
    %5 = tpu.matmul %3, %4, %cst_5 {dimension_numbers = #tpu.dot_dimension_numbers<[1], [0], [0], [1], [0, 0, 1, 1], [], []>} : vector<128x128xf32>, vector<128x128xf32>, vector<128x128xf32> -> vector<128x128xf32>
    %cst_6 = arith.constant 0.000000e+00 : f32
    %6 = vector.broadcast %cst_6 : f32 to vector<128x128xf32>
    %7 = arith.cmpf ogt, %5, %6 : vector<128x128xf32>
    %cst_7 = arith.constant 0.00999999977 : f32
    %8 = vector.broadcast %cst_7 : f32 to vector<128x128xf32>
    %9 = arith.mulf %8, %5 : vector<128x128xf32>
    %10 = arith.select %7, %5, %9 : vector<128x128xi1>, vector<128x128xf32>
    %c0_8 = arith.constant 0 : index
    %c0_9 = arith.constant 0 : index
    %11 = vector.load %arg6[%c0_8, %c0_9] : memref<656x128xf32, #tpu.memory_space<vmem>>, vector<128x128xf32>
    tpu.vector_store %arg6[%c0_8, %c0_9], %10 {strides = array<i32>} : memref<656x128xf32, #tpu.memory_space<vmem>>, vector<128x128xf32>,
    %c0_10 = arith.constant 0 : index
    %c128 = arith.constant 128 : index
    %c0_11 = arith.constant 0 : index
    %12 = vector.load %arg1[%c0_10, %c128, %c0_11] : memref<1x648x128xf32, #tpu.memory_space<vmem>>, vector<1x128x128xf32>
    %13 = vector.shape_cast %12 : vector<1x128x128xf32> to vector<128x128xf32>
    %c0_12 = arith.constant 0 : index
    %c0_13 = arith.constant 0 : index
    %14 = vector.load %arg2[%c0_12, %c0_13] : memref<128x128xf32, #tpu.memory_space<vmem>>, vector<128x128xf32>
    %cst_14 = arith.constant dense<0.000000e+00> : vector<128x128xf32>
    %15 = tpu.matmul %13, %14, %cst_14 {dimension_numbers = #tpu.dot_dimension_numbers<[1], [0], [0], [1], [0, 0, 1, 1], [], []>} : vector<128x128xf32>, vector<128x128xf32>, vector<128x128xf32> -> vector<128x128xf32>
    %cst_15 = arith.constant 0.000000e+00 : f32
    %16 = vector.broadcast %cst_15 : f32 to vector<128x128xf32>
    %17 = arith.cmpf ogt, %15, %16 : vector<128x128xf32>
    %cst_16 = arith.constant 0.00999999977 : f32
    %18 = vector.broadcast %cst_16 : f32 to vector<128x128xf32>
    %19 = arith.mulf %18, %15 : vector<128x128xf32>
    %20 = arith.select %17, %15, %19 : vector<128x128xi1>, vector<128x128xf32>
    %c128_17 = arith.constant 128 : index
    %c0_18 = arith.constant 0 : index
    %21 = vector.load %arg6[%c128_17, %c0_18] : memref<656x128xf32, #tpu.memory_space<vmem>>, vector<128x128xf32>
    tpu.vector_store %arg6[%c128_17, %c0_18], %20 {strides = array<i32>} : memref<656x128xf32, #tpu.memory_space<vmem>>, vector<128x128xf32>,
    %c0_19 = arith.constant 0 : index
    %c256 = arith.constant 256 : index
    %c0_20 = arith.constant 0 : index
    %22 = vector.load %arg1[%c0_19, %c256, %c0_20] : memref<1x648x128xf32, #tpu.memory_space<vmem>>, vector<1x128x128xf32>
    %23 = vector.shape_cast %22 : vector<1x128x128xf32> to vector<128x128xf32>
    %c0_21 = arith.constant 0 : index
    %c0_22 = arith.constant 0 : index
    %24 = vector.load %arg2[%c0_21, %c0_22] : memref<128x128xf32, #tpu.memory_space<vmem>>, vector<128x128xf32>
    %cst_23 = arith.constant dense<0.000000e+00> : vector<128x128xf32>
    %25 = tpu.matmul %23, %24, %cst_23 {dimension_numbers = #tpu.dot_dimension_numbers<[1], [0], [0], [1], [0, 0, 1, 1], [], []>} : vector<128x128xf32>, vector<128x128xf32>, vector<128x128xf32> -> vector<128x128xf32>
    %cst_24 = arith.constant 0.000000e+00 : f32
    %26 = vector.broadcast %cst_24 : f32 to vector<128x128xf32>
    %27 = arith.cmpf ogt, %25, %26 : vector<128x128xf32>
    %cst_25 = arith.constant 0.00999999977 : f32
    %28 = vector.broadcast %cst_25 : f32 to vector<128x128xf32>
    %29 = arith.mulf %28, %25 : vector<128x128xf32>
    %30 = arith.select %27, %25, %29 : vector<128x128xi1>, vector<128x128xf32>
    %c256_26 = arith.constant 256 : index
    %c0_27 = arith.constant 0 : index
    %31 = vector.load %arg6[%c256_26, %c0_27] : memref<656x128xf32, #tpu.memory_space<vmem>>, vector<128x128xf32>
    tpu.vector_store %arg6[%c256_26, %c0_27], %30 {strides = array<i32>} : memref<656x128xf32, #tpu.memory_space<vmem>>, vector<128x128xf32>,
    %c0_28 = arith.constant 0 : index
    %c384 = arith.constant 384 : index
    %c0_29 = arith.constant 0 : index
    %32 = vector.load %arg1[%c0_28, %c384, %c0_29] : memref<1x648x128xf32, #tpu.memory_space<vmem>>, vector<1x128x128xf32>
    %33 = vector.shape_cast %32 : vector<1x128x128xf32> to vector<128x128xf32>
    %c0_30 = arith.constant 0 : index
    %c0_31 = arith.constant 0 : index
    %34 = vector.load %arg2[%c0_30, %c0_31] : memref<128x128xf32, #tpu.memory_space<vmem>>, vector<128x128xf32>
    %cst_32 = arith.constant dense<0.000000e+00> : vector<128x128xf32>
    %35 = tpu.matmul %33, %34, %cst_32 {dimension_numbers = #tpu.dot_dimension_numbers<[1], [0], [0], [1], [0, 0, 1, 1], [], []>} : vector<128x128xf32>, vector<128x128xf32>, vector<128x128xf32> -> vector<128x128xf32>
    %cst_33 = arith.constant 0.000000e+00 : f32
    %36 = vector.broadcast %cst_33 : f32 to vector<128x128xf32>
    %37 = arith.cmpf ogt, %35, %36 : vector<128x128xf32>
    %cst_34 = arith.constant 0.00999999977 : f32
    %38 = vector.broadcast %cst_34 : f32 to vector<128x128xf32>
    %39 = arith.mulf %38, %35 : vector<128x128xf32>
    %40 = arith.select %37, %35, %39 : vector<128x128xi1>, vector<128x128xf32>
    %c384_35 = arith.constant 384 : index
    %c0_36 = arith.constant 0 : index
    %41 = vector.load %arg6[%c384_35, %c0_36] : memref<656x128xf32, #tpu.memory_space<vmem>>, vector<128x128xf32>
    tpu.vector_store %arg6[%c384_35, %c0_36], %40 {strides = array<i32>} : memref<656x128xf32, #tpu.memory_space<vmem>>, vector<128x128xf32>,
    %c0_37 = arith.constant 0 : index
    %c512 = arith.constant 512 : index
    %c0_38 = arith.constant 0 : index
    %42 = vector.load %arg1[%c0_37, %c512, %c0_38] : memref<1x648x128xf32, #tpu.memory_space<vmem>>, vector<1x128x128xf32>
    %43 = vector.shape_cast %42 : vector<1x128x128xf32> to vector<128x128xf32>
    %c0_39 = arith.constant 0 : index
    %c0_40 = arith.constant 0 : index
    %44 = vector.load %arg2[%c0_39, %c0_40] : memref<128x128xf32, #tpu.memory_space<vmem>>, vector<128x128xf32>
    %cst_41 = arith.constant dense<0.000000e+00> : vector<128x128xf32>
    %45 = tpu.matmul %43, %44, %cst_41 {dimension_numbers = #tpu.dot_dimension_numbers<[1], [0], [0], [1], [0, 0, 1, 1], [], []>} : vector<128x128xf32>, vector<128x128xf32>, vector<128x128xf32> -> vector<128x128xf32>
    %cst_42 = arith.constant 0.000000e+00 : f32
    %46 = vector.broadcast %cst_42 : f32 to vector<128x128xf32>
    %47 = arith.cmpf ogt, %45, %46 : vector<128x128xf32>
    %cst_43 = arith.constant 0.00999999977 : f32
    %48 = vector.broadcast %cst_43 : f32 to vector<128x128xf32>
    %49 = arith.mulf %48, %45 : vector<128x128xf32>
    %50 = arith.select %47, %45, %49 : vector<128x128xi1>, vector<128x128xf32>
    %c512_44 = arith.constant 512 : index
    %c0_45 = arith.constant 0 : index
    %51 = vector.load %arg6[%c512_44, %c0_45] : memref<656x128xf32, #tpu.memory_space<vmem>>, vector<128x128xf32>
    tpu.vector_store %arg6[%c512_44, %c0_45], %50 {strides = array<i32>} : memref<656x128xf32, #tpu.memory_space<vmem>>, vector<128x128xf32>,
    %c0_46 = arith.constant 0 : index
    %c640 = arith.constant 640 : index
    %c0_47 = arith.constant 0 : index
    %52 = vector.load %arg1[%c0_46, %c640, %c0_47] : memref<1x648x128xf32, #tpu.memory_space<vmem>>, vector<1x8x128xf32>
    %53 = vector.shape_cast %52 : vector<1x8x128xf32> to vector<8x128xf32>
    %c0_48 = arith.constant 0 : index
    %c0_49 = arith.constant 0 : index
    %54 = vector.load %arg2[%c0_48, %c0_49] : memref<128x128xf32, #tpu.memory_space<vmem>>, vector<128x128xf32>
    %cst_50 = arith.constant dense<0.000000e+00> : vector<8x128xf32>
    %55 = tpu.matmul %53, %54, %cst_50 {dimension_numbers = #tpu.dot_dimension_numbers<[1], [0], [0], [1], [0, 0, 1, 1], [], []>} : vector<8x128xf32>, vector<128x128xf32>, vector<8x128xf32> -> vector<8x128xf32>
    %cst_51 = arith.constant 0.000000e+00 : f32
    %56 = vector.broadcast %cst_51 : f32 to vector<8x128xf32>
    %57 = arith.cmpf ogt, %55, %56 : vector<8x128xf32>
    %cst_52 = arith.constant 0.00999999977 : f32
    %58 = vector.broadcast %cst_52 : f32 to vector<8x128xf32>
    %59 = arith.mulf %58, %55 : vector<8x128xf32>
    %60 = arith.select %57, %55, %59 : vector<8x128xi1>, vector<8x128xf32>
    %c640_53 = arith.constant 640 : index
    %c0_54 = arith.constant 0 : index
    %61 = vector.load %arg6[%c640_53, %c0_54] : memref<656x128xf32, #tpu.memory_space<vmem>>, vector<8x128xf32>
    tpu.vector_store %arg6[%c640_53, %c0_54], %60 {strides = array<i32>} : memref<656x128xf32, #tpu.memory_space<vmem>>, vector<8x128xf32>,
    %c0_55 = arith.constant 0 : index
    %c0_56 = arith.constant 0 : index
    %62 = vector.load %arg4[%c0_55, %c0_56] : memref<1x128xf32, #tpu.memory_space<vmem>>, vector<1x128xf32>
    %cst_57 = arith.constant 0.000000e+00 : f32
    %63 = vector.broadcast %cst_57 : f32 to vector<128x128xf32>
    %c0_58 = arith.constant 0 : index
    %c0_59 = arith.constant 0 : index
    %64 = vector.load %arg6[%c0_58, %c0_59] : memref<656x128xf32, #tpu.memory_space<vmem>>, vector<128x128xf32>
    %c0_60 = arith.constant 0 : index
    %c0_61 = arith.constant 0 : index
    %c0_62 = arith.constant 0 : index
    %65 = vector.load %arg3[%c0_60, %c0_61, %c0_62] : memref<9x128x128xf32, #tpu.memory_space<vmem>>, vector<1x128x128xf32>
    %66 = vector.shape_cast %65 : vector<1x128x128xf32> to vector<128x128xf32>
    %cst_63 = arith.constant dense<0.000000e+00> : vector<128x128xf32>
    %67 = tpu.matmul %64, %66, %cst_63 {dimension_numbers = #tpu.dot_dimension_numbers<[1], [0], [0], [1], [0, 0, 1, 1], [], []>} : vector<128x128xf32>, vector<128x128xf32>, vector<128x128xf32> -> vector<128x128xf32>
    %68 = arith.addf %63, %67 : vector<128x128xf32>
    %c1 = arith.constant 1 : index
    %c0_64 = arith.constant 0 : index
    %69 = vector.load %arg6[%c1, %c0_64] : memref<656x128xf32, #tpu.memory_space<vmem>>, vector<128x128xf32>
    %c1_65 = arith.constant 1 : index
    %c0_66 = arith.constant 0 : index
    %c0_67 = arith.constant 0 : index
    %70 = vector.load %arg3[%c1_65, %c0_66, %c0_67] : memref<9x128x128xf32, #tpu.memory_space<vmem>>, vector<1x128x128xf32>
    %71 = vector.shape_cast %70 : vector<1x128x128xf32> to vector<128x128xf32>
    %cst_68 = arith.constant dense<0.000000e+00> : vector<128x128xf32>
    %72 = tpu.matmul %69, %71, %cst_68 {dimension_numbers = #tpu.dot_dimension_numbers<[1], [0], [0], [1], [0, 0, 1, 1], [], []>} : vector<128x128xf32>, vector<128x128xf32>, vector<128x128xf32> -> vector<128x128xf32>
    %73 = arith.addf %68, %72 : vector<128x128xf32>
    %c2 = arith.constant 2 : index
    %c0_69 = arith.constant 0 : index
    %74 = vector.load %arg6[%c2, %c0_69] : memref<656x128xf32, #tpu.memory_space<vmem>>, vector<128x128xf32>
    %c2_70 = arith.constant 2 : index
    %c0_71 = arith.constant 0 : index
    %c0_72 = arith.constant 0 : index
    %75 = vector.load %arg3[%c2_70, %c0_71, %c0_72] : memref<9x128x128xf32, #tpu.memory_space<vmem>>, vector<1x128x128xf32>
    %76 = vector.shape_cast %75 : vector<1x128x128xf32> to vector<128x128xf32>
    %cst_73 = arith.constant dense<0.000000e+00> : vector<128x128xf32>
    %77 = tpu.matmul %74, %76, %cst_73 {dimension_numbers = #tpu.dot_dimension_numbers<[1], [0], [0], [1], [0, 0, 1, 1], [], []>} : vector<128x128xf32>, vector<128x128xf32>, vector<128x128xf32> -> vector<128x128xf32>
    %78 = arith.addf %73, %77 : vector<128x128xf32>
    %c18 = arith.constant 18 : index
    %c0_74 = arith.constant 0 : index
    %79 = vector.load %arg6[%c18, %c0_74] : memref<656x128xf32, #tpu.memory_space<vmem>>, vector<128x128xf32>
    %c3 = arith.constant 3 : index
    %c0_75 = arith.constant 0 : index
    %c0_76 = arith.constant 0 : index
    %80 = vector.load %arg3[%c3, %c0_75, %c0_76] : memref<9x128x128xf32, #tpu.memory_space<vmem>>, vector<1x128x128xf32>
    %81 = vector.shape_cast %80 : vector<1x128x128xf32> to vector<128x128xf32>
    %cst_77 = arith.constant dense<0.000000e+00> : vector<128x128xf32>
    %82 = tpu.matmul %79, %81, %cst_77 {dimension_numbers = #tpu.dot_dimension_numbers<[1], [0], [0], [1], [0, 0, 1, 1], [], []>} : vector<128x128xf32>, vector<128x128xf32>, vector<128x128xf32> -> vector<128x128xf32>
    %83 = arith.addf %78, %82 : vector<128x128xf32>
    %c19 = arith.constant 19 : index
    %c0_78 = arith.constant 0 : index
    %84 = vector.load %arg6[%c19, %c0_78] : memref<656x128xf32, #tpu.memory_space<vmem>>, vector<128x128xf32>
    %c4 = arith.constant 4 : index
    %c0_79 = arith.constant 0 : index
    %c0_80 = arith.constant 0 : index
    %85 = vector.load %arg3[%c4, %c0_79, %c0_80] : memref<9x128x128xf32, #tpu.memory_space<vmem>>, vector<1x128x128xf32>
    %86 = vector.shape_cast %85 : vector<1x128x128xf32> to vector<128x128xf32>
    %cst_81 = arith.constant dense<0.000000e+00> : vector<128x128xf32>
    %87 = tpu.matmul %84, %86, %cst_81 {dimension_numbers = #tpu.dot_dimension_numbers<[1], [0], [0], [1], [0, 0, 1, 1], [], []>} : vector<128x128xf32>, vector<128x128xf32>, vector<128x128xf32> -> vector<128x128xf32>
    %88 = arith.addf %83, %87 : vector<128x128xf32>
    %c20 = arith.constant 20 : index
    %c0_82 = arith.constant 0 : index
    %89 = vector.load %arg6[%c20, %c0_82] : memref<656x128xf32, #tpu.memory_space<vmem>>, vector<128x128xf32>
    %c5 = arith.constant 5 : index
    %c0_83 = arith.constant 0 : index
    %c0_84 = arith.constant 0 : index
    %90 = vector.load %arg3[%c5, %c0_83, %c0_84] : memref<9x128x128xf32, #tpu.memory_space<vmem>>, vector<1x128x128xf32>
    %91 = vector.shape_cast %90 : vector<1x128x128xf32> to vector<128x128xf32>
    %cst_85 = arith.constant dense<0.000000e+00> : vector<128x128xf32>
    %92 = tpu.matmul %89, %91, %cst_85 {dimension_numbers = #tpu.dot_dimension_numbers<[1], [0], [0], [1], [0, 0, 1, 1], [], []>} : vector<128x128xf32>, vector<128x128xf32>, vector<128x128xf32> -> vector<128x128xf32>
    %93 = arith.addf %88, %92 : vector<128x128xf32>
    %c36 = arith.constant 36 : index
    %c0_86 = arith.constant 0 : index
    %94 = vector.load %arg6[%c36, %c0_86] : memref<656x128xf32, #tpu.memory_space<vmem>>, vector<128x128xf32>
    %c6 = arith.constant 6 : index
    %c0_87 = arith.constant 0 : index
    %c0_88 = arith.constant 0 : index
    %95 = vector.load %arg3[%c6, %c0_87, %c0_88] : memref<9x128x128xf32, #tpu.memory_space<vmem>>, vector<1x128x128xf32>
    %96 = vector.shape_cast %95 : vector<1x128x128xf32> to vector<128x128xf32>
    %cst_89 = arith.constant dense<0.000000e+00> : vector<128x128xf32>
    %97 = tpu.matmul %94, %96, %cst_89 {dimension_numbers = #tpu.dot_dimension_numbers<[1], [0], [0], [1], [0, 0, 1, 1], [], []>} : vector<128x128xf32>, vector<128x128xf32>, vector<128x128xf32> -> vector<128x128xf32>
    %98 = arith.addf %93, %97 : vector<128x128xf32>
    %c37 = arith.constant 37 : index
    %c0_90 = arith.constant 0 : index
    %99 = vector.load %arg6[%c37, %c0_90] : memref<656x128xf32, #tpu.memory_space<vmem>>, vector<128x128xf32>
    %c7 = arith.constant 7 : index
    %c0_91 = arith.constant 0 : index
    %c0_92 = arith.constant 0 : index
    %100 = vector.load %arg3[%c7, %c0_91, %c0_92] : memref<9x128x128xf32, #tpu.memory_space<vmem>>, vector<1x128x128xf32>
    %101 = vector.shape_cast %100 : vector<1x128x128xf32> to vector<128x128xf32>
    %cst_93 = arith.constant dense<0.000000e+00> : vector<128x128xf32>
    %102 = tpu.matmul %99, %101, %cst_93 {dimension_numbers = #tpu.dot_dimension_numbers<[1], [0], [0], [1], [0, 0, 1, 1], [], []>} : vector<128x128xf32>, vector<128x128xf32>, vector<128x128xf32> -> vector<128x128xf32>
    %103 = arith.addf %98, %102 : vector<128x128xf32>
    %c38 = arith.constant 38 : index
    %c0_94 = arith.constant 0 : index
    %104 = vector.load %arg6[%c38, %c0_94] : memref<656x128xf32, #tpu.memory_space<vmem>>, vector<128x128xf32>
    %c8 = arith.constant 8 : index
    %c0_95 = arith.constant 0 : index
    %c0_96 = arith.constant 0 : index
    %105 = vector.load %arg3[%c8, %c0_95, %c0_96] : memref<9x128x128xf32, #tpu.memory_space<vmem>>, vector<1x128x128xf32>
    %106 = vector.shape_cast %105 : vector<1x128x128xf32> to vector<128x128xf32>
    %cst_97 = arith.constant dense<0.000000e+00> : vector<128x128xf32>
    %107 = tpu.matmul %104, %106, %cst_97 {dimension_numbers = #tpu.dot_dimension_numbers<[1], [0], [0], [1], [0, 0, 1, 1], [], []>} : vector<128x128xf32>, vector<128x128xf32>, vector<128x128xf32> -> vector<128x128xf32>
    %108 = arith.addf %103, %107 : vector<128x128xf32>
    %109 = vector.broadcast %62 : vector<1x128xf32> to vector<128x128xf32>
    %110 = arith.addf %108, %109 : vector<128x128xf32>
    %cst_98 = arith.constant 0.000000e+00 : f32
    %111 = vector.broadcast %cst_98 : f32 to vector<128x128xf32>
    %112 = arith.cmpf ogt, %110, %111 : vector<128x128xf32>
    %cst_99 = arith.constant 0.00999999977 : f32
    %113 = vector.broadcast %cst_99 : f32 to vector<128x128xf32>
    %114 = arith.mulf %113, %110 : vector<128x128xf32>
    %115 = arith.select %112, %110, %114 : vector<128x128xi1>, vector<128x128xf32>
    %c0_100 = arith.constant 0 : index
    %c0_101 = arith.constant 0 : index
    %116 = vector.load %arg7[%c0_100, %c0_101] : memref<616x128xf32, #tpu.memory_space<vmem>>, vector<128x128xf32>
    tpu.vector_store %arg7[%c0_100, %c0_101], %115 {strides = array<i32>} : memref<616x128xf32, #tpu.memory_space<vmem>>, vector<128x128xf32>,
    %cst_102 = arith.constant 0.000000e+00 : f32
    %117 = vector.broadcast %cst_102 : f32 to vector<128x128xf32>
    %c128_103 = arith.constant 128 : index
    %c0_104 = arith.constant 0 : index
    %118 = vector.load %arg6[%c128_103, %c0_104] : memref<656x128xf32, #tpu.memory_space<vmem>>, vector<128x128xf32>
    %c0_105 = arith.constant 0 : index
    %c0_106 = arith.constant 0 : index
    %c0_107 = arith.constant 0 : index
    %119 = vector.load %arg3[%c0_105, %c0_106, %c0_107] : memref<9x128x128xf32, #tpu.memory_space<vmem>>, vector<1x128x128xf32>
    %120 = vector.shape_cast %119 : vector<1x128x128xf32> to vector<128x128xf32>
    %cst_108 = arith.constant dense<0.000000e+00> : vector<128x128xf32>
    %121 = tpu.matmul %118, %120, %cst_108 {dimension_numbers = #tpu.dot_dimension_numbers<[1], [0], [0], [1], [0, 0, 1, 1], [], []>} : vector<128x128xf32>, vector<128x128xf32>, vector<128x128xf32> -> vector<128x128xf32>
    %122 = arith.addf %117, %121 : vector<128x128xf32>
    %c129 = arith.constant 129 : index
    %c0_109 = arith.constant 0 : index
    %123 = vector.load %arg6[%c129, %c0_109] : memref<656x128xf32, #tpu.memory_space<vmem>>, vector<128x128xf32>
    %c1_110 = arith.constant 1 : index
    %c0_111 = arith.constant 0 : index
    %c0_112 = arith.constant 0 : index
    %124 = vector.load %arg3[%c1_110, %c0_111, %c0_112] : memref<9x128x128xf32, #tpu.memory_space<vmem>>, vector<1x128x128xf32>
    %125 = vector.shape_cast %124 : vector<1x128x128xf32> to vector<128x128xf32>
    %cst_113 = arith.constant dense<0.000000e+00> : vector<128x128xf32>
    %126 = tpu.matmul %123, %125, %cst_113 {dimension_numbers = #tpu.dot_dimension_numbers<[1], [0], [0], [1], [0, 0, 1, 1], [], []>} : vector<128x128xf32>, vector<128x128xf32>, vector<128x128xf32> -> vector<128x128xf32>
    %127 = arith.addf %122, %126 : vector<128x128xf32>
    %c130 = arith.constant 130 : index
    %c0_114 = arith.constant 0 : index
    %128 = vector.load %arg6[%c130, %c0_114] : memref<656x128xf32, #tpu.memory_space<vmem>>, vector<128x128xf32>
    %c2_115 = arith.constant 2 : index
    %c0_116 = arith.constant 0 : index
    %c0_117 = arith.constant 0 : index
    %129 = vector.load %arg3[%c2_115, %c0_116, %c0_117] : memref<9x128x128xf32, #tpu.memory_space<vmem>>, vector<1x128x128xf32>
    %130 = vector.shape_cast %129 : vector<1x128x128xf32> to vector<128x128xf32>
    %cst_118 = arith.constant dense<0.000000e+00> : vector<128x128xf32>
    %131 = tpu.matmul %128, %130, %cst_118 {dimension_numbers = #tpu.dot_dimension_numbers<[1], [0], [0], [1], [0, 0, 1, 1], [], []>} : vector<128x128xf32>, vector<128x128xf32>, vector<128x128xf32> -> vector<128x128xf32>
    %132 = arith.addf %127, %131 : vector<128x128xf32>
    %c146 = arith.constant 146 : index
    %c0_119 = arith.constant 0 : index
    %133 = vector.load %arg6[%c146, %c0_119] : memref<656x128xf32, #tpu.memory_space<vmem>>, vector<128x128xf32>
    %c3_120 = arith.constant 3 : index
    %c0_121 = arith.constant 0 : index
    %c0_122 = arith.constant 0 : index
    %134 = vector.load %arg3[%c3_120, %c0_121, %c0_122] : memref<9x128x128xf32, #tpu.memory_space<vmem>>, vector<1x128x128xf32>
    %135 = vector.shape_cast %134 : vector<1x128x128xf32> to vector<128x128xf32>
    %cst_123 = arith.constant dense<0.000000e+00> : vector<128x128xf32>
    %136 = tpu.matmul %133, %135, %cst_123 {dimension_numbers = #tpu.dot_dimension_numbers<[1], [0], [0], [1], [0, 0, 1, 1], [], []>} : vector<128x128xf32>, vector<128x128xf32>, vector<128x128xf32> -> vector<128x128xf32>
    %137 = arith.addf %132, %136 : vector<128x128xf32>
    %c147 = arith.constant 147 : index
    %c0_124 = arith.constant 0 : index
    %138 = vector.load %arg6[%c147, %c0_124] : memref<656x128xf32, #tpu.memory_space<vmem>>, vector<128x128xf32>
    %c4_125 = arith.constant 4 : index
    %c0_126 = arith.constant 0 : index
    %c0_127 = arith.constant 0 : index
    %139 = vector.load %arg3[%c4_125, %c0_126, %c0_127] : memref<9x128x128xf32, #tpu.memory_space<vmem>>, vector<1x128x128xf32>
    %140 = vector.shape_cast %139 : vector<1x128x128xf32> to vector<128x128xf32>
    %cst_128 = arith.constant dense<0.000000e+00> : vector<128x128xf32>
    %141 = tpu.matmul %138, %140, %cst_128 {dimension_numbers = #tpu.dot_dimension_numbers<[1], [0], [0], [1], [0, 0, 1, 1], [], []>} : vector<128x128xf32>, vector<128x128xf32>, vector<128x128xf32> -> vector<128x128xf32>
    %142 = arith.addf %137, %141 : vector<128x128xf32>
    %c148 = arith.constant 148 : index
    %c0_129 = arith.constant 0 : index
    %143 = vector.load %arg6[%c148, %c0_129] : memref<656x128xf32, #tpu.memory_space<vmem>>, vector<128x128xf32>
    %c5_130 = arith.constant 5 : index
    %c0_131 = arith.constant 0 : index
    %c0_132 = arith.constant 0 : index
    %144 = vector.load %arg3[%c5_130, %c0_131, %c0_132] : memref<9x128x128xf32, #tpu.memory_space<vmem>>, vector<1x128x128xf32>
    %145 = vector.shape_cast %144 : vector<1x128x128xf32> to vector<128x128xf32>
    %cst_133 = arith.constant dense<0.000000e+00> : vector<128x128xf32>
    %146 = tpu.matmul %143, %145, %cst_133 {dimension_numbers = #tpu.dot_dimension_numbers<[1], [0], [0], [1], [0, 0, 1, 1], [], []>} : vector<128x128xf32>, vector<128x128xf32>, vector<128x128xf32> -> vector<128x128xf32>
    %147 = arith.addf %142, %146 : vector<128x128xf32>
    %c164 = arith.constant 164 : index
    %c0_134 = arith.constant 0 : index
    %148 = vector.load %arg6[%c164, %c0_134] : memref<656x128xf32, #tpu.memory_space<vmem>>, vector<128x128xf32>
    %c6_135 = arith.constant 6 : index
    %c0_136 = arith.constant 0 : index
    %c0_137 = arith.constant 0 : index
    %149 = vector.load %arg3[%c6_135, %c0_136, %c0_137] : memref<9x128x128xf32, #tpu.memory_space<vmem>>, vector<1x128x128xf32>
    %150 = vector.shape_cast %149 : vector<1x128x128xf32> to vector<128x128xf32>
    %cst_138 = arith.constant dense<0.000000e+00> : vector<128x128xf32>
    %151 = tpu.matmul %148, %150, %cst_138 {dimension_numbers = #tpu.dot_dimension_numbers<[1], [0], [0], [1], [0, 0, 1, 1], [], []>} : vector<128x128xf32>, vector<128x128xf32>, vector<128x128xf32> -> vector<128x128xf32>
    %152 = arith.addf %147, %151 : vector<128x128xf32>
    %c165 = arith.constant 165 : index
    %c0_139 = arith.constant 0 : index
    %153 = vector.load %arg6[%c165, %c0_139] : memref<656x128xf32, #tpu.memory_space<vmem>>, vector<128x128xf32>
    %c7_140 = arith.constant 7 : index
    %c0_141 = arith.constant 0 : index
    %c0_142 = arith.constant 0 : index
    %154 = vector.load %arg3[%c7_140, %c0_141, %c0_142] : memref<9x128x128xf32, #tpu.memory_space<vmem>>, vector<1x128x128xf32>
    %155 = vector.shape_cast %154 : vector<1x128x128xf32> to vector<128x128xf32>
    %cst_143 = arith.constant dense<0.000000e+00> : vector<128x128xf32>
    %156 = tpu.matmul %153, %155, %cst_143 {dimension_numbers = #tpu.dot_dimension_numbers<[1], [0], [0], [1], [0, 0, 1, 1], [], []>} : vector<128x128xf32>, vector<128x128xf32>, vector<128x128xf32> -> vector<128x128xf32>
    %157 = arith.addf %152, %156 : vector<128x128xf32>
    %c166 = arith.constant 166 : index
    %c0_144 = arith.constant 0 : index
    %158 = vector.load %arg6[%c166, %c0_144] : memref<656x128xf32, #tpu.memory_space<vmem>>, vector<128x128xf32>
    %c8_145 = arith.constant 8 : index
    %c0_146 = arith.constant 0 : index
    %c0_147 = arith.constant 0 : index
    %159 = vector.load %arg3[%c8_145, %c0_146, %c0_147] : memref<9x128x128xf32, #tpu.memory_space<vmem>>, vector<1x128x128xf32>
    %160 = vector.shape_cast %159 : vector<1x128x128xf32> to vector<128x128xf32>
    %cst_148 = arith.constant dense<0.000000e+00> : vector<128x128xf32>
    %161 = tpu.matmul %158, %160, %cst_148 {dimension_numbers = #tpu.dot_dimension_numbers<[1], [0], [0], [1], [0, 0, 1, 1], [], []>} : vector<128x128xf32>, vector<128x128xf32>, vector<128x128xf32> -> vector<128x128xf32>
    %162 = arith.addf %157, %161 : vector<128x128xf32>
    %163 = vector.broadcast %62 : vector<1x128xf32> to vector<128x128xf32>
    %164 = arith.addf %162, %163 : vector<128x128xf32>
    %cst_149 = arith.constant 0.000000e+00 : f32
    %165 = vector.broadcast %cst_149 : f32 to vector<128x128xf32>
    %166 = arith.cmpf ogt, %164, %165 : vector<128x128xf32>
    %cst_150 = arith.constant 0.00999999977 : f32
    %167 = vector.broadcast %cst_150 : f32 to vector<128x128xf32>
    %168 = arith.mulf %167, %164 : vector<128x128xf32>
    %169 = arith.select %166, %164, %168 : vector<128x128xi1>, vector<128x128xf32>
    %c128_151 = arith.constant 128 : index
    %c0_152 = arith.constant 0 : index
    %170 = vector.load %arg7[%c128_151, %c0_152] : memref<616x128xf32, #tpu.memory_space<vmem>>, vector<128x128xf32>
    tpu.vector_store %arg7[%c128_151, %c0_152], %169 {strides = array<i32>} : memref<616x128xf32, #tpu.memory_space<vmem>>, vector<128x128xf32>,
    %cst_153 = arith.constant 0.000000e+00 : f32
    %171 = vector.broadcast %cst_153 : f32 to vector<128x128xf32>
    %c256_154 = arith.constant 256 : index
    %c0_155 = arith.constant 0 : index
    %172 = vector.load %arg6[%c256_154, %c0_155] : memref<656x128xf32, #tpu.memory_space<vmem>>, vector<128x128xf32>
    %c0_156 = arith.constant 0 : index
    %c0_157 = arith.constant 0 : index
    %c0_158 = arith.constant 0 : index
    %173 = vector.load %arg3[%c0_156, %c0_157, %c0_158] : memref<9x128x128xf32, #tpu.memory_space<vmem>>, vector<1x128x128xf32>
    %174 = vector.shape_cast %173 : vector<1x128x128xf32> to vector<128x128xf32>
    %cst_159 = arith.constant dense<0.000000e+00> : vector<128x128xf32>
    %175 = tpu.matmul %172, %174, %cst_159 {dimension_numbers = #tpu.dot_dimension_numbers<[1], [0], [0], [1], [0, 0, 1, 1], [], []>} : vector<128x128xf32>, vector<128x128xf32>, vector<128x128xf32> -> vector<128x128xf32>
    %176 = arith.addf %171, %175 : vector<128x128xf32>
    %c257 = arith.constant 257 : index
    %c0_160 = arith.constant 0 : index
    %177 = vector.load %arg6[%c257, %c0_160] : memref<656x128xf32, #tpu.memory_space<vmem>>, vector<128x128xf32>
    %c1_161 = arith.constant 1 : index
    %c0_162 = arith.constant 0 : index
    %c0_163 = arith.constant 0 : index
    %178 = vector.load %arg3[%c1_161, %c0_162, %c0_163] : memref<9x128x128xf32, #tpu.memory_space<vmem>>, vector<1x128x128xf32>
    %179 = vector.shape_cast %178 : vector<1x128x128xf32> to vector<128x128xf32>
    %cst_164 = arith.constant dense<0.000000e+00> : vector<128x128xf32>
    %180 = tpu.matmul %177, %179, %cst_164 {dimension_numbers = #tpu.dot_dimension_numbers<[1], [0], [0], [1], [0, 0, 1, 1], [], []>} : vector<128x128xf32>, vector<128x128xf32>, vector<128x128xf32> -> vector<128x128xf32>
    %181 = arith.addf %176, %180 : vector<128x128xf32>
    %c258 = arith.constant 258 : index
    %c0_165 = arith.constant 0 : index
    %182 = vector.load %arg6[%c258, %c0_165] : memref<656x128xf32, #tpu.memory_space<vmem>>, vector<128x128xf32>
    %c2_166 = arith.constant 2 : index
    %c0_167 = arith.constant 0 : index
    %c0_168 = arith.constant 0 : index
    %183 = vector.load %arg3[%c2_166, %c0_167, %c0_168] : memref<9x128x128xf32, #tpu.memory_space<vmem>>, vector<1x128x128xf32>
    %184 = vector.shape_cast %183 : vector<1x128x128xf32> to vector<128x128xf32>
    %cst_169 = arith.constant dense<0.000000e+00> : vector<128x128xf32>
    %185 = tpu.matmul %182, %184, %cst_169 {dimension_numbers = #tpu.dot_dimension_numbers<[1], [0], [0], [1], [0, 0, 1, 1], [], []>} : vector<128x128xf32>, vector<128x128xf32>, vector<128x128xf32> -> vector<128x128xf32>
    %186 = arith.addf %181, %185 : vector<128x128xf32>
    %c274 = arith.constant 274 : index
    %c0_170 = arith.constant 0 : index
    %187 = vector.load %arg6[%c274, %c0_170] : memref<656x128xf32, #tpu.memory_space<vmem>>, vector<128x128xf32>
    %c3_171 = arith.constant 3 : index
    %c0_172 = arith.constant 0 : index
    %c0_173 = arith.constant 0 : index
    %188 = vector.load %arg3[%c3_171, %c0_172, %c0_173] : memref<9x128x128xf32, #tpu.memory_space<vmem>>, vector<1x128x128xf32>
    %189 = vector.shape_cast %188 : vector<1x128x128xf32> to vector<128x128xf32>
    %cst_174 = arith.constant dense<0.000000e+00> : vector<128x128xf32>
    %190 = tpu.matmul %187, %189, %cst_174 {dimension_numbers = #tpu.dot_dimension_numbers<[1], [0], [0], [1], [0, 0, 1, 1], [], []>} : vector<128x128xf32>, vector<128x128xf32>, vector<128x128xf32> -> vector<128x128xf32>
    %191 = arith.addf %186, %190 : vector<128x128xf32>
    %c275 = arith.constant 275 : index
    %c0_175 = arith.constant 0 : index
    %192 = vector.load %arg6[%c275, %c0_175] : memref<656x128xf32, #tpu.memory_space<vmem>>, vector<128x128xf32>
    %c4_176 = arith.constant 4 : index
    %c0_177 = arith.constant 0 : index
    %c0_178 = arith.constant 0 : index
    %193 = vector.load %arg3[%c4_176, %c0_177, %c0_178] : memref<9x128x128xf32, #tpu.memory_space<vmem>>, vector<1x128x128xf32>
    %194 = vector.shape_cast %193 : vector<1x128x128xf32> to vector<128x128xf32>
    %cst_179 = arith.constant dense<0.000000e+00> : vector<128x128xf32>
    %195 = tpu.matmul %192, %194, %cst_179 {dimension_numbers = #tpu.dot_dimension_numbers<[1], [0], [0], [1], [0, 0, 1, 1], [], []>} : vector<128x128xf32>, vector<128x128xf32>, vector<128x128xf32> -> vector<128x128xf32>
    %196 = arith.addf %191, %195 : vector<128x128xf32>
    %c276 = arith.constant 276 : index
    %c0_180 = arith.constant 0 : index
    %197 = vector.load %arg6[%c276, %c0_180] : memref<656x128xf32, #tpu.memory_space<vmem>>, vector<128x128xf32>
    %c5_181 = arith.constant 5 : index
    %c0_182 = arith.constant 0 : index
    %c0_183 = arith.constant 0 : index
    %198 = vector.load %arg3[%c5_181, %c0_182, %c0_183] : memref<9x128x128xf32, #tpu.memory_space<vmem>>, vector<1x128x128xf32>
    %199 = vector.shape_cast %198 : vector<1x128x128xf32> to vector<128x128xf32>
    %cst_184 = arith.constant dense<0.000000e+00> : vector<128x128xf32>
    %200 = tpu.matmul %197, %199, %cst_184 {dimension_numbers = #tpu.dot_dimension_numbers<[1], [0], [0], [1], [0, 0, 1, 1], [], []>} : vector<128x128xf32>, vector<128x128xf32>, vector<128x128xf32> -> vector<128x128xf32>
    %201 = arith.addf %196, %200 : vector<128x128xf32>
    %c292 = arith.constant 292 : index
    %c0_185 = arith.constant 0 : index
    %202 = vector.load %arg6[%c292, %c0_185] : memref<656x128xf32, #tpu.memory_space<vmem>>, vector<128x128xf32>
    %c6_186 = arith.constant 6 : index
    %c0_187 = arith.constant 0 : index
    %c0_188 = arith.constant 0 : index
    %203 = vector.load %arg3[%c6_186, %c0_187, %c0_188] : memref<9x128x128xf32, #tpu.memory_space<vmem>>, vector<1x128x128xf32>
    %204 = vector.shape_cast %203 : vector<1x128x128xf32> to vector<128x128xf32>
    %cst_189 = arith.constant dense<0.000000e+00> : vector<128x128xf32>
    %205 = tpu.matmul %202, %204, %cst_189 {dimension_numbers = #tpu.dot_dimension_numbers<[1], [0], [0], [1], [0, 0, 1, 1], [], []>} : vector<128x128xf32>, vector<128x128xf32>, vector<128x128xf32> -> vector<128x128xf32>
    %206 = arith.addf %201, %205 : vector<128x128xf32>
    %c293 = arith.constant 293 : index
    %c0_190 = arith.constant 0 : index
    %207 = vector.load %arg6[%c293, %c0_190] : memref<656x128xf32, #tpu.memory_space<vmem>>, vector<128x128xf32>
    %c7_191 = arith.constant 7 : index
    %c0_192 = arith.constant 0 : index
    %c0_193 = arith.constant 0 : index
    %208 = vector.load %arg3[%c7_191, %c0_192, %c0_193] : memref<9x128x128xf32, #tpu.memory_space<vmem>>, vector<1x128x128xf32>
    %209 = vector.shape_cast %208 : vector<1x128x128xf32> to vector<128x128xf32>
    %cst_194 = arith.constant dense<0.000000e+00> : vector<128x128xf32>
    %210 = tpu.matmul %207, %209, %cst_194 {dimension_numbers = #tpu.dot_dimension_numbers<[1], [0], [0], [1], [0, 0, 1, 1], [], []>} : vector<128x128xf32>, vector<128x128xf32>, vector<128x128xf32> -> vector<128x128xf32>
    %211 = arith.addf %206, %210 : vector<128x128xf32>
    %c294 = arith.constant 294 : index
    %c0_195 = arith.constant 0 : index
    %212 = vector.load %arg6[%c294, %c0_195] : memref<656x128xf32, #tpu.memory_space<vmem>>, vector<128x128xf32>
    %c8_196 = arith.constant 8 : index
    %c0_197 = arith.constant 0 : index
    %c0_198 = arith.constant 0 : index
    %213 = vector.load %arg3[%c8_196, %c0_197, %c0_198] : memref<9x128x128xf32, #tpu.memory_space<vmem>>, vector<1x128x128xf32>
    %214 = vector.shape_cast %213 : vector<1x128x128xf32> to vector<128x128xf32>
    %cst_199 = arith.constant dense<0.000000e+00> : vector<128x128xf32>
    %215 = tpu.matmul %212, %214, %cst_199 {dimension_numbers = #tpu.dot_dimension_numbers<[1], [0], [0], [1], [0, 0, 1, 1], [], []>} : vector<128x128xf32>, vector<128x128xf32>, vector<128x128xf32> -> vector<128x128xf32>
    %216 = arith.addf %211, %215 : vector<128x128xf32>
    %217 = vector.broadcast %62 : vector<1x128xf32> to vector<128x128xf32>
    %218 = arith.addf %216, %217 : vector<128x128xf32>
    %cst_200 = arith.constant 0.000000e+00 : f32
    %219 = vector.broadcast %cst_200 : f32 to vector<128x128xf32>
    %220 = arith.cmpf ogt, %218, %219 : vector<128x128xf32>
    %cst_201 = arith.constant 0.00999999977 : f32
    %221 = vector.broadcast %cst_201 : f32 to vector<128x128xf32>
    %222 = arith.mulf %221, %218 : vector<128x128xf32>
    %223 = arith.select %220, %218, %222 : vector<128x128xi1>, vector<128x128xf32>
    %c256_202 = arith.constant 256 : index
    %c0_203 = arith.constant 0 : index
    %224 = vector.load %arg7[%c256_202, %c0_203] : memref<616x128xf32, #tpu.memory_space<vmem>>, vector<128x128xf32>
    tpu.vector_store %arg7[%c256_202, %c0_203], %223 {strides = array<i32>} : memref<616x128xf32, #tpu.memory_space<vmem>>, vector<128x128xf32>,
    %cst_204 = arith.constant 0.000000e+00 : f32
    %225 = vector.broadcast %cst_204 : f32 to vector<128x128xf32>
    %c384_205 = arith.constant 384 : index
    %c0_206 = arith.constant 0 : index
    %226 = vector.load %arg6[%c384_205, %c0_206] : memref<656x128xf32, #tpu.memory_space<vmem>>, vector<128x128xf32>
    %c0_207 = arith.constant 0 : index
    %c0_208 = arith.constant 0 : index
    %c0_209 = arith.constant 0 : index
    %227 = vector.load %arg3[%c0_207, %c0_208, %c0_209] : memref<9x128x128xf32, #tpu.memory_space<vmem>>, vector<1x128x128xf32>
    %228 = vector.shape_cast %227 : vector<1x128x128xf32> to vector<128x128xf32>
    %cst_210 = arith.constant dense<0.000000e+00> : vector<128x128xf32>
    %229 = tpu.matmul %226, %228, %cst_210 {dimension_numbers = #tpu.dot_dimension_numbers<[1], [0], [0], [1], [0, 0, 1, 1], [], []>} : vector<128x128xf32>, vector<128x128xf32>, vector<128x128xf32> -> vector<128x128xf32>
    %230 = arith.addf %225, %229 : vector<128x128xf32>
    %c385 = arith.constant 385 : index
    %c0_211 = arith.constant 0 : index
    %231 = vector.load %arg6[%c385, %c0_211] : memref<656x128xf32, #tpu.memory_space<vmem>>, vector<128x128xf32>
    %c1_212 = arith.constant 1 : index
    %c0_213 = arith.constant 0 : index
    %c0_214 = arith.constant 0 : index
    %232 = vector.load %arg3[%c1_212, %c0_213, %c0_214] : memref<9x128x128xf32, #tpu.memory_space<vmem>>, vector<1x128x128xf32>
    %233 = vector.shape_cast %232 : vector<1x128x128xf32> to vector<128x128xf32>
    %cst_215 = arith.constant dense<0.000000e+00> : vector<128x128xf32>
    %234 = tpu.matmul %231, %233, %cst_215 {dimension_numbers = #tpu.dot_dimension_numbers<[1], [0], [0], [1], [0, 0, 1, 1], [], []>} : vector<128x128xf32>, vector<128x128xf32>, vector<128x128xf32> -> vector<128x128xf32>
    %235 = arith.addf %230, %234 : vector<128x128xf32>
    %c386 = arith.constant 386 : index
    %c0_216 = arith.constant 0 : index
    %236 = vector.load %arg6[%c386, %c0_216] : memref<656x128xf32, #tpu.memory_space<vmem>>, vector<128x128xf32>
    %c2_217 = arith.constant 2 : index
    %c0_218 = arith.constant 0 : index
    %c0_219 = arith.constant 0 : index
    %237 = vector.load %arg3[%c2_217, %c0_218, %c0_219] : memref<9x128x128xf32, #tpu.memory_space<vmem>>, vector<1x128x128xf32>
    %238 = vector.shape_cast %237 : vector<1x128x128xf32> to vector<128x128xf32>
    %cst_220 = arith.constant dense<0.000000e+00> : vector<128x128xf32>
    %239 = tpu.matmul %236, %238, %cst_220 {dimension_numbers = #tpu.dot_dimension_numbers<[1], [0], [0], [1], [0, 0, 1, 1], [], []>} : vector<128x128xf32>, vector<128x128xf32>, vector<128x128xf32> -> vector<128x128xf32>
    %240 = arith.addf %235, %239 : vector<128x128xf32>
    %c402 = arith.constant 402 : index
    %c0_221 = arith.constant 0 : index
    %241 = vector.load %arg6[%c402, %c0_221] : memref<656x128xf32, #tpu.memory_space<vmem>>, vector<128x128xf32>
    %c3_222 = arith.constant 3 : index
    %c0_223 = arith.constant 0 : index
    %c0_224 = arith.constant 0 : index
    %242 = vector.load %arg3[%c3_222, %c0_223, %c0_224] : memref<9x128x128xf32, #tpu.memory_space<vmem>>, vector<1x128x128xf32>
    %243 = vector.shape_cast %242 : vector<1x128x128xf32> to vector<128x128xf32>
    %cst_225 = arith.constant dense<0.000000e+00> : vector<128x128xf32>
    %244 = tpu.matmul %241, %243, %cst_225 {dimension_numbers = #tpu.dot_dimension_numbers<[1], [0], [0], [1], [0, 0, 1, 1], [], []>} : vector<128x128xf32>, vector<128x128xf32>, vector<128x128xf32> -> vector<128x128xf32>
    %245 = arith.addf %240, %244 : vector<128x128xf32>
    %c403 = arith.constant 403 : index
    %c0_226 = arith.constant 0 : index
    %246 = vector.load %arg6[%c403, %c0_226] : memref<656x128xf32, #tpu.memory_space<vmem>>, vector<128x128xf32>
    %c4_227 = arith.constant 4 : index
    %c0_228 = arith.constant 0 : index
    %c0_229 = arith.constant 0 : index
    %247 = vector.load %arg3[%c4_227, %c0_228, %c0_229] : memref<9x128x128xf32, #tpu.memory_space<vmem>>, vector<1x128x128xf32>
    %248 = vector.shape_cast %247 : vector<1x128x128xf32> to vector<128x128xf32>
    %cst_230 = arith.constant dense<0.000000e+00> : vector<128x128xf32>
    %249 = tpu.matmul %246, %248, %cst_230 {dimension_numbers = #tpu.dot_dimension_numbers<[1], [0], [0], [1], [0, 0, 1, 1], [], []>} : vector<128x128xf32>, vector<128x128xf32>, vector<128x128xf32> -> vector<128x128xf32>
    %250 = arith.addf %245, %249 : vector<128x128xf32>
    %c404 = arith.constant 404 : index
    %c0_231 = arith.constant 0 : index
    %251 = vector.load %arg6[%c404, %c0_231] : memref<656x128xf32, #tpu.memory_space<vmem>>, vector<128x128xf32>
    %c5_232 = arith.constant 5 : index
    %c0_233 = arith.constant 0 : index
    %c0_234 = arith.constant 0 : index
    %252 = vector.load %arg3[%c5_232, %c0_233, %c0_234] : memref<9x128x128xf32, #tpu.memory_space<vmem>>, vector<1x128x128xf32>
    %253 = vector.shape_cast %252 : vector<1x128x128xf32> to vector<128x128xf32>
    %cst_235 = arith.constant dense<0.000000e+00> : vector<128x128xf32>
    %254 = tpu.matmul %251, %253, %cst_235 {dimension_numbers = #tpu.dot_dimension_numbers<[1], [0], [0], [1], [0, 0, 1, 1], [], []>} : vector<128x128xf32>, vector<128x128xf32>, vector<128x128xf32> -> vector<128x128xf32>
    %255 = arith.addf %250, %254 : vector<128x128xf32>
    %c420 = arith.constant 420 : index
    %c0_236 = arith.constant 0 : index
    %256 = vector.load %arg6[%c420, %c0_236] : memref<656x128xf32, #tpu.memory_space<vmem>>, vector<128x128xf32>
    %c6_237 = arith.constant 6 : index
    %c0_238 = arith.constant 0 : index
    %c0_239 = arith.constant 0 : index
    %257 = vector.load %arg3[%c6_237, %c0_238, %c0_239] : memref<9x128x128xf32, #tpu.memory_space<vmem>>, vector<1x128x128xf32>
    %258 = vector.shape_cast %257 : vector<1x128x128xf32> to vector<128x128xf32>
    %cst_240 = arith.constant dense<0.000000e+00> : vector<128x128xf32>
    %259 = tpu.matmul %256, %258, %cst_240 {dimension_numbers = #tpu.dot_dimension_numbers<[1], [0], [0], [1], [0, 0, 1, 1], [], []>} : vector<128x128xf32>, vector<128x128xf32>, vector<128x128xf32> -> vector<128x128xf32>
    %260 = arith.addf %255, %259 : vector<128x128xf32>
    %c421 = arith.constant 421 : index
    %c0_241 = arith.constant 0 : index
    %261 = vector.load %arg6[%c421, %c0_241] : memref<656x128xf32, #tpu.memory_space<vmem>>, vector<128x128xf32>
    %c7_242 = arith.constant 7 : index
    %c0_243 = arith.constant 0 : index
    %c0_244 = arith.constant 0 : index
    %262 = vector.load %arg3[%c7_242, %c0_243, %c0_244] : memref<9x128x128xf32, #tpu.memory_space<vmem>>, vector<1x128x128xf32>
    %263 = vector.shape_cast %262 : vector<1x128x128xf32> to vector<128x128xf32>
    %cst_245 = arith.constant dense<0.000000e+00> : vector<128x128xf32>
    %264 = tpu.matmul %261, %263, %cst_245 {dimension_numbers = #tpu.dot_dimension_numbers<[1], [0], [0], [1], [0, 0, 1, 1], [], []>} : vector<128x128xf32>, vector<128x128xf32>, vector<128x128xf32> -> vector<128x128xf32>
    %265 = arith.addf %260, %264 : vector<128x128xf32>
    %c422 = arith.constant 422 : index
    %c0_246 = arith.constant 0 : index
    %266 = vector.load %arg6[%c422, %c0_246] : memref<656x128xf32, #tpu.memory_space<vmem>>, vector<128x128xf32>
    %c8_247 = arith.constant 8 : index
    %c0_248 = arith.constant 0 : index
    %c0_249 = arith.constant 0 : index
    %267 = vector.load %arg3[%c8_247, %c0_248, %c0_249] : memref<9x128x128xf32, #tpu.memory_space<vmem>>, vector<1x128x128xf32>
    %268 = vector.shape_cast %267 : vector<1x128x128xf32> to vector<128x128xf32>
    %cst_250 = arith.constant dense<0.000000e+00> : vector<128x128xf32>
    %269 = tpu.matmul %266, %268, %cst_250 {dimension_numbers = #tpu.dot_dimension_numbers<[1], [0], [0], [1], [0, 0, 1, 1], [], []>} : vector<128x128xf32>, vector<128x128xf32>, vector<128x128xf32> -> vector<128x128xf32>
    %270 = arith.addf %265, %269 : vector<128x128xf32>
    %271 = vector.broadcast %62 : vector<1x128xf32> to vector<128x128xf32>
    %272 = arith.addf %270, %271 : vector<128x128xf32>
    %cst_251 = arith.constant 0.000000e+00 : f32
    %273 = vector.broadcast %cst_251 : f32 to vector<128x128xf32>
    %274 = arith.cmpf ogt, %272, %273 : vector<128x128xf32>
    %cst_252 = arith.constant 0.00999999977 : f32
    %275 = vector.broadcast %cst_252 : f32 to vector<128x128xf32>
    %276 = arith.mulf %275, %272 : vector<128x128xf32>
    %277 = arith.select %274, %272, %276 : vector<128x128xi1>, vector<128x128xf32>
    %c384_253 = arith.constant 384 : index
    %c0_254 = arith.constant 0 : index
    %278 = vector.load %arg7[%c384_253, %c0_254] : memref<616x128xf32, #tpu.memory_space<vmem>>, vector<128x128xf32>
    tpu.vector_store %arg7[%c384_253, %c0_254], %277 {strides = array<i32>} : memref<616x128xf32, #tpu.memory_space<vmem>>, vector<128x128xf32>,
    %cst_255 = arith.constant 0.000000e+00 : f32
    %279 = vector.broadcast %cst_255 : f32 to vector<104x128xf32>
    %c512_256 = arith.constant 512 : index
    %c0_257 = arith.constant 0 : index
    %280 = vector.load %arg6[%c512_256, %c0_257] : memref<656x128xf32, #tpu.memory_space<vmem>>, vector<104x128xf32>
    %c0_258 = arith.constant 0 : index
    %c0_259 = arith.constant 0 : index
    %c0_260 = arith.constant 0 : index
    %281 = vector.load %arg3[%c0_258, %c0_259, %c0_260] : memref<9x128x128xf32, #tpu.memory_space<vmem>>, vector<1x128x128xf32>
    %282 = vector.shape_cast %281 : vector<1x128x128xf32> to vector<128x128xf32>
    %cst_261 = arith.constant dense<0.000000e+00> : vector<104x128xf32>
    %283 = tpu.matmul %280, %282, %cst_261 {dimension_numbers = #tpu.dot_dimension_numbers<[1], [0], [0], [1], [0, 0, 1, 1], [], []>} : vector<104x128xf32>, vector<128x128xf32>, vector<104x128xf32> -> vector<104x128xf32>
    %284 = arith.addf %279, %283 : vector<104x128xf32>
    %c513 = arith.constant 513 : index
    %c0_262 = arith.constant 0 : index
    %285 = vector.load %arg6[%c513, %c0_262] : memref<656x128xf32, #tpu.memory_space<vmem>>, vector<104x128xf32>
    %c1_263 = arith.constant 1 : index
    %c0_264 = arith.constant 0 : index
    %c0_265 = arith.constant 0 : index
    %286 = vector.load %arg3[%c1_263, %c0_264, %c0_265] : memref<9x128x128xf32, #tpu.memory_space<vmem>>, vector<1x128x128xf32>
    %287 = vector.shape_cast %286 : vector<1x128x128xf32> to vector<128x128xf32>
    %cst_266 = arith.constant dense<0.000000e+00> : vector<104x128xf32>
    %288 = tpu.matmul %285, %287, %cst_266 {dimension_numbers = #tpu.dot_dimension_numbers<[1], [0], [0], [1], [0, 0, 1, 1], [], []>} : vector<104x128xf32>, vector<128x128xf32>, vector<104x128xf32> -> vector<104x128xf32>
    %289 = arith.addf %284, %288 : vector<104x128xf32>
    %c514 = arith.constant 514 : index
    %c0_267 = arith.constant 0 : index
    %290 = vector.load %arg6[%c514, %c0_267] : memref<656x128xf32, #tpu.memory_space<vmem>>, vector<104x128xf32>
    %c2_268 = arith.constant 2 : index
    %c0_269 = arith.constant 0 : index
    %c0_270 = arith.constant 0 : index
    %291 = vector.load %arg3[%c2_268, %c0_269, %c0_270] : memref<9x128x128xf32, #tpu.memory_space<vmem>>, vector<1x128x128xf32>
    %292 = vector.shape_cast %291 : vector<1x128x128xf32> to vector<128x128xf32>
    %cst_271 = arith.constant dense<0.000000e+00> : vector<104x128xf32>
    %293 = tpu.matmul %290, %292, %cst_271 {dimension_numbers = #tpu.dot_dimension_numbers<[1], [0], [0], [1], [0, 0, 1, 1], [], []>} : vector<104x128xf32>, vector<128x128xf32>, vector<104x128xf32> -> vector<104x128xf32>
    %294 = arith.addf %289, %293 : vector<104x128xf32>
    %c530 = arith.constant 530 : index
    %c0_272 = arith.constant 0 : index
    %295 = vector.load %arg6[%c530, %c0_272] : memref<656x128xf32, #tpu.memory_space<vmem>>, vector<104x128xf32>
    %c3_273 = arith.constant 3 : index
    %c0_274 = arith.constant 0 : index
    %c0_275 = arith.constant 0 : index
    %296 = vector.load %arg3[%c3_273, %c0_274, %c0_275] : memref<9x128x128xf32, #tpu.memory_space<vmem>>, vector<1x128x128xf32>
    %297 = vector.shape_cast %296 : vector<1x128x128xf32> to vector<128x128xf32>
    %cst_276 = arith.constant dense<0.000000e+00> : vector<104x128xf32>
    %298 = tpu.matmul %295, %297, %cst_276 {dimension_numbers = #tpu.dot_dimension_numbers<[1], [0], [0], [1], [0, 0, 1, 1], [], []>} : vector<104x128xf32>, vector<128x128xf32>, vector<104x128xf32> -> vector<104x128xf32>
    %299 = arith.addf %294, %298 : vector<104x128xf32>
    %c531 = arith.constant 531 : index
    %c0_277 = arith.constant 0 : index
    %300 = vector.load %arg6[%c531, %c0_277] : memref<656x128xf32, #tpu.memory_space<vmem>>, vector<104x128xf32>
    %c4_278 = arith.constant 4 : index
    %c0_279 = arith.constant 0 : index
    %c0_280 = arith.constant 0 : index
    %301 = vector.load %arg3[%c4_278, %c0_279, %c0_280] : memref<9x128x128xf32, #tpu.memory_space<vmem>>, vector<1x128x128xf32>
    %302 = vector.shape_cast %301 : vector<1x128x128xf32> to vector<128x128xf32>
    %cst_281 = arith.constant dense<0.000000e+00> : vector<104x128xf32>
    %303 = tpu.matmul %300, %302, %cst_281 {dimension_numbers = #tpu.dot_dimension_numbers<[1], [0], [0], [1], [0, 0, 1, 1], [], []>} : vector<104x128xf32>, vector<128x128xf32>, vector<104x128xf32> -> vector<104x128xf32>
    %304 = arith.addf %299, %303 : vector<104x128xf32>
    %c532 = arith.constant 532 : index
    %c0_282 = arith.constant 0 : index
    %305 = vector.load %arg6[%c532, %c0_282] : memref<656x128xf32, #tpu.memory_space<vmem>>, vector<104x128xf32>
    %c5_283 = arith.constant 5 : index
    %c0_284 = arith.constant 0 : index
    %c0_285 = arith.constant 0 : index
    %306 = vector.load %arg3[%c5_283, %c0_284, %c0_285] : memref<9x128x128xf32, #tpu.memory_space<vmem>>, vector<1x128x128xf32>
    %307 = vector.shape_cast %306 : vector<1x128x128xf32> to vector<128x128xf32>
    %cst_286 = arith.constant dense<0.000000e+00> : vector<104x128xf32>
    %308 = tpu.matmul %305, %307, %cst_286 {dimension_numbers = #tpu.dot_dimension_numbers<[1], [0], [0], [1], [0, 0, 1, 1], [], []>} : vector<104x128xf32>, vector<128x128xf32>, vector<104x128xf32> -> vector<104x128xf32>
    %309 = arith.addf %304, %308 : vector<104x128xf32>
    %c548 = arith.constant 548 : index
    %c0_287 = arith.constant 0 : index
    %310 = vector.load %arg6[%c548, %c0_287] : memref<656x128xf32, #tpu.memory_space<vmem>>, vector<104x128xf32>
    %c6_288 = arith.constant 6 : index
    %c0_289 = arith.constant 0 : index
    %c0_290 = arith.constant 0 : index
    %311 = vector.load %arg3[%c6_288, %c0_289, %c0_290] : memref<9x128x128xf32, #tpu.memory_space<vmem>>, vector<1x128x128xf32>
    %312 = vector.shape_cast %311 : vector<1x128x128xf32> to vector<128x128xf32>
    %cst_291 = arith.constant dense<0.000000e+00> : vector<104x128xf32>
    %313 = tpu.matmul %310, %312, %cst_291 {dimension_numbers = #tpu.dot_dimension_numbers<[1], [0], [0], [1], [0, 0, 1, 1], [], []>} : vector<104x128xf32>, vector<128x128xf32>, vector<104x128xf32> -> vector<104x128xf32>
    %314 = arith.addf %309, %313 : vector<104x128xf32>
    %c549 = arith.constant 549 : index
    %c0_292 = arith.constant 0 : index
    %315 = vector.load %arg6[%c549, %c0_292] : memref<656x128xf32, #tpu.memory_space<vmem>>, vector<104x128xf32>
    %c7_293 = arith.constant 7 : index
    %c0_294 = arith.constant 0 : index
    %c0_295 = arith.constant 0 : index
    %316 = vector.load %arg3[%c7_293, %c0_294, %c0_295] : memref<9x128x128xf32, #tpu.memory_space<vmem>>, vector<1x128x128xf32>
    %317 = vector.shape_cast %316 : vector<1x128x128xf32> to vector<128x128xf32>
    %cst_296 = arith.constant dense<0.000000e+00> : vector<104x128xf32>
    %318 = tpu.matmul %315, %317, %cst_296 {dimension_numbers = #tpu.dot_dimension_numbers<[1], [0], [0], [1], [0, 0, 1, 1], [], []>} : vector<104x128xf32>, vector<128x128xf32>, vector<104x128xf32> -> vector<104x128xf32>
    %319 = arith.addf %314, %318 : vector<104x128xf32>
    %c550 = arith.constant 550 : index
    %c0_297 = arith.constant 0 : index
    %320 = vector.load %arg6[%c550, %c0_297] : memref<656x128xf32, #tpu.memory_space<vmem>>, vector<104x128xf32>
    %c8_298 = arith.constant 8 : index
    %c0_299 = arith.constant 0 : index
    %c0_300 = arith.constant 0 : index
    %321 = vector.load %arg3[%c8_298, %c0_299, %c0_300] : memref<9x128x128xf32, #tpu.memory_space<vmem>>, vector<1x128x128xf32>
    %322 = vector.shape_cast %321 : vector<1x128x128xf32> to vector<128x128xf32>
    %cst_301 = arith.constant dense<0.000000e+00> : vector<104x128xf32>
    %323 = tpu.matmul %320, %322, %cst_301 {dimension_numbers = #tpu.dot_dimension_numbers<[1], [0], [0], [1], [0, 0, 1, 1], [], []>} : vector<104x128xf32>, vector<128x128xf32>, vector<104x128xf32> -> vector<104x128xf32>
    %324 = arith.addf %319, %323 : vector<104x128xf32>
    %325 = vector.broadcast %62 : vector<1x128xf32> to vector<104x128xf32>
    %326 = arith.addf %324, %325 : vector<104x128xf32>
    %cst_302 = arith.constant 0.000000e+00 : f32
    %327 = vector.broadcast %cst_302 : f32 to vector<104x128xf32>
    %328 = arith.cmpf ogt, %326, %327 : vector<104x128xf32>
    %cst_303 = arith.constant 0.00999999977 : f32
    %329 = vector.broadcast %cst_303 : f32 to vector<104x128xf32>
    %330 = arith.mulf %329, %326 : vector<104x128xf32>
    %331 = arith.select %328, %326, %330 : vector<104x128xi1>, vector<104x128xf32>
    %c512_304 = arith.constant 512 : index
    %c0_305 = arith.constant 0 : index
    %332 = vector.load %arg7[%c512_304, %c0_305] : memref<616x128xf32, #tpu.memory_space<vmem>>, vector<104x128xf32>
    tpu.vector_store %arg7[%c512_304, %c0_305], %331 {strides = array<i32>} : memref<616x128xf32, #tpu.memory_space<vmem>>, vector<104x128xf32>,
    %c0_306 = arith.constant 0 : index
    %c0_307 = arith.constant 0 : index
    %333 = vector.load %arg7[%c0_306, %c0_307] : memref<616x128xf32, #tpu.memory_space<vmem>>, vector<16x128xf32>
    %c18_308 = arith.constant 18 : index
    %c0_309 = arith.constant 0 : index
    %334 = vector.load %arg7[%c18_308, %c0_309] : memref<616x128xf32, #tpu.memory_space<vmem>>, vector<16x128xf32>
    %335 = arith.maximumf %333, %334 : vector<16x128xf32>
    %c36_310 = arith.constant 36 : index
    %c0_311 = arith.constant 0 : index
    %336 = vector.load %arg7[%c36_310, %c0_311] : memref<616x128xf32, #tpu.memory_space<vmem>>, vector<16x128xf32>
    %337 = arith.maximumf %335, %336 : vector<16x128xf32>
    %338 = vector.extract_strided_slice %337 {offsets = [0, 0], sizes = [15, 128], strides = [1, 1]} : vector<16x128xf32> to vector<15x128xf32>
    %339 = vector.extract_strided_slice %337 {offsets = [1, 0], sizes = [15, 128], strides = [1, 1]} : vector<16x128xf32> to vector<15x128xf32>
    %340 = arith.maximumf %338, %339 : vector<15x128xf32>
    %c0_312 = arith.constant 0 : index
    %c0_313 = arith.constant 0 : index
    %c0_314 = arith.constant 0 : index
    %c0_315 = arith.constant 0 : index
    %341 = vector.load %arg5[%c0_312, %c0_313, %c0_314, %c0_315] : memref<2x5x15x128xf32, #tpu.memory_space<vmem>>, vector<1x1x15x128xf32>
    %342 = vector.shape_cast %341 : vector<1x1x15x128xf32> to vector<15x128xf32>
    %343 = vector.shape_cast %340 : vector<15x128xf32> to vector<1x1x15x128xf32>
    tpu.vector_store %arg5[%c0_312, %c0_313, %c0_314, %c0_315], %343 {strides = array<i32>} : memref<2x5x15x128xf32, #tpu.memory_space<vmem>>, vector<1x1x15x128xf32>,
    %c54 = arith.constant 54 : index
    %c0_316 = arith.constant 0 : index
    %344 = vector.load %arg7[%c54, %c0_316] : memref<616x128xf32, #tpu.memory_space<vmem>>, vector<16x128xf32>
    %c72 = arith.constant 72 : index
    %c0_317 = arith.constant 0 : index
    %345 = vector.load %arg7[%c72, %c0_317] : memref<616x128xf32, #tpu.memory_space<vmem>>, vector<16x128xf32>
    %346 = arith.maximumf %344, %345 : vector<16x128xf32>
    %c90 = arith.constant 90 : index
    %c0_318 = arith.constant 0 : index
    %347 = vector.load %arg7[%c90, %c0_318] : memref<616x128xf32, #tpu.memory_space<vmem>>, vector<16x128xf32>
    %348 = arith.maximumf %346, %347 : vector<16x128xf32>
    %349 = vector.extract_strided_slice %348 {offsets = [0, 0], sizes = [15, 128], strides = [1, 1]} : vector<16x128xf32> to vector<15x128xf32>
    %350 = vector.extract_strided_slice %348 {offsets = [1, 0], sizes = [15, 128], strides = [1, 1]} : vector<16x128xf32> to vector<15x128xf32>
    %351 = arith.maximumf %349, %350 : vector<15x128xf32>
    %c0_319 = arith.constant 0 : index
    %c1_320 = arith.constant 1 : index
    %c0_321 = arith.constant 0 : index
    %c0_322 = arith.constant 0 : index
    %352 = vector.load %arg5[%c0_319, %c1_320, %c0_321, %c0_322] : memref<2x5x15x128xf32, #tpu.memory_space<vmem>>, vector<1x1x15x128xf32>
    %353 = vector.shape_cast %352 : vector<1x1x15x128xf32> to vector<15x128xf32>
    %354 = vector.shape_cast %351 : vector<15x128xf32> to vector<1x1x15x128xf32>
    tpu.vector_store %arg5[%c0_319, %c1_320, %c0_321, %c0_322], %354 {strides = array<i32>} : memref<2x5x15x128xf32, #tpu.memory_space<vmem>>, vector<1x1x15x128xf32>,
    %c108 = arith.constant 108 : index
    %c0_323 = arith.constant 0 : index
    %355 = vector.load %arg7[%c108, %c0_323] : memref<616x128xf32, #tpu.memory_space<vmem>>, vector<16x128xf32>
    %c126 = arith.constant 126 : index
    %c0_324 = arith.constant 0 : index
    %356 = vector.load %arg7[%c126, %c0_324] : memref<616x128xf32, #tpu.memory_space<vmem>>, vector<16x128xf32>
    %357 = arith.maximumf %355, %356 : vector<16x128xf32>
    %c144 = arith.constant 144 : index
    %c0_325 = arith.constant 0 : index
    %358 = vector.load %arg7[%c144, %c0_325] : memref<616x128xf32, #tpu.memory_space<vmem>>, vector<16x128xf32>
    %359 = arith.maximumf %357, %358 : vector<16x128xf32>
    %360 = vector.extract_strided_slice %359 {offsets = [0, 0], sizes = [15, 128], strides = [1, 1]} : vector<16x128xf32> to vector<15x128xf32>
    %361 = vector.extract_strided_slice %359 {offsets = [1, 0], sizes = [15, 128], strides = [1, 1]} : vector<16x128xf32> to vector<15x128xf32>
    %362 = arith.maximumf %360, %361 : vector<15x128xf32>
    %c0_326 = arith.constant 0 : index
    %c2_327 = arith.constant 2 : index
    %c0_328 = arith.constant 0 : index
    %c0_329 = arith.constant 0 : index
    %363 = vector.load %arg5[%c0_326, %c2_327, %c0_328, %c0_329] : memref<2x5x15x128xf32, #tpu.memory_space<vmem>>, vector<1x1x15x128xf32>
    %364 = vector.shape_cast %363 : vector<1x1x15x128xf32> to vector<15x128xf32>
    %365 = vector.shape_cast %362 : vector<15x128xf32> to vector<1x1x15x128xf32>
    tpu.vector_store %arg5[%c0_326, %c2_327, %c0_328, %c0_329], %365 {strides = array<i32>} : memref<2x5x15x128xf32, #tpu.memory_space<vmem>>, vector<1x1x15x128xf32>,
    %c162 = arith.constant 162 : index
    %c0_330 = arith.constant 0 : index
    %366 = vector.load %arg7[%c162, %c0_330] : memref<616x128xf32, #tpu.memory_space<vmem>>, vector<16x128xf32>
    %c180 = arith.constant 180 : index
    %c0_331 = arith.constant 0 : index
    %367 = vector.load %arg7[%c180, %c0_331] : memref<616x128xf32, #tpu.memory_space<vmem>>, vector<16x128xf32>
    %368 = arith.maximumf %366, %367 : vector<16x128xf32>
    %c198 = arith.constant 198 : index
    %c0_332 = arith.constant 0 : index
    %369 = vector.load %arg7[%c198, %c0_332] : memref<616x128xf32, #tpu.memory_space<vmem>>, vector<16x128xf32>
    %370 = arith.maximumf %368, %369 : vector<16x128xf32>
    %371 = vector.extract_strided_slice %370 {offsets = [0, 0], sizes = [15, 128], strides = [1, 1]} : vector<16x128xf32> to vector<15x128xf32>
    %372 = vector.extract_strided_slice %370 {offsets = [1, 0], sizes = [15, 128], strides = [1, 1]} : vector<16x128xf32> to vector<15x128xf32>
    %373 = arith.maximumf %371, %372 : vector<15x128xf32>
    %c0_333 = arith.constant 0 : index
    %c3_334 = arith.constant 3 : index
    %c0_335 = arith.constant 0 : index
    %c0_336 = arith.constant 0 : index
    %374 = vector.load %arg5[%c0_333, %c3_334, %c0_335, %c0_336] : memref<2x5x15x128xf32, #tpu.memory_space<vmem>>, vector<1x1x15x128xf32>
    %375 = vector.shape_cast %374 : vector<1x1x15x128xf32> to vector<15x128xf32>
    %376 = vector.shape_cast %373 : vector<15x128xf32> to vector<1x1x15x128xf32>
    tpu.vector_store %arg5[%c0_333, %c3_334, %c0_335, %c0_336], %376 {strides = array<i32>} : memref<2x5x15x128xf32, #tpu.memory_space<vmem>>, vector<1x1x15x128xf32>,
    %c216 = arith.constant 216 : index
    %c0_337 = arith.constant 0 : index
    %377 = vector.load %arg7[%c216, %c0_337] : memref<616x128xf32, #tpu.memory_space<vmem>>, vector<16x128xf32>
    %c234 = arith.constant 234 : index
    %c0_338 = arith.constant 0 : index
    %378 = vector.load %arg7[%c234, %c0_338] : memref<616x128xf32, #tpu.memory_space<vmem>>, vector<16x128xf32>
    %379 = arith.maximumf %377, %378 : vector<16x128xf32>
    %c252 = arith.constant 252 : index
    %c0_339 = arith.constant 0 : index
    %380 = vector.load %arg7[%c252, %c0_339] : memref<616x128xf32, #tpu.memory_space<vmem>>, vector<16x128xf32>
    %381 = arith.maximumf %379, %380 : vector<16x128xf32>
    %382 = vector.extract_strided_slice %381 {offsets = [0, 0], sizes = [15, 128], strides = [1, 1]} : vector<16x128xf32> to vector<15x128xf32>
    %383 = vector.extract_strided_slice %381 {offsets = [1, 0], sizes = [15, 128], strides = [1, 1]} : vector<16x128xf32> to vector<15x128xf32>
    %384 = arith.maximumf %382, %383 : vector<15x128xf32>
    %c0_340 = arith.constant 0 : index
    %c4_341 = arith.constant 4 : index
    %c0_342 = arith.constant 0 : index
    %c0_343 = arith.constant 0 : index
    %385 = vector.load %arg5[%c0_340, %c4_341, %c0_342, %c0_343] : memref<2x5x15x128xf32, #tpu.memory_space<vmem>>, vector<1x1x15x128xf32>
    %386 = vector.shape_cast %385 : vector<1x1x15x128xf32> to vector<15x128xf32>
    %387 = vector.shape_cast %384 : vector<15x128xf32> to vector<1x1x15x128xf32>
    tpu.vector_store %arg5[%c0_340, %c4_341, %c0_342, %c0_343], %387 {strides = array<i32>} : memref<2x5x15x128xf32, #tpu.memory_space<vmem>>, vector<1x1x15x128xf32>,
    %c324 = arith.constant 324 : index
    %c0_344 = arith.constant 0 : index
    %388 = vector.load %arg7[%c324, %c0_344] : memref<616x128xf32, #tpu.memory_space<vmem>>, vector<16x128xf32>
    %c342 = arith.constant 342 : index
    %c0_345 = arith.constant 0 : index
    %389 = vector.load %arg7[%c342, %c0_345] : memref<616x128xf32, #tpu.memory_space<vmem>>, vector<16x128xf32>
    %390 = arith.maximumf %388, %389 : vector<16x128xf32>
    %c360 = arith.constant 360 : index
    %c0_346 = arith.constant 0 : index
    %391 = vector.load %arg7[%c360, %c0_346] : memref<616x128xf32, #tpu.memory_space<vmem>>, vector<16x128xf32>
    %392 = arith.maximumf %390, %391 : vector<16x128xf32>
    %393 = vector.extract_strided_slice %392 {offsets = [0, 0], sizes = [15, 128], strides = [1, 1]} : vector<16x128xf32> to vector<15x128xf32>
    %394 = vector.extract_strided_slice %392 {offsets = [1, 0], sizes = [15, 128], strides = [1, 1]} : vector<16x128xf32> to vector<15x128xf32>
    %395 = arith.maximumf %393, %394 : vector<15x128xf32>
    %c1_347 = arith.constant 1 : index
    %c0_348 = arith.constant 0 : index
    %c0_349 = arith.constant 0 : index
    %c0_350 = arith.constant 0 : index
    %396 = vector.load %arg5[%c1_347, %c0_348, %c0_349, %c0_350] : memref<2x5x15x128xf32, #tpu.memory_space<vmem>>, vector<1x1x15x128xf32>
    %397 = vector.shape_cast %396 : vector<1x1x15x128xf32> to vector<15x128xf32>
    %398 = vector.shape_cast %395 : vector<15x128xf32> to vector<1x1x15x128xf32>
    tpu.vector_store %arg5[%c1_347, %c0_348, %c0_349, %c0_350], %398 {strides = array<i32>} : memref<2x5x15x128xf32, #tpu.memory_space<vmem>>, vector<1x1x15x128xf32>,
    %c378 = arith.constant 378 : index
    %c0_351 = arith.constant 0 : index
    %399 = vector.load %arg7[%c378, %c0_351] : memref<616x128xf32, #tpu.memory_space<vmem>>, vector<16x128xf32>
    %c396 = arith.constant 396 : index
    %c0_352 = arith.constant 0 : index
    %400 = vector.load %arg7[%c396, %c0_352] : memref<616x128xf32, #tpu.memory_space<vmem>>, vector<16x128xf32>
    %401 = arith.maximumf %399, %400 : vector<16x128xf32>
    %c414 = arith.constant 414 : index
    %c0_353 = arith.constant 0 : index
    %402 = vector.load %arg7[%c414, %c0_353] : memref<616x128xf32, #tpu.memory_space<vmem>>, vector<16x128xf32>
    %403 = arith.maximumf %401, %402 : vector<16x128xf32>
    %404 = vector.extract_strided_slice %403 {offsets = [0, 0], sizes = [15, 128], strides = [1, 1]} : vector<16x128xf32> to vector<15x128xf32>
    %405 = vector.extract_strided_slice %403 {offsets = [1, 0], sizes = [15, 128], strides = [1, 1]} : vector<16x128xf32> to vector<15x128xf32>
    %406 = arith.maximumf %404, %405 : vector<15x128xf32>
    %c1_354 = arith.constant 1 : index
    %c1_355 = arith.constant 1 : index
    %c0_356 = arith.constant 0 : index
    %c0_357 = arith.constant 0 : index
    %407 = vector.load %arg5[%c1_354, %c1_355, %c0_356, %c0_357] : memref<2x5x15x128xf32, #tpu.memory_space<vmem>>, vector<1x1x15x128xf32>
    %408 = vector.shape_cast %407 : vector<1x1x15x128xf32> to vector<15x128xf32>
    %409 = vector.shape_cast %406 : vector<15x128xf32> to vector<1x1x15x128xf32>
    tpu.vector_store %arg5[%c1_354, %c1_355, %c0_356, %c0_357], %409 {strides = array<i32>} : memref<2x5x15x128xf32, #tpu.memory_space<vmem>>, vector<1x1x15x128xf32>,
    %c432 = arith.constant 432 : index
    %c0_358 = arith.constant 0 : index
    %410 = vector.load %arg7[%c432, %c0_358] : memref<616x128xf32, #tpu.memory_space<vmem>>, vector<16x128xf32>
    %c450 = arith.constant 450 : index
    %c0_359 = arith.constant 0 : index
    %411 = vector.load %arg7[%c450, %c0_359] : memref<616x128xf32, #tpu.memory_space<vmem>>, vector<16x128xf32>
    %412 = arith.maximumf %410, %411 : vector<16x128xf32>
    %c468 = arith.constant 468 : index
    %c0_360 = arith.constant 0 : index
    %413 = vector.load %arg7[%c468, %c0_360] : memref<616x128xf32, #tpu.memory_space<vmem>>, vector<16x128xf32>
    %414 = arith.maximumf %412, %413 : vector<16x128xf32>
    %415 = vector.extract_strided_slice %414 {offsets = [0, 0], sizes = [15, 128], strides = [1, 1]} : vector<16x128xf32> to vector<15x128xf32>
    %416 = vector.extract_strided_slice %414 {offsets = [1, 0], sizes = [15, 128], strides = [1, 1]} : vector<16x128xf32> to vector<15x128xf32>
    %417 = arith.maximumf %415, %416 : vector<15x128xf32>
    %c1_361 = arith.constant 1 : index
    %c2_362 = arith.constant 2 : index
    %c0_363 = arith.constant 0 : index
    %c0_364 = arith.constant 0 : index
    %418 = vector.load %arg5[%c1_361, %c2_362, %c0_363, %c0_364] : memref<2x5x15x128xf32, #tpu.memory_space<vmem>>, vector<1x1x15x128xf32>
    %419 = vector.shape_cast %418 : vector<1x1x15x128xf32> to vector<15x128xf32>
    %420 = vector.shape_cast %417 : vector<15x128xf32> to vector<1x1x15x128xf32>
    tpu.vector_store %arg5[%c1_361, %c2_362, %c0_363, %c0_364], %420 {strides = array<i32>} : memref<2x5x15x128xf32, #tpu.memory_space<vmem>>, vector<1x1x15x128xf32>,
    %c486 = arith.constant 486 : index
    %c0_365 = arith.constant 0 : index
    %421 = vector.load %arg7[%c486, %c0_365] : memref<616x128xf32, #tpu.memory_space<vmem>>, vector<16x128xf32>
    %c504 = arith.constant 504 : index
    %c0_366 = arith.constant 0 : index
    %422 = vector.load %arg7[%c504, %c0_366] : memref<616x128xf32, #tpu.memory_space<vmem>>, vector<16x128xf32>
    %423 = arith.maximumf %421, %422 : vector<16x128xf32>
    %c522 = arith.constant 522 : index
    %c0_367 = arith.constant 0 : index
    %424 = vector.load %arg7[%c522, %c0_367] : memref<616x128xf32, #tpu.memory_space<vmem>>, vector<16x128xf32>
    %425 = arith.maximumf %423, %424 : vector<16x128xf32>
    %426 = vector.extract_strided_slice %425 {offsets = [0, 0], sizes = [15, 128], strides = [1, 1]} : vector<16x128xf32> to vector<15x128xf32>
    %427 = vector.extract_strided_slice %425 {offsets = [1, 0], sizes = [15, 128], strides = [1, 1]} : vector<16x128xf32> to vector<15x128xf32>
    %428 = arith.maximumf %426, %427 : vector<15x128xf32>
    %c1_368 = arith.constant 1 : index
    %c3_369 = arith.constant 3 : index
    %c0_370 = arith.constant 0 : index
    %c0_371 = arith.constant 0 : index
    %429 = vector.load %arg5[%c1_368, %c3_369, %c0_370, %c0_371] : memref<2x5x15x128xf32, #tpu.memory_space<vmem>>, vector<1x1x15x128xf32>
    %430 = vector.shape_cast %429 : vector<1x1x15x128xf32> to vector<15x128xf32>
    %431 = vector.shape_cast %428 : vector<15x128xf32> to vector<1x1x15x128xf32>
    tpu.vector_store %arg5[%c1_368, %c3_369, %c0_370, %c0_371], %431 {strides = array<i32>} : memref<2x5x15x128xf32, #tpu.memory_space<vmem>>, vector<1x1x15x128xf32>,
    %c540 = arith.constant 540 : index
    %c0_372 = arith.constant 0 : index
    %432 = vector.load %arg7[%c540, %c0_372] : memref<616x128xf32, #tpu.memory_space<vmem>>, vector<16x128xf32>
    %c558 = arith.constant 558 : index
    %c0_373 = arith.constant 0 : index
    %433 = vector.load %arg7[%c558, %c0_373] : memref<616x128xf32, #tpu.memory_space<vmem>>, vector<16x128xf32>
    %434 = arith.maximumf %432, %433 : vector<16x128xf32>
    %c576 = arith.constant 576 : index
    %c0_374 = arith.constant 0 : index
    %435 = vector.load %arg7[%c576, %c0_374] : memref<616x128xf32, #tpu.memory_space<vmem>>, vector<16x128xf32>
    %436 = arith.maximumf %434, %435 : vector<16x128xf32>
    %437 = vector.extract_strided_slice %436 {offsets = [0, 0], sizes = [15, 128], strides = [1, 1]} : vector<16x128xf32> to vector<15x128xf32>
    %438 = vector.extract_strided_slice %436 {offsets = [1, 0], sizes = [15, 128], strides = [1, 1]} : vector<16x128xf32> to vector<15x128xf32>
    %439 = arith.maximumf %437, %438 : vector<15x128xf32>
    %c1_375 = arith.constant 1 : index
    %c4_376 = arith.constant 4 : index
    %c0_377 = arith.constant 0 : index
    %c0_378 = arith.constant 0 : index
    %440 = vector.load %arg5[%c1_375, %c4_376, %c0_377, %c0_378] : memref<2x5x15x128xf32, #tpu.memory_space<vmem>>, vector<1x1x15x128xf32>
    %441 = vector.shape_cast %440 : vector<1x1x15x128xf32> to vector<15x128xf32>
    %442 = vector.shape_cast %439 : vector<15x128xf32> to vector<1x1x15x128xf32>
    tpu.vector_store %arg5[%c1_375, %c4_376, %c0_377, %c0_378], %442 {strides = array<i32>} : memref<2x5x15x128xf32, #tpu.memory_space<vmem>>, vector<1x1x15x128xf32>,
    return
  }
  func.func @transform_0(%arg0: i32) -> (i32, i32, i32) {
    %c0_i32 = arith.constant 0 : i32
    %c0_i32_0 = arith.constant 0 : i32
    %c0_i32_1 = arith.constant 0 : i32
    return %arg0, %c0_i32, %c0_i32_0 : i32, i32, i32
  }
  func.func @transform_1(%arg0: i32) -> (i32, i32) {
    %c0_i32 = arith.constant 0 : i32
    %c0_i32_0 = arith.constant 0 : i32
    %c0_i32_1 = arith.constant 0 : i32
    return %c0_i32, %c0_i32_0 : i32, i32
  }
  func.func @transform_2(%arg0: i32) -> (i32, i32, i32) {
    %c0_i32 = arith.constant 0 : i32
    %c0_i32_0 = arith.constant 0 : i32
    %c0_i32_1 = arith.constant 0 : i32
    %c0_i32_2 = arith.constant 0 : i32
    return %c0_i32, %c0_i32_0, %c0_i32_1 : i32, i32, i32
  }
  func.func @transform_3(%arg0: i32) -> (i32, i32) {
    %c0_i32 = arith.constant 0 : i32
    %c0_i32_0 = arith.constant 0 : i32
    %c0_i32_1 = arith.constant 0 : i32
    return %c0_i32, %c0_i32_0 : i32, i32
  }
  func.func @transform_4(%arg0: i32) -> (i32, i32, i32, i32) {
    %c0_i32 = arith.constant 0 : i32
    %c0_i32_0 = arith.constant 0 : i32
    %c0_i32_1 = arith.constant 0 : i32
    %c0_i32_2 = arith.constant 0 : i32
    return %arg0, %c0_i32, %c0_i32_0, %c0_i32_1 : i32, i32, i32, i32
  }
}

</mosaic_0001>

<llo_original>
// kernel: last_conv_layer.1
$region0: #{last_conv_layer.1}
  #allocation0 [shape = 'u32[]', space=smem, size = 0x4, offset = 0x4, fixed_abs, tag = 'smem constant byte address 0x4 - core index']
  #allocation1 [shape = 'u32[72,128]{1,0:T(1,128)}', space=vmem, size = 0x9000, scoped, tag = 'internal scratch']
  #allocation2 [shape = 'f32[656,128]{1,0:T(8,128)}', space=vmem, size = 0x52000, scoped, tag = 'scratch operand']
  #allocation3 [shape = 'f32[616,128]{1,0:T(8,128)}', space=vmem, size = 0x4d000, scoped, tag = 'scratch operand']
  %s0 = inlined_call_operand.vmem [shape: f32[1,648,128], index: 0, kind: input, shape index: {}]
  %s1 = inlined_call_operand.vmem [shape: f32[128,128], index: 1, kind: input, shape index: {}]
  %s2 = inlined_call_operand.vmem [shape: f32[9,128,128], index: 2, kind: input, shape index: {}]
  %s3 = inlined_call_operand.vmem [shape: f32[1,128], index: 3, kind: input, shape index: {}]
  %s4 = inlined_call_operand.vmem [shape: f32[2,5,15,128], index: 4, kind: output, shape index: {}]
  %s5 = sld [smem:[#allocation0]]
  $region26: #{last_conv_layer.1} parent=0
    _
  %s7 = ssub.s32 1, %s5
  %s8 = scalar_select 0, %s7, %s5
  // Predicated region
  $region2: #{last_conv_layer.1} parent=0 // pred_check
    _
  $region3: #{last_conv_layer.1} parent=0 // pred_check_branch
    %10 = sbr.rel (0) target = $region5
  $region4: #{last_conv_layer.1} parent=0 // pred_region
    _
  $region5: #{last_conv_layer.1} parent=0 // pred_fallthru
    _
  // Predicated region
  $region6: #{last_conv_layer.1} parent=0 // pred_check
    _
  $region7: #{last_conv_layer.1} parent=0 // pred_check_branch
    %12 = sbr.rel (0) target = $region9
  $region8: #{last_conv_layer.1} parent=0 // pred_region
    _
  $region9: #{last_conv_layer.1} parent=0 // pred_fallthru
    _
  // Predicated region
  $region10: #{last_conv_layer.1} parent=0 // pred_check
    _
  $region11: #{last_conv_layer.1} parent=0 // pred_check_branch
    %14 = sbr.rel (0) target = $region13
  $region12: #{last_conv_layer.1} parent=0 // pred_region
    _
  $region13: #{last_conv_layer.1} parent=0 // pred_fallthru
    _
  // Predicated region
  $region14: #{last_conv_layer.1} parent=0 // pred_check
    _
  $region15: #{last_conv_layer.1} parent=0 // pred_check_branch
    %16 = sbr.rel (0) target = $region17
  $region16: #{last_conv_layer.1} parent=0 // pred_region
    _
  $region17: #{last_conv_layer.1} parent=0 // pred_fallthru
    _
  %17 = vst [vmem:[#allocation2 + $0x288] sm:$0xff] 0.0
  %v18 = vld [vmem:[%s0] sm:$0xff]
  %v19 = vld [vmem:[%s0 + $0x8] sm:$0xff]
  %v20 = vld [vmem:[%s0 + $0x10] sm:$0xff]
  %v21 = vld [vmem:[%s0 + $0x18] sm:$0xff]
  %v22 = vld [vmem:[%s0 + $0x20] sm:$0xff]
  %v23 = vld [vmem:[%s0 + $0x28] sm:$0xff]
  %v24 = vld [vmem:[%s0 + $0x30] sm:$0xff]
  %v25 = vld [vmem:[%s0 + $0x38] sm:$0xff]
  %v26 = vld [vmem:[%s0 + $0x40] sm:$0xff]
  %v27 = vld [vmem:[%s0 + $0x48] sm:$0xff]
  %v28 = vld [vmem:[%s0 + $0x50] sm:$0xff]
  %v29 = vld [vmem:[%s0 + $0x58] sm:$0xff]
  %v30 = vld [vmem:[%s0 + $0x60] sm:$0xff]
  %v31 = vld [vmem:[%s0 + $0x68] sm:$0xff]
  %v32 = vld [vmem:[%s0 + $0x70] sm:$0xff]
  %v33 = vld [vmem:[%s0 + $0x78] sm:$0xff]
  %v34 = vld [vmem:[%s1] sm:$0xff]
  %v35 = vld [vmem:[%s1 + $0x8] sm:$0xff]
  %v36 = vld [vmem:[%s1 + $0x10] sm:$0xff]
  %v37 = vld [vmem:[%s1 + $0x18] sm:$0xff]
  %v38 = vld [vmem:[%s1 + $0x20] sm:$0xff]
  %v39 = vld [vmem:[%s1 + $0x28] sm:$0xff]
  %v40 = vld [vmem:[%s1 + $0x30] sm:$0xff]
  %v41 = vld [vmem:[%s1 + $0x38] sm:$0xff]
  %v42 = vld [vmem:[%s1 + $0x40] sm:$0xff]
  %v43 = vld [vmem:[%s1 + $0x48] sm:$0xff]
  %v44 = vld [vmem:[%s1 + $0x50] sm:$0xff]
  %v45 = vld [vmem:[%s1 + $0x58] sm:$0xff]
  %v46 = vld [vmem:[%s1 + $0x60] sm:$0xff]
  %v47 = vld [vmem:[%s1 + $0x68] sm:$0xff]
  %v48 = vld [vmem:[%s1 + $0x70] sm:$0xff]
  %v49 = vld [vmem:[%s1 + $0x78] sm:$0xff]
  %50 = vmatpush.msra.mxu0 %v49
  %51 = vmatpush.msra.mxu0 %v48
  %52 = vmatpush.msra.mxu0 %v47
  %53 = vmatpush.msra.mxu0 %v46
  %54 = vmatpush.msra.mxu0 %v45
  %55 = vmatpush.msra.mxu0 %v44
  %56 = vmatpush.msra.mxu0 %v43
  %57 = vmatpush.msra.mxu0 %v42
  %58 = vmatpush.msra.mxu0 %v41
  %59 = vmatpush.msra.mxu0 %v40
  %60 = vmatpush.msra.mxu0 %v39
  %61 = vmatpush.msra.mxu0 %v38
  %62 = vmatpush.msra.mxu0 %v37
  %63 = vmatpush.msra.mxu0 %v36
  %64 = vmatpush.msra.mxu0 %v35
  %65 = vmatpush.msra.mxu0 %v34
  %66 = vmatmul.f32.gmra.mxu0 %v18
  %v67 = vpop.f32.mrf.mxu0
  %v68 = vadd.f32 0.0, %v67
  %69 = vmatmul.f32.gmra.mxu0 %v19
  %v70 = vpop.f32.mrf.mxu0
  %v71 = vadd.f32 0.0, %v70
  %72 = vmatmul.f32.gmra.mxu0 %v20
  %v73 = vpop.f32.mrf.mxu0
  %v74 = vadd.f32 0.0, %v73
  %75 = vmatmul.f32.gmra.mxu0 %v21
  %v76 = vpop.f32.mrf.mxu0
  %v77 = vadd.f32 0.0, %v76
  %78 = vmatmul.f32.gmra.mxu0 %v22
  %v79 = vpop.f32.mrf.mxu0
  %v80 = vadd.f32 0.0, %v79
  %81 = vmatmul.f32.gmra.mxu0 %v23
  %v82 = vpop.f32.mrf.mxu0
  %v83 = vadd.f32 0.0, %v82
  %84 = vmatmul.f32.gmra.mxu0 %v24
  %v85 = vpop.f32.mrf.mxu0
  %v86 = vadd.f32 0.0, %v85
  %87 = vmatmul.f32.gmra.mxu0 %v25
  %v88 = vpop.f32.mrf.mxu0
  %v89 = vadd.f32 0.0, %v88
  %90 = vmatmul.f32.gmra.mxu0 %v26
  %v91 = vpop.f32.mrf.mxu0
  %v92 = vadd.f32 0.0, %v91
  %93 = vmatmul.f32.gmra.mxu0 %v27
  %v94 = vpop.f32.mrf.mxu0
  %v95 = vadd.f32 0.0, %v94
  %96 = vmatmul.f32.gmra.mxu0 %v28
  %v97 = vpop.f32.mrf.mxu0
  %v98 = vadd.f32 0.0, %v97
  %99 = vmatmul.f32.gmra.mxu0 %v29
  %v100 = vpop.f32.mrf.mxu0
  %v101 = vadd.f32 0.0, %v100
  %102 = vmatmul.f32.gmra.mxu0 %v30
  %v103 = vpop.f32.mrf.mxu0
  %v104 = vadd.f32 0.0, %v103
  %105 = vmatmul.f32.gmra.mxu0 %v31
  %v106 = vpop.f32.mrf.mxu0
  %v107 = vadd.f32 0.0, %v106
  %108 = vmatmul.f32.gmra.mxu0 %v32
  %v109 = vpop.f32.mrf.mxu0
  %v110 = vadd.f32 0.0, %v109
  %111 = vmatmul.f32.gmra.mxu0 %v33
  %v112 = vpop.f32.mrf.mxu0
  %v113 = vadd.f32 0.0, %v112
  %114 = vdwg.mxu0
  %vm115 = vcmp.gt.f32.partialorder %v68, 0.0
  %vm116 = vcmp.gt.f32.partialorder %v71, 0.0
  %vm117 = vcmp.gt.f32.partialorder %v74, 0.0
  %vm118 = vcmp.gt.f32.partialorder %v77, 0.0
  %vm119 = vcmp.gt.f32.partialorder %v80, 0.0
  %vm120 = vcmp.gt.f32.partialorder %v83, 0.0
  %vm121 = vcmp.gt.f32.partialorder %v86, 0.0
  %vm122 = vcmp.gt.f32.partialorder %v89, 0.0
  %vm123 = vcmp.gt.f32.partialorder %v92, 0.0
  %vm124 = vcmp.gt.f32.partialorder %v95, 0.0
  %vm125 = vcmp.gt.f32.partialorder %v98, 0.0
  %vm126 = vcmp.gt.f32.partialorder %v101, 0.0
  %vm127 = vcmp.gt.f32.partialorder %v104, 0.0
  %vm128 = vcmp.gt.f32.partialorder %v107, 0.0
  %vm129 = vcmp.gt.f32.partialorder %v110, 0.0
  %vm130 = vcmp.gt.f32.partialorder %v113, 0.0
  %v131 = vmul.f32 %v68, 0.01
  %v132 = vmul.f32 %v71, 0.01
  %v133 = vmul.f32 %v74, 0.01
  %v134 = vmul.f32 %v77, 0.01
  %v135 = vmul.f32 %v80, 0.01
  %v136 = vmul.f32 %v83, 0.01
  %v137 = vmul.f32 %v86, 0.01
  %v138 = vmul.f32 %v89, 0.01
  %v139 = vmul.f32 %v92, 0.01
  %v140 = vmul.f32 %v95, 0.01
  %v141 = vmul.f32 %v98, 0.01
  %v142 = vmul.f32 %v101, 0.01
  %v143 = vmul.f32 %v104, 0.01
  %v144 = vmul.f32 %v107, 0.01
  %v145 = vmul.f32 %v110, 0.01
  %v146 = vmul.f32 %v113, 0.01
  %v147 = vsel %vm115, %v68, %v131
  %v148 = vsel %vm116, %v71, %v132
  %v149 = vsel %vm117, %v74, %v133
  %v150 = vsel %vm118, %v77, %v134
  %v151 = vsel %vm119, %v80, %v135
  %v152 = vsel %vm120, %v83, %v136
  %v153 = vsel %vm121, %v86, %v137
  %v154 = vsel %vm122, %v89, %v138
  %v155 = vsel %vm123, %v92, %v139
  %v156 = vsel %vm124, %v95, %v140
  %v157 = vsel %vm125, %v98, %v141
  %v158 = vsel %vm126, %v101, %v142
  %v159 = vsel %vm127, %v104, %v143
  %v160 = vsel %vm128, %v107, %v144
  %v161 = vsel %vm129, %v110, %v145
  %v162 = vsel %vm130, %v113, %v146
  %163 = vst [vmem:[#allocation2] sm:$0xff] %v147
  %164 = vst [vmem:[#allocation2 + $0x8] sm:$0xff] %v148
  %165 = vst [vmem:[#allocation2 + $0x10] sm:$0xff] %v149
  %166 = vst [vmem:[#allocation2 + $0x18] sm:$0xff] %v150
  %167 = vst [vmem:[#allocation2 + $0x20] sm:$0xff] %v151
  %168 = vst [vmem:[#allocation2 + $0x28] sm:$0xff] %v152
  %169 = vst [vmem:[#allocation2 + $0x30] sm:$0xff] %v153
  %170 = vst [vmem:[#allocation2 + $0x38] sm:$0xff] %v154
  %171 = vst [vmem:[#allocation2 + $0x40] sm:$0xff] %v155
  %172 = vst [vmem:[#allocation2 + $0x48] sm:$0xff] %v156
  %173 = vst [vmem:[#allocation2 + $0x50] sm:$0xff] %v157
  %174 = vst [vmem:[#allocation2 + $0x58] sm:$0xff] %v158
  %175 = vst [vmem:[#allocation2 + $0x60] sm:$0xff] %v159
  %176 = vst [vmem:[#allocation2 + $0x68] sm:$0xff] %v160
  %177 = vst [vmem:[#allocation2 + $0x70] sm:$0xff] %v161
  %178 = vst [vmem:[#allocation2 + $0x78] sm:$0xff] %v162
  %v179 = vld [vmem:[%s0 + $0x80] sm:$0xff]
  %v180 = vld [vmem:[%s0 + $0x88] sm:$0xff]
  %v181 = vld [vmem:[%s0 + $0x90] sm:$0xff]
  %v182 = vld [vmem:[%s0 + $0x98] sm:$0xff]
  %v183 = vld [vmem:[%s0 + $0xa0] sm:$0xff]
  %v184 = vld [vmem:[%s0 + $0xa8] sm:$0xff]
  %v185 = vld [vmem:[%s0 + $0xb0] sm:$0xff]
  %v186 = vld [vmem:[%s0 + $0xb8] sm:$0xff]
  %v187 = vld [vmem:[%s0 + $0xc0] sm:$0xff]
  %v188 = vld [vmem:[%s0 + $0xc8] sm:$0xff]
  %v189 = vld [vmem:[%s0 + $0xd0] sm:$0xff]
  %v190 = vld [vmem:[%s0 + $0xd8] sm:$0xff]
  %v191 = vld [vmem:[%s0 + $0xe0] sm:$0xff]
  %v192 = vld [vmem:[%s0 + $0xe8] sm:$0xff]
  %v193 = vld [vmem:[%s0 + $0xf0] sm:$0xff]
  %v194 = vld [vmem:[%s0 + $0xf8] sm:$0xff]
  %v195 = vld [vmem:[%s1] sm:$0xff]
  %v196 = vld [vmem:[%s1 + $0x8] sm:$0xff]
  %v197 = vld [vmem:[%s1 + $0x10] sm:$0xff]
  %v198 = vld [vmem:[%s1 + $0x18] sm:$0xff]
  %v199 = vld [vmem:[%s1 + $0x20] sm:$0xff]
  %v200 = vld [vmem:[%s1 + $0x28] sm:$0xff]
  %v201 = vld [vmem:[%s1 + $0x30] sm:$0xff]
  %v202 = vld [vmem:[%s1 + $0x38] sm:$0xff]
  %v203 = vld [vmem:[%s1 + $0x40] sm:$0xff]
  %v204 = vld [vmem:[%s1 + $0x48] sm:$0xff]
  %v205 = vld [vmem:[%s1 + $0x50] sm:$0xff]
  %v206 = vld [vmem:[%s1 + $0x58] sm:$0xff]
  %v207 = vld [vmem:[%s1 + $0x60] sm:$0xff]
  %v208 = vld [vmem:[%s1 + $0x68] sm:$0xff]
  %v209 = vld [vmem:[%s1 + $0x70] sm:$0xff]
  %v210 = vld [vmem:[%s1 + $0x78] sm:$0xff]
  %211 = vmatpush.msra.mxu0 %v210
  %212 = vmatpush.msra.mxu0 %v209
  %213 = vmatpush.msra.mxu0 %v208
  %214 = vmatpush.msra.mxu0 %v207
  %215 = vmatpush.msra.mxu0 %v206
  %216 = vmatpush.msra.mxu0 %v205
  %217 = vmatpush.msra.mxu0 %v204
  %218 = vmatpush.msra.mxu0 %v203
  %219 = vmatpush.msra.mxu0 %v202
  %220 = vmatpush.msra.mxu0 %v201
  %221 = vmatpush.msra.mxu0 %v200
  %222 = vmatpush.msra.mxu0 %v199
  %223 = vmatpush.msra.mxu0 %v198
  %224 = vmatpush.msra.mxu0 %v197
  %225 = vmatpush.msra.mxu0 %v196
  %226 = vmatpush.msra.mxu0 %v195
  %227 = vmatmul.f32.gmra.mxu0 %v179
  %v228 = vpop.f32.mrf.mxu0
  %v229 = vadd.f32 0.0, %v228
  %230 = vmatmul.f32.gmra.mxu0 %v180
  %v231 = vpop.f32.mrf.mxu0
  %v232 = vadd.f32 0.0, %v231
  %233 = vmatmul.f32.gmra.mxu0 %v181
  %v234 = vpop.f32.mrf.mxu0
  %v235 = vadd.f32 0.0, %v234
  %236 = vmatmul.f32.gmra.mxu0 %v182
  %v237 = vpop.f32.mrf.mxu0
  %v238 = vadd.f32 0.0, %v237
  %239 = vmatmul.f32.gmra.mxu0 %v183
  %v240 = vpop.f32.mrf.mxu0
  %v241 = vadd.f32 0.0, %v240
  %242 = vmatmul.f32.gmra.mxu0 %v184
  %v243 = vpop.f32.mrf.mxu0
  %v244 = vadd.f32 0.0, %v243
  %245 = vmatmul.f32.gmra.mxu0 %v185
  %v246 = vpop.f32.mrf.mxu0
  %v247 = vadd.f32 0.0, %v246
  %248 = vmatmul.f32.gmra.mxu0 %v186
  %v249 = vpop.f32.mrf.mxu0
  %v250 = vadd.f32 0.0, %v249
  %251 = vmatmul.f32.gmra.mxu0 %v187
  %v252 = vpop.f32.mrf.mxu0
  %v253 = vadd.f32 0.0, %v252
  %254 = vmatmul.f32.gmra.mxu0 %v188
  %v255 = vpop.f32.mrf.mxu0
  %v256 = vadd.f32 0.0, %v255
  %257 = vmatmul.f32.gmra.mxu0 %v189
  %v258 = vpop.f32.mrf.mxu0
  %v259 = vadd.f32 0.0, %v258
  %260 = vmatmul.f32.gmra.mxu0 %v190
  %v261 = vpop.f32.mrf.mxu0
  %v262 = vadd.f32 0.0, %v261
  %263 = vmatmul.f32.gmra.mxu0 %v191
  %v264 = vpop.f32.mrf.mxu0
  %v265 = vadd.f32 0.0, %v264
  %266 = vmatmul.f32.gmra.mxu0 %v192
  %v267 = vpop.f32.mrf.mxu0
  %v268 = vadd.f32 0.0, %v267
  %269 = vmatmul.f32.gmra.mxu0 %v193
  %v270 = vpop.f32.mrf.mxu0
  %v271 = vadd.f32 0.0, %v270
  %272 = vmatmul.f32.gmra.mxu0 %v194
  %v273 = vpop.f32.mrf.mxu0
  %v274 = vadd.f32 0.0, %v273
  %275 = vdwg.mxu0
  %vm276 = vcmp.gt.f32.partialorder %v229, 0.0
  %vm277 = vcmp.gt.f32.partialorder %v232, 0.0
  %vm278 = vcmp.gt.f32.partialorder %v235, 0.0
  %vm279 = vcmp.gt.f32.partialorder %v238, 0.0
  %vm280 = vcmp.gt.f32.partialorder %v241, 0.0
  %vm281 = vcmp.gt.f32.partialorder %v244, 0.0
  %vm282 = vcmp.gt.f32.partialorder %v247, 0.0
  %vm283 = vcmp.gt.f32.partialorder %v250, 0.0
  %vm284 = vcmp.gt.f32.partialorder %v253, 0.0
  %vm285 = vcmp.gt.f32.partialorder %v256, 0.0
  %vm286 = vcmp.gt.f32.partialorder %v259, 0.0
  %vm287 = vcmp.gt.f32.partialorder %v262, 0.0
  %vm288 = vcmp.gt.f32.partialorder %v265, 0.0
  %vm289 = vcmp.gt.f32.partialorder %v268, 0.0
  %vm290 = vcmp.gt.f32.partialorder %v271, 0.0
  %vm291 = vcmp.gt.f32.partialorder %v274, 0.0
  %v292 = vmul.f32 %v229, 0.01
  %v293 = vmul.f32 %v232, 0.01
  %v294 = vmul.f32 %v235, 0.01
  %v295 = vmul.f32 %v238, 0.01
  %v296 = vmul.f32 %v241, 0.01
  %v297 = vmul.f32 %v244, 0.01
  %v298 = vmul.f32 %v247, 0.01
  %v299 = vmul.f32 %v250, 0.01
  %v300 = vmul.f32 %v253, 0.01
  %v301 = vmul.f32 %v256, 0.01
  %v302 = vmul.f32 %v259, 0.01
  %v303 = vmul.f32 %v262, 0.01
  %v304 = vmul.f32 %v265, 0.01
  %v305 = vmul.f32 %v268, 0.01
  %v306 = vmul.f32 %v271, 0.01
  %v307 = vmul.f32 %v274, 0.01
  %v308 = vsel %vm276, %v229, %v292
  %v309 = vsel %vm277, %v232, %v293
  %v310 = vsel %vm278, %v235, %v294
  %v311 = vsel %vm279, %v238, %v295
  %v312 = vsel %vm280, %v241, %v296
  %v313 = vsel %vm281, %v244, %v297
  %v314 = vsel %vm282, %v247, %v298
  %v315 = vsel %vm283, %v250, %v299
  %v316 = vsel %vm284, %v253, %v300
  %v317 = vsel %vm285, %v256, %v301
  %v318 = vsel %vm286, %v259, %v302
  %v319 = vsel %vm287, %v262, %v303
  %v320 = vsel %vm288, %v265, %v304
  %v321 = vsel %vm289, %v268, %v305
  %v322 = vsel %vm290, %v271, %v306
  %v323 = vsel %vm291, %v274, %v307
  %324 = vst [vmem:[#allocation2 + $0x80] sm:$0xff] %v308
  %325 = vst [vmem:[#allocation2 + $0x88] sm:$0xff] %v309
  %326 = vst [vmem:[#allocation2 + $0x90] sm:$0xff] %v310
  %327 = vst [vmem:[#allocation2 + $0x98] sm:$0xff] %v311
  %328 = vst [vmem:[#allocation2 + $0xa0] sm:$0xff] %v312
  %329 = vst [vmem:[#allocation2 + $0xa8] sm:$0xff] %v313
  %330 = vst [vmem:[#allocation2 + $0xb0] sm:$0xff] %v314
  %331 = vst [vmem:[#allocation2 + $0xb8] sm:$0xff] %v315
  %332 = vst [vmem:[#allocation2 + $0xc0] sm:$0xff] %v316
  %333 = vst [vmem:[#allocation2 + $0xc8] sm:$0xff] %v317
  %334 = vst [vmem:[#allocation2 + $0xd0] sm:$0xff] %v318
  %335 = vst [vmem:[#allocation2 + $0xd8] sm:$0xff] %v319
  %336 = vst [vmem:[#allocation2 + $0xe0] sm:$0xff] %v320
  %337 = vst [vmem:[#allocation2 + $0xe8] sm:$0xff] %v321
  %338 = vst [vmem:[#allocation2 + $0xf0] sm:$0xff] %v322
  %339 = vst [vmem:[#allocation2 + $0xf8] sm:$0xff] %v323
  %v340 = vld [vmem:[%s0 + $0x100] sm:$0xff]
  %v341 = vld [vmem:[%s0 + $0x108] sm:$0xff]
  %v342 = vld [vmem:[%s0 + $0x110] sm:$0xff]
  %v343 = vld [vmem:[%s0 + $0x118] sm:$0xff]
  %v344 = vld [vmem:[%s0 + $0x120] sm:$0xff]
  %v345 = vld [vmem:[%s0 + $0x128] sm:$0xff]
  %v346 = vld [vmem:[%s0 + $0x130] sm:$0xff]
  %v347 = vld [vmem:[%s0 + $0x138] sm:$0xff]
  %v348 = vld [vmem:[%s0 + $0x140] sm:$0xff]
  %v349 = vld [vmem:[%s0 + $0x148] sm:$0xff]
  %v350 = vld [vmem:[%s0 + $0x150] sm:$0xff]
  %v351 = vld [vmem:[%s0 + $0x158] sm:$0xff]
  %v352 = vld [vmem:[%s0 + $0x160] sm:$0xff]
  %v353 = vld [vmem:[%s0 + $0x168] sm:$0xff]
  %v354 = vld [vmem:[%s0 + $0x170] sm:$0xff]
  %v355 = vld [vmem:[%s0 + $0x178] sm:$0xff]
  %v356 = vld [vmem:[%s1] sm:$0xff]
  %v357 = vld [vmem:[%s1 + $0x8] sm:$0xff]
  %v358 = vld [vmem:[%s1 + $0x10] sm:$0xff]
  %v359 = vld [vmem:[%s1 + $0x18] sm:$0xff]
  %v360 = vld [vmem:[%s1 + $0x20] sm:$0xff]
  %v361 = vld [vmem:[%s1 + $0x28] sm:$0xff]
  %v362 = vld [vmem:[%s1 + $0x30] sm:$0xff]
  %v363 = vld [vmem:[%s1 + $0x38] sm:$0xff]
  %v364 = vld [vmem:[%s1 + $0x40] sm:$0xff]
  %v365 = vld [vmem:[%s1 + $0x48] sm:$0xff]
  %v366 = vld [vmem:[%s1 + $0x50] sm:$0xff]
  %v367 = vld [vmem:[%s1 + $0x58] sm:$0xff]
  %v368 = vld [vmem:[%s1 + $0x60] sm:$0xff]
  %v369 = vld [vmem:[%s1 + $0x68] sm:$0xff]
  %v370 = vld [vmem:[%s1 + $0x70] sm:$0xff]
  %v371 = vld [vmem:[%s1 + $0x78] sm:$0xff]
  %372 = vmatpush.msra.mxu0 %v371
  %373 = vmatpush.msra.mxu0 %v370
  %374 = vmatpush.msra.mxu0 %v369
  %375 = vmatpush.msra.mxu0 %v368
  %376 = vmatpush.msra.mxu0 %v367
  %377 = vmatpush.msra.mxu0 %v366
  %378 = vmatpush.msra.mxu0 %v365
  %379 = vmatpush.msra.mxu0 %v364
  %380 = vmatpush.msra.mxu0 %v363
  %381 = vmatpush.msra.mxu0 %v362
  %382 = vmatpush.msra.mxu0 %v361
  %383 = vmatpush.msra.mxu0 %v360
  %384 = vmatpush.msra.mxu0 %v359
  %385 = vmatpush.msra.mxu0 %v358
  %386 = vmatpush.msra.mxu0 %v357
  %387 = vmatpush.msra.mxu0 %v356
  %388 = vmatmul.f32.gmra.mxu0 %v340
  %v389 = vpop.f32.mrf.mxu0
  %v390 = vadd.f32 0.0, %v389
  %391 = vmatmul.f32.gmra.mxu0 %v341
  %v392 = vpop.f32.mrf.mxu0
  %v393 = vadd.f32 0.0, %v392
  %394 = vmatmul.f32.gmra.mxu0 %v342
  %v395 = vpop.f32.mrf.mxu0
  %v396 = vadd.f32 0.0, %v395
  %397 = vmatmul.f32.gmra.mxu0 %v343
  %v398 = vpop.f32.mrf.mxu0
  %v399 = vadd.f32 0.0, %v398
  %400 = vmatmul.f32.gmra.mxu0 %v344
  %v401 = vpop.f32.mrf.mxu0
  %v402 = vadd.f32 0.0, %v401
  %403 = vmatmul.f32.gmra.mxu0 %v345
  %v404 = vpop.f32.mrf.mxu0
  %v405 = vadd.f32 0.0, %v404
  %406 = vmatmul.f32.gmra.mxu0 %v346
  %v407 = vpop.f32.mrf.mxu0
  %v408 = vadd.f32 0.0, %v407
  %409 = vmatmul.f32.gmra.mxu0 %v347
  %v410 = vpop.f32.mrf.mxu0
  %v411 = vadd.f32 0.0, %v410
  %412 = vmatmul.f32.gmra.mxu0 %v348
  %v413 = vpop.f32.mrf.mxu0
  %v414 = vadd.f32 0.0, %v413
  %415 = vmatmul.f32.gmra.mxu0 %v349
  %v416 = vpop.f32.mrf.mxu0
  %v417 = vadd.f32 0.0, %v416
  %418 = vmatmul.f32.gmra.mxu0 %v350
  %v419 = vpop.f32.mrf.mxu0
  %v420 = vadd.f32 0.0, %v419
  %421 = vmatmul.f32.gmra.mxu0 %v351
  %v422 = vpop.f32.mrf.mxu0
  %v423 = vadd.f32 0.0, %v422
  %424 = vmatmul.f32.gmra.mxu0 %v352
  %v425 = vpop.f32.mrf.mxu0
  %v426 = vadd.f32 0.0, %v425
  %427 = vmatmul.f32.gmra.mxu0 %v353
  %v428 = vpop.f32.mrf.mxu0
  %v429 = vadd.f32 0.0, %v428
  %430 = vmatmul.f32.gmra.mxu0 %v354
  %v431 = vpop.f32.mrf.mxu0
  %v432 = vadd.f32 0.0, %v431
  %433 = vmatmul.f32.gmra.mxu0 %v355
  %v434 = vpop.f32.mrf.mxu0
  %v435 = vadd.f32 0.0, %v434
  %436 = vdwg.mxu0
  %vm437 = vcmp.gt.f32.partialorder %v390, 0.0
  %vm438 = vcmp.gt.f32.partialorder %v393, 0.0
  %vm439 = vcmp.gt.f32.partialorder %v396, 0.0
  %vm440 = vcmp.gt.f32.partialorder %v399, 0.0
  %vm441 = vcmp.gt.f32.partialorder %v402, 0.0
  %vm442 = vcmp.gt.f32.partialorder %v405, 0.0
  %vm443 = vcmp.gt.f32.partialorder %v408, 0.0
  %vm444 = vcmp.gt.f32.partialorder %v411, 0.0
  %vm445 = vcmp.gt.f32.partialorder %v414, 0.0
  %vm446 = vcmp.gt.f32.partialorder %v417, 0.0
  %vm447 = vcmp.gt.f32.partialorder %v420, 0.0
  %vm448 = vcmp.gt.f32.partialorder %v423, 0.0
  %vm449 = vcmp.gt.f32.partialorder %v426, 0.0
  %vm450 = vcmp.gt.f32.partialorder %v429, 0.0
  %vm451 = vcmp.gt.f32.partialorder %v432, 0.0
  %vm452 = vcmp.gt.f32.partialorder %v435, 0.0
  %v453 = vmul.f32 %v390, 0.01
  %v454 = vmul.f32 %v393, 0.01
  %v455 = vmul.f32 %v396, 0.01
  %v456 = vmul.f32 %v399, 0.01
  %v457 = vmul.f32 %v402, 0.01
  %v458 = vmul.f32 %v405, 0.01
  %v459 = vmul.f32 %v408, 0.01
  %v460 = vmul.f32 %v411, 0.01
  %v461 = vmul.f32 %v414, 0.01
  %v462 = vmul.f32 %v417, 0.01
  %v463 = vmul.f32 %v420, 0.01
  %v464 = vmul.f32 %v423, 0.01
  %v465 = vmul.f32 %v426, 0.01
  %v466 = vmul.f32 %v429, 0.01
  %v467 = vmul.f32 %v432, 0.01
  %v468 = vmul.f32 %v435, 0.01
  %v469 = vsel %vm437, %v390, %v453
  %v470 = vsel %vm438, %v393, %v454
  %v471 = vsel %vm439, %v396, %v455
  %v472 = vsel %vm440, %v399, %v456
  %v473 = vsel %vm441, %v402, %v457
  %v474 = vsel %vm442, %v405, %v458
  %v475 = vsel %vm443, %v408, %v459
  %v476 = vsel %vm444, %v411, %v460
  %v477 = vsel %vm445, %v414, %v461
  %v478 = vsel %vm446, %v417, %v462
  %v479 = vsel %vm447, %v420, %v463
  %v480 = vsel %vm448, %v423, %v464
  %v481 = vsel %vm449, %v426, %v465
  %v482 = vsel %vm450, %v429, %v466
  %v483 = vsel %vm451, %v432, %v467
  %v484 = vsel %vm452, %v435, %v468
  %485 = vst [vmem:[#allocation2 + $0x100] sm:$0xff] %v469
  %486 = vst [vmem:[#allocation2 + $0x108] sm:$0xff] %v470
  %487 = vst [vmem:[#allocation2 + $0x110] sm:$0xff] %v471
  %488 = vst [vmem:[#allocation2 + $0x118] sm:$0xff] %v472
  %489 = vst [vmem:[#allocation2 + $0x120] sm:$0xff] %v473
  %490 = vst [vmem:[#allocation2 + $0x128] sm:$0xff] %v474
  %491 = vst [vmem:[#allocation2 + $0x130] sm:$0xff] %v475
  %492 = vst [vmem:[#allocation2 + $0x138] sm:$0xff] %v476
  %493 = vst [vmem:[#allocation2 + $0x140] sm:$0xff] %v477
  %494 = vst [vmem:[#allocation2 + $0x148] sm:$0xff] %v478
  %495 = vst [vmem:[#allocation2 + $0x150] sm:$0xff] %v479
  %496 = vst [vmem:[#allocation2 + $0x158] sm:$0xff] %v480
  %497 = vst [vmem:[#allocation2 + $0x160] sm:$0xff] %v481
  %498 = vst [vmem:[#allocation2 + $0x168] sm:$0xff] %v482
  %499 = vst [vmem:[#allocation2 + $0x170] sm:$0xff] %v483
  %500 = vst [vmem:[#allocation2 + $0x178] sm:$0xff] %v484
  %v501 = vld [vmem:[%s0 + $0x180] sm:$0xff]
  %v502 = vld [vmem:[%s0 + $0x188] sm:$0xff]
  %v503 = vld [vmem:[%s0 + $0x190] sm:$0xff]
  %v504 = vld [vmem:[%s0 + $0x198] sm:$0xff]
  %v505 = vld [vmem:[%s0 + $0x1a0] sm:$0xff]
  %v506 = vld [vmem:[%s0 + $0x1a8] sm:$0xff]
  %v507 = vld [vmem:[%s0 + $0x1b0] sm:$0xff]
  %v508 = vld [vmem:[%s0 + $0x1b8] sm:$0xff]
  %v509 = vld [vmem:[%s0 + $0x1c0] sm:$0xff]
  %v510 = vld [vmem:[%s0 + $0x1c8] sm:$0xff]
  %v511 = vld [vmem:[%s0 + $0x1d0] sm:$0xff]
  %v512 = vld [vmem:[%s0 + $0x1d8] sm:$0xff]
  %v513 = vld [vmem:[%s0 + $0x1e0] sm:$0xff]
  %v514 = vld [vmem:[%s0 + $0x1e8] sm:$0xff]
  %v515 = vld [vmem:[%s0 + $0x1f0] sm:$0xff]
  %v516 = vld [vmem:[%s0 + $0x1f8] sm:$0xff]
  %v517 = vld [vmem:[%s1] sm:$0xff]
  %v518 = vld [vmem:[%s1 + $0x8] sm:$0xff]
  %v519 = vld [vmem:[%s1 + $0x10] sm:$0xff]
  %v520 = vld [vmem:[%s1 + $0x18] sm:$0xff]
  %v521 = vld [vmem:[%s1 + $0x20] sm:$0xff]
  %v522 = vld [vmem:[%s1 + $0x28] sm:$0xff]
  %v523 = vld [vmem:[%s1 + $0x30] sm:$0xff]
  %v524 = vld [vmem:[%s1 + $0x38] sm:$0xff]
  %v525 = vld [vmem:[%s1 + $0x40] sm:$0xff]
  %v526 = vld [vmem:[%s1 + $0x48] sm:$0xff]
  %v527 = vld [vmem:[%s1 + $0x50] sm:$0xff]
  %v528 = vld [vmem:[%s1 + $0x58] sm:$0xff]
  %v529 = vld [vmem:[%s1 + $0x60] sm:$0xff]
  %v530 = vld [vmem:[%s1 + $0x68] sm:$0xff]
  %v531 = vld [vmem:[%s1 + $0x70] sm:$0xff]
  %v532 = vld [vmem:[%s1 + $0x78] sm:$0xff]
  %533 = vmatpush.msra.mxu0 %v532
  %534 = vmatpush.msra.mxu0 %v531
  %535 = vmatpush.msra.mxu0 %v530
  %536 = vmatpush.msra.mxu0 %v529
  %537 = vmatpush.msra.mxu0 %v528
  %538 = vmatpush.msra.mxu0 %v527
  %539 = vmatpush.msra.mxu0 %v526
  %540 = vmatpush.msra.mxu0 %v525
  %541 = vmatpush.msra.mxu0 %v524
  %542 = vmatpush.msra.mxu0 %v523
  %543 = vmatpush.msra.mxu0 %v522
  %544 = vmatpush.msra.mxu0 %v521
  %545 = vmatpush.msra.mxu0 %v520
  %546 = vmatpush.msra.mxu0 %v519
  %547 = vmatpush.msra.mxu0 %v518
  %548 = vmatpush.msra.mxu0 %v517
  %549 = vmatmul.f32.gmra.mxu0 %v501
  %v550 = vpop.f32.mrf.mxu0
  %v551 = vadd.f32 0.0, %v550
  %552 = vmatmul.f32.gmra.mxu0 %v502
  %v553 = vpop.f32.mrf.mxu0
  %v554 = vadd.f32 0.0, %v553
  %555 = vmatmul.f32.gmra.mxu0 %v503
  %v556 = vpop.f32.mrf.mxu0
  %v557 = vadd.f32 0.0, %v556
  %558 = vmatmul.f32.gmra.mxu0 %v504
  %v559 = vpop.f32.mrf.mxu0
  %v560 = vadd.f32 0.0, %v559
  %561 = vmatmul.f32.gmra.mxu0 %v505
  %v562 = vpop.f32.mrf.mxu0
  %v563 = vadd.f32 0.0, %v562
  %564 = vmatmul.f32.gmra.mxu0 %v506
  %v565 = vpop.f32.mrf.mxu0
  %v566 = vadd.f32 0.0, %v565
  %567 = vmatmul.f32.gmra.mxu0 %v507
  %v568 = vpop.f32.mrf.mxu0
  %v569 = vadd.f32 0.0, %v568
  %570 = vmatmul.f32.gmra.mxu0 %v508
  %v571 = vpop.f32.mrf.mxu0
  %v572 = vadd.f32 0.0, %v571
  %573 = vmatmul.f32.gmra.mxu0 %v509
  %v574 = vpop.f32.mrf.mxu0
  %v575 = vadd.f32 0.0, %v574
  %576 = vmatmul.f32.gmra.mxu0 %v510
  %v577 = vpop.f32.mrf.mxu0
  %v578 = vadd.f32 0.0, %v577
  %579 = vmatmul.f32.gmra.mxu0 %v511
  %v580 = vpop.f32.mrf.mxu0
  %v581 = vadd.f32 0.0, %v580
  %582 = vmatmul.f32.gmra.mxu0 %v512
  %v583 = vpop.f32.mrf.mxu0
  %v584 = vadd.f32 0.0, %v583
  %585 = vmatmul.f32.gmra.mxu0 %v513
  %v586 = vpop.f32.mrf.mxu0
  %v587 = vadd.f32 0.0, %v586
  %588 = vmatmul.f32.gmra.mxu0 %v514
  %v589 = vpop.f32.mrf.mxu0
  %v590 = vadd.f32 0.0, %v589
  %591 = vmatmul.f32.gmra.mxu0 %v515
  %v592 = vpop.f32.mrf.mxu0
  %v593 = vadd.f32 0.0, %v592
  %594 = vmatmul.f32.gmra.mxu0 %v516
  %v595 = vpop.f32.mrf.mxu0
  %v596 = vadd.f32 0.0, %v595
  %597 = vdwg.mxu0
  %vm598 = vcmp.gt.f32.partialorder %v551, 0.0
  %vm599 = vcmp.gt.f32.partialorder %v554, 0.0
  %vm600 = vcmp.gt.f32.partialorder %v557, 0.0
  %vm601 = vcmp.gt.f32.partialorder %v560, 0.0
  %vm602 = vcmp.gt.f32.partialorder %v563, 0.0
  %vm603 = vcmp.gt.f32.partialorder %v566, 0.0
  %vm604 = vcmp.gt.f32.partialorder %v569, 0.0
  %vm605 = vcmp.gt.f32.partialorder %v572, 0.0
  %vm606 = vcmp.gt.f32.partialorder %v575, 0.0
  %vm607 = vcmp.gt.f32.partialorder %v578, 0.0
  %vm608 = vcmp.gt.f32.partialorder %v581, 0.0
  %vm609 = vcmp.gt.f32.partialorder %v584, 0.0
  %vm610 = vcmp.gt.f32.partialorder %v587, 0.0
  %vm611 = vcmp.gt.f32.partialorder %v590, 0.0
  %vm612 = vcmp.gt.f32.partialorder %v593, 0.0
  %vm613 = vcmp.gt.f32.partialorder %v596, 0.0
  %v614 = vmul.f32 %v551, 0.01
  %v615 = vmul.f32 %v554, 0.01
  %v616 = vmul.f32 %v557, 0.01
  %v617 = vmul.f32 %v560, 0.01
  %v618 = vmul.f32 %v563, 0.01
  %v619 = vmul.f32 %v566, 0.01
  %v620 = vmul.f32 %v569, 0.01
  %v621 = vmul.f32 %v572, 0.01
  %v622 = vmul.f32 %v575, 0.01
  %v623 = vmul.f32 %v578, 0.01
  %v624 = vmul.f32 %v581, 0.01
  %v625 = vmul.f32 %v584, 0.01
  %v626 = vmul.f32 %v587, 0.01
  %v627 = vmul.f32 %v590, 0.01
  %v628 = vmul.f32 %v593, 0.01
  %v629 = vmul.f32 %v596, 0.01
  %v630 = vsel %vm598, %v551, %v614
  %v631 = vsel %vm599, %v554, %v615
  %v632 = vsel %vm600, %v557, %v616
  %v633 = vsel %vm601, %v560, %v617
  %v634 = vsel %vm602, %v563, %v618
  %v635 = vsel %vm603, %v566, %v619
  %v636 = vsel %vm604, %v569, %v620
  %v637 = vsel %vm605, %v572, %v621
  %v638 = vsel %vm606, %v575, %v622
  %v639 = vsel %vm607, %v578, %v623
  %v640 = vsel %vm608, %v581, %v624
  %v641 = vsel %vm609, %v584, %v625
  %v642 = vsel %vm610, %v587, %v626
  %v643 = vsel %vm611, %v590, %v627
  %v644 = vsel %vm612, %v593, %v628
  %v645 = vsel %vm613, %v596, %v629
  %646 = vst [vmem:[#allocation2 + $0x180] sm:$0xff] %v630
  %647 = vst [vmem:[#allocation2 + $0x188] sm:$0xff] %v631
  %648 = vst [vmem:[#allocation2 + $0x190] sm:$0xff] %v632
  %649 = vst [vmem:[#allocation2 + $0x198] sm:$0xff] %v633
  %650 = vst [vmem:[#allocation2 + $0x1a0] sm:$0xff] %v634
  %651 = vst [vmem:[#allocation2 + $0x1a8] sm:$0xff] %v635
  %652 = vst [vmem:[#allocation2 + $0x1b0] sm:$0xff] %v636
  %653 = vst [vmem:[#allocation2 + $0x1b8] sm:$0xff] %v637
  %654 = vst [vmem:[#allocation2 + $0x1c0] sm:$0xff] %v638
  %655 = vst [vmem:[#allocation2 + $0x1c8] sm:$0xff] %v639
  %656 = vst [vmem:[#allocation2 + $0x1d0] sm:$0xff] %v640
  %657 = vst [vmem:[#allocation2 + $0x1d8] sm:$0xff] %v641
  %658 = vst [vmem:[#allocation2 + $0x1e0] sm:$0xff] %v642
  %659 = vst [vmem:[#allocation2 + $0x1e8] sm:$0xff] %v643
  %660 = vst [vmem:[#allocation2 + $0x1f0] sm:$0xff] %v644
  %661 = vst [vmem:[#allocation2 + $0x1f8] sm:$0xff] %v645
  %v662 = vld [vmem:[%s0 + $0x200] sm:$0xff]
  %v663 = vld [vmem:[%s0 + $0x208] sm:$0xff]
  %v664 = vld [vmem:[%s0 + $0x210] sm:$0xff]
  %v665 = vld [vmem:[%s0 + $0x218] sm:$0xff]
  %v666 = vld [vmem:[%s0 + $0x220] sm:$0xff]
  %v667 = vld [vmem:[%s0 + $0x228] sm:$0xff]
  %v668 = vld [vmem:[%s0 + $0x230] sm:$0xff]
  %v669 = vld [vmem:[%s0 + $0x238] sm:$0xff]
  %v670 = vld [vmem:[%s0 + $0x240] sm:$0xff]
  %v671 = vld [vmem:[%s0 + $0x248] sm:$0xff]
  %v672 = vld [vmem:[%s0 + $0x250] sm:$0xff]
  %v673 = vld [vmem:[%s0 + $0x258] sm:$0xff]
  %v674 = vld [vmem:[%s0 + $0x260] sm:$0xff]
  %v675 = vld [vmem:[%s0 + $0x268] sm:$0xff]
  %v676 = vld [vmem:[%s0 + $0x270] sm:$0xff]
  %v677 = vld [vmem:[%s0 + $0x278] sm:$0xff]
  %v678 = vld [vmem:[%s1] sm:$0xff]
  %v679 = vld [vmem:[%s1 + $0x8] sm:$0xff]
  %v680 = vld [vmem:[%s1 + $0x10] sm:$0xff]
  %v681 = vld [vmem:[%s1 + $0x18] sm:$0xff]
  %v682 = vld [vmem:[%s1 + $0x20] sm:$0xff]
  %v683 = vld [vmem:[%s1 + $0x28] sm:$0xff]
  %v684 = vld [vmem:[%s1 + $0x30] sm:$0xff]
  %v685 = vld [vmem:[%s1 + $0x38] sm:$0xff]
  %v686 = vld [vmem:[%s1 + $0x40] sm:$0xff]
  %v687 = vld [vmem:[%s1 + $0x48] sm:$0xff]
  %v688 = vld [vmem:[%s1 + $0x50] sm:$0xff]
  %v689 = vld [vmem:[%s1 + $0x58] sm:$0xff]
  %v690 = vld [vmem:[%s1 + $0x60] sm:$0xff]
  %v691 = vld [vmem:[%s1 + $0x68] sm:$0xff]
  %v692 = vld [vmem:[%s1 + $0x70] sm:$0xff]
  %v693 = vld [vmem:[%s1 + $0x78] sm:$0xff]
  %694 = vmatpush.msra.mxu0 %v693
  %695 = vmatpush.msra.mxu0 %v692
  %696 = vmatpush.msra.mxu0 %v691
  %697 = vmatpush.msra.mxu0 %v690
  %698 = vmatpush.msra.mxu0 %v689
  %699 = vmatpush.msra.mxu0 %v688
  %700 = vmatpush.msra.mxu0 %v687
  %701 = vmatpush.msra.mxu0 %v686
  %702 = vmatpush.msra.mxu0 %v685
  %703 = vmatpush.msra.mxu0 %v684
  %704 = vmatpush.msra.mxu0 %v683
  %705 = vmatpush.msra.mxu0 %v682
  %706 = vmatpush.msra.mxu0 %v681
  %707 = vmatpush.msra.mxu0 %v680
  %708 = vmatpush.msra.mxu0 %v679
  %709 = vmatpush.msra.mxu0 %v678
  %710 = vmatmul.f32.gmra.mxu0 %v662
  %v711 = vpop.f32.mrf.mxu0
  %v712 = vadd.f32 0.0, %v711
  %713 = vmatmul.f32.gmra.mxu0 %v663
  %v714 = vpop.f32.mrf.mxu0
  %v715 = vadd.f32 0.0, %v714
  %716 = vmatmul.f32.gmra.mxu0 %v664
  %v717 = vpop.f32.mrf.mxu0
  %v718 = vadd.f32 0.0, %v717
  %719 = vmatmul.f32.gmra.mxu0 %v665
  %v720 = vpop.f32.mrf.mxu0
  %v721 = vadd.f32 0.0, %v720
  %722 = vmatmul.f32.gmra.mxu0 %v666
  %v723 = vpop.f32.mrf.mxu0
  %v724 = vadd.f32 0.0, %v723
  %725 = vmatmul.f32.gmra.mxu0 %v667
  %v726 = vpop.f32.mrf.mxu0
  %v727 = vadd.f32 0.0, %v726
  %728 = vmatmul.f32.gmra.mxu0 %v668
  %v729 = vpop.f32.mrf.mxu0
  %v730 = vadd.f32 0.0, %v729
  %731 = vmatmul.f32.gmra.mxu0 %v669
  %v732 = vpop.f32.mrf.mxu0
  %v733 = vadd.f32 0.0, %v732
  %734 = vmatmul.f32.gmra.mxu0 %v670
  %v735 = vpop.f32.mrf.mxu0
  %v736 = vadd.f32 0.0, %v735
  %737 = vmatmul.f32.gmra.mxu0 %v671
  %v738 = vpop.f32.mrf.mxu0
  %v739 = vadd.f32 0.0, %v738
  %740 = vmatmul.f32.gmra.mxu0 %v672
  %v741 = vpop.f32.mrf.mxu0
  %v742 = vadd.f32 0.0, %v741
  %743 = vmatmul.f32.gmra.mxu0 %v673
  %v744 = vpop.f32.mrf.mxu0
  %v745 = vadd.f32 0.0, %v744
  %746 = vmatmul.f32.gmra.mxu0 %v674
  %v747 = vpop.f32.mrf.mxu0
  %v748 = vadd.f32 0.0, %v747
  %749 = vmatmul.f32.gmra.mxu0 %v675
  %v750 = vpop.f32.mrf.mxu0
  %v751 = vadd.f32 0.0, %v750
  %752 = vmatmul.f32.gmra.mxu0 %v676
  %v753 = vpop.f32.mrf.mxu0
  %v754 = vadd.f32 0.0, %v753
  %755 = vmatmul.f32.gmra.mxu0 %v677
  %v756 = vpop.f32.mrf.mxu0
  %v757 = vadd.f32 0.0, %v756
  %758 = vdwg.mxu0
  %vm759 = vcmp.gt.f32.partialorder %v712, 0.0
  %vm760 = vcmp.gt.f32.partialorder %v715, 0.0
  %vm761 = vcmp.gt.f32.partialorder %v718, 0.0
  %vm762 = vcmp.gt.f32.partialorder %v721, 0.0
  %vm763 = vcmp.gt.f32.partialorder %v724, 0.0
  %vm764 = vcmp.gt.f32.partialorder %v727, 0.0
  %vm765 = vcmp.gt.f32.partialorder %v730, 0.0
  %vm766 = vcmp.gt.f32.partialorder %v733, 0.0
  %vm767 = vcmp.gt.f32.partialorder %v736, 0.0
  %vm768 = vcmp.gt.f32.partialorder %v739, 0.0
  %vm769 = vcmp.gt.f32.partialorder %v742, 0.0
  %vm770 = vcmp.gt.f32.partialorder %v745, 0.0
  %vm771 = vcmp.gt.f32.partialorder %v748, 0.0
  %vm772 = vcmp.gt.f32.partialorder %v751, 0.0
  %vm773 = vcmp.gt.f32.partialorder %v754, 0.0
  %vm774 = vcmp.gt.f32.partialorder %v757, 0.0
  %v775 = vmul.f32 %v712, 0.01
  %v776 = vmul.f32 %v715, 0.01
  %v777 = vmul.f32 %v718, 0.01
  %v778 = vmul.f32 %v721, 0.01
  %v779 = vmul.f32 %v724, 0.01
  %v780 = vmul.f32 %v727, 0.01
  %v781 = vmul.f32 %v730, 0.01
  %v782 = vmul.f32 %v733, 0.01
  %v783 = vmul.f32 %v736, 0.01
  %v784 = vmul.f32 %v739, 0.01
  %v785 = vmul.f32 %v742, 0.01
  %v786 = vmul.f32 %v745, 0.01
  %v787 = vmul.f32 %v748, 0.01
  %v788 = vmul.f32 %v751, 0.01
  %v789 = vmul.f32 %v754, 0.01
  %v790 = vmul.f32 %v757, 0.01
  %v791 = vsel %vm759, %v712, %v775
  %v792 = vsel %vm760, %v715, %v776
  %v793 = vsel %vm761, %v718, %v777
  %v794 = vsel %vm762, %v721, %v778
  %v795 = vsel %vm763, %v724, %v779
  %v796 = vsel %vm764, %v727, %v780
  %v797 = vsel %vm765, %v730, %v781
  %v798 = vsel %vm766, %v733, %v782
  %v799 = vsel %vm767, %v736, %v783
  %v800 = vsel %vm768, %v739, %v784
  %v801 = vsel %vm769, %v742, %v785
  %v802 = vsel %vm770, %v745, %v786
  %v803 = vsel %vm771, %v748, %v787
  %v804 = vsel %vm772, %v751, %v788
  %v805 = vsel %vm773, %v754, %v789
  %v806 = vsel %vm774, %v757, %v790
  %807 = vst [vmem:[#allocation2 + $0x200] sm:$0xff] %v791
  %808 = vst [vmem:[#allocation2 + $0x208] sm:$0xff] %v792
  %809 = vst [vmem:[#allocation2 + $0x210] sm:$0xff] %v793
  %810 = vst [vmem:[#allocation2 + $0x218] sm:$0xff] %v794
  %811 = vst [vmem:[#allocation2 + $0x220] sm:$0xff] %v795
  %812 = vst [vmem:[#allocation2 + $0x228] sm:$0xff] %v796
  %813 = vst [vmem:[#allocation2 + $0x230] sm:$0xff] %v797
  %814 = vst [vmem:[#allocation2 + $0x238] sm:$0xff] %v798
  %815 = vst [vmem:[#allocation2 + $0x240] sm:$0xff] %v799
  %816 = vst [vmem:[#allocation2 + $0x248] sm:$0xff] %v800
  %817 = vst [vmem:[#allocation2 + $0x250] sm:$0xff] %v801
  %818 = vst [vmem:[#allocation2 + $0x258] sm:$0xff] %v802
  %819 = vst [vmem:[#allocation2 + $0x260] sm:$0xff] %v803
  %820 = vst [vmem:[#allocation2 + $0x268] sm:$0xff] %v804
  %821 = vst [vmem:[#allocation2 + $0x270] sm:$0xff] %v805
  %822 = vst [vmem:[#allocation2 + $0x278] sm:$0xff] %v806
  %v823 = vld [vmem:[%s0 + $0x280] sm:$0xff]
  %v824 = vld [vmem:[%s1] sm:$0xff]
  %v825 = vld [vmem:[%s1 + $0x8] sm:$0xff]
  %v826 = vld [vmem:[%s1 + $0x10] sm:$0xff]
  %v827 = vld [vmem:[%s1 + $0x18] sm:$0xff]
  %v828 = vld [vmem:[%s1 + $0x20] sm:$0xff]
  %v829 = vld [vmem:[%s1 + $0x28] sm:$0xff]
  %v830 = vld [vmem:[%s1 + $0x30] sm:$0xff]
  %v831 = vld [vmem:[%s1 + $0x38] sm:$0xff]
  %v832 = vld [vmem:[%s1 + $0x40] sm:$0xff]
  %v833 = vld [vmem:[%s1 + $0x48] sm:$0xff]
  %v834 = vld [vmem:[%s1 + $0x50] sm:$0xff]
  %v835 = vld [vmem:[%s1 + $0x58] sm:$0xff]
  %v836 = vld [vmem:[%s1 + $0x60] sm:$0xff]
  %v837 = vld [vmem:[%s1 + $0x68] sm:$0xff]
  %v838 = vld [vmem:[%s1 + $0x70] sm:$0xff]
  %v839 = vld [vmem:[%s1 + $0x78] sm:$0xff]
  %840 = vmatpush.msra.mxu0 %v839
  %841 = vmatpush.msra.mxu0 %v838
  %842 = vmatpush.msra.mxu0 %v837
  %843 = vmatpush.msra.mxu0 %v836
  %844 = vmatpush.msra.mxu0 %v835
  %845 = vmatpush.msra.mxu0 %v834
  %846 = vmatpush.msra.mxu0 %v833
  %847 = vmatpush.msra.mxu0 %v832
  %848 = vmatpush.msra.mxu0 %v831
  %849 = vmatpush.msra.mxu0 %v830
  %850 = vmatpush.msra.mxu0 %v829
  %851 = vmatpush.msra.mxu0 %v828
  %852 = vmatpush.msra.mxu0 %v827
  %853 = vmatpush.msra.mxu0 %v826
  %854 = vmatpush.msra.mxu0 %v825
  %855 = vmatpush.msra.mxu0 %v824
  %856 = vmatmul.f32.gmra.mxu0 %v823
  %v857 = vpop.f32.mrf.mxu0
  %v858 = vadd.f32 0.0, %v857
  %859 = vdwg.mxu0
  %vm860 = vcmp.gt.f32.partialorder %v858, 0.0
  %v861 = vmul.f32 %v858, 0.01
  %v862 = vsel %vm860, %v858, %v861
  %863 = vst [vmem:[#allocation2 + $0x280] sm:$0xff] %v862
  %v864 = vld [vmem:[%s3] sm:$0x1]
  %v865 = vld [vmem:[#allocation2] sm:$0xff]
  %v866 = vld [vmem:[#allocation2 + $0x8] sm:$0xff]
  %v867 = vld [vmem:[#allocation2 + $0x10] sm:$0xff]
  %v868 = vld [vmem:[#allocation2 + $0x18] sm:$0xff]
  %v869 = vld [vmem:[#allocation2 + $0x20] sm:$0xff]
  %v870 = vld [vmem:[#allocation2 + $0x28] sm:$0xff]
  %v871 = vld [vmem:[#allocation2 + $0x30] sm:$0xff]
  %v872 = vld [vmem:[#allocation2 + $0x38] sm:$0xff]
  %v873 = vld [vmem:[#allocation2 + $0x40] sm:$0xff]
  %v874 = vld [vmem:[#allocation2 + $0x48] sm:$0xff]
  %v875 = vld [vmem:[#allocation2 + $0x50] sm:$0xff]
  %v876 = vld [vmem:[#allocation2 + $0x58] sm:$0xff]
  %v877 = vld [vmem:[#allocation2 + $0x60] sm:$0xff]
  %v878 = vld [vmem:[#allocation2 + $0x68] sm:$0xff]
  %v879 = vld [vmem:[#allocation2 + $0x70] sm:$0xff]
  %v880 = vld [vmem:[#allocation2 + $0x78] sm:$0xff]
  %v881 = vld [vmem:[%s2] sm:$0xff]
  %v882 = vld [vmem:[%s2 + $0x8] sm:$0xff]
  %v883 = vld [vmem:[%s2 + $0x10] sm:$0xff]
  %v884 = vld [vmem:[%s2 + $0x18] sm:$0xff]
  %v885 = vld [vmem:[%s2 + $0x20] sm:$0xff]
  %v886 = vld [vmem:[%s2 + $0x28] sm:$0xff]
  %v887 = vld [vmem:[%s2 + $0x30] sm:$0xff]
  %v888 = vld [vmem:[%s2 + $0x38] sm:$0xff]
  %v889 = vld [vmem:[%s2 + $0x40] sm:$0xff]
  %v890 = vld [vmem:[%s2 + $0x48] sm:$0xff]
  %v891 = vld [vmem:[%s2 + $0x50] sm:$0xff]
  %v892 = vld [vmem:[%s2 + $0x58] sm:$0xff]
  %v893 = vld [vmem:[%s2 + $0x60] sm:$0xff]
  %v894 = vld [vmem:[%s2 + $0x68] sm:$0xff]
  %v895 = vld [vmem:[%s2 + $0x70] sm:$0xff]
  %v896 = vld [vmem:[%s2 + $0x78] sm:$0xff]
  %v897 = vld [vmem:[#allocation2 + $0x1] sm:$0xff]
  %v898 = vld [vmem:[#allocation2 + $0x9] sm:$0xff]
  %v899 = vld [vmem:[#allocation2 + $0x11] sm:$0xff]
  %v900 = vld [vmem:[#allocation2 + $0x19] sm:$0xff]
  %v901 = vld [vmem:[#allocation2 + $0x21] sm:$0xff]
  %v902 = vld [vmem:[#allocation2 + $0x29] sm:$0xff]
  %v903 = vld [vmem:[#allocation2 + $0x31] sm:$0xff]
  %v904 = vld [vmem:[#allocation2 + $0x39] sm:$0xff]
  %v905 = vld [vmem:[#allocation2 + $0x41] sm:$0xff]
  %v906 = vld [vmem:[#allocation2 + $0x49] sm:$0xff]
  %v907 = vld [vmem:[#allocation2 + $0x51] sm:$0xff]
  %v908 = vld [vmem:[#allocation2 + $0x59] sm:$0xff]
  %v909 = vld [vmem:[#allocation2 + $0x61] sm:$0xff]
  %v910 = vld [vmem:[#allocation2 + $0x69] sm:$0xff]
  %v911 = vld [vmem:[#allocation2 + $0x71] sm:$0xff]
  %v912 = vld [vmem:[#allocation2 + $0x79] sm:$0xff]
  %s913 = scalar_lea.vmem %s2, 128
  %v914 = vld [vmem:[%s913] sm:$0xff]
  %v915 = vld [vmem:[%s913 + $0x8] sm:$0xff]
  %v916 = vld [vmem:[%s913 + $0x10] sm:$0xff]
  %v917 = vld [vmem:[%s913 + $0x18] sm:$0xff]
  %v918 = vld [vmem:[%s913 + $0x20] sm:$0xff]
  %v919 = vld [vmem:[%s913 + $0x28] sm:$0xff]
  %v920 = vld [vmem:[%s913 + $0x30] sm:$0xff]
  %v921 = vld [vmem:[%s913 + $0x38] sm:$0xff]
  %v922 = vld [vmem:[%s913 + $0x40] sm:$0xff]
  %v923 = vld [vmem:[%s913 + $0x48] sm:$0xff]
  %v924 = vld [vmem:[%s913 + $0x50] sm:$0xff]
  %v925 = vld [vmem:[%s913 + $0x58] sm:$0xff]
  %v926 = vld [vmem:[%s913 + $0x60] sm:$0xff]
  %v927 = vld [vmem:[%s913 + $0x68] sm:$0xff]
  %v928 = vld [vmem:[%s913 + $0x70] sm:$0xff]
  %v929 = vld [vmem:[%s913 + $0x78] sm:$0xff]
  %930 = vmatpush.msra.mxu0 %v929
  %931 = vmatpush.msra.mxu0 %v928
  %932 = vmatpush.msra.mxu0 %v927
  %933 = vmatpush.msra.mxu0 %v926
  %934 = vmatpush.msra.mxu0 %v925
  %935 = vmatpush.msra.mxu0 %v924
  %936 = vmatpush.msra.mxu0 %v923
  %937 = vmatpush.msra.mxu0 %v922
  %938 = vmatpush.msra.mxu0 %v921
  %939 = vmatpush.msra.mxu0 %v920
  %940 = vmatpush.msra.mxu0 %v919
  %941 = vmatpush.msra.mxu0 %v918
  %942 = vmatpush.msra.mxu0 %v917
  %943 = vmatpush.msra.mxu0 %v916
  %944 = vmatpush.msra.mxu0 %v915
  %945 = vmatpush.msra.mxu0 %v914
  %946 = vmatmul.f32.gmra.mxu0 %v897
  %v947 = vpop.f32.mrf.mxu0
  %v948 = vadd.f32 0.0, %v947
  %949 = vmatmul.f32.gmra.mxu0 %v898
  %v950 = vpop.f32.mrf.mxu0
  %v951 = vadd.f32 0.0, %v950
  %952 = vmatmul.f32.gmra.mxu0 %v899
  %v953 = vpop.f32.mrf.mxu0
  %v954 = vadd.f32 0.0, %v953
  %955 = vmatmul.f32.gmra.mxu0 %v900
  %v956 = vpop.f32.mrf.mxu0
  %v957 = vadd.f32 0.0, %v956
  %958 = vmatmul.f32.gmra.mxu0 %v901
  %v959 = vpop.f32.mrf.mxu0
  %v960 = vadd.f32 0.0, %v959
  %961 = vmatmul.f32.gmra.mxu0 %v902
  %v962 = vpop.f32.mrf.mxu0
  %v963 = vadd.f32 0.0, %v962
  %964 = vmatmul.f32.gmra.mxu0 %v903
  %v965 = vpop.f32.mrf.mxu0
  %v966 = vadd.f32 0.0, %v965
  %967 = vmatmul.f32.gmra.mxu0 %v904
  %v968 = vpop.f32.mrf.mxu0
  %v969 = vadd.f32 0.0, %v968
  %970 = vmatmul.f32.gmra.mxu0 %v905
  %v971 = vpop.f32.mrf.mxu0
  %v972 = vadd.f32 0.0, %v971
  %973 = vmatmul.f32.gmra.mxu0 %v906
  %v974 = vpop.f32.mrf.mxu0
  %v975 = vadd.f32 0.0, %v974
  %976 = vmatmul.f32.gmra.mxu0 %v907
  %v977 = vpop.f32.mrf.mxu0
  %v978 = vadd.f32 0.0, %v977
  %979 = vmatmul.f32.gmra.mxu0 %v908
  %v980 = vpop.f32.mrf.mxu0
  %v981 = vadd.f32 0.0, %v980
  %982 = vmatmul.f32.gmra.mxu0 %v909
  %v983 = vpop.f32.mrf.mxu0
  %v984 = vadd.f32 0.0, %v983
  %985 = vmatmul.f32.gmra.mxu0 %v910
  %v986 = vpop.f32.mrf.mxu0
  %v987 = vadd.f32 0.0, %v986
  %988 = vmatmul.f32.gmra.mxu0 %v911
  %v989 = vpop.f32.mrf.mxu0
  %v990 = vadd.f32 0.0, %v989
  %991 = vmatmul.f32.gmra.mxu0 %v912
  %v992 = vpop.f32.mrf.mxu0
  %v993 = vadd.f32 0.0, %v992
  %994 = vdwg.mxu0
  %995 = vmatpush.msra.mxu0 %v896
  %996 = vmatpush.msra.mxu0 %v895
  %997 = vmatpush.msra.mxu0 %v894
  %998 = vmatpush.msra.mxu0 %v893
  %999 = vmatpush.msra.mxu0 %v892
  %1000 = vmatpush.msra.mxu0 %v891
  %1001 = vmatpush.msra.mxu0 %v890
  %1002 = vmatpush.msra.mxu0 %v889
  %1003 = vmatpush.msra.mxu0 %v888
  %1004 = vmatpush.msra.mxu0 %v887
  %1005 = vmatpush.msra.mxu0 %v886
  %1006 = vmatpush.msra.mxu0 %v885
  %1007 = vmatpush.msra.mxu0 %v884
  %1008 = vmatpush.msra.mxu0 %v883
  %1009 = vmatpush.msra.mxu0 %v882
  %1010 = vmatpush.msra.mxu0 %v881
  %1011 = vmatmul.f32.gmra.mxu0 %v865
  %v1012 = vpop.f32.mrf.mxu0
  %v1013 = vadd.f32 %v948, %v1012
  %1014 = vmatmul.f32.gmra.mxu0 %v866
  %v1015 = vpop.f32.mrf.mxu0
  %v1016 = vadd.f32 %v951, %v1015
  %1017 = vmatmul.f32.gmra.mxu0 %v867
  %v1018 = vpop.f32.mrf.mxu0
  %v1019 = vadd.f32 %v954, %v1018
  %1020 = vmatmul.f32.gmra.mxu0 %v868
  %v1021 = vpop.f32.mrf.mxu0
  %v1022 = vadd.f32 %v957, %v1021
  %1023 = vmatmul.f32.gmra.mxu0 %v869
  %v1024 = vpop.f32.mrf.mxu0
  %v1025 = vadd.f32 %v960, %v1024
  %1026 = vmatmul.f32.gmra.mxu0 %v870
  %v1027 = vpop.f32.mrf.mxu0
  %v1028 = vadd.f32 %v963, %v1027
  %1029 = vmatmul.f32.gmra.mxu0 %v871
  %v1030 = vpop.f32.mrf.mxu0
  %v1031 = vadd.f32 %v966, %v1030
  %1032 = vmatmul.f32.gmra.mxu0 %v872
  %v1033 = vpop.f32.mrf.mxu0
  %v1034 = vadd.f32 %v969, %v1033
  %1035 = vmatmul.f32.gmra.mxu0 %v873
  %v1036 = vpop.f32.mrf.mxu0
  %v1037 = vadd.f32 %v972, %v1036
  %1038 = vmatmul.f32.gmra.mxu0 %v874
  %v1039 = vpop.f32.mrf.mxu0
  %v1040 = vadd.f32 %v975, %v1039
  %1041 = vmatmul.f32.gmra.mxu0 %v875
  %v1042 = vpop.f32.mrf.mxu0
  %v1043 = vadd.f32 %v978, %v1042
  %1044 = vmatmul.f32.gmra.mxu0 %v876
  %v1045 = vpop.f32.mrf.mxu0
  %v1046 = vadd.f32 %v981, %v1045
  %1047 = vmatmul.f32.gmra.mxu0 %v877
  %v1048 = vpop.f32.mrf.mxu0
  %v1049 = vadd.f32 %v984, %v1048
  %1050 = vmatmul.f32.gmra.mxu0 %v878
  %v1051 = vpop.f32.mrf.mxu0
  %v1052 = vadd.f32 %v987, %v1051
  %1053 = vmatmul.f32.gmra.mxu0 %v879
  %v1054 = vpop.f32.mrf.mxu0
  %v1055 = vadd.f32 %v990, %v1054
  %1056 = vmatmul.f32.gmra.mxu0 %v880
  %v1057 = vpop.f32.mrf.mxu0
  %v1058 = vadd.f32 %v993, %v1057
  %1059 = vdwg.mxu0
  %v1060 = vld [vmem:[#allocation2 + $0x2] sm:$0xff]
  %v1061 = vld [vmem:[#allocation2 + $0xa] sm:$0xff]
  %v1062 = vld [vmem:[#allocation2 + $0x12] sm:$0xff]
  %v1063 = vld [vmem:[#allocation2 + $0x1a] sm:$0xff]
  %v1064 = vld [vmem:[#allocation2 + $0x22] sm:$0xff]
  %v1065 = vld [vmem:[#allocation2 + $0x2a] sm:$0xff]
  %v1066 = vld [vmem:[#allocation2 + $0x32] sm:$0xff]
  %v1067 = vld [vmem:[#allocation2 + $0x3a] sm:$0xff]
  %v1068 = vld [vmem:[#allocation2 + $0x42] sm:$0xff]
  %v1069 = vld [vmem:[#allocation2 + $0x4a] sm:$0xff]
  %v1070 = vld [vmem:[#allocation2 + $0x52] sm:$0xff]
  %v1071 = vld [vmem:[#allocation2 + $0x5a] sm:$0xff]
  %v1072 = vld [vmem:[#allocation2 + $0x62] sm:$0xff]
  %v1073 = vld [vmem:[#allocation2 + $0x6a] sm:$0xff]
  %v1074 = vld [vmem:[#allocation2 + $0x72] sm:$0xff]
  %v1075 = vld [vmem:[#allocation2 + $0x7a] sm:$0xff]
  %s1076 = scalar_lea.vmem %s2, 256
  %v1077 = vld [vmem:[%s1076] sm:$0xff]
  %v1078 = vld [vmem:[%s1076 + $0x8] sm:$0xff]
  %v1079 = vld [vmem:[%s1076 + $0x10] sm:$0xff]
  %v1080 = vld [vmem:[%s1076 + $0x18] sm:$0xff]
  %v1081 = vld [vmem:[%s1076 + $0x20] sm:$0xff]
  %v1082 = vld [vmem:[%s1076 + $0x28] sm:$0xff]
  %v1083 = vld [vmem:[%s1076 + $0x30] sm:$0xff]
  %v1084 = vld [vmem:[%s1076 + $0x38] sm:$0xff]
  %v1085 = vld [vmem:[%s1076 + $0x40] sm:$0xff]
  %v1086 = vld [vmem:[%s1076 + $0x48] sm:$0xff]
  %v1087 = vld [vmem:[%s1076 + $0x50] sm:$0xff]
  %v1088 = vld [vmem:[%s1076 + $0x58] sm:$0xff]
  %v1089 = vld [vmem:[%s1076 + $0x60] sm:$0xff]
  %v1090 = vld [vmem:[%s1076 + $0x68] sm:$0xff]
  %v1091 = vld [vmem:[%s1076 + $0x70] sm:$0xff]
  %v1092 = vld [vmem:[%s1076 + $0x78] sm:$0xff]
  %1093 = vmatpush.msra.mxu0 %v1092
  %1094 = vmatpush.msra.mxu0 %v1091
  %1095 = vmatpush.msra.mxu0 %v1090
  %1096 = vmatpush.msra.mxu0 %v1089
  %1097 = vmatpush.msra.mxu0 %v1088
  %1098 = vmatpush.msra.mxu0 %v1087
  %1099 = vmatpush.msra.mxu0 %v1086
  %1100 = vmatpush.msra.mxu0 %v1085
  %1101 = vmatpush.msra.mxu0 %v1084
  %1102 = vmatpush.msra.mxu0 %v1083
  %1103 = vmatpush.msra.mxu0 %v1082
  %1104 = vmatpush.msra.mxu0 %v1081
  %1105 = vmatpush.msra.mxu0 %v1080
  %1106 = vmatpush.msra.mxu0 %v1079
  %1107 = vmatpush.msra.mxu0 %v1078
  %1108 = vmatpush.msra.mxu0 %v1077
  %1109 = vmatmul.f32.gmra.mxu0 %v1060
  %v1110 = vpop.f32.mrf.mxu0
  %v1111 = vadd.f32 0.0, %v1110
  %1112 = vmatmul.f32.gmra.mxu0 %v1061
  %v1113 = vpop.f32.mrf.mxu0
  %v1114 = vadd.f32 0.0, %v1113
  %1115 = vmatmul.f32.gmra.mxu0 %v1062
  %v1116 = vpop.f32.mrf.mxu0
  %v1117 = vadd.f32 0.0, %v1116
  %1118 = vmatmul.f32.gmra.mxu0 %v1063
  %v1119 = vpop.f32.mrf.mxu0
  %v1120 = vadd.f32 0.0, %v1119
  %1121 = vmatmul.f32.gmra.mxu0 %v1064
  %v1122 = vpop.f32.mrf.mxu0
  %v1123 = vadd.f32 0.0, %v1122
  %1124 = vmatmul.f32.gmra.mxu0 %v1065
  %v1125 = vpop.f32.mrf.mxu0
  %v1126 = vadd.f32 0.0, %v1125
  %1127 = vmatmul.f32.gmra.mxu0 %v1066
  %v1128 = vpop.f32.mrf.mxu0
  %v1129 = vadd.f32 0.0, %v1128
  %1130 = vmatmul.f32.gmra.mxu0 %v1067
  %v1131 = vpop.f32.mrf.mxu0
  %v1132 = vadd.f32 0.0, %v1131
  %1133 = vmatmul.f32.gmra.mxu0 %v1068
  %v1134 = vpop.f32.mrf.mxu0
  %v1135 = vadd.f32 0.0, %v1134
  %1136 = vmatmul.f32.gmra.mxu0 %v1069
  %v1137 = vpop.f32.mrf.mxu0
  %v1138 = vadd.f32 0.0, %v1137
  %1139 = vmatmul.f32.gmra.mxu0 %v1070
  %v1140 = vpop.f32.mrf.mxu0
  %v1141 = vadd.f32 0.0, %v1140
  %1142 = vmatmul.f32.gmra.mxu0 %v1071
  %v1143 = vpop.f32.mrf.mxu0
  %v1144 = vadd.f32 0.0, %v1143
  %1145 = vmatmul.f32.gmra.mxu0 %v1072
  %v1146 = vpop.f32.mrf.mxu0
  %v1147 = vadd.f32 0.0, %v1146
  %1148 = vmatmul.f32.gmra.mxu0 %v1073
  %v1149 = vpop.f32.mrf.mxu0
  %v1150 = vadd.f32 0.0, %v1149
  %1151 = vmatmul.f32.gmra.mxu0 %v1074
  %v1152 = vpop.f32.mrf.mxu0
  %v1153 = vadd.f32 0.0, %v1152
  %1154 = vmatmul.f32.gmra.mxu0 %v1075
  %v1155 = vpop.f32.mrf.mxu0
  %v1156 = vadd.f32 0.0, %v1155
  %1157 = vdwg.mxu0
  %v1158 = vadd.f32 %v1013, %v1111
  %v1159 = vadd.f32 %v1016, %v1114
  %v1160 = vadd.f32 %v1019, %v1117
  %v1161 = vadd.f32 %v1022, %v1120
  %v1162 = vadd.f32 %v1025, %v1123
  %v1163 = vadd.f32 %v1028, %v1126
  %v1164 = vadd.f32 %v1031, %v1129
  %v1165 = vadd.f32 %v1034, %v1132
  %v1166 = vadd.f32 %v1037, %v1135
  %v1167 = vadd.f32 %v1040, %v1138
  %v1168 = vadd.f32 %v1043, %v1141
  %v1169 = vadd.f32 %v1046, %v1144
  %v1170 = vadd.f32 %v1049, %v1147
  %v1171 = vadd.f32 %v1052, %v1150
  %v1172 = vadd.f32 %v1055, %v1153
  %v1173 = vadd.f32 %v1058, %v1156
  %v1174 = vld [vmem:[#allocation2 + $0x12] sm:$0xff]
  %v1175 = vld [vmem:[#allocation2 + $0x1a] sm:$0xff]
  %v1176 = vld [vmem:[#allocation2 + $0x22] sm:$0xff]
  %v1177 = vld [vmem:[#allocation2 + $0x2a] sm:$0xff]
  %v1178 = vld [vmem:[#allocation2 + $0x32] sm:$0xff]
  %v1179 = vld [vmem:[#allocation2 + $0x3a] sm:$0xff]
  %v1180 = vld [vmem:[#allocation2 + $0x42] sm:$0xff]
  %v1181 = vld [vmem:[#allocation2 + $0x4a] sm:$0xff]
  %v1182 = vld [vmem:[#allocation2 + $0x52] sm:$0xff]
  %v1183 = vld [vmem:[#allocation2 + $0x5a] sm:$0xff]
  %v1184 = vld [vmem:[#allocation2 + $0x62] sm:$0xff]
  %v1185 = vld [vmem:[#allocation2 + $0x6a] sm:$0xff]
  %v1186 = vld [vmem:[#allocation2 + $0x72] sm:$0xff]
  %v1187 = vld [vmem:[#allocation2 + $0x7a] sm:$0xff]
  %v1188 = vld [vmem:[#allocation2 + $0x82] sm:$0xff]
  %v1189 = vld [vmem:[#allocation2 + $0x8a] sm:$0xff]
  %s1190 = scalar_lea.vmem %s2, 384
  %v1191 = vld [vmem:[%s1190] sm:$0xff]
  %v1192 = vld [vmem:[%s1190 + $0x8] sm:$0xff]
  %v1193 = vld [vmem:[%s1190 + $0x10] sm:$0xff]
  %v1194 = vld [vmem:[%s1190 + $0x18] sm:$0xff]
  %v1195 = vld [vmem:[%s1190 + $0x20] sm:$0xff]
  %v1196 = vld [vmem:[%s1190 + $0x28] sm:$0xff]
  %v1197 = vld [vmem:[%s1190 + $0x30] sm:$0xff]
  %v1198 = vld [vmem:[%s1190 + $0x38] sm:$0xff]
  %v1199 = vld [vmem:[%s1190 + $0x40] sm:$0xff]
  %v1200 = vld [vmem:[%s1190 + $0x48] sm:$0xff]
  %v1201 = vld [vmem:[%s1190 + $0x50] sm:$0xff]
  %v1202 = vld [vmem:[%s1190 + $0x58] sm:$0xff]
  %v1203 = vld [vmem:[%s1190 + $0x60] sm:$0xff]
  %v1204 = vld [vmem:[%s1190 + $0x68] sm:$0xff]
  %v1205 = vld [vmem:[%s1190 + $0x70] sm:$0xff]
  %v1206 = vld [vmem:[%s1190 + $0x78] sm:$0xff]
  %1207 = vmatpush.msra.mxu0 %v1206
  %1208 = vmatpush.msra.mxu0 %v1205
  %1209 = vmatpush.msra.mxu0 %v1204
  %1210 = vmatpush.msra.mxu0 %v1203
  %1211 = vmatpush.msra.mxu0 %v1202
  %1212 = vmatpush.msra.mxu0 %v1201
  %1213 = vmatpush.msra.mxu0 %v1200
  %1214 = vmatpush.msra.mxu0 %v1199
  %1215 = vmatpush.msra.mxu0 %v1198
  %1216 = vmatpush.msra.mxu0 %v1197
  %1217 = vmatpush.msra.mxu0 %v1196
  %1218 = vmatpush.msra.mxu0 %v1195
  %1219 = vmatpush.msra.mxu0 %v1194
  %1220 = vmatpush.msra.mxu0 %v1193
  %1221 = vmatpush.msra.mxu0 %v1192
  %1222 = vmatpush.msra.mxu0 %v1191
  %1223 = vmatmul.f32.gmra.mxu0 %v1174
  %v1224 = vpop.f32.mrf.mxu0
  %v1225 = vadd.f32 0.0, %v1224
  %1226 = vmatmul.f32.gmra.mxu0 %v1175
  %v1227 = vpop.f32.mrf.mxu0
  %v1228 = vadd.f32 0.0, %v1227
  %1229 = vmatmul.f32.gmra.mxu0 %v1176
  %v1230 = vpop.f32.mrf.mxu0
  %v1231 = vadd.f32 0.0, %v1230
  %1232 = vmatmul.f32.gmra.mxu0 %v1177
  %v1233 = vpop.f32.mrf.mxu0
  %v1234 = vadd.f32 0.0, %v1233
  %1235 = vmatmul.f32.gmra.mxu0 %v1178
  %v1236 = vpop.f32.mrf.mxu0
  %v1237 = vadd.f32 0.0, %v1236
  %1238 = vmatmul.f32.gmra.mxu0 %v1179
  %v1239 = vpop.f32.mrf.mxu0
  %v1240 = vadd.f32 0.0, %v1239
  %1241 = vmatmul.f32.gmra.mxu0 %v1180
  %v1242 = vpop.f32.mrf.mxu0
  %v1243 = vadd.f32 0.0, %v1242
  %1244 = vmatmul.f32.gmra.mxu0 %v1181
  %v1245 = vpop.f32.mrf.mxu0
  %v1246 = vadd.f32 0.0, %v1245
  %1247 = vmatmul.f32.gmra.mxu0 %v1182
  %v1248 = vpop.f32.mrf.mxu0
  %v1249 = vadd.f32 0.0, %v1248
  %1250 = vmatmul.f32.gmra.mxu0 %v1183
  %v1251 = vpop.f32.mrf.mxu0
  %v1252 = vadd.f32 0.0, %v1251
  %1253 = vmatmul.f32.gmra.mxu0 %v1184
  %v1254 = vpop.f32.mrf.mxu0
  %v1255 = vadd.f32 0.0, %v1254
  %1256 = vmatmul.f32.gmra.mxu0 %v1185
  %v1257 = vpop.f32.mrf.mxu0
  %v1258 = vadd.f32 0.0, %v1257
  %1259 = vmatmul.f32.gmra.mxu0 %v1186
  %v1260 = vpop.f32.mrf.mxu0
  %v1261 = vadd.f32 0.0, %v1260
  %1262 = vmatmul.f32.gmra.mxu0 %v1187
  %v1263 = vpop.f32.mrf.mxu0
  %v1264 = vadd.f32 0.0, %v1263
  %1265 = vmatmul.f32.gmra.mxu0 %v1188
  %v1266 = vpop.f32.mrf.mxu0
  %v1267 = vadd.f32 0.0, %v1266
  %1268 = vmatmul.f32.gmra.mxu0 %v1189
  %v1269 = vpop.f32.mrf.mxu0
  %v1270 = vadd.f32 0.0, %v1269
  %1271 = vdwg.mxu0
  %v1272 = vadd.f32 %v1158, %v1225
  %v1273 = vadd.f32 %v1159, %v1228
  %v1274 = vadd.f32 %v1160, %v1231
  %v1275 = vadd.f32 %v1161, %v1234
  %v1276 = vadd.f32 %v1162, %v1237
  %v1277 = vadd.f32 %v1163, %v1240
  %v1278 = vadd.f32 %v1164, %v1243
  %v1279 = vadd.f32 %v1165, %v1246
  %v1280 = vadd.f32 %v1166, %v1249
  %v1281 = vadd.f32 %v1167, %v1252
  %v1282 = vadd.f32 %v1168, %v1255
  %v1283 = vadd.f32 %v1169, %v1258
  %v1284 = vadd.f32 %v1170, %v1261
  %v1285 = vadd.f32 %v1171, %v1264
  %v1286 = vadd.f32 %v1172, %v1267
  %v1287 = vadd.f32 %v1173, %v1270
  %v1288 = vld [vmem:[#allocation2 + $0x13] sm:$0xff]
  %v1289 = vld [vmem:[#allocation2 + $0x1b] sm:$0xff]
  %v1290 = vld [vmem:[#allocation2 + $0x23] sm:$0xff]
  %v1291 = vld [vmem:[#allocation2 + $0x2b] sm:$0xff]
  %v1292 = vld [vmem:[#allocation2 + $0x33] sm:$0xff]
  %v1293 = vld [vmem:[#allocation2 + $0x3b] sm:$0xff]
  %v1294 = vld [vmem:[#allocation2 + $0x43] sm:$0xff]
  %v1295 = vld [vmem:[#allocation2 + $0x4b] sm:$0xff]
  %v1296 = vld [vmem:[#allocation2 + $0x53] sm:$0xff]
  %v1297 = vld [vmem:[#allocation2 + $0x5b] sm:$0xff]
  %v1298 = vld [vmem:[#allocation2 + $0x63] sm:$0xff]
  %v1299 = vld [vmem:[#allocation2 + $0x6b] sm:$0xff]
  %v1300 = vld [vmem:[#allocation2 + $0x73] sm:$0xff]
  %v1301 = vld [vmem:[#allocation2 + $0x7b] sm:$0xff]
  %v1302 = vld [vmem:[#allocation2 + $0x83] sm:$0xff]
  %v1303 = vld [vmem:[#allocation2 + $0x8b] sm:$0xff]
  %s1304 = scalar_lea.vmem %s2, 512
  %v1305 = vld [vmem:[%s1304] sm:$0xff]
  %v1306 = vld [vmem:[%s1304 + $0x8] sm:$0xff]
  %v1307 = vld [vmem:[%s1304 + $0x10] sm:$0xff]
  %v1308 = vld [vmem:[%s1304 + $0x18] sm:$0xff]
  %v1309 = vld [vmem:[%s1304 + $0x20] sm:$0xff]
  %v1310 = vld [vmem:[%s1304 + $0x28] sm:$0xff]
  %v1311 = vld [vmem:[%s1304 + $0x30] sm:$0xff]
  %v1312 = vld [vmem:[%s1304 + $0x38] sm:$0xff]
  %v1313 = vld [vmem:[%s1304 + $0x40] sm:$0xff]
  %v1314 = vld [vmem:[%s1304 + $0x48] sm:$0xff]
  %v1315 = vld [vmem:[%s1304 + $0x50] sm:$0xff]
  %v1316 = vld [vmem:[%s1304 + $0x58] sm:$0xff]
  %v1317 = vld [vmem:[%s1304 + $0x60] sm:$0xff]
  %v1318 = vld [vmem:[%s1304 + $0x68] sm:$0xff]
  %v1319 = vld [vmem:[%s1304 + $0x70] sm:$0xff]
  %v1320 = vld [vmem:[%s1304 + $0x78] sm:$0xff]
  %1321 = vmatpush.msra.mxu0 %v1320
  %1322 = vmatpush.msra.mxu0 %v1319
  %1323 = vmatpush.msra.mxu0 %v1318
  %1324 = vmatpush.msra.mxu0 %v1317
  %1325 = vmatpush.msra.mxu0 %v1316
  %1326 = vmatpush.msra.mxu0 %v1315
  %1327 = vmatpush.msra.mxu0 %v1314
  %1328 = vmatpush.msra.mxu0 %v1313
  %1329 = vmatpush.msra.mxu0 %v1312
  %1330 = vmatpush.msra.mxu0 %v1311
  %1331 = vmatpush.msra.mxu0 %v1310
  %1332 = vmatpush.msra.mxu0 %v1309
  %1333 = vmatpush.msra.mxu0 %v1308
  %1334 = vmatpush.msra.mxu0 %v1307
  %1335 = vmatpush.msra.mxu0 %v1306
  %1336 = vmatpush.msra.mxu0 %v1305
  %1337 = vmatmul.f32.gmra.mxu0 %v1288
  %v1338 = vpop.f32.mrf.mxu0
  %v1339 = vadd.f32 0.0, %v1338
  %1340 = vmatmul.f32.gmra.mxu0 %v1289
  %v1341 = vpop.f32.mrf.mxu0
  %v1342 = vadd.f32 0.0, %v1341
  %1343 = vmatmul.f32.gmra.mxu0 %v1290
  %v1344 = vpop.f32.mrf.mxu0
  %v1345 = vadd.f32 0.0, %v1344
  %1346 = vmatmul.f32.gmra.mxu0 %v1291
  %v1347 = vpop.f32.mrf.mxu0
  %v1348 = vadd.f32 0.0, %v1347
  %1349 = vmatmul.f32.gmra.mxu0 %v1292
  %v1350 = vpop.f32.mrf.mxu0
  %v1351 = vadd.f32 0.0, %v1350
  %1352 = vmatmul.f32.gmra.mxu0 %v1293
  %v1353 = vpop.f32.mrf.mxu0
  %v1354 = vadd.f32 0.0, %v1353
  %1355 = vmatmul.f32.gmra.mxu0 %v1294
  %v1356 = vpop.f32.mrf.mxu0
  %v1357 = vadd.f32 0.0, %v1356
  %1358 = vmatmul.f32.gmra.mxu0 %v1295
  %v1359 = vpop.f32.mrf.mxu0
  %v1360 = vadd.f32 0.0, %v1359
  %1361 = vmatmul.f32.gmra.mxu0 %v1296
  %v1362 = vpop.f32.mrf.mxu0
  %v1363 = vadd.f32 0.0, %v1362
  %1364 = vmatmul.f32.gmra.mxu0 %v1297
  %v1365 = vpop.f32.mrf.mxu0
  %v1366 = vadd.f32 0.0, %v1365
  %1367 = vmatmul.f32.gmra.mxu0 %v1298
  %v1368 = vpop.f32.mrf.mxu0
  %v1369 = vadd.f32 0.0, %v1368
  %1370 = vmatmul.f32.gmra.mxu0 %v1299
  %v1371 = vpop.f32.mrf.mxu0
  %v1372 = vadd.f32 0.0, %v1371
  %1373 = vmatmul.f32.gmra.mxu0 %v1300
  %v1374 = vpop.f32.mrf.mxu0
  %v1375 = vadd.f32 0.0, %v1374
  %1376 = vmatmul.f32.gmra.mxu0 %v1301
  %v1377 = vpop.f32.mrf.mxu0
  %v1378 = vadd.f32 0.0, %v1377
  %1379 = vmatmul.f32.gmra.mxu0 %v1302
  %v1380 = vpop.f32.mrf.mxu0
  %v1381 = vadd.f32 0.0, %v1380
  %1382 = vmatmul.f32.gmra.mxu0 %v1303
  %v1383 = vpop.f32.mrf.mxu0
  %v1384 = vadd.f32 0.0, %v1383
  %1385 = vdwg.mxu0
  %v1386 = vadd.f32 %v1272, %v1339
  %v1387 = vadd.f32 %v1273, %v1342
  %v1388 = vadd.f32 %v1274, %v1345
  %v1389 = vadd.f32 %v1275, %v1348
  %v1390 = vadd.f32 %v1276, %v1351
  %v1391 = vadd.f32 %v1277, %v1354
  %v1392 = vadd.f32 %v1278, %v1357
  %v1393 = vadd.f32 %v1279, %v1360
  %v1394 = vadd.f32 %v1280, %v1363
  %v1395 = vadd.f32 %v1281, %v1366
  %v1396 = vadd.f32 %v1282, %v1369
  %v1397 = vadd.f32 %v1283, %v1372
  %v1398 = vadd.f32 %v1284, %v1375
  %v1399 = vadd.f32 %v1285, %v1378
  %v1400 = vadd.f32 %v1286, %v1381
  %v1401 = vadd.f32 %v1287, %v1384
  %v1402 = vld [vmem:[#allocation2 + $0x14] sm:$0xff]
  %v1403 = vld [vmem:[#allocation2 + $0x1c] sm:$0xff]
  %v1404 = vld [vmem:[#allocation2 + $0x24] sm:$0xff]
  %v1405 = vld [vmem:[#allocation2 + $0x2c] sm:$0xff]
  %v1406 = vld [vmem:[#allocation2 + $0x34] sm:$0xff]
  %v1407 = vld [vmem:[#allocation2 + $0x3c] sm:$0xff]
  %v1408 = vld [vmem:[#allocation2 + $0x44] sm:$0xff]
  %v1409 = vld [vmem:[#allocation2 + $0x4c] sm:$0xff]
  %v1410 = vld [vmem:[#allocation2 + $0x54] sm:$0xff]
  %v1411 = vld [vmem:[#allocation2 + $0x5c] sm:$0xff]
  %v1412 = vld [vmem:[#allocation2 + $0x64] sm:$0xff]
  %v1413 = vld [vmem:[#allocation2 + $0x6c] sm:$0xff]
  %v1414 = vld [vmem:[#allocation2 + $0x74] sm:$0xff]
  %v1415 = vld [vmem:[#allocation2 + $0x7c] sm:$0xff]
  %v1416 = vld [vmem:[#allocation2 + $0x84] sm:$0xff]
  %v1417 = vld [vmem:[#allocation2 + $0x8c] sm:$0xff]
  %s1418 = scalar_lea.vmem %s2, 640
  %v1419 = vld [vmem:[%s1418] sm:$0xff]
  %v1420 = vld [vmem:[%s1418 + $0x8] sm:$0xff]
  %v1421 = vld [vmem:[%s1418 + $0x10] sm:$0xff]
  %v1422 = vld [vmem:[%s1418 + $0x18] sm:$0xff]
  %v1423 = vld [vmem:[%s1418 + $0x20] sm:$0xff]
  %v1424 = vld [vmem:[%s1418 + $0x28] sm:$0xff]
  %v1425 = vld [vmem:[%s1418 + $0x30] sm:$0xff]
  %v1426 = vld [vmem:[%s1418 + $0x38] sm:$0xff]
  %v1427 = vld [vmem:[%s1418 + $0x40] sm:$0xff]
  %v1428 = vld [vmem:[%s1418 + $0x48] sm:$0xff]
  %v1429 = vld [vmem:[%s1418 + $0x50] sm:$0xff]
  %v1430 = vld [vmem:[%s1418 + $0x58] sm:$0xff]
  %v1431 = vld [vmem:[%s1418 + $0x60] sm:$0xff]
  %v1432 = vld [vmem:[%s1418 + $0x68] sm:$0xff]
  %v1433 = vld [vmem:[%s1418 + $0x70] sm:$0xff]
  %v1434 = vld [vmem:[%s1418 + $0x78] sm:$0xff]
  %1435 = vmatpush.msra.mxu0 %v1434
  %1436 = vmatpush.msra.mxu0 %v1433
  %1437 = vmatpush.msra.mxu0 %v1432
  %1438 = vmatpush.msra.mxu0 %v1431
  %1439 = vmatpush.msra.mxu0 %v1430
  %1440 = vmatpush.msra.mxu0 %v1429
  %1441 = vmatpush.msra.mxu0 %v1428
  %1442 = vmatpush.msra.mxu0 %v1427
  %1443 = vmatpush.msra.mxu0 %v1426
  %1444 = vmatpush.msra.mxu0 %v1425
  %1445 = vmatpush.msra.mxu0 %v1424
  %1446 = vmatpush.msra.mxu0 %v1423
  %1447 = vmatpush.msra.mxu0 %v1422
  %1448 = vmatpush.msra.mxu0 %v1421
  %1449 = vmatpush.msra.mxu0 %v1420
  %1450 = vmatpush.msra.mxu0 %v1419
  %1451 = vmatmul.f32.gmra.mxu0 %v1402
  %v1452 = vpop.f32.mrf.mxu0
  %v1453 = vadd.f32 0.0, %v1452
  %1454 = vmatmul.f32.gmra.mxu0 %v1403
  %v1455 = vpop.f32.mrf.mxu0
  %v1456 = vadd.f32 0.0, %v1455
  %1457 = vmatmul.f32.gmra.mxu0 %v1404
  %v1458 = vpop.f32.mrf.mxu0
  %v1459 = vadd.f32 0.0, %v1458
  %1460 = vmatmul.f32.gmra.mxu0 %v1405
  %v1461 = vpop.f32.mrf.mxu0
  %v1462 = vadd.f32 0.0, %v1461
  %1463 = vmatmul.f32.gmra.mxu0 %v1406
  %v1464 = vpop.f32.mrf.mxu0
  %v1465 = vadd.f32 0.0, %v1464
  %1466 = vmatmul.f32.gmra.mxu0 %v1407
  %v1467 = vpop.f32.mrf.mxu0
  %v1468 = vadd.f32 0.0, %v1467
  %1469 = vmatmul.f32.gmra.mxu0 %v1408
  %v1470 = vpop.f32.mrf.mxu0
  %v1471 = vadd.f32 0.0, %v1470
  %1472 = vmatmul.f32.gmra.mxu0 %v1409
  %v1473 = vpop.f32.mrf.mxu0
  %v1474 = vadd.f32 0.0, %v1473
  %1475 = vmatmul.f32.gmra.mxu0 %v1410
  %v1476 = vpop.f32.mrf.mxu0
  %v1477 = vadd.f32 0.0, %v1476
  %1478 = vmatmul.f32.gmra.mxu0 %v1411
  %v1479 = vpop.f32.mrf.mxu0
  %v1480 = vadd.f32 0.0, %v1479
  %1481 = vmatmul.f32.gmra.mxu0 %v1412
  %v1482 = vpop.f32.mrf.mxu0
  %v1483 = vadd.f32 0.0, %v1482
  %1484 = vmatmul.f32.gmra.mxu0 %v1413
  %v1485 = vpop.f32.mrf.mxu0
  %v1486 = vadd.f32 0.0, %v1485
  %1487 = vmatmul.f32.gmra.mxu0 %v1414
  %v1488 = vpop.f32.mrf.mxu0
  %v1489 = vadd.f32 0.0, %v1488
  %1490 = vmatmul.f32.gmra.mxu0 %v1415
  %v1491 = vpop.f32.mrf.mxu0
  %v1492 = vadd.f32 0.0, %v1491
  %1493 = vmatmul.f32.gmra.mxu0 %v1416
  %v1494 = vpop.f32.mrf.mxu0
  %v1495 = vadd.f32 0.0, %v1494
  %1496 = vmatmul.f32.gmra.mxu0 %v1417
  %v1497 = vpop.f32.mrf.mxu0
  %v1498 = vadd.f32 0.0, %v1497
  %1499 = vdwg.mxu0
  %v1500 = vadd.f32 %v1386, %v1453
  %v1501 = vadd.f32 %v1387, %v1456
  %v1502 = vadd.f32 %v1388, %v1459
  %v1503 = vadd.f32 %v1389, %v1462
  %v1504 = vadd.f32 %v1390, %v1465
  %v1505 = vadd.f32 %v1391, %v1468
  %v1506 = vadd.f32 %v1392, %v1471
  %v1507 = vadd.f32 %v1393, %v1474
  %v1508 = vadd.f32 %v1394, %v1477
  %v1509 = vadd.f32 %v1395, %v1480
  %v1510 = vadd.f32 %v1396, %v1483
  %v1511 = vadd.f32 %v1397, %v1486
  %v1512 = vadd.f32 %v1398, %v1489
  %v1513 = vadd.f32 %v1399, %v1492
  %v1514 = vadd.f32 %v1400, %v1495
  %v1515 = vadd.f32 %v1401, %v1498
  %v1516 = vld [vmem:[#allocation2 + $0x24] sm:$0xff]
  %v1517 = vld [vmem:[#allocation2 + $0x2c] sm:$0xff]
  %v1518 = vld [vmem:[#allocation2 + $0x34] sm:$0xff]
  %v1519 = vld [vmem:[#allocation2 + $0x3c] sm:$0xff]
  %v1520 = vld [vmem:[#allocation2 + $0x44] sm:$0xff]
  %v1521 = vld [vmem:[#allocation2 + $0x4c] sm:$0xff]
  %v1522 = vld [vmem:[#allocation2 + $0x54] sm:$0xff]
  %v1523 = vld [vmem:[#allocation2 + $0x5c] sm:$0xff]
  %v1524 = vld [vmem:[#allocation2 + $0x64] sm:$0xff]
  %v1525 = vld [vmem:[#allocation2 + $0x6c] sm:$0xff]
  %v1526 = vld [vmem:[#allocation2 + $0x74] sm:$0xff]
  %v1527 = vld [vmem:[#allocation2 + $0x7c] sm:$0xff]
  %v1528 = vld [vmem:[#allocation2 + $0x84] sm:$0xff]
  %v1529 = vld [vmem:[#allocation2 + $0x8c] sm:$0xff]
  %v1530 = vld [vmem:[#allocation2 + $0x94] sm:$0xff]
  %v1531 = vld [vmem:[#allocation2 + $0x9c] sm:$0xff]
  %s1532 = scalar_lea.vmem %s2, 768
  %v1533 = vld [vmem:[%s1532] sm:$0xff]
  %v1534 = vld [vmem:[%s1532 + $0x8] sm:$0xff]
  %v1535 = vld [vmem:[%s1532 + $0x10] sm:$0xff]
  %v1536 = vld [vmem:[%s1532 + $0x18] sm:$0xff]
  %v1537 = vld [vmem:[%s1532 + $0x20] sm:$0xff]
  %v1538 = vld [vmem:[%s1532 + $0x28] sm:$0xff]
  %v1539 = vld [vmem:[%s1532 + $0x30] sm:$0xff]
  %v1540 = vld [vmem:[%s1532 + $0x38] sm:$0xff]
  %v1541 = vld [vmem:[%s1532 + $0x40] sm:$0xff]
  %v1542 = vld [vmem:[%s1532 + $0x48] sm:$0xff]
  %v1543 = vld [vmem:[%s1532 + $0x50] sm:$0xff]
  %v1544 = vld [vmem:[%s1532 + $0x58] sm:$0xff]
  %v1545 = vld [vmem:[%s1532 + $0x60] sm:$0xff]
  %v1546 = vld [vmem:[%s1532 + $0x68] sm:$0xff]
  %v1547 = vld [vmem:[%s1532 + $0x70] sm:$0xff]
  %v1548 = vld [vmem:[%s1532 + $0x78] sm:$0xff]
  %1549 = vmatpush.msra.mxu0 %v1548
  %1550 = vmatpush.msra.mxu0 %v1547
  %1551 = vmatpush.msra.mxu0 %v1546
  %1552 = vmatpush.msra.mxu0 %v1545
  %1553 = vmatpush.msra.mxu0 %v1544
  %1554 = vmatpush.msra.mxu0 %v1543
  %1555 = vmatpush.msra.mxu0 %v1542
  %1556 = vmatpush.msra.mxu0 %v1541
  %1557 = vmatpush.msra.mxu0 %v1540
  %1558 = vmatpush.msra.mxu0 %v1539
  %1559 = vmatpush.msra.mxu0 %v1538
  %1560 = vmatpush.msra.mxu0 %v1537
  %1561 = vmatpush.msra.mxu0 %v1536
  %1562 = vmatpush.msra.mxu0 %v1535
  %1563 = vmatpush.msra.mxu0 %v1534
  %1564 = vmatpush.msra.mxu0 %v1533
  %1565 = vmatmul.f32.gmra.mxu0 %v1516
  %v1566 = vpop.f32.mrf.mxu0
  %v1567 = vadd.f32 0.0, %v1566
  %1568 = vmatmul.f32.gmra.mxu0 %v1517
  %v1569 = vpop.f32.mrf.mxu0
  %v1570 = vadd.f32 0.0, %v1569
  %1571 = vmatmul.f32.gmra.mxu0 %v1518
  %v1572 = vpop.f32.mrf.mxu0
  %v1573 = vadd.f32 0.0, %v1572
  %1574 = vmatmul.f32.gmra.mxu0 %v1519
  %v1575 = vpop.f32.mrf.mxu0
  %v1576 = vadd.f32 0.0, %v1575
  %1577 = vmatmul.f32.gmra.mxu0 %v1520
  %v1578 = vpop.f32.mrf.mxu0
  %v1579 = vadd.f32 0.0, %v1578
  %1580 = vmatmul.f32.gmra.mxu0 %v1521
  %v1581 = vpop.f32.mrf.mxu0
  %v1582 = vadd.f32 0.0, %v1581
  %1583 = vmatmul.f32.gmra.mxu0 %v1522
  %v1584 = vpop.f32.mrf.mxu0
  %v1585 = vadd.f32 0.0, %v1584
  %1586 = vmatmul.f32.gmra.mxu0 %v1523
  %v1587 = vpop.f32.mrf.mxu0
  %v1588 = vadd.f32 0.0, %v1587
  %1589 = vmatmul.f32.gmra.mxu0 %v1524
  %v1590 = vpop.f32.mrf.mxu0
  %v1591 = vadd.f32 0.0, %v1590
  %1592 = vmatmul.f32.gmra.mxu0 %v1525
  %v1593 = vpop.f32.mrf.mxu0
  %v1594 = vadd.f32 0.0, %v1593
  %1595 = vmatmul.f32.gmra.mxu0 %v1526
  %v1596 = vpop.f32.mrf.mxu0
  %v1597 = vadd.f32 0.0, %v1596
  %1598 = vmatmul.f32.gmra.mxu0 %v1527
  %v1599 = vpop.f32.mrf.mxu0
  %v1600 = vadd.f32 0.0, %v1599
  %1601 = vmatmul.f32.gmra.mxu0 %v1528
  %v1602 = vpop.f32.mrf.mxu0
  %v1603 = vadd.f32 0.0, %v1602
  %1604 = vmatmul.f32.gmra.mxu0 %v1529
  %v1605 = vpop.f32.mrf.mxu0
  %v1606 = vadd.f32 0.0, %v1605
  %1607 = vmatmul.f32.gmra.mxu0 %v1530
  %v1608 = vpop.f32.mrf.mxu0
  %v1609 = vadd.f32 0.0, %v1608
  %1610 = vmatmul.f32.gmra.mxu0 %v1531
  %v1611 = vpop.f32.mrf.mxu0
  %v1612 = vadd.f32 0.0, %v1611
  %1613 = vdwg.mxu0
  %v1614 = vadd.f32 %v1500, %v1567
  %v1615 = vadd.f32 %v1501, %v1570
  %v1616 = vadd.f32 %v1502, %v1573
  %v1617 = vadd.f32 %v1503, %v1576
  %v1618 = vadd.f32 %v1504, %v1579
  %v1619 = vadd.f32 %v1505, %v1582
  %v1620 = vadd.f32 %v1506, %v1585
  %v1621 = vadd.f32 %v1507, %v1588
  %v1622 = vadd.f32 %v1508, %v1591
  %v1623 = vadd.f32 %v1509, %v1594
  %v1624 = vadd.f32 %v1510, %v1597
  %v1625 = vadd.f32 %v1511, %v1600
  %v1626 = vadd.f32 %v1512, %v1603
  %v1627 = vadd.f32 %v1513, %v1606
  %v1628 = vadd.f32 %v1514, %v1609
  %v1629 = vadd.f32 %v1515, %v1612
  %v1630 = vld [vmem:[#allocation2 + $0x25] sm:$0xff]
  %v1631 = vld [vmem:[#allocation2 + $0x2d] sm:$0xff]
  %v1632 = vld [vmem:[#allocation2 + $0x35] sm:$0xff]
  %v1633 = vld [vmem:[#allocation2 + $0x3d] sm:$0xff]
  %v1634 = vld [vmem:[#allocation2 + $0x45] sm:$0xff]
  %v1635 = vld [vmem:[#allocation2 + $0x4d] sm:$0xff]
  %v1636 = vld [vmem:[#allocation2 + $0x55] sm:$0xff]
  %v1637 = vld [vmem:[#allocation2 + $0x5d] sm:$0xff]
  %v1638 = vld [vmem:[#allocation2 + $0x65] sm:$0xff]
  %v1639 = vld [vmem:[#allocation2 + $0x6d] sm:$0xff]
  %v1640 = vld [vmem:[#allocation2 + $0x75] sm:$0xff]
  %v1641 = vld [vmem:[#allocation2 + $0x7d] sm:$0xff]
  %v1642 = vld [vmem:[#allocation2 + $0x85] sm:$0xff]
  %v1643 = vld [vmem:[#allocation2 + $0x8d] sm:$0xff]
  %v1644 = vld [vmem:[#allocation2 + $0x95] sm:$0xff]
  %v1645 = vld [vmem:[#allocation2 + $0x9d] sm:$0xff]
  %s1646 = scalar_lea.vmem %s2, 896
  %v1647 = vld [vmem:[%s1646] sm:$0xff]
  %v1648 = vld [vmem:[%s1646 + $0x8] sm:$0xff]
  %v1649 = vld [vmem:[%s1646 + $0x10] sm:$0xff]
  %v1650 = vld [vmem:[%s1646 + $0x18] sm:$0xff]
  %v1651 = vld [vmem:[%s1646 + $0x20] sm:$0xff]
  %v1652 = vld [vmem:[%s1646 + $0x28] sm:$0xff]
  %v1653 = vld [vmem:[%s1646 + $0x30] sm:$0xff]
  %v1654 = vld [vmem:[%s1646 + $0x38] sm:$0xff]
  %v1655 = vld [vmem:[%s1646 + $0x40] sm:$0xff]
  %v1656 = vld [vmem:[%s1646 + $0x48] sm:$0xff]
  %v1657 = vld [vmem:[%s1646 + $0x50] sm:$0xff]
  %v1658 = vld [vmem:[%s1646 + $0x58] sm:$0xff]
  %v1659 = vld [vmem:[%s1646 + $0x60] sm:$0xff]
  %v1660 = vld [vmem:[%s1646 + $0x68] sm:$0xff]
  %v1661 = vld [vmem:[%s1646 + $0x70] sm:$0xff]
  %v1662 = vld [vmem:[%s1646 + $0x78] sm:$0xff]
  %1663 = vmatpush.msra.mxu0 %v1662
  %1664 = vmatpush.msra.mxu0 %v1661
  %1665 = vmatpush.msra.mxu0 %v1660
  %1666 = vmatpush.msra.mxu0 %v1659
  %1667 = vmatpush.msra.mxu0 %v1658
  %1668 = vmatpush.msra.mxu0 %v1657
  %1669 = vmatpush.msra.mxu0 %v1656
  %1670 = vmatpush.msra.mxu0 %v1655
  %1671 = vmatpush.msra.mxu0 %v1654
  %1672 = vmatpush.msra.mxu0 %v1653
  %1673 = vmatpush.msra.mxu0 %v1652
  %1674 = vmatpush.msra.mxu0 %v1651
  %1675 = vmatpush.msra.mxu0 %v1650
  %1676 = vmatpush.msra.mxu0 %v1649
  %1677 = vmatpush.msra.mxu0 %v1648
  %1678 = vmatpush.msra.mxu0 %v1647
  %1679 = vmatmul.f32.gmra.mxu0 %v1630
  %v1680 = vpop.f32.mrf.mxu0
  %v1681 = vadd.f32 0.0, %v1680
  %1682 = vmatmul.f32.gmra.mxu0 %v1631
  %v1683 = vpop.f32.mrf.mxu0
  %v1684 = vadd.f32 0.0, %v1683
  %1685 = vmatmul.f32.gmra.mxu0 %v1632
  %v1686 = vpop.f32.mrf.mxu0
  %v1687 = vadd.f32 0.0, %v1686
  %1688 = vmatmul.f32.gmra.mxu0 %v1633
  %v1689 = vpop.f32.mrf.mxu0
  %v1690 = vadd.f32 0.0, %v1689
  %1691 = vmatmul.f32.gmra.mxu0 %v1634
  %v1692 = vpop.f32.mrf.mxu0
  %v1693 = vadd.f32 0.0, %v1692
  %1694 = vmatmul.f32.gmra.mxu0 %v1635
  %v1695 = vpop.f32.mrf.mxu0
  %v1696 = vadd.f32 0.0, %v1695
  %1697 = vmatmul.f32.gmra.mxu0 %v1636
  %v1698 = vpop.f32.mrf.mxu0
  %v1699 = vadd.f32 0.0, %v1698
  %1700 = vmatmul.f32.gmra.mxu0 %v1637
  %v1701 = vpop.f32.mrf.mxu0
  %v1702 = vadd.f32 0.0, %v1701
  %1703 = vmatmul.f32.gmra.mxu0 %v1638
  %v1704 = vpop.f32.mrf.mxu0
  %v1705 = vadd.f32 0.0, %v1704
  %1706 = vmatmul.f32.gmra.mxu0 %v1639
  %v1707 = vpop.f32.mrf.mxu0
  %v1708 = vadd.f32 0.0, %v1707
  %1709 = vmatmul.f32.gmra.mxu0 %v1640
  %v1710 = vpop.f32.mrf.mxu0
  %v1711 = vadd.f32 0.0, %v1710
  %1712 = vmatmul.f32.gmra.mxu0 %v1641
  %v1713 = vpop.f32.mrf.mxu0
  %v1714 = vadd.f32 0.0, %v1713
  %1715 = vmatmul.f32.gmra.mxu0 %v1642
  %v1716 = vpop.f32.mrf.mxu0
  %v1717 = vadd.f32 0.0, %v1716
  %1718 = vmatmul.f32.gmra.mxu0 %v1643
  %v1719 = vpop.f32.mrf.mxu0
  %v1720 = vadd.f32 0.0, %v1719
  %1721 = vmatmul.f32.gmra.mxu0 %v1644
  %v1722 = vpop.f32.mrf.mxu0
  %v1723 = vadd.f32 0.0, %v1722
  %1724 = vmatmul.f32.gmra.mxu0 %v1645
  %v1725 = vpop.f32.mrf.mxu0
  %v1726 = vadd.f32 0.0, %v1725
  %1727 = vdwg.mxu0
  %v1728 = vadd.f32 %v1614, %v1681
  %v1729 = vadd.f32 %v1615, %v1684
  %v1730 = vadd.f32 %v1616, %v1687
  %v1731 = vadd.f32 %v1617, %v1690
  %v1732 = vadd.f32 %v1618, %v1693
  %v1733 = vadd.f32 %v1619, %v1696
  %v1734 = vadd.f32 %v1620, %v1699
  %v1735 = vadd.f32 %v1621, %v1702
  %v1736 = vadd.f32 %v1622, %v1705
  %v1737 = vadd.f32 %v1623, %v1708
  %v1738 = vadd.f32 %v1624, %v1711
  %v1739 = vadd.f32 %v1625, %v1714
  %v1740 = vadd.f32 %v1626, %v1717
  %v1741 = vadd.f32 %v1627, %v1720
  %v1742 = vadd.f32 %v1628, %v1723
  %v1743 = vadd.f32 %v1629, %v1726
  %v1744 = vld [vmem:[#allocation2 + $0x26] sm:$0xff]
  %v1745 = vld [vmem:[#allocation2 + $0x2e] sm:$0xff]
  %v1746 = vld [vmem:[#allocation2 + $0x36] sm:$0xff]
  %v1747 = vld [vmem:[#allocation2 + $0x3e] sm:$0xff]
  %v1748 = vld [vmem:[#allocation2 + $0x46] sm:$0xff]
  %v1749 = vld [vmem:[#allocation2 + $0x4e] sm:$0xff]
  %v1750 = vld [vmem:[#allocation2 + $0x56] sm:$0xff]
  %v1751 = vld [vmem:[#allocation2 + $0x5e] sm:$0xff]
  %v1752 = vld [vmem:[#allocation2 + $0x66] sm:$0xff]
  %v1753 = vld [vmem:[#allocation2 + $0x6e] sm:$0xff]
  %v1754 = vld [vmem:[#allocation2 + $0x76] sm:$0xff]
  %v1755 = vld [vmem:[#allocation2 + $0x7e] sm:$0xff]
  %v1756 = vld [vmem:[#allocation2 + $0x86] sm:$0xff]
  %v1757 = vld [vmem:[#allocation2 + $0x8e] sm:$0xff]
  %v1758 = vld [vmem:[#allocation2 + $0x96] sm:$0xff]
  %v1759 = vld [vmem:[#allocation2 + $0x9e] sm:$0xff]
  %s1760 = scalar_lea.vmem %s2, 1024
  %v1761 = vld [vmem:[%s1760] sm:$0xff]
  %v1762 = vld [vmem:[%s1760 + $0x8] sm:$0xff]
  %v1763 = vld [vmem:[%s1760 + $0x10] sm:$0xff]
  %v1764 = vld [vmem:[%s1760 + $0x18] sm:$0xff]
  %v1765 = vld [vmem:[%s1760 + $0x20] sm:$0xff]
  %v1766 = vld [vmem:[%s1760 + $0x28] sm:$0xff]
  %v1767 = vld [vmem:[%s1760 + $0x30] sm:$0xff]
  %v1768 = vld [vmem:[%s1760 + $0x38] sm:$0xff]
  %v1769 = vld [vmem:[%s1760 + $0x40] sm:$0xff]
  %v1770 = vld [vmem:[%s1760 + $0x48] sm:$0xff]
  %v1771 = vld [vmem:[%s1760 + $0x50] sm:$0xff]
  %v1772 = vld [vmem:[%s1760 + $0x58] sm:$0xff]
  %v1773 = vld [vmem:[%s1760 + $0x60] sm:$0xff]
  %v1774 = vld [vmem:[%s1760 + $0x68] sm:$0xff]
  %v1775 = vld [vmem:[%s1760 + $0x70] sm:$0xff]
  %v1776 = vld [vmem:[%s1760 + $0x78] sm:$0xff]
  %1777 = vmatpush.msra.mxu0 %v1776
  %1778 = vmatpush.msra.mxu0 %v1775
  %1779 = vmatpush.msra.mxu0 %v1774
  %1780 = vmatpush.msra.mxu0 %v1773
  %1781 = vmatpush.msra.mxu0 %v1772
  %1782 = vmatpush.msra.mxu0 %v1771
  %1783 = vmatpush.msra.mxu0 %v1770
  %1784 = vmatpush.msra.mxu0 %v1769
  %1785 = vmatpush.msra.mxu0 %v1768
  %1786 = vmatpush.msra.mxu0 %v1767
  %1787 = vmatpush.msra.mxu0 %v1766
  %1788 = vmatpush.msra.mxu0 %v1765
  %1789 = vmatpush.msra.mxu0 %v1764
  %1790 = vmatpush.msra.mxu0 %v1763
  %1791 = vmatpush.msra.mxu0 %v1762
  %1792 = vmatpush.msra.mxu0 %v1761
  %1793 = vmatmul.f32.gmra.mxu0 %v1744
  %v1794 = vpop.f32.mrf.mxu0
  %v1795 = vadd.f32 0.0, %v1794
  %1796 = vmatmul.f32.gmra.mxu0 %v1745
  %v1797 = vpop.f32.mrf.mxu0
  %v1798 = vadd.f32 0.0, %v1797
  %1799 = vmatmul.f32.gmra.mxu0 %v1746
  %v1800 = vpop.f32.mrf.mxu0
  %v1801 = vadd.f32 0.0, %v1800
  %1802 = vmatmul.f32.gmra.mxu0 %v1747
  %v1803 = vpop.f32.mrf.mxu0
  %v1804 = vadd.f32 0.0, %v1803
  %1805 = vmatmul.f32.gmra.mxu0 %v1748
  %v1806 = vpop.f32.mrf.mxu0
  %v1807 = vadd.f32 0.0, %v1806
  %1808 = vmatmul.f32.gmra.mxu0 %v1749
  %v1809 = vpop.f32.mrf.mxu0
  %v1810 = vadd.f32 0.0, %v1809
  %1811 = vmatmul.f32.gmra.mxu0 %v1750
  %v1812 = vpop.f32.mrf.mxu0
  %v1813 = vadd.f32 0.0, %v1812
  %1814 = vmatmul.f32.gmra.mxu0 %v1751
  %v1815 = vpop.f32.mrf.mxu0
  %v1816 = vadd.f32 0.0, %v1815
  %1817 = vmatmul.f32.gmra.mxu0 %v1752
  %v1818 = vpop.f32.mrf.mxu0
  %v1819 = vadd.f32 0.0, %v1818
  %1820 = vmatmul.f32.gmra.mxu0 %v1753
  %v1821 = vpop.f32.mrf.mxu0
  %v1822 = vadd.f32 0.0, %v1821
  %1823 = vmatmul.f32.gmra.mxu0 %v1754
  %v1824 = vpop.f32.mrf.mxu0
  %v1825 = vadd.f32 0.0, %v1824
  %1826 = vmatmul.f32.gmra.mxu0 %v1755
  %v1827 = vpop.f32.mrf.mxu0
  %v1828 = vadd.f32 0.0, %v1827
  %1829 = vmatmul.f32.gmra.mxu0 %v1756
  %v1830 = vpop.f32.mrf.mxu0
  %v1831 = vadd.f32 0.0, %v1830
  %1832 = vmatmul.f32.gmra.mxu0 %v1757
  %v1833 = vpop.f32.mrf.mxu0
  %v1834 = vadd.f32 0.0, %v1833
  %1835 = vmatmul.f32.gmra.mxu0 %v1758
  %v1836 = vpop.f32.mrf.mxu0
  %v1837 = vadd.f32 0.0, %v1836
  %1838 = vmatmul.f32.gmra.mxu0 %v1759
  %v1839 = vpop.f32.mrf.mxu0
  %v1840 = vadd.f32 0.0, %v1839
  %1841 = vdwg.mxu0
  %v1842 = vadd.f32 %v1728, %v1795
  %v1843 = vadd.f32 %v1729, %v1798
  %v1844 = vadd.f32 %v1730, %v1801
  %v1845 = vadd.f32 %v1731, %v1804
  %v1846 = vadd.f32 %v1732, %v1807
  %v1847 = vadd.f32 %v1733, %v1810
  %v1848 = vadd.f32 %v1734, %v1813
  %v1849 = vadd.f32 %v1735, %v1816
  %v1850 = vadd.f32 %v1736, %v1819
  %v1851 = vadd.f32 %v1737, %v1822
  %v1852 = vadd.f32 %v1738, %v1825
  %v1853 = vadd.f32 %v1739, %v1828
  %v1854 = vadd.f32 %v1740, %v1831
  %v1855 = vadd.f32 %v1741, %v1834
  %v1856 = vadd.f32 %v1742, %v1837
  %v1857 = vadd.f32 %v1743, %v1840
  %v1859 = vperm.slane %v864, 0
  %v1861 = vadd.f32 %v1842, %v1859
  %v1862 = vadd.f32 %v1843, %v1859
  %v1863 = vadd.f32 %v1844, %v1859
  %v1864 = vadd.f32 %v1845, %v1859
  %v1865 = vadd.f32 %v1846, %v1859
  %v1866 = vadd.f32 %v1847, %v1859
  %v1867 = vadd.f32 %v1848, %v1859
  %v1868 = vadd.f32 %v1849, %v1859
  %v1869 = vadd.f32 %v1850, %v1859
  %v1870 = vadd.f32 %v1851, %v1859
  %v1871 = vadd.f32 %v1852, %v1859
  %v1872 = vadd.f32 %v1853, %v1859
  %v1873 = vadd.f32 %v1854, %v1859
  %v1874 = vadd.f32 %v1855, %v1859
  %v1875 = vadd.f32 %v1856, %v1859
  %v1876 = vadd.f32 %v1857, %v1859
  %vm1877 = vcmp.gt.f32.partialorder %v1861, 0.0
  %vm1878 = vcmp.gt.f32.partialorder %v1862, 0.0
  %vm1879 = vcmp.gt.f32.partialorder %v1863, 0.0
  %vm1880 = vcmp.gt.f32.partialorder %v1864, 0.0
  %vm1881 = vcmp.gt.f32.partialorder %v1865, 0.0
  %vm1882 = vcmp.gt.f32.partialorder %v1866, 0.0
  %vm1883 = vcmp.gt.f32.partialorder %v1867, 0.0
  %vm1884 = vcmp.gt.f32.partialorder %v1868, 0.0
  %vm1885 = vcmp.gt.f32.partialorder %v1869, 0.0
  %vm1886 = vcmp.gt.f32.partialorder %v1870, 0.0
  %vm1887 = vcmp.gt.f32.partialorder %v1871, 0.0
  %vm1888 = vcmp.gt.f32.partialorder %v1872, 0.0
  %vm1889 = vcmp.gt.f32.partialorder %v1873, 0.0
  %vm1890 = vcmp.gt.f32.partialorder %v1874, 0.0
  %vm1891 = vcmp.gt.f32.partialorder %v1875, 0.0
  %vm1892 = vcmp.gt.f32.partialorder %v1876, 0.0
  %v1893 = vmul.f32 %v1861, 0.01
  %v1894 = vmul.f32 %v1862, 0.01
  %v1895 = vmul.f32 %v1863, 0.01
  %v1896 = vmul.f32 %v1864, 0.01
  %v1897 = vmul.f32 %v1865, 0.01
  %v1898 = vmul.f32 %v1866, 0.01
  %v1899 = vmul.f32 %v1867, 0.01
  %v1900 = vmul.f32 %v1868, 0.01
  %v1901 = vmul.f32 %v1869, 0.01
  %v1902 = vmul.f32 %v1870, 0.01
  %v1903 = vmul.f32 %v1871, 0.01
  %v1904 = vmul.f32 %v1872, 0.01
  %v1905 = vmul.f32 %v1873, 0.01
  %v1906 = vmul.f32 %v1874, 0.01
  %v1907 = vmul.f32 %v1875, 0.01
  %v1908 = vmul.f32 %v1876, 0.01
  %v1909 = vsel %vm1877, %v1861, %v1893
  %v1910 = vsel %vm1878, %v1862, %v1894
  %v1911 = vsel %vm1879, %v1863, %v1895
  %v1912 = vsel %vm1880, %v1864, %v1896
  %v1913 = vsel %vm1881, %v1865, %v1897
  %v1914 = vsel %vm1882, %v1866, %v1898
  %v1915 = vsel %vm1883, %v1867, %v1899
  %v1916 = vsel %vm1884, %v1868, %v1900
  %v1917 = vsel %vm1885, %v1869, %v1901
  %v1918 = vsel %vm1886, %v1870, %v1902
  %v1919 = vsel %vm1887, %v1871, %v1903
  %v1920 = vsel %vm1888, %v1872, %v1904
  %v1921 = vsel %vm1889, %v1873, %v1905
  %v1922 = vsel %vm1890, %v1874, %v1906
  %v1923 = vsel %vm1891, %v1875, %v1907
  %v1924 = vsel %vm1892, %v1876, %v1908
  %1925 = vst [vmem:[#allocation3] sm:$0xff] %v1909
  %1926 = vst [vmem:[#allocation3 + $0x8] sm:$0xff] %v1910
  %1927 = vst [vmem:[#allocation3 + $0x10] sm:$0xff] %v1911
  %1928 = vst [vmem:[#allocation3 + $0x18] sm:$0xff] %v1912
  %1929 = vst [vmem:[#allocation3 + $0x20] sm:$0xff] %v1913
  %1930 = vst [vmem:[#allocation3 + $0x28] sm:$0xff] %v1914
  %1931 = vst [vmem:[#allocation3 + $0x30] sm:$0xff] %v1915
  %1932 = vst [vmem:[#allocation3 + $0x38] sm:$0xff] %v1916
  %1933 = vst [vmem:[#allocation3 + $0x40] sm:$0xff] %v1917
  %1934 = vst [vmem:[#allocation3 + $0x48] sm:$0xff] %v1918
  %1935 = vst [vmem:[#allocation3 + $0x50] sm:$0xff] %v1919
  %1936 = vst [vmem:[#allocation3 + $0x58] sm:$0xff] %v1920
  %1937 = vst [vmem:[#allocation3 + $0x60] sm:$0xff] %v1921
  %1938 = vst [vmem:[#allocation3 + $0x68] sm:$0xff] %v1922
  %1939 = vst [vmem:[#allocation3 + $0x70] sm:$0xff] %v1923
  %1940 = vst [vmem:[#allocation3 + $0x78] sm:$0xff] %v1924
  %v1941 = vld [vmem:[#allocation2 + $0x80] sm:$0xff]
  %v1942 = vld [vmem:[#allocation2 + $0x88] sm:$0xff]
  %v1943 = vld [vmem:[#allocation2 + $0x90] sm:$0xff]
  %v1944 = vld [vmem:[#allocation2 + $0x98] sm:$0xff]
  %v1945 = vld [vmem:[#allocation2 + $0xa0] sm:$0xff]
  %v1946 = vld [vmem:[#allocation2 + $0xa8] sm:$0xff]
  %v1947 = vld [vmem:[#allocation2 + $0xb0] sm:$0xff]
  %v1948 = vld [vmem:[#allocation2 + $0xb8] sm:$0xff]
  %v1949 = vld [vmem:[#allocation2 + $0xc0] sm:$0xff]
  %v1950 = vld [vmem:[#allocation2 + $0xc8] sm:$0xff]
  %v1951 = vld [vmem:[#allocation2 + $0xd0] sm:$0xff]
  %v1952 = vld [vmem:[#allocation2 + $0xd8] sm:$0xff]
  %v1953 = vld [vmem:[#allocation2 + $0xe0] sm:$0xff]
  %v1954 = vld [vmem:[#allocation2 + $0xe8] sm:$0xff]
  %v1955 = vld [vmem:[#allocation2 + $0xf0] sm:$0xff]
  %v1956 = vld [vmem:[#allocation2 + $0xf8] sm:$0xff]
  %v1957 = vld [vmem:[%s2] sm:$0xff]
  %v1958 = vld [vmem:[%s2 + $0x8] sm:$0xff]
  %v1959 = vld [vmem:[%s2 + $0x10] sm:$0xff]
  %v1960 = vld [vmem:[%s2 + $0x18] sm:$0xff]
  %v1961 = vld [vmem:[%s2 + $0x20] sm:$0xff]
  %v1962 = vld [vmem:[%s2 + $0x28] sm:$0xff]
  %v1963 = vld [vmem:[%s2 + $0x30] sm:$0xff]
  %v1964 = vld [vmem:[%s2 + $0x38] sm:$0xff]
  %v1965 = vld [vmem:[%s2 + $0x40] sm:$0xff]
  %v1966 = vld [vmem:[%s2 + $0x48] sm:$0xff]
  %v1967 = vld [vmem:[%s2 + $0x50] sm:$0xff]
  %v1968 = vld [vmem:[%s2 + $0x58] sm:$0xff]
  %v1969 = vld [vmem:[%s2 + $0x60] sm:$0xff]
  %v1970 = vld [vmem:[%s2 + $0x68] sm:$0xff]
  %v1971 = vld [vmem:[%s2 + $0x70] sm:$0xff]
  %v1972 = vld [vmem:[%s2 + $0x78] sm:$0xff]
  %v1973 = vld [vmem:[#allocation2 + $0x81] sm:$0xff]
  %v1974 = vld [vmem:[#allocation2 + $0x89] sm:$0xff]
  %v1975 = vld [vmem:[#allocation2 + $0x91] sm:$0xff]
  %v1976 = vld [vmem:[#allocation2 + $0x99] sm:$0xff]
  %v1977 = vld [vmem:[#allocation2 + $0xa1] sm:$0xff]
  %v1978 = vld [vmem:[#allocation2 + $0xa9] sm:$0xff]
  %v1979 = vld [vmem:[#allocation2 + $0xb1] sm:$0xff]
  %v1980 = vld [vmem:[#allocation2 + $0xb9] sm:$0xff]
  %v1981 = vld [vmem:[#allocation2 + $0xc1] sm:$0xff]
  %v1982 = vld [vmem:[#allocation2 + $0xc9] sm:$0xff]
  %v1983 = vld [vmem:[#allocation2 + $0xd1] sm:$0xff]
  %v1984 = vld [vmem:[#allocation2 + $0xd9] sm:$0xff]
  %v1985 = vld [vmem:[#allocation2 + $0xe1] sm:$0xff]
  %v1986 = vld [vmem:[#allocation2 + $0xe9] sm:$0xff]
  %v1987 = vld [vmem:[#allocation2 + $0xf1] sm:$0xff]
  %v1988 = vld [vmem:[#allocation2 + $0xf9] sm:$0xff]
  %v1989 = vld [vmem:[%s913] sm:$0xff]
  %v1990 = vld [vmem:[%s913 + $0x8] sm:$0xff]
  %v1991 = vld [vmem:[%s913 + $0x10] sm:$0xff]
  %v1992 = vld [vmem:[%s913 + $0x18] sm:$0xff]
  %v1993 = vld [vmem:[%s913 + $0x20] sm:$0xff]
  %v1994 = vld [vmem:[%s913 + $0x28] sm:$0xff]
  %v1995 = vld [vmem:[%s913 + $0x30] sm:$0xff]
  %v1996 = vld [vmem:[%s913 + $0x38] sm:$0xff]
  %v1997 = vld [vmem:[%s913 + $0x40] sm:$0xff]
  %v1998 = vld [vmem:[%s913 + $0x48] sm:$0xff]
  %v1999 = vld [vmem:[%s913 + $0x50] sm:$0xff]
  %v2000 = vld [vmem:[%s913 + $0x58] sm:$0xff]
  %v2001 = vld [vmem:[%s913 + $0x60] sm:$0xff]
  %v2002 = vld [vmem:[%s913 + $0x68] sm:$0xff]
  %v2003 = vld [vmem:[%s913 + $0x70] sm:$0xff]
  %v2004 = vld [vmem:[%s913 + $0x78] sm:$0xff]
  %2005 = vmatpush.msra.mxu0 %v2004
  %2006 = vmatpush.msra.mxu0 %v2003
  %2007 = vmatpush.msra.mxu0 %v2002
  %2008 = vmatpush.msra.mxu0 %v2001
  %2009 = vmatpush.msra.mxu0 %v2000
  %2010 = vmatpush.msra.mxu0 %v1999
  %2011 = vmatpush.msra.mxu0 %v1998
  %2012 = vmatpush.msra.mxu0 %v1997
  %2013 = vmatpush.msra.mxu0 %v1996
  %2014 = vmatpush.msra.mxu0 %v1995
  %2015 = vmatpush.msra.mxu0 %v1994
  %2016 = vmatpush.msra.mxu0 %v1993
  %2017 = vmatpush.msra.mxu0 %v1992
  %2018 = vmatpush.msra.mxu0 %v1991
  %2019 = vmatpush.msra.mxu0 %v1990
  %2020 = vmatpush.msra.mxu0 %v1989
  %2021 = vmatmul.f32.gmra.mxu0 %v1973
  %v2022 = vpop.f32.mrf.mxu0
  %v2023 = vadd.f32 0.0, %v2022
  %2024 = vmatmul.f32.gmra.mxu0 %v1974
  %v2025 = vpop.f32.mrf.mxu0
  %v2026 = vadd.f32 0.0, %v2025
  %2027 = vmatmul.f32.gmra.mxu0 %v1975
  %v2028 = vpop.f32.mrf.mxu0
  %v2029 = vadd.f32 0.0, %v2028
  %2030 = vmatmul.f32.gmra.mxu0 %v1976
  %v2031 = vpop.f32.mrf.mxu0
  %v2032 = vadd.f32 0.0, %v2031
  %2033 = vmatmul.f32.gmra.mxu0 %v1977
  %v2034 = vpop.f32.mrf.mxu0
  %v2035 = vadd.f32 0.0, %v2034
  %2036 = vmatmul.f32.gmra.mxu0 %v1978
  %v2037 = vpop.f32.mrf.mxu0
  %v2038 = vadd.f32 0.0, %v2037
  %2039 = vmatmul.f32.gmra.mxu0 %v1979
  %v2040 = vpop.f32.mrf.mxu0
  %v2041 = vadd.f32 0.0, %v2040
  %2042 = vmatmul.f32.gmra.mxu0 %v1980
  %v2043 = vpop.f32.mrf.mxu0
  %v2044 = vadd.f32 0.0, %v2043
  %2045 = vmatmul.f32.gmra.mxu0 %v1981
  %v2046 = vpop.f32.mrf.mxu0
  %v2047 = vadd.f32 0.0, %v2046
  %2048 = vmatmul.f32.gmra.mxu0 %v1982
  %v2049 = vpop.f32.mrf.mxu0
  %v2050 = vadd.f32 0.0, %v2049
  %2051 = vmatmul.f32.gmra.mxu0 %v1983
  %v2052 = vpop.f32.mrf.mxu0
  %v2053 = vadd.f32 0.0, %v2052
  %2054 = vmatmul.f32.gmra.mxu0 %v1984
  %v2055 = vpop.f32.mrf.mxu0
  %v2056 = vadd.f32 0.0, %v2055
  %2057 = vmatmul.f32.gmra.mxu0 %v1985
  %v2058 = vpop.f32.mrf.mxu0
  %v2059 = vadd.f32 0.0, %v2058
  %2060 = vmatmul.f32.gmra.mxu0 %v1986
  %v2061 = vpop.f32.mrf.mxu0
  %v2062 = vadd.f32 0.0, %v2061
  %2063 = vmatmul.f32.gmra.mxu0 %v1987
  %v2064 = vpop.f32.mrf.mxu0
  %v2065 = vadd.f32 0.0, %v2064
  %2066 = vmatmul.f32.gmra.mxu0 %v1988
  %v2067 = vpop.f32.mrf.mxu0
  %v2068 = vadd.f32 0.0, %v2067
  %2069 = vdwg.mxu0
  %2070 = vmatpush.msra.mxu0 %v1972
  %2071 = vmatpush.msra.mxu0 %v1971
  %2072 = vmatpush.msra.mxu0 %v1970
  %2073 = vmatpush.msra.mxu0 %v1969
  %2074 = vmatpush.msra.mxu0 %v1968
  %2075 = vmatpush.msra.mxu0 %v1967
  %2076 = vmatpush.msra.mxu0 %v1966
  %2077 = vmatpush.msra.mxu0 %v1965
  %2078 = vmatpush.msra.mxu0 %v1964
  %2079 = vmatpush.msra.mxu0 %v1963
  %2080 = vmatpush.msra.mxu0 %v1962
  %2081 = vmatpush.msra.mxu0 %v1961
  %2082 = vmatpush.msra.mxu0 %v1960
  %2083 = vmatpush.msra.mxu0 %v1959
  %2084 = vmatpush.msra.mxu0 %v1958
  %2085 = vmatpush.msra.mxu0 %v1957
  %2086 = vmatmul.f32.gmra.mxu0 %v1941
  %v2087 = vpop.f32.mrf.mxu0
  %v2088 = vadd.f32 %v2023, %v2087
  %2089 = vmatmul.f32.gmra.mxu0 %v1942
  %v2090 = vpop.f32.mrf.mxu0
  %v2091 = vadd.f32 %v2026, %v2090
  %2092 = vmatmul.f32.gmra.mxu0 %v1943
  %v2093 = vpop.f32.mrf.mxu0
  %v2094 = vadd.f32 %v2029, %v2093
  %2095 = vmatmul.f32.gmra.mxu0 %v1944
  %v2096 = vpop.f32.mrf.mxu0
  %v2097 = vadd.f32 %v2032, %v2096
  %2098 = vmatmul.f32.gmra.mxu0 %v1945
  %v2099 = vpop.f32.mrf.mxu0
  %v2100 = vadd.f32 %v2035, %v2099
  %2101 = vmatmul.f32.gmra.mxu0 %v1946
  %v2102 = vpop.f32.mrf.mxu0
  %v2103 = vadd.f32 %v2038, %v2102
  %2104 = vmatmul.f32.gmra.mxu0 %v1947
  %v2105 = vpop.f32.mrf.mxu0
  %v2106 = vadd.f32 %v2041, %v2105
  %2107 = vmatmul.f32.gmra.mxu0 %v1948
  %v2108 = vpop.f32.mrf.mxu0
  %v2109 = vadd.f32 %v2044, %v2108
  %2110 = vmatmul.f32.gmra.mxu0 %v1949
  %v2111 = vpop.f32.mrf.mxu0
  %v2112 = vadd.f32 %v2047, %v2111
  %2113 = vmatmul.f32.gmra.mxu0 %v1950
  %v2114 = vpop.f32.mrf.mxu0
  %v2115 = vadd.f32 %v2050, %v2114
  %2116 = vmatmul.f32.gmra.mxu0 %v1951
  %v2117 = vpop.f32.mrf.mxu0
  %v2118 = vadd.f32 %v2053, %v2117
  %2119 = vmatmul.f32.gmra.mxu0 %v1952
  %v2120 = vpop.f32.mrf.mxu0
  %v2121 = vadd.f32 %v2056, %v2120
  %2122 = vmatmul.f32.gmra.mxu0 %v1953
  %v2123 = vpop.f32.mrf.mxu0
  %v2124 = vadd.f32 %v2059, %v2123
  %2125 = vmatmul.f32.gmra.mxu0 %v1954
  %v2126 = vpop.f32.mrf.mxu0
  %v2127 = vadd.f32 %v2062, %v2126
  %2128 = vmatmul.f32.gmra.mxu0 %v1955
  %v2129 = vpop.f32.mrf.mxu0
  %v2130 = vadd.f32 %v2065, %v2129
  %2131 = vmatmul.f32.gmra.mxu0 %v1956
  %v2132 = vpop.f32.mrf.mxu0
  %v2133 = vadd.f32 %v2068, %v2132
  %2134 = vdwg.mxu0
  %v2135 = vld [vmem:[#allocation2 + $0x82] sm:$0xff]
  %v2136 = vld [vmem:[#allocation2 + $0x8a] sm:$0xff]
  %v2137 = vld [vmem:[#allocation2 + $0x92] sm:$0xff]
  %v2138 = vld [vmem:[#allocation2 + $0x9a] sm:$0xff]
  %v2139 = vld [vmem:[#allocation2 + $0xa2] sm:$0xff]
  %v2140 = vld [vmem:[#allocation2 + $0xaa] sm:$0xff]
  %v2141 = vld [vmem:[#allocation2 + $0xb2] sm:$0xff]
  %v2142 = vld [vmem:[#allocation2 + $0xba] sm:$0xff]
  %v2143 = vld [vmem:[#allocation2 + $0xc2] sm:$0xff]
  %v2144 = vld [vmem:[#allocation2 + $0xca] sm:$0xff]
  %v2145 = vld [vmem:[#allocation2 + $0xd2] sm:$0xff]
  %v2146 = vld [vmem:[#allocation2 + $0xda] sm:$0xff]
  %v2147 = vld [vmem:[#allocation2 + $0xe2] sm:$0xff]
  %v2148 = vld [vmem:[#allocation2 + $0xea] sm:$0xff]
  %v2149 = vld [vmem:[#allocation2 + $0xf2] sm:$0xff]
  %v2150 = vld [vmem:[#allocation2 + $0xfa] sm:$0xff]
  %v2151 = vld [vmem:[%s1076] sm:$0xff]
  %v2152 = vld [vmem:[%s1076 + $0x8] sm:$0xff]
  %v2153 = vld [vmem:[%s1076 + $0x10] sm:$0xff]
  %v2154 = vld [vmem:[%s1076 + $0x18] sm:$0xff]
  %v2155 = vld [vmem:[%s1076 + $0x20] sm:$0xff]
  %v2156 = vld [vmem:[%s1076 + $0x28] sm:$0xff]
  %v2157 = vld [vmem:[%s1076 + $0x30] sm:$0xff]
  %v2158 = vld [vmem:[%s1076 + $0x38] sm:$0xff]
  %v2159 = vld [vmem:[%s1076 + $0x40] sm:$0xff]
  %v2160 = vld [vmem:[%s1076 + $0x48] sm:$0xff]
  %v2161 = vld [vmem:[%s1076 + $0x50] sm:$0xff]
  %v2162 = vld [vmem:[%s1076 + $0x58] sm:$0xff]
  %v2163 = vld [vmem:[%s1076 + $0x60] sm:$0xff]
  %v2164 = vld [vmem:[%s1076 + $0x68] sm:$0xff]
  %v2165 = vld [vmem:[%s1076 + $0x70] sm:$0xff]
  %v2166 = vld [vmem:[%s1076 + $0x78] sm:$0xff]
  %2167 = vmatpush.msra.mxu0 %v2166
  %2168 = vmatpush.msra.mxu0 %v2165
  %2169 = vmatpush.msra.mxu0 %v2164
  %2170 = vmatpush.msra.mxu0 %v2163
  %2171 = vmatpush.msra.mxu0 %v2162
  %2172 = vmatpush.msra.mxu0 %v2161
  %2173 = vmatpush.msra.mxu0 %v2160
  %2174 = vmatpush.msra.mxu0 %v2159
  %2175 = vmatpush.msra.mxu0 %v2158
  %2176 = vmatpush.msra.mxu0 %v2157
  %2177 = vmatpush.msra.mxu0 %v2156
  %2178 = vmatpush.msra.mxu0 %v2155
  %2179 = vmatpush.msra.mxu0 %v2154
  %2180 = vmatpush.msra.mxu0 %v2153
  %2181 = vmatpush.msra.mxu0 %v2152
  %2182 = vmatpush.msra.mxu0 %v2151
  %2183 = vmatmul.f32.gmra.mxu0 %v2135
  %v2184 = vpop.f32.mrf.mxu0
  %v2185 = vadd.f32 0.0, %v2184
  %2186 = vmatmul.f32.gmra.mxu0 %v2136
  %v2187 = vpop.f32.mrf.mxu0
  %v2188 = vadd.f32 0.0, %v2187
  %2189 = vmatmul.f32.gmra.mxu0 %v2137
  %v2190 = vpop.f32.mrf.mxu0
  %v2191 = vadd.f32 0.0, %v2190
  %2192 = vmatmul.f32.gmra.mxu0 %v2138
  %v2193 = vpop.f32.mrf.mxu0
  %v2194 = vadd.f32 0.0, %v2193
  %2195 = vmatmul.f32.gmra.mxu0 %v2139
  %v2196 = vpop.f32.mrf.mxu0
  %v2197 = vadd.f32 0.0, %v2196
  %2198 = vmatmul.f32.gmra.mxu0 %v2140
  %v2199 = vpop.f32.mrf.mxu0
  %v2200 = vadd.f32 0.0, %v2199
  %2201 = vmatmul.f32.gmra.mxu0 %v2141
  %v2202 = vpop.f32.mrf.mxu0
  %v2203 = vadd.f32 0.0, %v2202
  %2204 = vmatmul.f32.gmra.mxu0 %v2142
  %v2205 = vpop.f32.mrf.mxu0
  %v2206 = vadd.f32 0.0, %v2205
  %2207 = vmatmul.f32.gmra.mxu0 %v2143
  %v2208 = vpop.f32.mrf.mxu0
  %v2209 = vadd.f32 0.0, %v2208
  %2210 = vmatmul.f32.gmra.mxu0 %v2144
  %v2211 = vpop.f32.mrf.mxu0
  %v2212 = vadd.f32 0.0, %v2211
  %2213 = vmatmul.f32.gmra.mxu0 %v2145
  %v2214 = vpop.f32.mrf.mxu0
  %v2215 = vadd.f32 0.0, %v2214
  %2216 = vmatmul.f32.gmra.mxu0 %v2146
  %v2217 = vpop.f32.mrf.mxu0
  %v2218 = vadd.f32 0.0, %v2217
  %2219 = vmatmul.f32.gmra.mxu0 %v2147
  %v2220 = vpop.f32.mrf.mxu0
  %v2221 = vadd.f32 0.0, %v2220
  %2222 = vmatmul.f32.gmra.mxu0 %v2148
  %v2223 = vpop.f32.mrf.mxu0
  %v2224 = vadd.f32 0.0, %v2223
  %2225 = vmatmul.f32.gmra.mxu0 %v2149
  %v2226 = vpop.f32.mrf.mxu0
  %v2227 = vadd.f32 0.0, %v2226
  %2228 = vmatmul.f32.gmra.mxu0 %v2150
  %v2229 = vpop.f32.mrf.mxu0
  %v2230 = vadd.f32 0.0, %v2229
  %2231 = vdwg.mxu0
  %v2232 = vadd.f32 %v2088, %v2185
  %v2233 = vadd.f32 %v2091, %v2188
  %v2234 = vadd.f32 %v2094, %v2191
  %v2235 = vadd.f32 %v2097, %v2194
  %v2236 = vadd.f32 %v2100, %v2197
  %v2237 = vadd.f32 %v2103, %v2200
  %v2238 = vadd.f32 %v2106, %v2203
  %v2239 = vadd.f32 %v2109, %v2206
  %v2240 = vadd.f32 %v2112, %v2209
  %v2241 = vadd.f32 %v2115, %v2212
  %v2242 = vadd.f32 %v2118, %v2215
  %v2243 = vadd.f32 %v2121, %v2218
  %v2244 = vadd.f32 %v2124, %v2221
  %v2245 = vadd.f32 %v2127, %v2224
  %v2246 = vadd.f32 %v2130, %v2227
  %v2247 = vadd.f32 %v2133, %v2230
  %v2248 = vld [vmem:[#allocation2 + $0x92] sm:$0xff]
  %v2249 = vld [vmem:[#allocation2 + $0x9a] sm:$0xff]
  %v2250 = vld [vmem:[#allocation2 + $0xa2] sm:$0xff]
  %v2251 = vld [vmem:[#allocation2 + $0xaa] sm:$0xff]
  %v2252 = vld [vmem:[#allocation2 + $0xb2] sm:$0xff]
  %v2253 = vld [vmem:[#allocation2 + $0xba] sm:$0xff]
  %v2254 = vld [vmem:[#allocation2 + $0xc2] sm:$0xff]
  %v2255 = vld [vmem:[#allocation2 + $0xca] sm:$0xff]
  %v2256 = vld [vmem:[#allocation2 + $0xd2] sm:$0xff]
  %v2257 = vld [vmem:[#allocation2 + $0xda] sm:$0xff]
  %v2258 = vld [vmem:[#allocation2 + $0xe2] sm:$0xff]
  %v2259 = vld [vmem:[#allocation2 + $0xea] sm:$0xff]
  %v2260 = vld [vmem:[#allocation2 + $0xf2] sm:$0xff]
  %v2261 = vld [vmem:[#allocation2 + $0xfa] sm:$0xff]
  %v2262 = vld [vmem:[#allocation2 + $0x102] sm:$0xff]
  %v2263 = vld [vmem:[#allocation2 + $0x10a] sm:$0xff]
  %v2264 = vld [vmem:[%s1190] sm:$0xff]
  %v2265 = vld [vmem:[%s1190 + $0x8] sm:$0xff]
  %v2266 = vld [vmem:[%s1190 + $0x10] sm:$0xff]
  %v2267 = vld [vmem:[%s1190 + $0x18] sm:$0xff]
  %v2268 = vld [vmem:[%s1190 + $0x20] sm:$0xff]
  %v2269 = vld [vmem:[%s1190 + $0x28] sm:$0xff]
  %v2270 = vld [vmem:[%s1190 + $0x30] sm:$0xff]
  %v2271 = vld [vmem:[%s1190 + $0x38] sm:$0xff]
  %v2272 = vld [vmem:[%s1190 + $0x40] sm:$0xff]
  %v2273 = vld [vmem:[%s1190 + $0x48] sm:$0xff]
  %v2274 = vld [vmem:[%s1190 + $0x50] sm:$0xff]
  %v2275 = vld [vmem:[%s1190 + $0x58] sm:$0xff]
  %v2276 = vld [vmem:[%s1190 + $0x60] sm:$0xff]
  %v2277 = vld [vmem:[%s1190 + $0x68] sm:$0xff]
  %v2278 = vld [vmem:[%s1190 + $0x70] sm:$0xff]
  %v2279 = vld [vmem:[%s1190 + $0x78] sm:$0xff]
  %2280 = vmatpush.msra.mxu0 %v2279
  %2281 = vmatpush.msra.mxu0 %v2278
  %2282 = vmatpush.msra.mxu0 %v2277
  %2283 = vmatpush.msra.mxu0 %v2276
  %2284 = vmatpush.msra.mxu0 %v2275
  %2285 = vmatpush.msra.mxu0 %v2274
  %2286 = vmatpush.msra.mxu0 %v2273
  %2287 = vmatpush.msra.mxu0 %v2272
  %2288 = vmatpush.msra.mxu0 %v2271
  %2289 = vmatpush.msra.mxu0 %v2270
  %2290 = vmatpush.msra.mxu0 %v2269
  %2291 = vmatpush.msra.mxu0 %v2268
  %2292 = vmatpush.msra.mxu0 %v2267
  %2293 = vmatpush.msra.mxu0 %v2266
  %2294 = vmatpush.msra.mxu0 %v2265
  %2295 = vmatpush.msra.mxu0 %v2264
  %2296 = vmatmul.f32.gmra.mxu0 %v2248
  %v2297 = vpop.f32.mrf.mxu0
  %v2298 = vadd.f32 0.0, %v2297
  %2299 = vmatmul.f32.gmra.mxu0 %v2249
  %v2300 = vpop.f32.mrf.mxu0
  %v2301 = vadd.f32 0.0, %v2300
  %2302 = vmatmul.f32.gmra.mxu0 %v2250
  %v2303 = vpop.f32.mrf.mxu0
  %v2304 = vadd.f32 0.0, %v2303
  %2305 = vmatmul.f32.gmra.mxu0 %v2251
  %v2306 = vpop.f32.mrf.mxu0
  %v2307 = vadd.f32 0.0, %v2306
  %2308 = vmatmul.f32.gmra.mxu0 %v2252
  %v2309 = vpop.f32.mrf.mxu0
  %v2310 = vadd.f32 0.0, %v2309
  %2311 = vmatmul.f32.gmra.mxu0 %v2253
  %v2312 = vpop.f32.mrf.mxu0
  %v2313 = vadd.f32 0.0, %v2312
  %2314 = vmatmul.f32.gmra.mxu0 %v2254
  %v2315 = vpop.f32.mrf.mxu0
  %v2316 = vadd.f32 0.0, %v2315
  %2317 = vmatmul.f32.gmra.mxu0 %v2255
  %v2318 = vpop.f32.mrf.mxu0
  %v2319 = vadd.f32 0.0, %v2318
  %2320 = vmatmul.f32.gmra.mxu0 %v2256
  %v2321 = vpop.f32.mrf.mxu0
  %v2322 = vadd.f32 0.0, %v2321
  %2323 = vmatmul.f32.gmra.mxu0 %v2257
  %v2324 = vpop.f32.mrf.mxu0
  %v2325 = vadd.f32 0.0, %v2324
  %2326 = vmatmul.f32.gmra.mxu0 %v2258
  %v2327 = vpop.f32.mrf.mxu0
  %v2328 = vadd.f32 0.0, %v2327
  %2329 = vmatmul.f32.gmra.mxu0 %v2259
  %v2330 = vpop.f32.mrf.mxu0
  %v2331 = vadd.f32 0.0, %v2330
  %2332 = vmatmul.f32.gmra.mxu0 %v2260
  %v2333 = vpop.f32.mrf.mxu0
  %v2334 = vadd.f32 0.0, %v2333
  %2335 = vmatmul.f32.gmra.mxu0 %v2261
  %v2336 = vpop.f32.mrf.mxu0
  %v2337 = vadd.f32 0.0, %v2336
  %2338 = vmatmul.f32.gmra.mxu0 %v2262
  %v2339 = vpop.f32.mrf.mxu0
  %v2340 = vadd.f32 0.0, %v2339
  %2341 = vmatmul.f32.gmra.mxu0 %v2263
  %v2342 = vpop.f32.mrf.mxu0
  %v2343 = vadd.f32 0.0, %v2342
  %2344 = vdwg.mxu0
  %v2345 = vadd.f32 %v2232, %v2298
  %v2346 = vadd.f32 %v2233, %v2301
  %v2347 = vadd.f32 %v2234, %v2304
  %v2348 = vadd.f32 %v2235, %v2307
  %v2349 = vadd.f32 %v2236, %v2310
  %v2350 = vadd.f32 %v2237, %v2313
  %v2351 = vadd.f32 %v2238, %v2316
  %v2352 = vadd.f32 %v2239, %v2319
  %v2353 = vadd.f32 %v2240, %v2322
  %v2354 = vadd.f32 %v2241, %v2325
  %v2355 = vadd.f32 %v2242, %v2328
  %v2356 = vadd.f32 %v2243, %v2331
  %v2357 = vadd.f32 %v2244, %v2334
  %v2358 = vadd.f32 %v2245, %v2337
  %v2359 = vadd.f32 %v2246, %v2340
  %v2360 = vadd.f32 %v2247, %v2343
  %v2361 = vld [vmem:[#allocation2 + $0x93] sm:$0xff]
  %v2362 = vld [vmem:[#allocation2 + $0x9b] sm:$0xff]
  %v2363 = vld [vmem:[#allocation2 + $0xa3] sm:$0xff]
  %v2364 = vld [vmem:[#allocation2 + $0xab] sm:$0xff]
  %v2365 = vld [vmem:[#allocation2 + $0xb3] sm:$0xff]
  %v2366 = vld [vmem:[#allocation2 + $0xbb] sm:$0xff]
  %v2367 = vld [vmem:[#allocation2 + $0xc3] sm:$0xff]
  %v2368 = vld [vmem:[#allocation2 + $0xcb] sm:$0xff]
  %v2369 = vld [vmem:[#allocation2 + $0xd3] sm:$0xff]
  %v2370 = vld [vmem:[#allocation2 + $0xdb] sm:$0xff]
  %v2371 = vld [vmem:[#allocation2 + $0xe3] sm:$0xff]
  %v2372 = vld [vmem:[#allocation2 + $0xeb] sm:$0xff]
  %v2373 = vld [vmem:[#allocation2 + $0xf3] sm:$0xff]
  %v2374 = vld [vmem:[#allocation2 + $0xfb] sm:$0xff]
  %v2375 = vld [vmem:[#allocation2 + $0x103] sm:$0xff]
  %v2376 = vld [vmem:[#allocation2 + $0x10b] sm:$0xff]
  %v2377 = vld [vmem:[%s1304] sm:$0xff]
  %v2378 = vld [vmem:[%s1304 + $0x8] sm:$0xff]
  %v2379 = vld [vmem:[%s1304 + $0x10] sm:$0xff]
  %v2380 = vld [vmem:[%s1304 + $0x18] sm:$0xff]
  %v2381 = vld [vmem:[%s1304 + $0x20] sm:$0xff]
  %v2382 = vld [vmem:[%s1304 + $0x28] sm:$0xff]
  %v2383 = vld [vmem:[%s1304 + $0x30] sm:$0xff]
  %v2384 = vld [vmem:[%s1304 + $0x38] sm:$0xff]
  %v2385 = vld [vmem:[%s1304 + $0x40] sm:$0xff]
  %v2386 = vld [vmem:[%s1304 + $0x48] sm:$0xff]
  %v2387 = vld [vmem:[%s1304 + $0x50] sm:$0xff]
  %v2388 = vld [vmem:[%s1304 + $0x58] sm:$0xff]
  %v2389 = vld [vmem:[%s1304 + $0x60] sm:$0xff]
  %v2390 = vld [vmem:[%s1304 + $0x68] sm:$0xff]
  %v2391 = vld [vmem:[%s1304 + $0x70] sm:$0xff]
  %v2392 = vld [vmem:[%s1304 + $0x78] sm:$0xff]
  %2393 = vmatpush.msra.mxu0 %v2392
  %2394 = vmatpush.msra.mxu0 %v2391
  %2395 = vmatpush.msra.mxu0 %v2390
  %2396 = vmatpush.msra.mxu0 %v2389
  %2397 = vmatpush.msra.mxu0 %v2388
  %2398 = vmatpush.msra.mxu0 %v2387
  %2399 = vmatpush.msra.mxu0 %v2386
  %2400 = vmatpush.msra.mxu0 %v2385
  %2401 = vmatpush.msra.mxu0 %v2384
  %2402 = vmatpush.msra.mxu0 %v2383
  %2403 = vmatpush.msra.mxu0 %v2382
  %2404 = vmatpush.msra.mxu0 %v2381
  %2405 = vmatpush.msra.mxu0 %v2380
  %2406 = vmatpush.msra.mxu0 %v2379
  %2407 = vmatpush.msra.mxu0 %v2378
  %2408 = vmatpush.msra.mxu0 %v2377
  %2409 = vmatmul.f32.gmra.mxu0 %v2361
  %v2410 = vpop.f32.mrf.mxu0
  %v2411 = vadd.f32 0.0, %v2410
  %2412 = vmatmul.f32.gmra.mxu0 %v2362
  %v2413 = vpop.f32.mrf.mxu0
  %v2414 = vadd.f32 0.0, %v2413
  %2415 = vmatmul.f32.gmra.mxu0 %v2363
  %v2416 = vpop.f32.mrf.mxu0
  %v2417 = vadd.f32 0.0, %v2416
  %2418 = vmatmul.f32.gmra.mxu0 %v2364
  %v2419 = vpop.f32.mrf.mxu0
  %v2420 = vadd.f32 0.0, %v2419
  %2421 = vmatmul.f32.gmra.mxu0 %v2365
  %v2422 = vpop.f32.mrf.mxu0
  %v2423 = vadd.f32 0.0, %v2422
  %2424 = vmatmul.f32.gmra.mxu0 %v2366
  %v2425 = vpop.f32.mrf.mxu0
  %v2426 = vadd.f32 0.0, %v2425
  %2427 = vmatmul.f32.gmra.mxu0 %v2367
  %v2428 = vpop.f32.mrf.mxu0
  %v2429 = vadd.f32 0.0, %v2428
  %2430 = vmatmul.f32.gmra.mxu0 %v2368
  %v2431 = vpop.f32.mrf.mxu0
  %v2432 = vadd.f32 0.0, %v2431
  %2433 = vmatmul.f32.gmra.mxu0 %v2369
  %v2434 = vpop.f32.mrf.mxu0
  %v2435 = vadd.f32 0.0, %v2434
  %2436 = vmatmul.f32.gmra.mxu0 %v2370
  %v2437 = vpop.f32.mrf.mxu0
  %v2438 = vadd.f32 0.0, %v2437
  %2439 = vmatmul.f32.gmra.mxu0 %v2371
  %v2440 = vpop.f32.mrf.mxu0
  %v2441 = vadd.f32 0.0, %v2440
  %2442 = vmatmul.f32.gmra.mxu0 %v2372
  %v2443 = vpop.f32.mrf.mxu0
  %v2444 = vadd.f32 0.0, %v2443
  %2445 = vmatmul.f32.gmra.mxu0 %v2373
  %v2446 = vpop.f32.mrf.mxu0
  %v2447 = vadd.f32 0.0, %v2446
  %2448 = vmatmul.f32.gmra.mxu0 %v2374
  %v2449 = vpop.f32.mrf.mxu0
  %v2450 = vadd.f32 0.0, %v2449
  %2451 = vmatmul.f32.gmra.mxu0 %v2375
  %v2452 = vpop.f32.mrf.mxu0
  %v2453 = vadd.f32 0.0, %v2452
  %2454 = vmatmul.f32.gmra.mxu0 %v2376
  %v2455 = vpop.f32.mrf.mxu0
  %v2456 = vadd.f32 0.0, %v2455
  %2457 = vdwg.mxu0
  %v2458 = vadd.f32 %v2345, %v2411
  %v2459 = vadd.f32 %v2346, %v2414
  %v2460 = vadd.f32 %v2347, %v2417
  %v2461 = vadd.f32 %v2348, %v2420
  %v2462 = vadd.f32 %v2349, %v2423
  %v2463 = vadd.f32 %v2350, %v2426
  %v2464 = vadd.f32 %v2351, %v2429
  %v2465 = vadd.f32 %v2352, %v2432
  %v2466 = vadd.f32 %v2353, %v2435
  %v2467 = vadd.f32 %v2354, %v2438
  %v2468 = vadd.f32 %v2355, %v2441
  %v2469 = vadd.f32 %v2356, %v2444
  %v2470 = vadd.f32 %v2357, %v2447
  %v2471 = vadd.f32 %v2358, %v2450
  %v2472 = vadd.f32 %v2359, %v2453
  %v2473 = vadd.f32 %v2360, %v2456
  %v2474 = vld [vmem:[#allocation2 + $0x94] sm:$0xff]
  %v2475 = vld [vmem:[#allocation2 + $0x9c] sm:$0xff]
  %v2476 = vld [vmem:[#allocation2 + $0xa4] sm:$0xff]
  %v2477 = vld [vmem:[#allocation2 + $0xac] sm:$0xff]
  %v2478 = vld [vmem:[#allocation2 + $0xb4] sm:$0xff]
  %v2479 = vld [vmem:[#allocation2 + $0xbc] sm:$0xff]
  %v2480 = vld [vmem:[#allocation2 + $0xc4] sm:$0xff]
  %v2481 = vld [vmem:[#allocation2 + $0xcc] sm:$0xff]
  %v2482 = vld [vmem:[#allocation2 + $0xd4] sm:$0xff]
  %v2483 = vld [vmem:[#allocation2 + $0xdc] sm:$0xff]
  %v2484 = vld [vmem:[#allocation2 + $0xe4] sm:$0xff]
  %v2485 = vld [vmem:[#allocation2 + $0xec] sm:$0xff]
  %v2486 = vld [vmem:[#allocation2 + $0xf4] sm:$0xff]
  %v2487 = vld [vmem:[#allocation2 + $0xfc] sm:$0xff]
  %v2488 = vld [vmem:[#allocation2 + $0x104] sm:$0xff]
  %v2489 = vld [vmem:[#allocation2 + $0x10c] sm:$0xff]
  %v2490 = vld [vmem:[%s1418] sm:$0xff]
  %v2491 = vld [vmem:[%s1418 + $0x8] sm:$0xff]
  %v2492 = vld [vmem:[%s1418 + $0x10] sm:$0xff]
  %v2493 = vld [vmem:[%s1418 + $0x18] sm:$0xff]
  %v2494 = vld [vmem:[%s1418 + $0x20] sm:$0xff]
  %v2495 = vld [vmem:[%s1418 + $0x28] sm:$0xff]
  %v2496 = vld [vmem:[%s1418 + $0x30] sm:$0xff]
  %v2497 = vld [vmem:[%s1418 + $0x38] sm:$0xff]
  %v2498 = vld [vmem:[%s1418 + $0x40] sm:$0xff]
  %v2499 = vld [vmem:[%s1418 + $0x48] sm:$0xff]
  %v2500 = vld [vmem:[%s1418 + $0x50] sm:$0xff]
  %v2501 = vld [vmem:[%s1418 + $0x58] sm:$0xff]
  %v2502 = vld [vmem:[%s1418 + $0x60] sm:$0xff]
  %v2503 = vld [vmem:[%s1418 + $0x68] sm:$0xff]
  %v2504 = vld [vmem:[%s1418 + $0x70] sm:$0xff]
  %v2505 = vld [vmem:[%s1418 + $0x78] sm:$0xff]
  %2506 = vmatpush.msra.mxu0 %v2505
  %2507 = vmatpush.msra.mxu0 %v2504
  %2508 = vmatpush.msra.mxu0 %v2503
  %2509 = vmatpush.msra.mxu0 %v2502
  %2510 = vmatpush.msra.mxu0 %v2501
  %2511 = vmatpush.msra.mxu0 %v2500
  %2512 = vmatpush.msra.mxu0 %v2499
  %2513 = vmatpush.msra.mxu0 %v2498
  %2514 = vmatpush.msra.mxu0 %v2497
  %2515 = vmatpush.msra.mxu0 %v2496
  %2516 = vmatpush.msra.mxu0 %v2495
  %2517 = vmatpush.msra.mxu0 %v2494
  %2518 = vmatpush.msra.mxu0 %v2493
  %2519 = vmatpush.msra.mxu0 %v2492
  %2520 = vmatpush.msra.mxu0 %v2491
  %2521 = vmatpush.msra.mxu0 %v2490
  %2522 = vmatmul.f32.gmra.mxu0 %v2474
  %v2523 = vpop.f32.mrf.mxu0
  %v2524 = vadd.f32 0.0, %v2523
  %2525 = vmatmul.f32.gmra.mxu0 %v2475
  %v2526 = vpop.f32.mrf.mxu0
  %v2527 = vadd.f32 0.0, %v2526
  %2528 = vmatmul.f32.gmra.mxu0 %v2476
  %v2529 = vpop.f32.mrf.mxu0
  %v2530 = vadd.f32 0.0, %v2529
  %2531 = vmatmul.f32.gmra.mxu0 %v2477
  %v2532 = vpop.f32.mrf.mxu0
  %v2533 = vadd.f32 0.0, %v2532
  %2534 = vmatmul.f32.gmra.mxu0 %v2478
  %v2535 = vpop.f32.mrf.mxu0
  %v2536 = vadd.f32 0.0, %v2535
  %2537 = vmatmul.f32.gmra.mxu0 %v2479
  %v2538 = vpop.f32.mrf.mxu0
  %v2539 = vadd.f32 0.0, %v2538
  %2540 = vmatmul.f32.gmra.mxu0 %v2480
  %v2541 = vpop.f32.mrf.mxu0
  %v2542 = vadd.f32 0.0, %v2541
  %2543 = vmatmul.f32.gmra.mxu0 %v2481
  %v2544 = vpop.f32.mrf.mxu0
  %v2545 = vadd.f32 0.0, %v2544
  %2546 = vmatmul.f32.gmra.mxu0 %v2482
  %v2547 = vpop.f32.mrf.mxu0
  %v2548 = vadd.f32 0.0, %v2547
  %2549 = vmatmul.f32.gmra.mxu0 %v2483
  %v2550 = vpop.f32.mrf.mxu0
  %v2551 = vadd.f32 0.0, %v2550
  %2552 = vmatmul.f32.gmra.mxu0 %v2484
  %v2553 = vpop.f32.mrf.mxu0
  %v2554 = vadd.f32 0.0, %v2553
  %2555 = vmatmul.f32.gmra.mxu0 %v2485
  %v2556 = vpop.f32.mrf.mxu0
  %v2557 = vadd.f32 0.0, %v2556
  %2558 = vmatmul.f32.gmra.mxu0 %v2486
  %v2559 = vpop.f32.mrf.mxu0
  %v2560 = vadd.f32 0.0, %v2559
  %2561 = vmatmul.f32.gmra.mxu0 %v2487
  %v2562 = vpop.f32.mrf.mxu0
  %v2563 = vadd.f32 0.0, %v2562
  %2564 = vmatmul.f32.gmra.mxu0 %v2488
  %v2565 = vpop.f32.mrf.mxu0
  %v2566 = vadd.f32 0.0, %v2565
  %2567 = vmatmul.f32.gmra.mxu0 %v2489
  %v2568 = vpop.f32.mrf.mxu0
  %v2569 = vadd.f32 0.0, %v2568
  %2570 = vdwg.mxu0
  %v2571 = vadd.f32 %v2458, %v2524
  %v2572 = vadd.f32 %v2459, %v2527
  %v2573 = vadd.f32 %v2460, %v2530
  %v2574 = vadd.f32 %v2461, %v2533
  %v2575 = vadd.f32 %v2462, %v2536
  %v2576 = vadd.f32 %v2463, %v2539
  %v2577 = vadd.f32 %v2464, %v2542
  %v2578 = vadd.f32 %v2465, %v2545
  %v2579 = vadd.f32 %v2466, %v2548
  %v2580 = vadd.f32 %v2467, %v2551
  %v2581 = vadd.f32 %v2468, %v2554
  %v2582 = vadd.f32 %v2469, %v2557
  %v2583 = vadd.f32 %v2470, %v2560
  %v2584 = vadd.f32 %v2471, %v2563
  %v2585 = vadd.f32 %v2472, %v2566
  %v2586 = vadd.f32 %v2473, %v2569
  %v2587 = vld [vmem:[#allocation2 + $0xa4] sm:$0xff]
  %v2588 = vld [vmem:[#allocation2 + $0xac] sm:$0xff]
  %v2589 = vld [vmem:[#allocation2 + $0xb4] sm:$0xff]
  %v2590 = vld [vmem:[#allocation2 + $0xbc] sm:$0xff]
  %v2591 = vld [vmem:[#allocation2 + $0xc4] sm:$0xff]
  %v2592 = vld [vmem:[#allocation2 + $0xcc] sm:$0xff]
  %v2593 = vld [vmem:[#allocation2 + $0xd4] sm:$0xff]
  %v2594 = vld [vmem:[#allocation2 + $0xdc] sm:$0xff]
  %v2595 = vld [vmem:[#allocation2 + $0xe4] sm:$0xff]
  %v2596 = vld [vmem:[#allocation2 + $0xec] sm:$0xff]
  %v2597 = vld [vmem:[#allocation2 + $0xf4] sm:$0xff]
  %v2598 = vld [vmem:[#allocation2 + $0xfc] sm:$0xff]
  %v2599 = vld [vmem:[#allocation2 + $0x104] sm:$0xff]
  %v2600 = vld [vmem:[#allocation2 + $0x10c] sm:$0xff]
  %v2601 = vld [vmem:[#allocation2 + $0x114] sm:$0xff]
  %v2602 = vld [vmem:[#allocation2 + $0x11c] sm:$0xff]
  %v2603 = vld [vmem:[%s1532] sm:$0xff]
  %v2604 = vld [vmem:[%s1532 + $0x8] sm:$0xff]
  %v2605 = vld [vmem:[%s1532 + $0x10] sm:$0xff]
  %v2606 = vld [vmem:[%s1532 + $0x18] sm:$0xff]
  %v2607 = vld [vmem:[%s1532 + $0x20] sm:$0xff]
  %v2608 = vld [vmem:[%s1532 + $0x28] sm:$0xff]
  %v2609 = vld [vmem:[%s1532 + $0x30] sm:$0xff]
  %v2610 = vld [vmem:[%s1532 + $0x38] sm:$0xff]
  %v2611 = vld [vmem:[%s1532 + $0x40] sm:$0xff]
  %v2612 = vld [vmem:[%s1532 + $0x48] sm:$0xff]
  %v2613 = vld [vmem:[%s1532 + $0x50] sm:$0xff]
  %v2614 = vld [vmem:[%s1532 + $0x58] sm:$0xff]
  %v2615 = vld [vmem:[%s1532 + $0x60] sm:$0xff]
  %v2616 = vld [vmem:[%s1532 + $0x68] sm:$0xff]
  %v2617 = vld [vmem:[%s1532 + $0x70] sm:$0xff]
  %v2618 = vld [vmem:[%s1532 + $0x78] sm:$0xff]
  %2619 = vmatpush.msra.mxu0 %v2618
  %2620 = vmatpush.msra.mxu0 %v2617
  %2621 = vmatpush.msra.mxu0 %v2616
  %2622 = vmatpush.msra.mxu0 %v2615
  %2623 = vmatpush.msra.mxu0 %v2614
  %2624 = vmatpush.msra.mxu0 %v2613
  %2625 = vmatpush.msra.mxu0 %v2612
  %2626 = vmatpush.msra.mxu0 %v2611
  %2627 = vmatpush.msra.mxu0 %v2610
  %2628 = vmatpush.msra.mxu0 %v2609
  %2629 = vmatpush.msra.mxu0 %v2608
  %2630 = vmatpush.msra.mxu0 %v2607
  %2631 = vmatpush.msra.mxu0 %v2606
  %2632 = vmatpush.msra.mxu0 %v2605
  %2633 = vmatpush.msra.mxu0 %v2604
  %2634 = vmatpush.msra.mxu0 %v2603
  %2635 = vmatmul.f32.gmra.mxu0 %v2587
  %v2636 = vpop.f32.mrf.mxu0
  %v2637 = vadd.f32 0.0, %v2636
  %2638 = vmatmul.f32.gmra.mxu0 %v2588
  %v2639 = vpop.f32.mrf.mxu0
  %v2640 = vadd.f32 0.0, %v2639
  %2641 = vmatmul.f32.gmra.mxu0 %v2589
  %v2642 = vpop.f32.mrf.mxu0
  %v2643 = vadd.f32 0.0, %v2642
  %2644 = vmatmul.f32.gmra.mxu0 %v2590
  %v2645 = vpop.f32.mrf.mxu0
  %v2646 = vadd.f32 0.0, %v2645
  %2647 = vmatmul.f32.gmra.mxu0 %v2591
  %v2648 = vpop.f32.mrf.mxu0
  %v2649 = vadd.f32 0.0, %v2648
  %2650 = vmatmul.f32.gmra.mxu0 %v2592
  %v2651 = vpop.f32.mrf.mxu0
  %v2652 = vadd.f32 0.0, %v2651
  %2653 = vmatmul.f32.gmra.mxu0 %v2593
  %v2654 = vpop.f32.mrf.mxu0
  %v2655 = vadd.f32 0.0, %v2654
  %2656 = vmatmul.f32.gmra.mxu0 %v2594
  %v2657 = vpop.f32.mrf.mxu0
  %v2658 = vadd.f32 0.0, %v2657
  %2659 = vmatmul.f32.gmra.mxu0 %v2595
  %v2660 = vpop.f32.mrf.mxu0
  %v2661 = vadd.f32 0.0, %v2660
  %2662 = vmatmul.f32.gmra.mxu0 %v2596
  %v2663 = vpop.f32.mrf.mxu0
  %v2664 = vadd.f32 0.0, %v2663
  %2665 = vmatmul.f32.gmra.mxu0 %v2597
  %v2666 = vpop.f32.mrf.mxu0
  %v2667 = vadd.f32 0.0, %v2666
  %2668 = vmatmul.f32.gmra.mxu0 %v2598
  %v2669 = vpop.f32.mrf.mxu0
  %v2670 = vadd.f32 0.0, %v2669
  %2671 = vmatmul.f32.gmra.mxu0 %v2599
  %v2672 = vpop.f32.mrf.mxu0
  %v2673 = vadd.f32 0.0, %v2672
  %2674 = vmatmul.f32.gmra.mxu0 %v2600
  %v2675 = vpop.f32.mrf.mxu0
  %v2676 = vadd.f32 0.0, %v2675
  %2677 = vmatmul.f32.gmra.mxu0 %v2601
  %v2678 = vpop.f32.mrf.mxu0
  %v2679 = vadd.f32 0.0, %v2678
  %2680 = vmatmul.f32.gmra.mxu0 %v2602
  %v2681 = vpop.f32.mrf.mxu0
  %v2682 = vadd.f32 0.0, %v2681
  %2683 = vdwg.mxu0
  %v2684 = vadd.f32 %v2571, %v2637
  %v2685 = vadd.f32 %v2572, %v2640
  %v2686 = vadd.f32 %v2573, %v2643
  %v2687 = vadd.f32 %v2574, %v2646
  %v2688 = vadd.f32 %v2575, %v2649
  %v2689 = vadd.f32 %v2576, %v2652
  %v2690 = vadd.f32 %v2577, %v2655
  %v2691 = vadd.f32 %v2578, %v2658
  %v2692 = vadd.f32 %v2579, %v2661
  %v2693 = vadd.f32 %v2580, %v2664
  %v2694 = vadd.f32 %v2581, %v2667
  %v2695 = vadd.f32 %v2582, %v2670
  %v2696 = vadd.f32 %v2583, %v2673
  %v2697 = vadd.f32 %v2584, %v2676
  %v2698 = vadd.f32 %v2585, %v2679
  %v2699 = vadd.f32 %v2586, %v2682
  %v2700 = vld [vmem:[#allocation2 + $0xa5] sm:$0xff]
  %v2701 = vld [vmem:[#allocation2 + $0xad] sm:$0xff]
  %v2702 = vld [vmem:[#allocation2 + $0xb5] sm:$0xff]
  %v2703 = vld [vmem:[#allocation2 + $0xbd] sm:$0xff]
  %v2704 = vld [vmem:[#allocation2 + $0xc5] sm:$0xff]
  %v2705 = vld [vmem:[#allocation2 + $0xcd] sm:$0xff]
  %v2706 = vld [vmem:[#allocation2 + $0xd5] sm:$0xff]
  %v2707 = vld [vmem:[#allocation2 + $0xdd] sm:$0xff]
  %v2708 = vld [vmem:[#allocation2 + $0xe5] sm:$0xff]
  %v2709 = vld [vmem:[#allocation2 + $0xed] sm:$0xff]
  %v2710 = vld [vmem:[#allocation2 + $0xf5] sm:$0xff]
  %v2711 = vld [vmem:[#allocation2 + $0xfd] sm:$0xff]
  %v2712 = vld [vmem:[#allocation2 + $0x105] sm:$0xff]
  %v2713 = vld [vmem:[#allocation2 + $0x10d] sm:$0xff]
  %v2714 = vld [vmem:[#allocation2 + $0x115] sm:$0xff]
  %v2715 = vld [vmem:[#allocation2 + $0x11d] sm:$0xff]
  %v2716 = vld [vmem:[%s1646] sm:$0xff]
  %v2717 = vld [vmem:[%s1646 + $0x8] sm:$0xff]
  %v2718 = vld [vmem:[%s1646 + $0x10] sm:$0xff]
  %v2719 = vld [vmem:[%s1646 + $0x18] sm:$0xff]
  %v2720 = vld [vmem:[%s1646 + $0x20] sm:$0xff]
  %v2721 = vld [vmem:[%s1646 + $0x28] sm:$0xff]
  %v2722 = vld [vmem:[%s1646 + $0x30] sm:$0xff]
  %v2723 = vld [vmem:[%s1646 + $0x38] sm:$0xff]
  %v2724 = vld [vmem:[%s1646 + $0x40] sm:$0xff]
  %v2725 = vld [vmem:[%s1646 + $0x48] sm:$0xff]
  %v2726 = vld [vmem:[%s1646 + $0x50] sm:$0xff]
  %v2727 = vld [vmem:[%s1646 + $0x58] sm:$0xff]
  %v2728 = vld [vmem:[%s1646 + $0x60] sm:$0xff]
  %v2729 = vld [vmem:[%s1646 + $0x68] sm:$0xff]
  %v2730 = vld [vmem:[%s1646 + $0x70] sm:$0xff]
  %v2731 = vld [vmem:[%s1646 + $0x78] sm:$0xff]
  %2732 = vmatpush.msra.mxu0 %v2731
  %2733 = vmatpush.msra.mxu0 %v2730
  %2734 = vmatpush.msra.mxu0 %v2729
  %2735 = vmatpush.msra.mxu0 %v2728
  %2736 = vmatpush.msra.mxu0 %v2727
  %2737 = vmatpush.msra.mxu0 %v2726
  %2738 = vmatpush.msra.mxu0 %v2725
  %2739 = vmatpush.msra.mxu0 %v2724
  %2740 = vmatpush.msra.mxu0 %v2723
  %2741 = vmatpush.msra.mxu0 %v2722
  %2742 = vmatpush.msra.mxu0 %v2721
  %2743 = vmatpush.msra.mxu0 %v2720
  %2744 = vmatpush.msra.mxu0 %v2719
  %2745 = vmatpush.msra.mxu0 %v2718
  %2746 = vmatpush.msra.mxu0 %v2717
  %2747 = vmatpush.msra.mxu0 %v2716
  %2748 = vmatmul.f32.gmra.mxu0 %v2700
  %v2749 = vpop.f32.mrf.mxu0
  %v2750 = vadd.f32 0.0, %v2749
  %2751 = vmatmul.f32.gmra.mxu0 %v2701
  %v2752 = vpop.f32.mrf.mxu0
  %v2753 = vadd.f32 0.0, %v2752
  %2754 = vmatmul.f32.gmra.mxu0 %v2702
  %v2755 = vpop.f32.mrf.mxu0
  %v2756 = vadd.f32 0.0, %v2755
  %2757 = vmatmul.f32.gmra.mxu0 %v2703
  %v2758 = vpop.f32.mrf.mxu0
  %v2759 = vadd.f32 0.0, %v2758
  %2760 = vmatmul.f32.gmra.mxu0 %v2704
  %v2761 = vpop.f32.mrf.mxu0
  %v2762 = vadd.f32 0.0, %v2761
  %2763 = vmatmul.f32.gmra.mxu0 %v2705
  %v2764 = vpop.f32.mrf.mxu0
  %v2765 = vadd.f32 0.0, %v2764
  %2766 = vmatmul.f32.gmra.mxu0 %v2706
  %v2767 = vpop.f32.mrf.mxu0
  %v2768 = vadd.f32 0.0, %v2767
  %2769 = vmatmul.f32.gmra.mxu0 %v2707
  %v2770 = vpop.f32.mrf.mxu0
  %v2771 = vadd.f32 0.0, %v2770
  %2772 = vmatmul.f32.gmra.mxu0 %v2708
  %v2773 = vpop.f32.mrf.mxu0
  %v2774 = vadd.f32 0.0, %v2773
  %2775 = vmatmul.f32.gmra.mxu0 %v2709
  %v2776 = vpop.f32.mrf.mxu0
  %v2777 = vadd.f32 0.0, %v2776
  %2778 = vmatmul.f32.gmra.mxu0 %v2710
  %v2779 = vpop.f32.mrf.mxu0
  %v2780 = vadd.f32 0.0, %v2779
  %2781 = vmatmul.f32.gmra.mxu0 %v2711
  %v2782 = vpop.f32.mrf.mxu0
  %v2783 = vadd.f32 0.0, %v2782
  %2784 = vmatmul.f32.gmra.mxu0 %v2712
  %v2785 = vpop.f32.mrf.mxu0
  %v2786 = vadd.f32 0.0, %v2785
  %2787 = vmatmul.f32.gmra.mxu0 %v2713
  %v2788 = vpop.f32.mrf.mxu0
  %v2789 = vadd.f32 0.0, %v2788
  %2790 = vmatmul.f32.gmra.mxu0 %v2714
  %v2791 = vpop.f32.mrf.mxu0
  %v2792 = vadd.f32 0.0, %v2791
  %2793 = vmatmul.f32.gmra.mxu0 %v2715
  %v2794 = vpop.f32.mrf.mxu0
  %v2795 = vadd.f32 0.0, %v2794
  %2796 = vdwg.mxu0
  %v2797 = vadd.f32 %v2684, %v2750
  %v2798 = vadd.f32 %v2685, %v2753
  %v2799 = vadd.f32 %v2686, %v2756
  %v2800 = vadd.f32 %v2687, %v2759
  %v2801 = vadd.f32 %v2688, %v2762
  %v2802 = vadd.f32 %v2689, %v2765
  %v2803 = vadd.f32 %v2690, %v2768
  %v2804 = vadd.f32 %v2691, %v2771
  %v2805 = vadd.f32 %v2692, %v2774
  %v2806 = vadd.f32 %v2693, %v2777
  %v2807 = vadd.f32 %v2694, %v2780
  %v2808 = vadd.f32 %v2695, %v2783
  %v2809 = vadd.f32 %v2696, %v2786
  %v2810 = vadd.f32 %v2697, %v2789
  %v2811 = vadd.f32 %v2698, %v2792
  %v2812 = vadd.f32 %v2699, %v2795
  %v2813 = vld [vmem:[#allocation2 + $0xa6] sm:$0xff]
  %v2814 = vld [vmem:[#allocation2 + $0xae] sm:$0xff]
  %v2815 = vld [vmem:[#allocation2 + $0xb6] sm:$0xff]
  %v2816 = vld [vmem:[#allocation2 + $0xbe] sm:$0xff]
  %v2817 = vld [vmem:[#allocation2 + $0xc6] sm:$0xff]
  %v2818 = vld [vmem:[#allocation2 + $0xce] sm:$0xff]
  %v2819 = vld [vmem:[#allocation2 + $0xd6] sm:$0xff]
  %v2820 = vld [vmem:[#allocation2 + $0xde] sm:$0xff]
  %v2821 = vld [vmem:[#allocation2 + $0xe6] sm:$0xff]
  %v2822 = vld [vmem:[#allocation2 + $0xee] sm:$0xff]
  %v2823 = vld [vmem:[#allocation2 + $0xf6] sm:$0xff]
  %v2824 = vld [vmem:[#allocation2 + $0xfe] sm:$0xff]
  %v2825 = vld [vmem:[#allocation2 + $0x106] sm:$0xff]
  %v2826 = vld [vmem:[#allocation2 + $0x10e] sm:$0xff]
  %v2827 = vld [vmem:[#allocation2 + $0x116] sm:$0xff]
  %v2828 = vld [vmem:[#allocation2 + $0x11e] sm:$0xff]
  %v2829 = vld [vmem:[%s1760] sm:$0xff]
  %v2830 = vld [vmem:[%s1760 + $0x8] sm:$0xff]
  %v2831 = vld [vmem:[%s1760 + $0x10] sm:$0xff]
  %v2832 = vld [vmem:[%s1760 + $0x18] sm:$0xff]
  %v2833 = vld [vmem:[%s1760 + $0x20] sm:$0xff]
  %v2834 = vld [vmem:[%s1760 + $0x28] sm:$0xff]
  %v2835 = vld [vmem:[%s1760 + $0x30] sm:$0xff]
  %v2836 = vld [vmem:[%s1760 + $0x38] sm:$0xff]
  %v2837 = vld [vmem:[%s1760 + $0x40] sm:$0xff]
  %v2838 = vld [vmem:[%s1760 + $0x48] sm:$0xff]
  %v2839 = vld [vmem:[%s1760 + $0x50] sm:$0xff]
  %v2840 = vld [vmem:[%s1760 + $0x58] sm:$0xff]
  %v2841 = vld [vmem:[%s1760 + $0x60] sm:$0xff]
  %v2842 = vld [vmem:[%s1760 + $0x68] sm:$0xff]
  %v2843 = vld [vmem:[%s1760 + $0x70] sm:$0xff]
  %v2844 = vld [vmem:[%s1760 + $0x78] sm:$0xff]
  %2845 = vmatpush.msra.mxu0 %v2844
  %2846 = vmatpush.msra.mxu0 %v2843
  %2847 = vmatpush.msra.mxu0 %v2842
  %2848 = vmatpush.msra.mxu0 %v2841
  %2849 = vmatpush.msra.mxu0 %v2840
  %2850 = vmatpush.msra.mxu0 %v2839
  %2851 = vmatpush.msra.mxu0 %v2838
  %2852 = vmatpush.msra.mxu0 %v2837
  %2853 = vmatpush.msra.mxu0 %v2836
  %2854 = vmatpush.msra.mxu0 %v2835
  %2855 = vmatpush.msra.mxu0 %v2834
  %2856 = vmatpush.msra.mxu0 %v2833
  %2857 = vmatpush.msra.mxu0 %v2832
  %2858 = vmatpush.msra.mxu0 %v2831
  %2859 = vmatpush.msra.mxu0 %v2830
  %2860 = vmatpush.msra.mxu0 %v2829
  %2861 = vmatmul.f32.gmra.mxu0 %v2813
  %v2862 = vpop.f32.mrf.mxu0
  %v2863 = vadd.f32 0.0, %v2862
  %2864 = vmatmul.f32.gmra.mxu0 %v2814
  %v2865 = vpop.f32.mrf.mxu0
  %v2866 = vadd.f32 0.0, %v2865
  %2867 = vmatmul.f32.gmra.mxu0 %v2815
  %v2868 = vpop.f32.mrf.mxu0
  %v2869 = vadd.f32 0.0, %v2868
  %2870 = vmatmul.f32.gmra.mxu0 %v2816
  %v2871 = vpop.f32.mrf.mxu0
  %v2872 = vadd.f32 0.0, %v2871
  %2873 = vmatmul.f32.gmra.mxu0 %v2817
  %v2874 = vpop.f32.mrf.mxu0
  %v2875 = vadd.f32 0.0, %v2874
  %2876 = vmatmul.f32.gmra.mxu0 %v2818
  %v2877 = vpop.f32.mrf.mxu0
  %v2878 = vadd.f32 0.0, %v2877
  %2879 = vmatmul.f32.gmra.mxu0 %v2819
  %v2880 = vpop.f32.mrf.mxu0
  %v2881 = vadd.f32 0.0, %v2880
  %2882 = vmatmul.f32.gmra.mxu0 %v2820
  %v2883 = vpop.f32.mrf.mxu0
  %v2884 = vadd.f32 0.0, %v2883
  %2885 = vmatmul.f32.gmra.mxu0 %v2821
  %v2886 = vpop.f32.mrf.mxu0
  %v2887 = vadd.f32 0.0, %v2886
  %2888 = vmatmul.f32.gmra.mxu0 %v2822
  %v2889 = vpop.f32.mrf.mxu0
  %v2890 = vadd.f32 0.0, %v2889
  %2891 = vmatmul.f32.gmra.mxu0 %v2823
  %v2892 = vpop.f32.mrf.mxu0
  %v2893 = vadd.f32 0.0, %v2892
  %2894 = vmatmul.f32.gmra.mxu0 %v2824
  %v2895 = vpop.f32.mrf.mxu0
  %v2896 = vadd.f32 0.0, %v2895
  %2897 = vmatmul.f32.gmra.mxu0 %v2825
  %v2898 = vpop.f32.mrf.mxu0
  %v2899 = vadd.f32 0.0, %v2898
  %2900 = vmatmul.f32.gmra.mxu0 %v2826
  %v2901 = vpop.f32.mrf.mxu0
  %v2902 = vadd.f32 0.0, %v2901
  %2903 = vmatmul.f32.gmra.mxu0 %v2827
  %v2904 = vpop.f32.mrf.mxu0
  %v2905 = vadd.f32 0.0, %v2904
  %2906 = vmatmul.f32.gmra.mxu0 %v2828
  %v2907 = vpop.f32.mrf.mxu0
  %v2908 = vadd.f32 0.0, %v2907
  %2909 = vdwg.mxu0
  %v2910 = vadd.f32 %v2797, %v2863
  %v2911 = vadd.f32 %v2798, %v2866
  %v2912 = vadd.f32 %v2799, %v2869
  %v2913 = vadd.f32 %v2800, %v2872
  %v2914 = vadd.f32 %v2801, %v2875
  %v2915 = vadd.f32 %v2802, %v2878
  %v2916 = vadd.f32 %v2803, %v2881
  %v2917 = vadd.f32 %v2804, %v2884
  %v2918 = vadd.f32 %v2805, %v2887
  %v2919 = vadd.f32 %v2806, %v2890
  %v2920 = vadd.f32 %v2807, %v2893
  %v2921 = vadd.f32 %v2808, %v2896
  %v2922 = vadd.f32 %v2809, %v2899
  %v2923 = vadd.f32 %v2810, %v2902
  %v2924 = vadd.f32 %v2811, %v2905
  %v2925 = vadd.f32 %v2812, %v2908
  %v2926 = vadd.f32 %v2910, %v1859
  %v2927 = vadd.f32 %v2911, %v1859
  %v2928 = vadd.f32 %v2912, %v1859
  %v2929 = vadd.f32 %v2913, %v1859
  %v2930 = vadd.f32 %v2914, %v1859
  %v2931 = vadd.f32 %v2915, %v1859
  %v2932 = vadd.f32 %v2916, %v1859
  %v2933 = vadd.f32 %v2917, %v1859
  %v2934 = vadd.f32 %v2918, %v1859
  %v2935 = vadd.f32 %v2919, %v1859
  %v2936 = vadd.f32 %v2920, %v1859
  %v2937 = vadd.f32 %v2921, %v1859
  %v2938 = vadd.f32 %v2922, %v1859
  %v2939 = vadd.f32 %v2923, %v1859
  %v2940 = vadd.f32 %v2924, %v1859
  %v2941 = vadd.f32 %v2925, %v1859
  %vm2942 = vcmp.gt.f32.partialorder %v2926, 0.0
  %vm2943 = vcmp.gt.f32.partialorder %v2927, 0.0
  %vm2944 = vcmp.gt.f32.partialorder %v2928, 0.0
  %vm2945 = vcmp.gt.f32.partialorder %v2929, 0.0
  %vm2946 = vcmp.gt.f32.partialorder %v2930, 0.0
  %vm2947 = vcmp.gt.f32.partialorder %v2931, 0.0
  %vm2948 = vcmp.gt.f32.partialorder %v2932, 0.0
  %vm2949 = vcmp.gt.f32.partialorder %v2933, 0.0
  %vm2950 = vcmp.gt.f32.partialorder %v2934, 0.0
  %vm2951 = vcmp.gt.f32.partialorder %v2935, 0.0
  %vm2952 = vcmp.gt.f32.partialorder %v2936, 0.0
  %vm2953 = vcmp.gt.f32.partialorder %v2937, 0.0
  %vm2954 = vcmp.gt.f32.partialorder %v2938, 0.0
  %vm2955 = vcmp.gt.f32.partialorder %v2939, 0.0
  %vm2956 = vcmp.gt.f32.partialorder %v2940, 0.0
  %vm2957 = vcmp.gt.f32.partialorder %v2941, 0.0
  %v2958 = vmul.f32 %v2926, 0.01
  %v2959 = vmul.f32 %v2927, 0.01
  %v2960 = vmul.f32 %v2928, 0.01
  %v2961 = vmul.f32 %v2929, 0.01
  %v2962 = vmul.f32 %v2930, 0.01
  %v2963 = vmul.f32 %v2931, 0.01
  %v2964 = vmul.f32 %v2932, 0.01
  %v2965 = vmul.f32 %v2933, 0.01
  %v2966 = vmul.f32 %v2934, 0.01
  %v2967 = vmul.f32 %v2935, 0.01
  %v2968 = vmul.f32 %v2936, 0.01
  %v2969 = vmul.f32 %v2937, 0.01
  %v2970 = vmul.f32 %v2938, 0.01
  %v2971 = vmul.f32 %v2939, 0.01
  %v2972 = vmul.f32 %v2940, 0.01
  %v2973 = vmul.f32 %v2941, 0.01
  %v2974 = vsel %vm2942, %v2926, %v2958
  %v2975 = vsel %vm2943, %v2927, %v2959
  %v2976 = vsel %vm2944, %v2928, %v2960
  %v2977 = vsel %vm2945, %v2929, %v2961
  %v2978 = vsel %vm2946, %v2930, %v2962
  %v2979 = vsel %vm2947, %v2931, %v2963
  %v2980 = vsel %vm2948, %v2932, %v2964
  %v2981 = vsel %vm2949, %v2933, %v2965
  %v2982 = vsel %vm2950, %v2934, %v2966
  %v2983 = vsel %vm2951, %v2935, %v2967
  %v2984 = vsel %vm2952, %v2936, %v2968
  %v2985 = vsel %vm2953, %v2937, %v2969
  %v2986 = vsel %vm2954, %v2938, %v2970
  %v2987 = vsel %vm2955, %v2939, %v2971
  %v2988 = vsel %vm2956, %v2940, %v2972
  %v2989 = vsel %vm2957, %v2941, %v2973
  %2990 = vst [vmem:[#allocation3 + $0x80] sm:$0xff] %v2974
  %2991 = vst [vmem:[#allocation3 + $0x88] sm:$0xff] %v2975
  %2992 = vst [vmem:[#allocation3 + $0x90] sm:$0xff] %v2976
  %2993 = vst [vmem:[#allocation3 + $0x98] sm:$0xff] %v2977
  %2994 = vst [vmem:[#allocation3 + $0xa0] sm:$0xff] %v2978
  %2995 = vst [vmem:[#allocation3 + $0xa8] sm:$0xff] %v2979
  %2996 = vst [vmem:[#allocation3 + $0xb0] sm:$0xff] %v2980
  %2997 = vst [vmem:[#allocation3 + $0xb8] sm:$0xff] %v2981
  %2998 = vst [vmem:[#allocation3 + $0xc0] sm:$0xff] %v2982
  %2999 = vst [vmem:[#allocation3 + $0xc8] sm:$0xff] %v2983
  %3000 = vst [vmem:[#allocation3 + $0xd0] sm:$0xff] %v2984
  %3001 = vst [vmem:[#allocation3 + $0xd8] sm:$0xff] %v2985
  %3002 = vst [vmem:[#allocation3 + $0xe0] sm:$0xff] %v2986
  %3003 = vst [vmem:[#allocation3 + $0xe8] sm:$0xff] %v2987
  %3004 = vst [vmem:[#allocation3 + $0xf0] sm:$0xff] %v2988
  %3005 = vst [vmem:[#allocation3 + $0xf8] sm:$0xff] %v2989
  %v3006 = vld [vmem:[#allocation2 + $0x100] sm:$0xff]
  %v3007 = vld [vmem:[#allocation2 + $0x108] sm:$0xff]
  %v3008 = vld [vmem:[#allocation2 + $0x110] sm:$0xff]
  %v3009 = vld [vmem:[#allocation2 + $0x118] sm:$0xff]
  %v3010 = vld [vmem:[#allocation2 + $0x120] sm:$0xff]
  %v3011 = vld [vmem:[#allocation2 + $0x128] sm:$0xff]
  %v3012 = vld [vmem:[#allocation2 + $0x130] sm:$0xff]
  %v3013 = vld [vmem:[#allocation2 + $0x138] sm:$0xff]
  %v3014 = vld [vmem:[#allocation2 + $0x140] sm:$0xff]
  %v3015 = vld [vmem:[#allocation2 + $0x148] sm:$0xff]
  %v3016 = vld [vmem:[#allocation2 + $0x150] sm:$0xff]
  %v3017 = vld [vmem:[#allocation2 + $0x158] sm:$0xff]
  %v3018 = vld [vmem:[#allocation2 + $0x160] sm:$0xff]
  %v3019 = vld [vmem:[#allocation2 + $0x168] sm:$0xff]
  %v3020 = vld [vmem:[#allocation2 + $0x170] sm:$0xff]
  %v3021 = vld [vmem:[#allocation2 + $0x178] sm:$0xff]
  %v3022 = vld [vmem:[%s2] sm:$0xff]
  %v3023 = vld [vmem:[%s2 + $0x8] sm:$0xff]
  %v3024 = vld [vmem:[%s2 + $0x10] sm:$0xff]
  %v3025 = vld [vmem:[%s2 + $0x18] sm:$0xff]
  %v3026 = vld [vmem:[%s2 + $0x20] sm:$0xff]
  %v3027 = vld [vmem:[%s2 + $0x28] sm:$0xff]
  %v3028 = vld [vmem:[%s2 + $0x30] sm:$0xff]
  %v3029 = vld [vmem:[%s2 + $0x38] sm:$0xff]
  %v3030 = vld [vmem:[%s2 + $0x40] sm:$0xff]
  %v3031 = vld [vmem:[%s2 + $0x48] sm:$0xff]
  %v3032 = vld [vmem:[%s2 + $0x50] sm:$0xff]
  %v3033 = vld [vmem:[%s2 + $0x58] sm:$0xff]
  %v3034 = vld [vmem:[%s2 + $0x60] sm:$0xff]
  %v3035 = vld [vmem:[%s2 + $0x68] sm:$0xff]
  %v3036 = vld [vmem:[%s2 + $0x70] sm:$0xff]
  %v3037 = vld [vmem:[%s2 + $0x78] sm:$0xff]
  %v3038 = vld [vmem:[#allocation2 + $0x101] sm:$0xff]
  %v3039 = vld [vmem:[#allocation2 + $0x109] sm:$0xff]
  %v3040 = vld [vmem:[#allocation2 + $0x111] sm:$0xff]
  %v3041 = vld [vmem:[#allocation2 + $0x119] sm:$0xff]
  %v3042 = vld [vmem:[#allocation2 + $0x121] sm:$0xff]
  %v3043 = vld [vmem:[#allocation2 + $0x129] sm:$0xff]
  %v3044 = vld [vmem:[#allocation2 + $0x131] sm:$0xff]
  %v3045 = vld [vmem:[#allocation2 + $0x139] sm:$0xff]
  %v3046 = vld [vmem:[#allocation2 + $0x141] sm:$0xff]
  %v3047 = vld [vmem:[#allocation2 + $0x149] sm:$0xff]
  %v3048 = vld [vmem:[#allocation2 + $0x151] sm:$0xff]
  %v3049 = vld [vmem:[#allocation2 + $0x159] sm:$0xff]
  %v3050 = vld [vmem:[#allocation2 + $0x161] sm:$0xff]
  %v3051 = vld [vmem:[#allocation2 + $0x169] sm:$0xff]
  %v3052 = vld [vmem:[#allocation2 + $0x171] sm:$0xff]
  %v3053 = vld [vmem:[#allocation2 + $0x179] sm:$0xff]
  %v3054 = vld [vmem:[%s913] sm:$0xff]
  %v3055 = vld [vmem:[%s913 + $0x8] sm:$0xff]
  %v3056 = vld [vmem:[%s913 + $0x10] sm:$0xff]
  %v3057 = vld [vmem:[%s913 + $0x18] sm:$0xff]
  %v3058 = vld [vmem:[%s913 + $0x20] sm:$0xff]
  %v3059 = vld [vmem:[%s913 + $0x28] sm:$0xff]
  %v3060 = vld [vmem:[%s913 + $0x30] sm:$0xff]
  %v3061 = vld [vmem:[%s913 + $0x38] sm:$0xff]
  %v3062 = vld [vmem:[%s913 + $0x40] sm:$0xff]
  %v3063 = vld [vmem:[%s913 + $0x48] sm:$0xff]
  %v3064 = vld [vmem:[%s913 + $0x50] sm:$0xff]
  %v3065 = vld [vmem:[%s913 + $0x58] sm:$0xff]
  %v3066 = vld [vmem:[%s913 + $0x60] sm:$0xff]
  %v3067 = vld [vmem:[%s913 + $0x68] sm:$0xff]
  %v3068 = vld [vmem:[%s913 + $0x70] sm:$0xff]
  %v3069 = vld [vmem:[%s913 + $0x78] sm:$0xff]
  %3070 = vmatpush.msra.mxu0 %v3069
  %3071 = vmatpush.msra.mxu0 %v3068
  %3072 = vmatpush.msra.mxu0 %v3067
  %3073 = vmatpush.msra.mxu0 %v3066
  %3074 = vmatpush.msra.mxu0 %v3065
  %3075 = vmatpush.msra.mxu0 %v3064
  %3076 = vmatpush.msra.mxu0 %v3063
  %3077 = vmatpush.msra.mxu0 %v3062
  %3078 = vmatpush.msra.mxu0 %v3061
  %3079 = vmatpush.msra.mxu0 %v3060
  %3080 = vmatpush.msra.mxu0 %v3059
  %3081 = vmatpush.msra.mxu0 %v3058
  %3082 = vmatpush.msra.mxu0 %v3057
  %3083 = vmatpush.msra.mxu0 %v3056
  %3084 = vmatpush.msra.mxu0 %v3055
  %3085 = vmatpush.msra.mxu0 %v3054
  %3086 = vmatmul.f32.gmra.mxu0 %v3038
  %v3087 = vpop.f32.mrf.mxu0
  %v3088 = vadd.f32 0.0, %v3087
  %3089 = vmatmul.f32.gmra.mxu0 %v3039
  %v3090 = vpop.f32.mrf.mxu0
  %v3091 = vadd.f32 0.0, %v3090
  %3092 = vmatmul.f32.gmra.mxu0 %v3040
  %v3093 = vpop.f32.mrf.mxu0
  %v3094 = vadd.f32 0.0, %v3093
  %3095 = vmatmul.f32.gmra.mxu0 %v3041
  %v3096 = vpop.f32.mrf.mxu0
  %v3097 = vadd.f32 0.0, %v3096
  %3098 = vmatmul.f32.gmra.mxu0 %v3042
  %v3099 = vpop.f32.mrf.mxu0
  %v3100 = vadd.f32 0.0, %v3099
  %3101 = vmatmul.f32.gmra.mxu0 %v3043
  %v3102 = vpop.f32.mrf.mxu0
  %v3103 = vadd.f32 0.0, %v3102
  %3104 = vmatmul.f32.gmra.mxu0 %v3044
  %v3105 = vpop.f32.mrf.mxu0
  %v3106 = vadd.f32 0.0, %v3105
  %3107 = vmatmul.f32.gmra.mxu0 %v3045
  %v3108 = vpop.f32.mrf.mxu0
  %v3109 = vadd.f32 0.0, %v3108
  %3110 = vmatmul.f32.gmra.mxu0 %v3046
  %v3111 = vpop.f32.mrf.mxu0
  %v3112 = vadd.f32 0.0, %v3111
  %3113 = vmatmul.f32.gmra.mxu0 %v3047
  %v3114 = vpop.f32.mrf.mxu0
  %v3115 = vadd.f32 0.0, %v3114
  %3116 = vmatmul.f32.gmra.mxu0 %v3048
  %v3117 = vpop.f32.mrf.mxu0
  %v3118 = vadd.f32 0.0, %v3117
  %3119 = vmatmul.f32.gmra.mxu0 %v3049
  %v3120 = vpop.f32.mrf.mxu0
  %v3121 = vadd.f32 0.0, %v3120
  %3122 = vmatmul.f32.gmra.mxu0 %v3050
  %v3123 = vpop.f32.mrf.mxu0
  %v3124 = vadd.f32 0.0, %v3123
  %3125 = vmatmul.f32.gmra.mxu0 %v3051
  %v3126 = vpop.f32.mrf.mxu0
  %v3127 = vadd.f32 0.0, %v3126
  %3128 = vmatmul.f32.gmra.mxu0 %v3052
  %v3129 = vpop.f32.mrf.mxu0
  %v3130 = vadd.f32 0.0, %v3129
  %3131 = vmatmul.f32.gmra.mxu0 %v3053
  %v3132 = vpop.f32.mrf.mxu0
  %v3133 = vadd.f32 0.0, %v3132
  %3134 = vdwg.mxu0
  %3135 = vmatpush.msra.mxu0 %v3037
  %3136 = vmatpush.msra.mxu0 %v3036
  %3137 = vmatpush.msra.mxu0 %v3035
  %3138 = vmatpush.msra.mxu0 %v3034
  %3139 = vmatpush.msra.mxu0 %v3033
  %3140 = vmatpush.msra.mxu0 %v3032
  %3141 = vmatpush.msra.mxu0 %v3031
  %3142 = vmatpush.msra.mxu0 %v3030
  %3143 = vmatpush.msra.mxu0 %v3029
  %3144 = vmatpush.msra.mxu0 %v3028
  %3145 = vmatpush.msra.mxu0 %v3027
  %3146 = vmatpush.msra.mxu0 %v3026
  %3147 = vmatpush.msra.mxu0 %v3025
  %3148 = vmatpush.msra.mxu0 %v3024
  %3149 = vmatpush.msra.mxu0 %v3023
  %3150 = vmatpush.msra.mxu0 %v3022
  %3151 = vmatmul.f32.gmra.mxu0 %v3006
  %v3152 = vpop.f32.mrf.mxu0
  %v3153 = vadd.f32 %v3088, %v3152
  %3154 = vmatmul.f32.gmra.mxu0 %v3007
  %v3155 = vpop.f32.mrf.mxu0
  %v3156 = vadd.f32 %v3091, %v3155
  %3157 = vmatmul.f32.gmra.mxu0 %v3008
  %v3158 = vpop.f32.mrf.mxu0
  %v3159 = vadd.f32 %v3094, %v3158
  %3160 = vmatmul.f32.gmra.mxu0 %v3009
  %v3161 = vpop.f32.mrf.mxu0
  %v3162 = vadd.f32 %v3097, %v3161
  %3163 = vmatmul.f32.gmra.mxu0 %v3010
  %v3164 = vpop.f32.mrf.mxu0
  %v3165 = vadd.f32 %v3100, %v3164
  %3166 = vmatmul.f32.gmra.mxu0 %v3011
  %v3167 = vpop.f32.mrf.mxu0
  %v3168 = vadd.f32 %v3103, %v3167
  %3169 = vmatmul.f32.gmra.mxu0 %v3012
  %v3170 = vpop.f32.mrf.mxu0
  %v3171 = vadd.f32 %v3106, %v3170
  %3172 = vmatmul.f32.gmra.mxu0 %v3013
  %v3173 = vpop.f32.mrf.mxu0
  %v3174 = vadd.f32 %v3109, %v3173
  %3175 = vmatmul.f32.gmra.mxu0 %v3014
  %v3176 = vpop.f32.mrf.mxu0
  %v3177 = vadd.f32 %v3112, %v3176
  %3178 = vmatmul.f32.gmra.mxu0 %v3015
  %v3179 = vpop.f32.mrf.mxu0
  %v3180 = vadd.f32 %v3115, %v3179
  %3181 = vmatmul.f32.gmra.mxu0 %v3016
  %v3182 = vpop.f32.mrf.mxu0
  %v3183 = vadd.f32 %v3118, %v3182
  %3184 = vmatmul.f32.gmra.mxu0 %v3017
  %v3185 = vpop.f32.mrf.mxu0
  %v3186 = vadd.f32 %v3121, %v3185
  %3187 = vmatmul.f32.gmra.mxu0 %v3018
  %v3188 = vpop.f32.mrf.mxu0
  %v3189 = vadd.f32 %v3124, %v3188
  %3190 = vmatmul.f32.gmra.mxu0 %v3019
  %v3191 = vpop.f32.mrf.mxu0
  %v3192 = vadd.f32 %v3127, %v3191
  %3193 = vmatmul.f32.gmra.mxu0 %v3020
  %v3194 = vpop.f32.mrf.mxu0
  %v3195 = vadd.f32 %v3130, %v3194
  %3196 = vmatmul.f32.gmra.mxu0 %v3021
  %v3197 = vpop.f32.mrf.mxu0
  %v3198 = vadd.f32 %v3133, %v3197
  %3199 = vdwg.mxu0
  %v3200 = vld [vmem:[#allocation2 + $0x102] sm:$0xff]
  %v3201 = vld [vmem:[#allocation2 + $0x10a] sm:$0xff]
  %v3202 = vld [vmem:[#allocation2 + $0x112] sm:$0xff]
  %v3203 = vld [vmem:[#allocation2 + $0x11a] sm:$0xff]
  %v3204 = vld [vmem:[#allocation2 + $0x122] sm:$0xff]
  %v3205 = vld [vmem:[#allocation2 + $0x12a] sm:$0xff]
  %v3206 = vld [vmem:[#allocation2 + $0x132] sm:$0xff]
  %v3207 = vld [vmem:[#allocation2 + $0x13a] sm:$0xff]
  %v3208 = vld [vmem:[#allocation2 + $0x142] sm:$0xff]
  %v3209 = vld [vmem:[#allocation2 + $0x14a] sm:$0xff]
  %v3210 = vld [vmem:[#allocation2 + $0x152] sm:$0xff]
  %v3211 = vld [vmem:[#allocation2 + $0x15a] sm:$0xff]
  %v3212 = vld [vmem:[#allocation2 + $0x162] sm:$0xff]
  %v3213 = vld [vmem:[#allocation2 + $0x16a] sm:$0xff]
  %v3214 = vld [vmem:[#allocation2 + $0x172] sm:$0xff]
  %v3215 = vld [vmem:[#allocation2 + $0x17a] sm:$0xff]
  %v3216 = vld [vmem:[%s1076] sm:$0xff]
  %v3217 = vld [vmem:[%s1076 + $0x8] sm:$0xff]
  %v3218 = vld [vmem:[%s1076 + $0x10] sm:$0xff]
  %v3219 = vld [vmem:[%s1076 + $0x18] sm:$0xff]
  %v3220 = vld [vmem:[%s1076 + $0x20] sm:$0xff]
  %v3221 = vld [vmem:[%s1076 + $0x28] sm:$0xff]
  %v3222 = vld [vmem:[%s1076 + $0x30] sm:$0xff]
  %v3223 = vld [vmem:[%s1076 + $0x38] sm:$0xff]
  %v3224 = vld [vmem:[%s1076 + $0x40] sm:$0xff]
  %v3225 = vld [vmem:[%s1076 + $0x48] sm:$0xff]
  %v3226 = vld [vmem:[%s1076 + $0x50] sm:$0xff]
  %v3227 = vld [vmem:[%s1076 + $0x58] sm:$0xff]
  %v3228 = vld [vmem:[%s1076 + $0x60] sm:$0xff]
  %v3229 = vld [vmem:[%s1076 + $0x68] sm:$0xff]
  %v3230 = vld [vmem:[%s1076 + $0x70] sm:$0xff]
  %v3231 = vld [vmem:[%s1076 + $0x78] sm:$0xff]
  %3232 = vmatpush.msra.mxu0 %v3231
  %3233 = vmatpush.msra.mxu0 %v3230
  %3234 = vmatpush.msra.mxu0 %v3229
  %3235 = vmatpush.msra.mxu0 %v3228
  %3236 = vmatpush.msra.mxu0 %v3227
  %3237 = vmatpush.msra.mxu0 %v3226
  %3238 = vmatpush.msra.mxu0 %v3225
  %3239 = vmatpush.msra.mxu0 %v3224
  %3240 = vmatpush.msra.mxu0 %v3223
  %3241 = vmatpush.msra.mxu0 %v3222
  %3242 = vmatpush.msra.mxu0 %v3221
  %3243 = vmatpush.msra.mxu0 %v3220
  %3244 = vmatpush.msra.mxu0 %v3219
  %3245 = vmatpush.msra.mxu0 %v3218
  %3246 = vmatpush.msra.mxu0 %v3217
  %3247 = vmatpush.msra.mxu0 %v3216
  %3248 = vmatmul.f32.gmra.mxu0 %v3200
  %v3249 = vpop.f32.mrf.mxu0
  %v3250 = vadd.f32 0.0, %v3249
  %3251 = vmatmul.f32.gmra.mxu0 %v3201
  %v3252 = vpop.f32.mrf.mxu0
  %v3253 = vadd.f32 0.0, %v3252
  %3254 = vmatmul.f32.gmra.mxu0 %v3202
  %v3255 = vpop.f32.mrf.mxu0
  %v3256 = vadd.f32 0.0, %v3255
  %3257 = vmatmul.f32.gmra.mxu0 %v3203
  %v3258 = vpop.f32.mrf.mxu0
  %v3259 = vadd.f32 0.0, %v3258
  %3260 = vmatmul.f32.gmra.mxu0 %v3204
  %v3261 = vpop.f32.mrf.mxu0
  %v3262 = vadd.f32 0.0, %v3261
  %3263 = vmatmul.f32.gmra.mxu0 %v3205
  %v3264 = vpop.f32.mrf.mxu0
  %v3265 = vadd.f32 0.0, %v3264
  %3266 = vmatmul.f32.gmra.mxu0 %v3206
  %v3267 = vpop.f32.mrf.mxu0
  %v3268 = vadd.f32 0.0, %v3267
  %3269 = vmatmul.f32.gmra.mxu0 %v3207
  %v3270 = vpop.f32.mrf.mxu0
  %v3271 = vadd.f32 0.0, %v3270
  %3272 = vmatmul.f32.gmra.mxu0 %v3208
  %v3273 = vpop.f32.mrf.mxu0
  %v3274 = vadd.f32 0.0, %v3273
  %3275 = vmatmul.f32.gmra.mxu0 %v3209
  %v3276 = vpop.f32.mrf.mxu0
  %v3277 = vadd.f32 0.0, %v3276
  %3278 = vmatmul.f32.gmra.mxu0 %v3210
  %v3279 = vpop.f32.mrf.mxu0
  %v3280 = vadd.f32 0.0, %v3279
  %3281 = vmatmul.f32.gmra.mxu0 %v3211
  %v3282 = vpop.f32.mrf.mxu0
  %v3283 = vadd.f32 0.0, %v3282
  %3284 = vmatmul.f32.gmra.mxu0 %v3212
  %v3285 = vpop.f32.mrf.mxu0
  %v3286 = vadd.f32 0.0, %v3285
  %3287 = vmatmul.f32.gmra.mxu0 %v3213
  %v3288 = vpop.f32.mrf.mxu0
  %v3289 = vadd.f32 0.0, %v3288
  %3290 = vmatmul.f32.gmra.mxu0 %v3214
  %v3291 = vpop.f32.mrf.mxu0
  %v3292 = vadd.f32 0.0, %v3291
  %3293 = vmatmul.f32.gmra.mxu0 %v3215
  %v3294 = vpop.f32.mrf.mxu0
  %v3295 = vadd.f32 0.0, %v3294
  %3296 = vdwg.mxu0
  %v3297 = vadd.f32 %v3153, %v3250
  %v3298 = vadd.f32 %v3156, %v3253
  %v3299 = vadd.f32 %v3159, %v3256
  %v3300 = vadd.f32 %v3162, %v3259
  %v3301 = vadd.f32 %v3165, %v3262
  %v3302 = vadd.f32 %v3168, %v3265
  %v3303 = vadd.f32 %v3171, %v3268
  %v3304 = vadd.f32 %v3174, %v3271
  %v3305 = vadd.f32 %v3177, %v3274
  %v3306 = vadd.f32 %v3180, %v3277
  %v3307 = vadd.f32 %v3183, %v3280
  %v3308 = vadd.f32 %v3186, %v3283
  %v3309 = vadd.f32 %v3189, %v3286
  %v3310 = vadd.f32 %v3192, %v3289
  %v3311 = vadd.f32 %v3195, %v3292
  %v3312 = vadd.f32 %v3198, %v3295
  %v3313 = vld [vmem:[#allocation2 + $0x112] sm:$0xff]
  %v3314 = vld [vmem:[#allocation2 + $0x11a] sm:$0xff]
  %v3315 = vld [vmem:[#allocation2 + $0x122] sm:$0xff]
  %v3316 = vld [vmem:[#allocation2 + $0x12a] sm:$0xff]
  %v3317 = vld [vmem:[#allocation2 + $0x132] sm:$0xff]
  %v3318 = vld [vmem:[#allocation2 + $0x13a] sm:$0xff]
  %v3319 = vld [vmem:[#allocation2 + $0x142] sm:$0xff]
  %v3320 = vld [vmem:[#allocation2 + $0x14a] sm:$0xff]
  %v3321 = vld [vmem:[#allocation2 + $0x152] sm:$0xff]
  %v3322 = vld [vmem:[#allocation2 + $0x15a] sm:$0xff]
  %v3323 = vld [vmem:[#allocation2 + $0x162] sm:$0xff]
  %v3324 = vld [vmem:[#allocation2 + $0x16a] sm:$0xff]
  %v3325 = vld [vmem:[#allocation2 + $0x172] sm:$0xff]
  %v3326 = vld [vmem:[#allocation2 + $0x17a] sm:$0xff]
  %v3327 = vld [vmem:[#allocation2 + $0x182] sm:$0xff]
  %v3328 = vld [vmem:[#allocation2 + $0x18a] sm:$0xff]
  %v3329 = vld [vmem:[%s1190] sm:$0xff]
  %v3330 = vld [vmem:[%s1190 + $0x8] sm:$0xff]
  %v3331 = vld [vmem:[%s1190 + $0x10] sm:$0xff]
  %v3332 = vld [vmem:[%s1190 + $0x18] sm:$0xff]
  %v3333 = vld [vmem:[%s1190 + $0x20] sm:$0xff]
  %v3334 = vld [vmem:[%s1190 + $0x28] sm:$0xff]
  %v3335 = vld [vmem:[%s1190 + $0x30] sm:$0xff]
  %v3336 = vld [vmem:[%s1190 + $0x38] sm:$0xff]
  %v3337 = vld [vmem:[%s1190 + $0x40] sm:$0xff]
  %v3338 = vld [vmem:[%s1190 + $0x48] sm:$0xff]
  %v3339 = vld [vmem:[%s1190 + $0x50] sm:$0xff]
  %v3340 = vld [vmem:[%s1190 + $0x58] sm:$0xff]
  %v3341 = vld [vmem:[%s1190 + $0x60] sm:$0xff]
  %v3342 = vld [vmem:[%s1190 + $0x68] sm:$0xff]
  %v3343 = vld [vmem:[%s1190 + $0x70] sm:$0xff]
  %v3344 = vld [vmem:[%s1190 + $0x78] sm:$0xff]
  %3345 = vmatpush.msra.mxu0 %v3344
  %3346 = vmatpush.msra.mxu0 %v3343
  %3347 = vmatpush.msra.mxu0 %v3342
  %3348 = vmatpush.msra.mxu0 %v3341
  %3349 = vmatpush.msra.mxu0 %v3340
  %3350 = vmatpush.msra.mxu0 %v3339
  %3351 = vmatpush.msra.mxu0 %v3338
  %3352 = vmatpush.msra.mxu0 %v3337
  %3353 = vmatpush.msra.mxu0 %v3336
  %3354 = vmatpush.msra.mxu0 %v3335
  %3355 = vmatpush.msra.mxu0 %v3334
  %3356 = vmatpush.msra.mxu0 %v3333
  %3357 = vmatpush.msra.mxu0 %v3332
  %3358 = vmatpush.msra.mxu0 %v3331
  %3359 = vmatpush.msra.mxu0 %v3330
  %3360 = vmatpush.msra.mxu0 %v3329
  %3361 = vmatmul.f32.gmra.mxu0 %v3313
  %v3362 = vpop.f32.mrf.mxu0
  %v3363 = vadd.f32 0.0, %v3362
  %3364 = vmatmul.f32.gmra.mxu0 %v3314
  %v3365 = vpop.f32.mrf.mxu0
  %v3366 = vadd.f32 0.0, %v3365
  %3367 = vmatmul.f32.gmra.mxu0 %v3315
  %v3368 = vpop.f32.mrf.mxu0
  %v3369 = vadd.f32 0.0, %v3368
  %3370 = vmatmul.f32.gmra.mxu0 %v3316
  %v3371 = vpop.f32.mrf.mxu0
  %v3372 = vadd.f32 0.0, %v3371
  %3373 = vmatmul.f32.gmra.mxu0 %v3317
  %v3374 = vpop.f32.mrf.mxu0
  %v3375 = vadd.f32 0.0, %v3374
  %3376 = vmatmul.f32.gmra.mxu0 %v3318
  %v3377 = vpop.f32.mrf.mxu0
  %v3378 = vadd.f32 0.0, %v3377
  %3379 = vmatmul.f32.gmra.mxu0 %v3319
  %v3380 = vpop.f32.mrf.mxu0
  %v3381 = vadd.f32 0.0, %v3380
  %3382 = vmatmul.f32.gmra.mxu0 %v3320
  %v3383 = vpop.f32.mrf.mxu0
  %v3384 = vadd.f32 0.0, %v3383
  %3385 = vmatmul.f32.gmra.mxu0 %v3321
  %v3386 = vpop.f32.mrf.mxu0
  %v3387 = vadd.f32 0.0, %v3386
  %3388 = vmatmul.f32.gmra.mxu0 %v3322
  %v3389 = vpop.f32.mrf.mxu0
  %v3390 = vadd.f32 0.0, %v3389
  %3391 = vmatmul.f32.gmra.mxu0 %v3323
  %v3392 = vpop.f32.mrf.mxu0
  %v3393 = vadd.f32 0.0, %v3392
  %3394 = vmatmul.f32.gmra.mxu0 %v3324
  %v3395 = vpop.f32.mrf.mxu0
  %v3396 = vadd.f32 0.0, %v3395
  %3397 = vmatmul.f32.gmra.mxu0 %v3325
  %v3398 = vpop.f32.mrf.mxu0
  %v3399 = vadd.f32 0.0, %v3398
  %3400 = vmatmul.f32.gmra.mxu0 %v3326
  %v3401 = vpop.f32.mrf.mxu0
  %v3402 = vadd.f32 0.0, %v3401
  %3403 = vmatmul.f32.gmra.mxu0 %v3327
  %v3404 = vpop.f32.mrf.mxu0
  %v3405 = vadd.f32 0.0, %v3404
  %3406 = vmatmul.f32.gmra.mxu0 %v3328
  %v3407 = vpop.f32.mrf.mxu0
  %v3408 = vadd.f32 0.0, %v3407
  %3409 = vdwg.mxu0
  %v3410 = vadd.f32 %v3297, %v3363
  %v3411 = vadd.f32 %v3298, %v3366
  %v3412 = vadd.f32 %v3299, %v3369
  %v3413 = vadd.f32 %v3300, %v3372
  %v3414 = vadd.f32 %v3301, %v3375
  %v3415 = vadd.f32 %v3302, %v3378
  %v3416 = vadd.f32 %v3303, %v3381
  %v3417 = vadd.f32 %v3304, %v3384
  %v3418 = vadd.f32 %v3305, %v3387
  %v3419 = vadd.f32 %v3306, %v3390
  %v3420 = vadd.f32 %v3307, %v3393
  %v3421 = vadd.f32 %v3308, %v3396
  %v3422 = vadd.f32 %v3309, %v3399
  %v3423 = vadd.f32 %v3310, %v3402
  %v3424 = vadd.f32 %v3311, %v3405
  %v3425 = vadd.f32 %v3312, %v3408
  %v3426 = vld [vmem:[#allocation2 + $0x113] sm:$0xff]
  %v3427 = vld [vmem:[#allocation2 + $0x11b] sm:$0xff]
  %v3428 = vld [vmem:[#allocation2 + $0x123] sm:$0xff]
  %v3429 = vld [vmem:[#allocation2 + $0x12b] sm:$0xff]
  %v3430 = vld [vmem:[#allocation2 + $0x133] sm:$0xff]
  %v3431 = vld [vmem:[#allocation2 + $0x13b] sm:$0xff]
  %v3432 = vld [vmem:[#allocation2 + $0x143] sm:$0xff]
  %v3433 = vld [vmem:[#allocation2 + $0x14b] sm:$0xff]
  %v3434 = vld [vmem:[#allocation2 + $0x153] sm:$0xff]
  %v3435 = vld [vmem:[#allocation2 + $0x15b] sm:$0xff]
  %v3436 = vld [vmem:[#allocation2 + $0x163] sm:$0xff]
  %v3437 = vld [vmem:[#allocation2 + $0x16b] sm:$0xff]
  %v3438 = vld [vmem:[#allocation2 + $0x173] sm:$0xff]
  %v3439 = vld [vmem:[#allocation2 + $0x17b] sm:$0xff]
  %v3440 = vld [vmem:[#allocation2 + $0x183] sm:$0xff]
  %v3441 = vld [vmem:[#allocation2 + $0x18b] sm:$0xff]
  %v3442 = vld [vmem:[%s1304] sm:$0xff]
  %v3443 = vld [vmem:[%s1304 + $0x8] sm:$0xff]
  %v3444 = vld [vmem:[%s1304 + $0x10] sm:$0xff]
  %v3445 = vld [vmem:[%s1304 + $0x18] sm:$0xff]
  %v3446 = vld [vmem:[%s1304 + $0x20] sm:$0xff]
  %v3447 = vld [vmem:[%s1304 + $0x28] sm:$0xff]
  %v3448 = vld [vmem:[%s1304 + $0x30] sm:$0xff]
  %v3449 = vld [vmem:[%s1304 + $0x38] sm:$0xff]
  %v3450 = vld [vmem:[%s1304 + $0x40] sm:$0xff]
  %v3451 = vld [vmem:[%s1304 + $0x48] sm:$0xff]
  %v3452 = vld [vmem:[%s1304 + $0x50] sm:$0xff]
  %v3453 = vld [vmem:[%s1304 + $0x58] sm:$0xff]
  %v3454 = vld [vmem:[%s1304 + $0x60] sm:$0xff]
  %v3455 = vld [vmem:[%s1304 + $0x68] sm:$0xff]
  %v3456 = vld [vmem:[%s1304 + $0x70] sm:$0xff]
  %v3457 = vld [vmem:[%s1304 + $0x78] sm:$0xff]
  %3458 = vmatpush.msra.mxu0 %v3457
  %3459 = vmatpush.msra.mxu0 %v3456
  %3460 = vmatpush.msra.mxu0 %v3455
  %3461 = vmatpush.msra.mxu0 %v3454
  %3462 = vmatpush.msra.mxu0 %v3453
  %3463 = vmatpush.msra.mxu0 %v3452
  %3464 = vmatpush.msra.mxu0 %v3451
  %3465 = vmatpush.msra.mxu0 %v3450
  %3466 = vmatpush.msra.mxu0 %v3449
  %3467 = vmatpush.msra.mxu0 %v3448
  %3468 = vmatpush.msra.mxu0 %v3447
  %3469 = vmatpush.msra.mxu0 %v3446
  %3470 = vmatpush.msra.mxu0 %v3445
  %3471 = vmatpush.msra.mxu0 %v3444
  %3472 = vmatpush.msra.mxu0 %v3443
  %3473 = vmatpush.msra.mxu0 %v3442
  %3474 = vmatmul.f32.gmra.mxu0 %v3426
  %v3475 = vpop.f32.mrf.mxu0
  %v3476 = vadd.f32 0.0, %v3475
  %3477 = vmatmul.f32.gmra.mxu0 %v3427
  %v3478 = vpop.f32.mrf.mxu0
  %v3479 = vadd.f32 0.0, %v3478
  %3480 = vmatmul.f32.gmra.mxu0 %v3428
  %v3481 = vpop.f32.mrf.mxu0
  %v3482 = vadd.f32 0.0, %v3481
  %3483 = vmatmul.f32.gmra.mxu0 %v3429
  %v3484 = vpop.f32.mrf.mxu0
  %v3485 = vadd.f32 0.0, %v3484
  %3486 = vmatmul.f32.gmra.mxu0 %v3430
  %v3487 = vpop.f32.mrf.mxu0
  %v3488 = vadd.f32 0.0, %v3487
  %3489 = vmatmul.f32.gmra.mxu0 %v3431
  %v3490 = vpop.f32.mrf.mxu0
  %v3491 = vadd.f32 0.0, %v3490
  %3492 = vmatmul.f32.gmra.mxu0 %v3432
  %v3493 = vpop.f32.mrf.mxu0
  %v3494 = vadd.f32 0.0, %v3493
  %3495 = vmatmul.f32.gmra.mxu0 %v3433
  %v3496 = vpop.f32.mrf.mxu0
  %v3497 = vadd.f32 0.0, %v3496
  %3498 = vmatmul.f32.gmra.mxu0 %v3434
  %v3499 = vpop.f32.mrf.mxu0
  %v3500 = vadd.f32 0.0, %v3499
  %3501 = vmatmul.f32.gmra.mxu0 %v3435
  %v3502 = vpop.f32.mrf.mxu0
  %v3503 = vadd.f32 0.0, %v3502
  %3504 = vmatmul.f32.gmra.mxu0 %v3436
  %v3505 = vpop.f32.mrf.mxu0
  %v3506 = vadd.f32 0.0, %v3505
  %3507 = vmatmul.f32.gmra.mxu0 %v3437
  %v3508 = vpop.f32.mrf.mxu0
  %v3509 = vadd.f32 0.0, %v3508
  %3510 = vmatmul.f32.gmra.mxu0 %v3438
  %v3511 = vpop.f32.mrf.mxu0
  %v3512 = vadd.f32 0.0, %v3511
  %3513 = vmatmul.f32.gmra.mxu0 %v3439
  %v3514 = vpop.f32.mrf.mxu0
  %v3515 = vadd.f32 0.0, %v3514
  %3516 = vmatmul.f32.gmra.mxu0 %v3440
  %v3517 = vpop.f32.mrf.mxu0
  %v3518 = vadd.f32 0.0, %v3517
  %3519 = vmatmul.f32.gmra.mxu0 %v3441
  %v3520 = vpop.f32.mrf.mxu0
  %v3521 = vadd.f32 0.0, %v3520
  %3522 = vdwg.mxu0
  %v3523 = vadd.f32 %v3410, %v3476
  %v3524 = vadd.f32 %v3411, %v3479
  %v3525 = vadd.f32 %v3412, %v3482
  %v3526 = vadd.f32 %v3413, %v3485
  %v3527 = vadd.f32 %v3414, %v3488
  %v3528 = vadd.f32 %v3415, %v3491
  %v3529 = vadd.f32 %v3416, %v3494
  %v3530 = vadd.f32 %v3417, %v3497
  %v3531 = vadd.f32 %v3418, %v3500
  %v3532 = vadd.f32 %v3419, %v3503
  %v3533 = vadd.f32 %v3420, %v3506
  %v3534 = vadd.f32 %v3421, %v3509
  %v3535 = vadd.f32 %v3422, %v3512
  %v3536 = vadd.f32 %v3423, %v3515
  %v3537 = vadd.f32 %v3424, %v3518
  %v3538 = vadd.f32 %v3425, %v3521
  %v3539 = vld [vmem:[#allocation2 + $0x114] sm:$0xff]
  %v3540 = vld [vmem:[#allocation2 + $0x11c] sm:$0xff]
  %v3541 = vld [vmem:[#allocation2 + $0x124] sm:$0xff]
  %v3542 = vld [vmem:[#allocation2 + $0x12c] sm:$0xff]
  %v3543 = vld [vmem:[#allocation2 + $0x134] sm:$0xff]
  %v3544 = vld [vmem:[#allocation2 + $0x13c] sm:$0xff]
  %v3545 = vld [vmem:[#allocation2 + $0x144] sm:$0xff]
  %v3546 = vld [vmem:[#allocation2 + $0x14c] sm:$0xff]
  %v3547 = vld [vmem:[#allocation2 + $0x154] sm:$0xff]
  %v3548 = vld [vmem:[#allocation2 + $0x15c] sm:$0xff]
  %v3549 = vld [vmem:[#allocation2 + $0x164] sm:$0xff]
  %v3550 = vld [vmem:[#allocation2 + $0x16c] sm:$0xff]
  %v3551 = vld [vmem:[#allocation2 + $0x174] sm:$0xff]
  %v3552 = vld [vmem:[#allocation2 + $0x17c] sm:$0xff]
  %v3553 = vld [vmem:[#allocation2 + $0x184] sm:$0xff]
  %v3554 = vld [vmem:[#allocation2 + $0x18c] sm:$0xff]
  %v3555 = vld [vmem:[%s1418] sm:$0xff]
  %v3556 = vld [vmem:[%s1418 + $0x8] sm:$0xff]
  %v3557 = vld [vmem:[%s1418 + $0x10] sm:$0xff]
  %v3558 = vld [vmem:[%s1418 + $0x18] sm:$0xff]
  %v3559 = vld [vmem:[%s1418 + $0x20] sm:$0xff]
  %v3560 = vld [vmem:[%s1418 + $0x28] sm:$0xff]
  %v3561 = vld [vmem:[%s1418 + $0x30] sm:$0xff]
  %v3562 = vld [vmem:[%s1418 + $0x38] sm:$0xff]
  %v3563 = vld [vmem:[%s1418 + $0x40] sm:$0xff]
  %v3564 = vld [vmem:[%s1418 + $0x48] sm:$0xff]
  %v3565 = vld [vmem:[%s1418 + $0x50] sm:$0xff]
  %v3566 = vld [vmem:[%s1418 + $0x58] sm:$0xff]
  %v3567 = vld [vmem:[%s1418 + $0x60] sm:$0xff]
  %v3568 = vld [vmem:[%s1418 + $0x68] sm:$0xff]
  %v3569 = vld [vmem:[%s1418 + $0x70] sm:$0xff]
  %v3570 = vld [vmem:[%s1418 + $0x78] sm:$0xff]
  %3571 = vmatpush.msra.mxu0 %v3570
  %3572 = vmatpush.msra.mxu0 %v3569
  %3573 = vmatpush.msra.mxu0 %v3568
  %3574 = vmatpush.msra.mxu0 %v3567
  %3575 = vmatpush.msra.mxu0 %v3566
  %3576 = vmatpush.msra.mxu0 %v3565
  %3577 = vmatpush.msra.mxu0 %v3564
  %3578 = vmatpush.msra.mxu0 %v3563
  %3579 = vmatpush.msra.mxu0 %v3562
  %3580 = vmatpush.msra.mxu0 %v3561
  %3581 = vmatpush.msra.mxu0 %v3560
  %3582 = vmatpush.msra.mxu0 %v3559
  %3583 = vmatpush.msra.mxu0 %v3558
  %3584 = vmatpush.msra.mxu0 %v3557
  %3585 = vmatpush.msra.mxu0 %v3556
  %3586 = vmatpush.msra.mxu0 %v3555
  %3587 = vmatmul.f32.gmra.mxu0 %v3539
  %v3588 = vpop.f32.mrf.mxu0
  %v3589 = vadd.f32 0.0, %v3588
  %3590 = vmatmul.f32.gmra.mxu0 %v3540
  %v3591 = vpop.f32.mrf.mxu0
  %v3592 = vadd.f32 0.0, %v3591
  %3593 = vmatmul.f32.gmra.mxu0 %v3541
  %v3594 = vpop.f32.mrf.mxu0
  %v3595 = vadd.f32 0.0, %v3594
  %3596 = vmatmul.f32.gmra.mxu0 %v3542
  %v3597 = vpop.f32.mrf.mxu0
  %v3598 = vadd.f32 0.0, %v3597
  %3599 = vmatmul.f32.gmra.mxu0 %v3543
  %v3600 = vpop.f32.mrf.mxu0
  %v3601 = vadd.f32 0.0, %v3600
  %3602 = vmatmul.f32.gmra.mxu0 %v3544
  %v3603 = vpop.f32.mrf.mxu0
  %v3604 = vadd.f32 0.0, %v3603
  %3605 = vmatmul.f32.gmra.mxu0 %v3545
  %v3606 = vpop.f32.mrf.mxu0
  %v3607 = vadd.f32 0.0, %v3606
  %3608 = vmatmul.f32.gmra.mxu0 %v3546
  %v3609 = vpop.f32.mrf.mxu0
  %v3610 = vadd.f32 0.0, %v3609
  %3611 = vmatmul.f32.gmra.mxu0 %v3547
  %v3612 = vpop.f32.mrf.mxu0
  %v3613 = vadd.f32 0.0, %v3612
  %3614 = vmatmul.f32.gmra.mxu0 %v3548
  %v3615 = vpop.f32.mrf.mxu0
  %v3616 = vadd.f32 0.0, %v3615
  %3617 = vmatmul.f32.gmra.mxu0 %v3549
  %v3618 = vpop.f32.mrf.mxu0
  %v3619 = vadd.f32 0.0, %v3618
  %3620 = vmatmul.f32.gmra.mxu0 %v3550
  %v3621 = vpop.f32.mrf.mxu0
  %v3622 = vadd.f32 0.0, %v3621
  %3623 = vmatmul.f32.gmra.mxu0 %v3551
  %v3624 = vpop.f32.mrf.mxu0
  %v3625 = vadd.f32 0.0, %v3624
  %3626 = vmatmul.f32.gmra.mxu0 %v3552
  %v3627 = vpop.f32.mrf.mxu0
  %v3628 = vadd.f32 0.0, %v3627
  %3629 = vmatmul.f32.gmra.mxu0 %v3553
  %v3630 = vpop.f32.mrf.mxu0
  %v3631 = vadd.f32 0.0, %v3630
  %3632 = vmatmul.f32.gmra.mxu0 %v3554
  %v3633 = vpop.f32.mrf.mxu0
  %v3634 = vadd.f32 0.0, %v3633
  %3635 = vdwg.mxu0
  %v3636 = vadd.f32 %v3523, %v3589
  %v3637 = vadd.f32 %v3524, %v3592
  %v3638 = vadd.f32 %v3525, %v3595
  %v3639 = vadd.f32 %v3526, %v3598
  %v3640 = vadd.f32 %v3527, %v3601
  %v3641 = vadd.f32 %v3528, %v3604
  %v3642 = vadd.f32 %v3529, %v3607
  %v3643 = vadd.f32 %v3530, %v3610
  %v3644 = vadd.f32 %v3531, %v3613
  %v3645 = vadd.f32 %v3532, %v3616
  %v3646 = vadd.f32 %v3533, %v3619
  %v3647 = vadd.f32 %v3534, %v3622
  %v3648 = vadd.f32 %v3535, %v3625
  %v3649 = vadd.f32 %v3536, %v3628
  %v3650 = vadd.f32 %v3537, %v3631
  %v3651 = vadd.f32 %v3538, %v3634
  %v3652 = vld [vmem:[#allocation2 + $0x124] sm:$0xff]
  %v3653 = vld [vmem:[#allocation2 + $0x12c] sm:$0xff]
  %v3654 = vld [vmem:[#allocation2 + $0x134] sm:$0xff]
  %v3655 = vld [vmem:[#allocation2 + $0x13c] sm:$0xff]
  %v3656 = vld [vmem:[#allocation2 + $0x144] sm:$0xff]
  %v3657 = vld [vmem:[#allocation2 + $0x14c] sm:$0xff]
  %v3658 = vld [vmem:[#allocation2 + $0x154] sm:$0xff]
  %v3659 = vld [vmem:[#allocation2 + $0x15c] sm:$0xff]
  %v3660 = vld [vmem:[#allocation2 + $0x164] sm:$0xff]
  %v3661 = vld [vmem:[#allocation2 + $0x16c] sm:$0xff]
  %v3662 = vld [vmem:[#allocation2 + $0x174] sm:$0xff]
  %v3663 = vld [vmem:[#allocation2 + $0x17c] sm:$0xff]
  %v3664 = vld [vmem:[#allocation2 + $0x184] sm:$0xff]
  %v3665 = vld [vmem:[#allocation2 + $0x18c] sm:$0xff]
  %v3666 = vld [vmem:[#allocation2 + $0x194] sm:$0xff]
  %v3667 = vld [vmem:[#allocation2 + $0x19c] sm:$0xff]
  %v3668 = vld [vmem:[%s1532] sm:$0xff]
  %v3669 = vld [vmem:[%s1532 + $0x8] sm:$0xff]
  %v3670 = vld [vmem:[%s1532 + $0x10] sm:$0xff]
  %v3671 = vld [vmem:[%s1532 + $0x18] sm:$0xff]
  %v3672 = vld [vmem:[%s1532 + $0x20] sm:$0xff]
  %v3673 = vld [vmem:[%s1532 + $0x28] sm:$0xff]
  %v3674 = vld [vmem:[%s1532 + $0x30] sm:$0xff]
  %v3675 = vld [vmem:[%s1532 + $0x38] sm:$0xff]
  %v3676 = vld [vmem:[%s1532 + $0x40] sm:$0xff]
  %v3677 = vld [vmem:[%s1532 + $0x48] sm:$0xff]
  %v3678 = vld [vmem:[%s1532 + $0x50] sm:$0xff]
  %v3679 = vld [vmem:[%s1532 + $0x58] sm:$0xff]
  %v3680 = vld [vmem:[%s1532 + $0x60] sm:$0xff]
  %v3681 = vld [vmem:[%s1532 + $0x68] sm:$0xff]
  %v3682 = vld [vmem:[%s1532 + $0x70] sm:$0xff]
  %v3683 = vld [vmem:[%s1532 + $0x78] sm:$0xff]
  %3684 = vmatpush.msra.mxu0 %v3683
  %3685 = vmatpush.msra.mxu0 %v3682
  %3686 = vmatpush.msra.mxu0 %v3681
  %3687 = vmatpush.msra.mxu0 %v3680
  %3688 = vmatpush.msra.mxu0 %v3679
  %3689 = vmatpush.msra.mxu0 %v3678
  %3690 = vmatpush.msra.mxu0 %v3677
  %3691 = vmatpush.msra.mxu0 %v3676
  %3692 = vmatpush.msra.mxu0 %v3675
  %3693 = vmatpush.msra.mxu0 %v3674
  %3694 = vmatpush.msra.mxu0 %v3673
  %3695 = vmatpush.msra.mxu0 %v3672
  %3696 = vmatpush.msra.mxu0 %v3671
  %3697 = vmatpush.msra.mxu0 %v3670
  %3698 = vmatpush.msra.mxu0 %v3669
  %3699 = vmatpush.msra.mxu0 %v3668
  %3700 = vmatmul.f32.gmra.mxu0 %v3652
  %v3701 = vpop.f32.mrf.mxu0
  %v3702 = vadd.f32 0.0, %v3701
  %3703 = vmatmul.f32.gmra.mxu0 %v3653
  %v3704 = vpop.f32.mrf.mxu0
  %v3705 = vadd.f32 0.0, %v3704
  %3706 = vmatmul.f32.gmra.mxu0 %v3654
  %v3707 = vpop.f32.mrf.mxu0
  %v3708 = vadd.f32 0.0, %v3707
  %3709 = vmatmul.f32.gmra.mxu0 %v3655
  %v3710 = vpop.f32.mrf.mxu0
  %v3711 = vadd.f32 0.0, %v3710
  %3712 = vmatmul.f32.gmra.mxu0 %v3656
  %v3713 = vpop.f32.mrf.mxu0
  %v3714 = vadd.f32 0.0, %v3713
  %3715 = vmatmul.f32.gmra.mxu0 %v3657
  %v3716 = vpop.f32.mrf.mxu0
  %v3717 = vadd.f32 0.0, %v3716
  %3718 = vmatmul.f32.gmra.mxu0 %v3658
  %v3719 = vpop.f32.mrf.mxu0
  %v3720 = vadd.f32 0.0, %v3719
  %3721 = vmatmul.f32.gmra.mxu0 %v3659
  %v3722 = vpop.f32.mrf.mxu0
  %v3723 = vadd.f32 0.0, %v3722
  %3724 = vmatmul.f32.gmra.mxu0 %v3660
  %v3725 = vpop.f32.mrf.mxu0
  %v3726 = vadd.f32 0.0, %v3725
  %3727 = vmatmul.f32.gmra.mxu0 %v3661
  %v3728 = vpop.f32.mrf.mxu0
  %v3729 = vadd.f32 0.0, %v3728
  %3730 = vmatmul.f32.gmra.mxu0 %v3662
  %v3731 = vpop.f32.mrf.mxu0
  %v3732 = vadd.f32 0.0, %v3731
  %3733 = vmatmul.f32.gmra.mxu0 %v3663
  %v3734 = vpop.f32.mrf.mxu0
  %v3735 = vadd.f32 0.0, %v3734
  %3736 = vmatmul.f32.gmra.mxu0 %v3664
  %v3737 = vpop.f32.mrf.mxu0
  %v3738 = vadd.f32 0.0, %v3737
  %3739 = vmatmul.f32.gmra.mxu0 %v3665
  %v3740 = vpop.f32.mrf.mxu0
  %v3741 = vadd.f32 0.0, %v3740
  %3742 = vmatmul.f32.gmra.mxu0 %v3666
  %v3743 = vpop.f32.mrf.mxu0
  %v3744 = vadd.f32 0.0, %v3743
  %3745 = vmatmul.f32.gmra.mxu0 %v3667
  %v3746 = vpop.f32.mrf.mxu0
  %v3747 = vadd.f32 0.0, %v3746
  %3748 = vdwg.mxu0
  %v3749 = vadd.f32 %v3636, %v3702
  %v3750 = vadd.f32 %v3637, %v3705
  %v3751 = vadd.f32 %v3638, %v3708
  %v3752 = vadd.f32 %v3639, %v3711
  %v3753 = vadd.f32 %v3640, %v3714
  %v3754 = vadd.f32 %v3641, %v3717
  %v3755 = vadd.f32 %v3642, %v3720
  %v3756 = vadd.f32 %v3643, %v3723
  %v3757 = vadd.f32 %v3644, %v3726
  %v3758 = vadd.f32 %v3645, %v3729
  %v3759 = vadd.f32 %v3646, %v3732
  %v3760 = vadd.f32 %v3647, %v3735
  %v3761 = vadd.f32 %v3648, %v3738
  %v3762 = vadd.f32 %v3649, %v3741
  %v3763 = vadd.f32 %v3650, %v3744
  %v3764 = vadd.f32 %v3651, %v3747
  %v3765 = vld [vmem:[#allocation2 + $0x125] sm:$0xff]
  %v3766 = vld [vmem:[#allocation2 + $0x12d] sm:$0xff]
  %v3767 = vld [vmem:[#allocation2 + $0x135] sm:$0xff]
  %v3768 = vld [vmem:[#allocation2 + $0x13d] sm:$0xff]
  %v3769 = vld [vmem:[#allocation2 + $0x145] sm:$0xff]
  %v3770 = vld [vmem:[#allocation2 + $0x14d] sm:$0xff]
  %v3771 = vld [vmem:[#allocation2 + $0x155] sm:$0xff]
  %v3772 = vld [vmem:[#allocation2 + $0x15d] sm:$0xff]
  %v3773 = vld [vmem:[#allocation2 + $0x165] sm:$0xff]
  %v3774 = vld [vmem:[#allocation2 + $0x16d] sm:$0xff]
  %v3775 = vld [vmem:[#allocation2 + $0x175] sm:$0xff]
  %v3776 = vld [vmem:[#allocation2 + $0x17d] sm:$0xff]
  %v3777 = vld [vmem:[#allocation2 + $0x185] sm:$0xff]
  %v3778 = vld [vmem:[#allocation2 + $0x18d] sm:$0xff]
  %v3779 = vld [vmem:[#allocation2 + $0x195] sm:$0xff]
  %v3780 = vld [vmem:[#allocation2 + $0x19d] sm:$0xff]
  %v3781 = vld [vmem:[%s1646] sm:$0xff]
  %v3782 = vld [vmem:[%s1646 + $0x8] sm:$0xff]
  %v3783 = vld [vmem:[%s1646 + $0x10] sm:$0xff]
  %v3784 = vld [vmem:[%s1646 + $0x18] sm:$0xff]
  %v3785 = vld [vmem:[%s1646 + $0x20] sm:$0xff]
  %v3786 = vld [vmem:[%s1646 + $0x28] sm:$0xff]
  %v3787 = vld [vmem:[%s1646 + $0x30] sm:$0xff]
  %v3788 = vld [vmem:[%s1646 + $0x38] sm:$0xff]
  %v3789 = vld [vmem:[%s1646 + $0x40] sm:$0xff]
  %v3790 = vld [vmem:[%s1646 + $0x48] sm:$0xff]
  %v3791 = vld [vmem:[%s1646 + $0x50] sm:$0xff]
  %v3792 = vld [vmem:[%s1646 + $0x58] sm:$0xff]
  %v3793 = vld [vmem:[%s1646 + $0x60] sm:$0xff]
  %v3794 = vld [vmem:[%s1646 + $0x68] sm:$0xff]
  %v3795 = vld [vmem:[%s1646 + $0x70] sm:$0xff]
  %v3796 = vld [vmem:[%s1646 + $0x78] sm:$0xff]
  %3797 = vmatpush.msra.mxu0 %v3796
  %3798 = vmatpush.msra.mxu0 %v3795
  %3799 = vmatpush.msra.mxu0 %v3794
  %3800 = vmatpush.msra.mxu0 %v3793
  %3801 = vmatpush.msra.mxu0 %v3792
  %3802 = vmatpush.msra.mxu0 %v3791
  %3803 = vmatpush.msra.mxu0 %v3790
  %3804 = vmatpush.msra.mxu0 %v3789
  %3805 = vmatpush.msra.mxu0 %v3788
  %3806 = vmatpush.msra.mxu0 %v3787
  %3807 = vmatpush.msra.mxu0 %v3786
  %3808 = vmatpush.msra.mxu0 %v3785
  %3809 = vmatpush.msra.mxu0 %v3784
  %3810 = vmatpush.msra.mxu0 %v3783
  %3811 = vmatpush.msra.mxu0 %v3782
  %3812 = vmatpush.msra.mxu0 %v3781
  %3813 = vmatmul.f32.gmra.mxu0 %v3765
  %v3814 = vpop.f32.mrf.mxu0
  %v3815 = vadd.f32 0.0, %v3814
  %3816 = vmatmul.f32.gmra.mxu0 %v3766
  %v3817 = vpop.f32.mrf.mxu0
  %v3818 = vadd.f32 0.0, %v3817
  %3819 = vmatmul.f32.gmra.mxu0 %v3767
  %v3820 = vpop.f32.mrf.mxu0
  %v3821 = vadd.f32 0.0, %v3820
  %3822 = vmatmul.f32.gmra.mxu0 %v3768
  %v3823 = vpop.f32.mrf.mxu0
  %v3824 = vadd.f32 0.0, %v3823
  %3825 = vmatmul.f32.gmra.mxu0 %v3769
  %v3826 = vpop.f32.mrf.mxu0
  %v3827 = vadd.f32 0.0, %v3826
  %3828 = vmatmul.f32.gmra.mxu0 %v3770
  %v3829 = vpop.f32.mrf.mxu0
  %v3830 = vadd.f32 0.0, %v3829
  %3831 = vmatmul.f32.gmra.mxu0 %v3771
  %v3832 = vpop.f32.mrf.mxu0
  %v3833 = vadd.f32 0.0, %v3832
  %3834 = vmatmul.f32.gmra.mxu0 %v3772
  %v3835 = vpop.f32.mrf.mxu0
  %v3836 = vadd.f32 0.0, %v3835
  %3837 = vmatmul.f32.gmra.mxu0 %v3773
  %v3838 = vpop.f32.mrf.mxu0
  %v3839 = vadd.f32 0.0, %v3838
  %3840 = vmatmul.f32.gmra.mxu0 %v3774
  %v3841 = vpop.f32.mrf.mxu0
  %v3842 = vadd.f32 0.0, %v3841
  %3843 = vmatmul.f32.gmra.mxu0 %v3775
  %v3844 = vpop.f32.mrf.mxu0
  %v3845 = vadd.f32 0.0, %v3844
  %3846 = vmatmul.f32.gmra.mxu0 %v3776
  %v3847 = vpop.f32.mrf.mxu0
  %v3848 = vadd.f32 0.0, %v3847
  %3849 = vmatmul.f32.gmra.mxu0 %v3777
  %v3850 = vpop.f32.mrf.mxu0
  %v3851 = vadd.f32 0.0, %v3850
  %3852 = vmatmul.f32.gmra.mxu0 %v3778
  %v3853 = vpop.f32.mrf.mxu0
  %v3854 = vadd.f32 0.0, %v3853
  %3855 = vmatmul.f32.gmra.mxu0 %v3779
  %v3856 = vpop.f32.mrf.mxu0
  %v3857 = vadd.f32 0.0, %v3856
  %3858 = vmatmul.f32.gmra.mxu0 %v3780
  %v3859 = vpop.f32.mrf.mxu0
  %v3860 = vadd.f32 0.0, %v3859
  %3861 = vdwg.mxu0
  %v3862 = vadd.f32 %v3749, %v3815
  %v3863 = vadd.f32 %v3750, %v3818
  %v3864 = vadd.f32 %v3751, %v3821
  %v3865 = vadd.f32 %v3752, %v3824
  %v3866 = vadd.f32 %v3753, %v3827
  %v3867 = vadd.f32 %v3754, %v3830
  %v3868 = vadd.f32 %v3755, %v3833
  %v3869 = vadd.f32 %v3756, %v3836
  %v3870 = vadd.f32 %v3757, %v3839
  %v3871 = vadd.f32 %v3758, %v3842
  %v3872 = vadd.f32 %v3759, %v3845
  %v3873 = vadd.f32 %v3760, %v3848
  %v3874 = vadd.f32 %v3761, %v3851
  %v3875 = vadd.f32 %v3762, %v3854
  %v3876 = vadd.f32 %v3763, %v3857
  %v3877 = vadd.f32 %v3764, %v3860
  %v3878 = vld [vmem:[#allocation2 + $0x126] sm:$0xff]
  %v3879 = vld [vmem:[#allocation2 + $0x12e] sm:$0xff]
  %v3880 = vld [vmem:[#allocation2 + $0x136] sm:$0xff]
  %v3881 = vld [vmem:[#allocation2 + $0x13e] sm:$0xff]
  %v3882 = vld [vmem:[#allocation2 + $0x146] sm:$0xff]
  %v3883 = vld [vmem:[#allocation2 + $0x14e] sm:$0xff]
  %v3884 = vld [vmem:[#allocation2 + $0x156] sm:$0xff]
  %v3885 = vld [vmem:[#allocation2 + $0x15e] sm:$0xff]
  %v3886 = vld [vmem:[#allocation2 + $0x166] sm:$0xff]
  %v3887 = vld [vmem:[#allocation2 + $0x16e] sm:$0xff]
  %v3888 = vld [vmem:[#allocation2 + $0x176] sm:$0xff]
  %v3889 = vld [vmem:[#allocation2 + $0x17e] sm:$0xff]
  %v3890 = vld [vmem:[#allocation2 + $0x186] sm:$0xff]
  %v3891 = vld [vmem:[#allocation2 + $0x18e] sm:$0xff]
  %v3892 = vld [vmem:[#allocation2 + $0x196] sm:$0xff]
  %v3893 = vld [vmem:[#allocation2 + $0x19e] sm:$0xff]
  %v3894 = vld [vmem:[%s1760] sm:$0xff]
  %v3895 = vld [vmem:[%s1760 + $0x8] sm:$0xff]
  %v3896 = vld [vmem:[%s1760 + $0x10] sm:$0xff]
  %v3897 = vld [vmem:[%s1760 + $0x18] sm:$0xff]
  %v3898 = vld [vmem:[%s1760 + $0x20] sm:$0xff]
  %v3899 = vld [vmem:[%s1760 + $0x28] sm:$0xff]
  %v3900 = vld [vmem:[%s1760 + $0x30] sm:$0xff]
  %v3901 = vld [vmem:[%s1760 + $0x38] sm:$0xff]
  %v3902 = vld [vmem:[%s1760 + $0x40] sm:$0xff]
  %v3903 = vld [vmem:[%s1760 + $0x48] sm:$0xff]
  %v3904 = vld [vmem:[%s1760 + $0x50] sm:$0xff]
  %v3905 = vld [vmem:[%s1760 + $0x58] sm:$0xff]
  %v3906 = vld [vmem:[%s1760 + $0x60] sm:$0xff]
  %v3907 = vld [vmem:[%s1760 + $0x68] sm:$0xff]
  %v3908 = vld [vmem:[%s1760 + $0x70] sm:$0xff]
  %v3909 = vld [vmem:[%s1760 + $0x78] sm:$0xff]
  %3910 = vmatpush.msra.mxu0 %v3909
  %3911 = vmatpush.msra.mxu0 %v3908
  %3912 = vmatpush.msra.mxu0 %v3907
  %3913 = vmatpush.msra.mxu0 %v3906
  %3914 = vmatpush.msra.mxu0 %v3905
  %3915 = vmatpush.msra.mxu0 %v3904
  %3916 = vmatpush.msra.mxu0 %v3903
  %3917 = vmatpush.msra.mxu0 %v3902
  %3918 = vmatpush.msra.mxu0 %v3901
  %3919 = vmatpush.msra.mxu0 %v3900
  %3920 = vmatpush.msra.mxu0 %v3899
  %3921 = vmatpush.msra.mxu0 %v3898
  %3922 = vmatpush.msra.mxu0 %v3897
  %3923 = vmatpush.msra.mxu0 %v3896
  %3924 = vmatpush.msra.mxu0 %v3895
  %3925 = vmatpush.msra.mxu0 %v3894
  %3926 = vmatmul.f32.gmra.mxu0 %v3878
  %v3927 = vpop.f32.mrf.mxu0
  %v3928 = vadd.f32 0.0, %v3927
  %3929 = vmatmul.f32.gmra.mxu0 %v3879
  %v3930 = vpop.f32.mrf.mxu0
  %v3931 = vadd.f32 0.0, %v3930
  %3932 = vmatmul.f32.gmra.mxu0 %v3880
  %v3933 = vpop.f32.mrf.mxu0
  %v3934 = vadd.f32 0.0, %v3933
  %3935 = vmatmul.f32.gmra.mxu0 %v3881
  %v3936 = vpop.f32.mrf.mxu0
  %v3937 = vadd.f32 0.0, %v3936
  %3938 = vmatmul.f32.gmra.mxu0 %v3882
  %v3939 = vpop.f32.mrf.mxu0
  %v3940 = vadd.f32 0.0, %v3939
  %3941 = vmatmul.f32.gmra.mxu0 %v3883
  %v3942 = vpop.f32.mrf.mxu0
  %v3943 = vadd.f32 0.0, %v3942
  %3944 = vmatmul.f32.gmra.mxu0 %v3884
  %v3945 = vpop.f32.mrf.mxu0
  %v3946 = vadd.f32 0.0, %v3945
  %3947 = vmatmul.f32.gmra.mxu0 %v3885
  %v3948 = vpop.f32.mrf.mxu0
  %v3949 = vadd.f32 0.0, %v3948
  %3950 = vmatmul.f32.gmra.mxu0 %v3886
  %v3951 = vpop.f32.mrf.mxu0
  %v3952 = vadd.f32 0.0, %v3951
  %3953 = vmatmul.f32.gmra.mxu0 %v3887
  %v3954 = vpop.f32.mrf.mxu0
  %v3955 = vadd.f32 0.0, %v3954
  %3956 = vmatmul.f32.gmra.mxu0 %v3888
  %v3957 = vpop.f32.mrf.mxu0
  %v3958 = vadd.f32 0.0, %v3957
  %3959 = vmatmul.f32.gmra.mxu0 %v3889
  %v3960 = vpop.f32.mrf.mxu0
  %v3961 = vadd.f32 0.0, %v3960
  %3962 = vmatmul.f32.gmra.mxu0 %v3890
  %v3963 = vpop.f32.mrf.mxu0
  %v3964 = vadd.f32 0.0, %v3963
  %3965 = vmatmul.f32.gmra.mxu0 %v3891
  %v3966 = vpop.f32.mrf.mxu0
  %v3967 = vadd.f32 0.0, %v3966
  %3968 = vmatmul.f32.gmra.mxu0 %v3892
  %v3969 = vpop.f32.mrf.mxu0
  %v3970 = vadd.f32 0.0, %v3969
  %3971 = vmatmul.f32.gmra.mxu0 %v3893
  %v3972 = vpop.f32.mrf.mxu0
  %v3973 = vadd.f32 0.0, %v3972
  %3974 = vdwg.mxu0
  %v3975 = vadd.f32 %v3862, %v3928
  %v3976 = vadd.f32 %v3863, %v3931
  %v3977 = vadd.f32 %v3864, %v3934
  %v3978 = vadd.f32 %v3865, %v3937
  %v3979 = vadd.f32 %v3866, %v3940
  %v3980 = vadd.f32 %v3867, %v3943
  %v3981 = vadd.f32 %v3868, %v3946
  %v3982 = vadd.f32 %v3869, %v3949
  %v3983 = vadd.f32 %v3870, %v3952
  %v3984 = vadd.f32 %v3871, %v3955
  %v3985 = vadd.f32 %v3872, %v3958
  %v3986 = vadd.f32 %v3873, %v3961
  %v3987 = vadd.f32 %v3874, %v3964
  %v3988 = vadd.f32 %v3875, %v3967
  %v3989 = vadd.f32 %v3876, %v3970
  %v3990 = vadd.f32 %v3877, %v3973
  %v3991 = vadd.f32 %v3975, %v1859
  %v3992 = vadd.f32 %v3976, %v1859
  %v3993 = vadd.f32 %v3977, %v1859
  %v3994 = vadd.f32 %v3978, %v1859
  %v3995 = vadd.f32 %v3979, %v1859
  %v3996 = vadd.f32 %v3980, %v1859
  %v3997 = vadd.f32 %v3981, %v1859
  %v3998 = vadd.f32 %v3982, %v1859
  %v3999 = vadd.f32 %v3983, %v1859
  %v4000 = vadd.f32 %v3984, %v1859
  %v4001 = vadd.f32 %v3985, %v1859
  %v4002 = vadd.f32 %v3986, %v1859
  %v4003 = vadd.f32 %v3987, %v1859
  %v4004 = vadd.f32 %v3988, %v1859
  %v4005 = vadd.f32 %v3989, %v1859
  %v4006 = vadd.f32 %v3990, %v1859
  %vm4007 = vcmp.gt.f32.partialorder %v3991, 0.0
  %vm4008 = vcmp.gt.f32.partialorder %v3992, 0.0
  %vm4009 = vcmp.gt.f32.partialorder %v3993, 0.0
  %vm4010 = vcmp.gt.f32.partialorder %v3994, 0.0
  %vm4011 = vcmp.gt.f32.partialorder %v3995, 0.0
  %vm4012 = vcmp.gt.f32.partialorder %v3996, 0.0
  %vm4013 = vcmp.gt.f32.partialorder %v3997, 0.0
  %vm4014 = vcmp.gt.f32.partialorder %v3998, 0.0
  %vm4015 = vcmp.gt.f32.partialorder %v3999, 0.0
  %vm4016 = vcmp.gt.f32.partialorder %v4000, 0.0
  %vm4017 = vcmp.gt.f32.partialorder %v4001, 0.0
  %vm4018 = vcmp.gt.f32.partialorder %v4002, 0.0
  %vm4019 = vcmp.gt.f32.partialorder %v4003, 0.0
  %vm4020 = vcmp.gt.f32.partialorder %v4004, 0.0
  %vm4021 = vcmp.gt.f32.partialorder %v4005, 0.0
  %vm4022 = vcmp.gt.f32.partialorder %v4006, 0.0
  %v4023 = vmul.f32 %v3991, 0.01
  %v4024 = vmul.f32 %v3992, 0.01
  %v4025 = vmul.f32 %v3993, 0.01
  %v4026 = vmul.f32 %v3994, 0.01
  %v4027 = vmul.f32 %v3995, 0.01
  %v4028 = vmul.f32 %v3996, 0.01
  %v4029 = vmul.f32 %v3997, 0.01
  %v4030 = vmul.f32 %v3998, 0.01
  %v4031 = vmul.f32 %v3999, 0.01
  %v4032 = vmul.f32 %v4000, 0.01
  %v4033 = vmul.f32 %v4001, 0.01
  %v4034 = vmul.f32 %v4002, 0.01
  %v4035 = vmul.f32 %v4003, 0.01
  %v4036 = vmul.f32 %v4004, 0.01
  %v4037 = vmul.f32 %v4005, 0.01
  %v4038 = vmul.f32 %v4006, 0.01
  %v4039 = vsel %vm4007, %v3991, %v4023
  %v4040 = vsel %vm4008, %v3992, %v4024
  %v4041 = vsel %vm4009, %v3993, %v4025
  %v4042 = vsel %vm4010, %v3994, %v4026
  %v4043 = vsel %vm4011, %v3995, %v4027
  %v4044 = vsel %vm4012, %v3996, %v4028
  %v4045 = vsel %vm4013, %v3997, %v4029
  %v4046 = vsel %vm4014, %v3998, %v4030
  %v4047 = vsel %vm4015, %v3999, %v4031
  %v4048 = vsel %vm4016, %v4000, %v4032
  %v4049 = vsel %vm4017, %v4001, %v4033
  %v4050 = vsel %vm4018, %v4002, %v4034
  %v4051 = vsel %vm4019, %v4003, %v4035
  %v4052 = vsel %vm4020, %v4004, %v4036
  %v4053 = vsel %vm4021, %v4005, %v4037
  %v4054 = vsel %vm4022, %v4006, %v4038
  %4055 = vst [vmem:[#allocation3 + $0x100] sm:$0xff] %v4039
  %4056 = vst [vmem:[#allocation3 + $0x108] sm:$0xff] %v4040
  %4057 = vst [vmem:[#allocation3 + $0x110] sm:$0xff] %v4041
  %4058 = vst [vmem:[#allocation3 + $0x118] sm:$0xff] %v4042
  %4059 = vst [vmem:[#allocation3 + $0x120] sm:$0xff] %v4043
  %4060 = vst [vmem:[#allocation3 + $0x128] sm:$0xff] %v4044
  %4061 = vst [vmem:[#allocation3 + $0x130] sm:$0xff] %v4045
  %4062 = vst [vmem:[#allocation3 + $0x138] sm:$0xff] %v4046
  %4063 = vst [vmem:[#allocation3 + $0x140] sm:$0xff] %v4047
  %4064 = vst [vmem:[#allocation3 + $0x148] sm:$0xff] %v4048
  %4065 = vst [vmem:[#allocation3 + $0x150] sm:$0xff] %v4049
  %4066 = vst [vmem:[#allocation3 + $0x158] sm:$0xff] %v4050
  %4067 = vst [vmem:[#allocation3 + $0x160] sm:$0xff] %v4051
  %4068 = vst [vmem:[#allocation3 + $0x168] sm:$0xff] %v4052
  %4069 = vst [vmem:[#allocation3 + $0x170] sm:$0xff] %v4053
  %4070 = vst [vmem:[#allocation3 + $0x178] sm:$0xff] %v4054
  %v4071 = vld [vmem:[#allocation2 + $0x180] sm:$0xff]
  %v4072 = vld [vmem:[#allocation2 + $0x188] sm:$0xff]
  %v4073 = vld [vmem:[#allocation2 + $0x190] sm:$0xff]
  %v4074 = vld [vmem:[#allocation2 + $0x198] sm:$0xff]
  %v4075 = vld [vmem:[#allocation2 + $0x1a0] sm:$0xff]
  %v4076 = vld [vmem:[#allocation2 + $0x1a8] sm:$0xff]
  %v4077 = vld [vmem:[#allocation2 + $0x1b0] sm:$0xff]
  %v4078 = vld [vmem:[#allocation2 + $0x1b8] sm:$0xff]
  %v4079 = vld [vmem:[#allocation2 + $0x1c0] sm:$0xff]
  %v4080 = vld [vmem:[#allocation2 + $0x1c8] sm:$0xff]
  %v4081 = vld [vmem:[#allocation2 + $0x1d0] sm:$0xff]
  %v4082 = vld [vmem:[#allocation2 + $0x1d8] sm:$0xff]
  %v4083 = vld [vmem:[#allocation2 + $0x1e0] sm:$0xff]
  %v4084 = vld [vmem:[#allocation2 + $0x1e8] sm:$0xff]
  %v4085 = vld [vmem:[#allocation2 + $0x1f0] sm:$0xff]
  %v4086 = vld [vmem:[#allocation2 + $0x1f8] sm:$0xff]
  %v4087 = vld [vmem:[%s2] sm:$0xff]
  %v4088 = vld [vmem:[%s2 + $0x8] sm:$0xff]
  %v4089 = vld [vmem:[%s2 + $0x10] sm:$0xff]
  %v4090 = vld [vmem:[%s2 + $0x18] sm:$0xff]
  %v4091 = vld [vmem:[%s2 + $0x20] sm:$0xff]
  %v4092 = vld [vmem:[%s2 + $0x28] sm:$0xff]
  %v4093 = vld [vmem:[%s2 + $0x30] sm:$0xff]
  %v4094 = vld [vmem:[%s2 + $0x38] sm:$0xff]
  %v4095 = vld [vmem:[%s2 + $0x40] sm:$0xff]
  %v4096 = vld [vmem:[%s2 + $0x48] sm:$0xff]
  %v4097 = vld [vmem:[%s2 + $0x50] sm:$0xff]
  %v4098 = vld [vmem:[%s2 + $0x58] sm:$0xff]
  %v4099 = vld [vmem:[%s2 + $0x60] sm:$0xff]
  %v4100 = vld [vmem:[%s2 + $0x68] sm:$0xff]
  %v4101 = vld [vmem:[%s2 + $0x70] sm:$0xff]
  %v4102 = vld [vmem:[%s2 + $0x78] sm:$0xff]
  %v4103 = vld [vmem:[#allocation2 + $0x181] sm:$0xff]
  %v4104 = vld [vmem:[#allocation2 + $0x189] sm:$0xff]
  %v4105 = vld [vmem:[#allocation2 + $0x191] sm:$0xff]
  %v4106 = vld [vmem:[#allocation2 + $0x199] sm:$0xff]
  %v4107 = vld [vmem:[#allocation2 + $0x1a1] sm:$0xff]
  %v4108 = vld [vmem:[#allocation2 + $0x1a9] sm:$0xff]
  %v4109 = vld [vmem:[#allocation2 + $0x1b1] sm:$0xff]
  %v4110 = vld [vmem:[#allocation2 + $0x1b9] sm:$0xff]
  %v4111 = vld [vmem:[#allocation2 + $0x1c1] sm:$0xff]
  %v4112 = vld [vmem:[#allocation2 + $0x1c9] sm:$0xff]
  %v4113 = vld [vmem:[#allocation2 + $0x1d1] sm:$0xff]
  %v4114 = vld [vmem:[#allocation2 + $0x1d9] sm:$0xff]
  %v4115 = vld [vmem:[#allocation2 + $0x1e1] sm:$0xff]
  %v4116 = vld [vmem:[#allocation2 + $0x1e9] sm:$0xff]
  %v4117 = vld [vmem:[#allocation2 + $0x1f1] sm:$0xff]
  %v4118 = vld [vmem:[#allocation2 + $0x1f9] sm:$0xff]
  %v4119 = vld [vmem:[%s913] sm:$0xff]
  %v4120 = vld [vmem:[%s913 + $0x8] sm:$0xff]
  %v4121 = vld [vmem:[%s913 + $0x10] sm:$0xff]
  %v4122 = vld [vmem:[%s913 + $0x18] sm:$0xff]
  %v4123 = vld [vmem:[%s913 + $0x20] sm:$0xff]
  %v4124 = vld [vmem:[%s913 + $0x28] sm:$0xff]
  %v4125 = vld [vmem:[%s913 + $0x30] sm:$0xff]
  %v4126 = vld [vmem:[%s913 + $0x38] sm:$0xff]
  %v4127 = vld [vmem:[%s913 + $0x40] sm:$0xff]
  %v4128 = vld [vmem:[%s913 + $0x48] sm:$0xff]
  %v4129 = vld [vmem:[%s913 + $0x50] sm:$0xff]
  %v4130 = vld [vmem:[%s913 + $0x58] sm:$0xff]
  %v4131 = vld [vmem:[%s913 + $0x60] sm:$0xff]
  %v4132 = vld [vmem:[%s913 + $0x68] sm:$0xff]
  %v4133 = vld [vmem:[%s913 + $0x70] sm:$0xff]
  %v4134 = vld [vmem:[%s913 + $0x78] sm:$0xff]
  %4135 = vmatpush.msra.mxu0 %v4134
  %4136 = vmatpush.msra.mxu0 %v4133
  %4137 = vmatpush.msra.mxu0 %v4132
  %4138 = vmatpush.msra.mxu0 %v4131
  %4139 = vmatpush.msra.mxu0 %v4130
  %4140 = vmatpush.msra.mxu0 %v4129
  %4141 = vmatpush.msra.mxu0 %v4128
  %4142 = vmatpush.msra.mxu0 %v4127
  %4143 = vmatpush.msra.mxu0 %v4126
  %4144 = vmatpush.msra.mxu0 %v4125
  %4145 = vmatpush.msra.mxu0 %v4124
  %4146 = vmatpush.msra.mxu0 %v4123
  %4147 = vmatpush.msra.mxu0 %v4122
  %4148 = vmatpush.msra.mxu0 %v4121
  %4149 = vmatpush.msra.mxu0 %v4120
  %4150 = vmatpush.msra.mxu0 %v4119
  %4151 = vmatmul.f32.gmra.mxu0 %v4103
  %v4152 = vpop.f32.mrf.mxu0
  %v4153 = vadd.f32 0.0, %v4152
  %4154 = vmatmul.f32.gmra.mxu0 %v4104
  %v4155 = vpop.f32.mrf.mxu0
  %v4156 = vadd.f32 0.0, %v4155
  %4157 = vmatmul.f32.gmra.mxu0 %v4105
  %v4158 = vpop.f32.mrf.mxu0
  %v4159 = vadd.f32 0.0, %v4158
  %4160 = vmatmul.f32.gmra.mxu0 %v4106
  %v4161 = vpop.f32.mrf.mxu0
  %v4162 = vadd.f32 0.0, %v4161
  %4163 = vmatmul.f32.gmra.mxu0 %v4107
  %v4164 = vpop.f32.mrf.mxu0
  %v4165 = vadd.f32 0.0, %v4164
  %4166 = vmatmul.f32.gmra.mxu0 %v4108
  %v4167 = vpop.f32.mrf.mxu0
  %v4168 = vadd.f32 0.0, %v4167
  %4169 = vmatmul.f32.gmra.mxu0 %v4109
  %v4170 = vpop.f32.mrf.mxu0
  %v4171 = vadd.f32 0.0, %v4170
  %4172 = vmatmul.f32.gmra.mxu0 %v4110
  %v4173 = vpop.f32.mrf.mxu0
  %v4174 = vadd.f32 0.0, %v4173
  %4175 = vmatmul.f32.gmra.mxu0 %v4111
  %v4176 = vpop.f32.mrf.mxu0
  %v4177 = vadd.f32 0.0, %v4176
  %4178 = vmatmul.f32.gmra.mxu0 %v4112
  %v4179 = vpop.f32.mrf.mxu0
  %v4180 = vadd.f32 0.0, %v4179
  %4181 = vmatmul.f32.gmra.mxu0 %v4113
  %v4182 = vpop.f32.mrf.mxu0
  %v4183 = vadd.f32 0.0, %v4182
  %4184 = vmatmul.f32.gmra.mxu0 %v4114
  %v4185 = vpop.f32.mrf.mxu0
  %v4186 = vadd.f32 0.0, %v4185
  %4187 = vmatmul.f32.gmra.mxu0 %v4115
  %v4188 = vpop.f32.mrf.mxu0
  %v4189 = vadd.f32 0.0, %v4188
  %4190 = vmatmul.f32.gmra.mxu0 %v4116
  %v4191 = vpop.f32.mrf.mxu0
  %v4192 = vadd.f32 0.0, %v4191
  %4193 = vmatmul.f32.gmra.mxu0 %v4117
  %v4194 = vpop.f32.mrf.mxu0
  %v4195 = vadd.f32 0.0, %v4194
  %4196 = vmatmul.f32.gmra.mxu0 %v4118
  %v4197 = vpop.f32.mrf.mxu0
  %v4198 = vadd.f32 0.0, %v4197
  %4199 = vdwg.mxu0
  %4200 = vmatpush.msra.mxu0 %v4102
  %4201 = vmatpush.msra.mxu0 %v4101
  %4202 = vmatpush.msra.mxu0 %v4100
  %4203 = vmatpush.msra.mxu0 %v4099
  %4204 = vmatpush.msra.mxu0 %v4098
  %4205 = vmatpush.msra.mxu0 %v4097
  %4206 = vmatpush.msra.mxu0 %v4096
  %4207 = vmatpush.msra.mxu0 %v4095
  %4208 = vmatpush.msra.mxu0 %v4094
  %4209 = vmatpush.msra.mxu0 %v4093
  %4210 = vmatpush.msra.mxu0 %v4092
  %4211 = vmatpush.msra.mxu0 %v4091
  %4212 = vmatpush.msra.mxu0 %v4090
  %4213 = vmatpush.msra.mxu0 %v4089
  %4214 = vmatpush.msra.mxu0 %v4088
  %4215 = vmatpush.msra.mxu0 %v4087
  %4216 = vmatmul.f32.gmra.mxu0 %v4071
  %v4217 = vpop.f32.mrf.mxu0
  %v4218 = vadd.f32 %v4153, %v4217
  %4219 = vmatmul.f32.gmra.mxu0 %v4072
  %v4220 = vpop.f32.mrf.mxu0
  %v4221 = vadd.f32 %v4156, %v4220
  %4222 = vmatmul.f32.gmra.mxu0 %v4073
  %v4223 = vpop.f32.mrf.mxu0
  %v4224 = vadd.f32 %v4159, %v4223
  %4225 = vmatmul.f32.gmra.mxu0 %v4074
  %v4226 = vpop.f32.mrf.mxu0
  %v4227 = vadd.f32 %v4162, %v4226
  %4228 = vmatmul.f32.gmra.mxu0 %v4075
  %v4229 = vpop.f32.mrf.mxu0
  %v4230 = vadd.f32 %v4165, %v4229
  %4231 = vmatmul.f32.gmra.mxu0 %v4076
  %v4232 = vpop.f32.mrf.mxu0
  %v4233 = vadd.f32 %v4168, %v4232
  %4234 = vmatmul.f32.gmra.mxu0 %v4077
  %v4235 = vpop.f32.mrf.mxu0
  %v4236 = vadd.f32 %v4171, %v4235
  %4237 = vmatmul.f32.gmra.mxu0 %v4078
  %v4238 = vpop.f32.mrf.mxu0
  %v4239 = vadd.f32 %v4174, %v4238
  %4240 = vmatmul.f32.gmra.mxu0 %v4079
  %v4241 = vpop.f32.mrf.mxu0
  %v4242 = vadd.f32 %v4177, %v4241
  %4243 = vmatmul.f32.gmra.mxu0 %v4080
  %v4244 = vpop.f32.mrf.mxu0
  %v4245 = vadd.f32 %v4180, %v4244
  %4246 = vmatmul.f32.gmra.mxu0 %v4081
  %v4247 = vpop.f32.mrf.mxu0
  %v4248 = vadd.f32 %v4183, %v4247
  %4249 = vmatmul.f32.gmra.mxu0 %v4082
  %v4250 = vpop.f32.mrf.mxu0
  %v4251 = vadd.f32 %v4186, %v4250
  %4252 = vmatmul.f32.gmra.mxu0 %v4083
  %v4253 = vpop.f32.mrf.mxu0
  %v4254 = vadd.f32 %v4189, %v4253
  %4255 = vmatmul.f32.gmra.mxu0 %v4084
  %v4256 = vpop.f32.mrf.mxu0
  %v4257 = vadd.f32 %v4192, %v4256
  %4258 = vmatmul.f32.gmra.mxu0 %v4085
  %v4259 = vpop.f32.mrf.mxu0
  %v4260 = vadd.f32 %v4195, %v4259
  %4261 = vmatmul.f32.gmra.mxu0 %v4086
  %v4262 = vpop.f32.mrf.mxu0
  %v4263 = vadd.f32 %v4198, %v4262
  %4264 = vdwg.mxu0
  %v4265 = vld [vmem:[#allocation2 + $0x182] sm:$0xff]
  %v4266 = vld [vmem:[#allocation2 + $0x18a] sm:$0xff]
  %v4267 = vld [vmem:[#allocation2 + $0x192] sm:$0xff]
  %v4268 = vld [vmem:[#allocation2 + $0x19a] sm:$0xff]
  %v4269 = vld [vmem:[#allocation2 + $0x1a2] sm:$0xff]
  %v4270 = vld [vmem:[#allocation2 + $0x1aa] sm:$0xff]
  %v4271 = vld [vmem:[#allocation2 + $0x1b2] sm:$0xff]
  %v4272 = vld [vmem:[#allocation2 + $0x1ba] sm:$0xff]
  %v4273 = vld [vmem:[#allocation2 + $0x1c2] sm:$0xff]
  %v4274 = vld [vmem:[#allocation2 + $0x1ca] sm:$0xff]
  %v4275 = vld [vmem:[#allocation2 + $0x1d2] sm:$0xff]
  %v4276 = vld [vmem:[#allocation2 + $0x1da] sm:$0xff]
  %v4277 = vld [vmem:[#allocation2 + $0x1e2] sm:$0xff]
  %v4278 = vld [vmem:[#allocation2 + $0x1ea] sm:$0xff]
  %v4279 = vld [vmem:[#allocation2 + $0x1f2] sm:$0xff]
  %v4280 = vld [vmem:[#allocation2 + $0x1fa] sm:$0xff]
  %v4281 = vld [vmem:[%s1076] sm:$0xff]
  %v4282 = vld [vmem:[%s1076 + $0x8] sm:$0xff]
  %v4283 = vld [vmem:[%s1076 + $0x10] sm:$0xff]
  %v4284 = vld [vmem:[%s1076 + $0x18] sm:$0xff]
  %v4285 = vld [vmem:[%s1076 + $0x20] sm:$0xff]
  %v4286 = vld [vmem:[%s1076 + $0x28] sm:$0xff]
  %v4287 = vld [vmem:[%s1076 + $0x30] sm:$0xff]
  %v4288 = vld [vmem:[%s1076 + $0x38] sm:$0xff]
  %v4289 = vld [vmem:[%s1076 + $0x40] sm:$0xff]
  %v4290 = vld [vmem:[%s1076 + $0x48] sm:$0xff]
  %v4291 = vld [vmem:[%s1076 + $0x50] sm:$0xff]
  %v4292 = vld [vmem:[%s1076 + $0x58] sm:$0xff]
  %v4293 = vld [vmem:[%s1076 + $0x60] sm:$0xff]
  %v4294 = vld [vmem:[%s1076 + $0x68] sm:$0xff]
  %v4295 = vld [vmem:[%s1076 + $0x70] sm:$0xff]
  %v4296 = vld [vmem:[%s1076 + $0x78] sm:$0xff]
  %4297 = vmatpush.msra.mxu0 %v4296
  %4298 = vmatpush.msra.mxu0 %v4295
  %4299 = vmatpush.msra.mxu0 %v4294
  %4300 = vmatpush.msra.mxu0 %v4293
  %4301 = vmatpush.msra.mxu0 %v4292
  %4302 = vmatpush.msra.mxu0 %v4291
  %4303 = vmatpush.msra.mxu0 %v4290
  %4304 = vmatpush.msra.mxu0 %v4289
  %4305 = vmatpush.msra.mxu0 %v4288
  %4306 = vmatpush.msra.mxu0 %v4287
  %4307 = vmatpush.msra.mxu0 %v4286
  %4308 = vmatpush.msra.mxu0 %v4285
  %4309 = vmatpush.msra.mxu0 %v4284
  %4310 = vmatpush.msra.mxu0 %v4283
  %4311 = vmatpush.msra.mxu0 %v4282
  %4312 = vmatpush.msra.mxu0 %v4281
  %4313 = vmatmul.f32.gmra.mxu0 %v4265
  %v4314 = vpop.f32.mrf.mxu0
  %v4315 = vadd.f32 0.0, %v4314
  %4316 = vmatmul.f32.gmra.mxu0 %v4266
  %v4317 = vpop.f32.mrf.mxu0
  %v4318 = vadd.f32 0.0, %v4317
  %4319 = vmatmul.f32.gmra.mxu0 %v4267
  %v4320 = vpop.f32.mrf.mxu0
  %v4321 = vadd.f32 0.0, %v4320
  %4322 = vmatmul.f32.gmra.mxu0 %v4268
  %v4323 = vpop.f32.mrf.mxu0
  %v4324 = vadd.f32 0.0, %v4323
  %4325 = vmatmul.f32.gmra.mxu0 %v4269
  %v4326 = vpop.f32.mrf.mxu0
  %v4327 = vadd.f32 0.0, %v4326
  %4328 = vmatmul.f32.gmra.mxu0 %v4270
  %v4329 = vpop.f32.mrf.mxu0
  %v4330 = vadd.f32 0.0, %v4329
  %4331 = vmatmul.f32.gmra.mxu0 %v4271
  %v4332 = vpop.f32.mrf.mxu0
  %v4333 = vadd.f32 0.0, %v4332
  %4334 = vmatmul.f32.gmra.mxu0 %v4272
  %v4335 = vpop.f32.mrf.mxu0
  %v4336 = vadd.f32 0.0, %v4335
  %4337 = vmatmul.f32.gmra.mxu0 %v4273
  %v4338 = vpop.f32.mrf.mxu0
  %v4339 = vadd.f32 0.0, %v4338
  %4340 = vmatmul.f32.gmra.mxu0 %v4274
  %v4341 = vpop.f32.mrf.mxu0
  %v4342 = vadd.f32 0.0, %v4341
  %4343 = vmatmul.f32.gmra.mxu0 %v4275
  %v4344 = vpop.f32.mrf.mxu0
  %v4345 = vadd.f32 0.0, %v4344
  %4346 = vmatmul.f32.gmra.mxu0 %v4276
  %v4347 = vpop.f32.mrf.mxu0
  %v4348 = vadd.f32 0.0, %v4347
  %4349 = vmatmul.f32.gmra.mxu0 %v4277
  %v4350 = vpop.f32.mrf.mxu0
  %v4351 = vadd.f32 0.0, %v4350
  %4352 = vmatmul.f32.gmra.mxu0 %v4278
  %v4353 = vpop.f32.mrf.mxu0
  %v4354 = vadd.f32 0.0, %v4353
  %4355 = vmatmul.f32.gmra.mxu0 %v4279
  %v4356 = vpop.f32.mrf.mxu0
  %v4357 = vadd.f32 0.0, %v4356
  %4358 = vmatmul.f32.gmra.mxu0 %v4280
  %v4359 = vpop.f32.mrf.mxu0
  %v4360 = vadd.f32 0.0, %v4359
  %4361 = vdwg.mxu0
  %v4362 = vadd.f32 %v4218, %v4315
  %v4363 = vadd.f32 %v4221, %v4318
  %v4364 = vadd.f32 %v4224, %v4321
  %v4365 = vadd.f32 %v4227, %v4324
  %v4366 = vadd.f32 %v4230, %v4327
  %v4367 = vadd.f32 %v4233, %v4330
  %v4368 = vadd.f32 %v4236, %v4333
  %v4369 = vadd.f32 %v4239, %v4336
  %v4370 = vadd.f32 %v4242, %v4339
  %v4371 = vadd.f32 %v4245, %v4342
  %v4372 = vadd.f32 %v4248, %v4345
  %v4373 = vadd.f32 %v4251, %v4348
  %v4374 = vadd.f32 %v4254, %v4351
  %v4375 = vadd.f32 %v4257, %v4354
  %v4376 = vadd.f32 %v4260, %v4357
  %v4377 = vadd.f32 %v4263, %v4360
  %v4378 = vld [vmem:[#allocation2 + $0x192] sm:$0xff]
  %v4379 = vld [vmem:[#allocation2 + $0x19a] sm:$0xff]
  %v4380 = vld [vmem:[#allocation2 + $0x1a2] sm:$0xff]
  %v4381 = vld [vmem:[#allocation2 + $0x1aa] sm:$0xff]
  %v4382 = vld [vmem:[#allocation2 + $0x1b2] sm:$0xff]
  %v4383 = vld [vmem:[#allocation2 + $0x1ba] sm:$0xff]
  %v4384 = vld [vmem:[#allocation2 + $0x1c2] sm:$0xff]
  %v4385 = vld [vmem:[#allocation2 + $0x1ca] sm:$0xff]
  %v4386 = vld [vmem:[#allocation2 + $0x1d2] sm:$0xff]
  %v4387 = vld [vmem:[#allocation2 + $0x1da] sm:$0xff]
  %v4388 = vld [vmem:[#allocation2 + $0x1e2] sm:$0xff]
  %v4389 = vld [vmem:[#allocation2 + $0x1ea] sm:$0xff]
  %v4390 = vld [vmem:[#allocation2 + $0x1f2] sm:$0xff]
  %v4391 = vld [vmem:[#allocation2 + $0x1fa] sm:$0xff]
  %v4392 = vld [vmem:[#allocation2 + $0x202] sm:$0xff]
  %v4393 = vld [vmem:[#allocation2 + $0x20a] sm:$0xff]
  %v4394 = vld [vmem:[%s1190] sm:$0xff]
  %v4395 = vld [vmem:[%s1190 + $0x8] sm:$0xff]
  %v4396 = vld [vmem:[%s1190 + $0x10] sm:$0xff]
  %v4397 = vld [vmem:[%s1190 + $0x18] sm:$0xff]
  %v4398 = vld [vmem:[%s1190 + $0x20] sm:$0xff]
  %v4399 = vld [vmem:[%s1190 + $0x28] sm:$0xff]
  %v4400 = vld [vmem:[%s1190 + $0x30] sm:$0xff]
  %v4401 = vld [vmem:[%s1190 + $0x38] sm:$0xff]
  %v4402 = vld [vmem:[%s1190 + $0x40] sm:$0xff]
  %v4403 = vld [vmem:[%s1190 + $0x48] sm:$0xff]
  %v4404 = vld [vmem:[%s1190 + $0x50] sm:$0xff]
  %v4405 = vld [vmem:[%s1190 + $0x58] sm:$0xff]
  %v4406 = vld [vmem:[%s1190 + $0x60] sm:$0xff]
  %v4407 = vld [vmem:[%s1190 + $0x68] sm:$0xff]
  %v4408 = vld [vmem:[%s1190 + $0x70] sm:$0xff]
  %v4409 = vld [vmem:[%s1190 + $0x78] sm:$0xff]
  %4410 = vmatpush.msra.mxu0 %v4409
  %4411 = vmatpush.msra.mxu0 %v4408
  %4412 = vmatpush.msra.mxu0 %v4407
  %4413 = vmatpush.msra.mxu0 %v4406
  %4414 = vmatpush.msra.mxu0 %v4405
  %4415 = vmatpush.msra.mxu0 %v4404
  %4416 = vmatpush.msra.mxu0 %v4403
  %4417 = vmatpush.msra.mxu0 %v4402
  %4418 = vmatpush.msra.mxu0 %v4401
  %4419 = vmatpush.msra.mxu0 %v4400
  %4420 = vmatpush.msra.mxu0 %v4399
  %4421 = vmatpush.msra.mxu0 %v4398
  %4422 = vmatpush.msra.mxu0 %v4397
  %4423 = vmatpush.msra.mxu0 %v4396
  %4424 = vmatpush.msra.mxu0 %v4395
  %4425 = vmatpush.msra.mxu0 %v4394
  %4426 = vmatmul.f32.gmra.mxu0 %v4378
  %v4427 = vpop.f32.mrf.mxu0
  %v4428 = vadd.f32 0.0, %v4427
  %4429 = vmatmul.f32.gmra.mxu0 %v4379
  %v4430 = vpop.f32.mrf.mxu0
  %v4431 = vadd.f32 0.0, %v4430
  %4432 = vmatmul.f32.gmra.mxu0 %v4380
  %v4433 = vpop.f32.mrf.mxu0
  %v4434 = vadd.f32 0.0, %v4433
  %4435 = vmatmul.f32.gmra.mxu0 %v4381
  %v4436 = vpop.f32.mrf.mxu0
  %v4437 = vadd.f32 0.0, %v4436
  %4438 = vmatmul.f32.gmra.mxu0 %v4382
  %v4439 = vpop.f32.mrf.mxu0
  %v4440 = vadd.f32 0.0, %v4439
  %4441 = vmatmul.f32.gmra.mxu0 %v4383
  %v4442 = vpop.f32.mrf.mxu0
  %v4443 = vadd.f32 0.0, %v4442
  %4444 = vmatmul.f32.gmra.mxu0 %v4384
  %v4445 = vpop.f32.mrf.mxu0
  %v4446 = vadd.f32 0.0, %v4445
  %4447 = vmatmul.f32.gmra.mxu0 %v4385
  %v4448 = vpop.f32.mrf.mxu0
  %v4449 = vadd.f32 0.0, %v4448
  %4450 = vmatmul.f32.gmra.mxu0 %v4386
  %v4451 = vpop.f32.mrf.mxu0
  %v4452 = vadd.f32 0.0, %v4451
  %4453 = vmatmul.f32.gmra.mxu0 %v4387
  %v4454 = vpop.f32.mrf.mxu0
  %v4455 = vadd.f32 0.0, %v4454
  %4456 = vmatmul.f32.gmra.mxu0 %v4388
  %v4457 = vpop.f32.mrf.mxu0
  %v4458 = vadd.f32 0.0, %v4457
  %4459 = vmatmul.f32.gmra.mxu0 %v4389
  %v4460 = vpop.f32.mrf.mxu0
  %v4461 = vadd.f32 0.0, %v4460
  %4462 = vmatmul.f32.gmra.mxu0 %v4390
  %v4463 = vpop.f32.mrf.mxu0
  %v4464 = vadd.f32 0.0, %v4463
  %4465 = vmatmul.f32.gmra.mxu0 %v4391
  %v4466 = vpop.f32.mrf.mxu0
  %v4467 = vadd.f32 0.0, %v4466
  %4468 = vmatmul.f32.gmra.mxu0 %v4392
  %v4469 = vpop.f32.mrf.mxu0
  %v4470 = vadd.f32 0.0, %v4469
  %4471 = vmatmul.f32.gmra.mxu0 %v4393
  %v4472 = vpop.f32.mrf.mxu0
  %v4473 = vadd.f32 0.0, %v4472
  %4474 = vdwg.mxu0
  %v4475 = vadd.f32 %v4362, %v4428
  %v4476 = vadd.f32 %v4363, %v4431
  %v4477 = vadd.f32 %v4364, %v4434
  %v4478 = vadd.f32 %v4365, %v4437
  %v4479 = vadd.f32 %v4366, %v4440
  %v4480 = vadd.f32 %v4367, %v4443
  %v4481 = vadd.f32 %v4368, %v4446
  %v4482 = vadd.f32 %v4369, %v4449
  %v4483 = vadd.f32 %v4370, %v4452
  %v4484 = vadd.f32 %v4371, %v4455
  %v4485 = vadd.f32 %v4372, %v4458
  %v4486 = vadd.f32 %v4373, %v4461
  %v4487 = vadd.f32 %v4374, %v4464
  %v4488 = vadd.f32 %v4375, %v4467
  %v4489 = vadd.f32 %v4376, %v4470
  %v4490 = vadd.f32 %v4377, %v4473
  %v4491 = vld [vmem:[#allocation2 + $0x193] sm:$0xff]
  %v4492 = vld [vmem:[#allocation2 + $0x19b] sm:$0xff]
  %v4493 = vld [vmem:[#allocation2 + $0x1a3] sm:$0xff]
  %v4494 = vld [vmem:[#allocation2 + $0x1ab] sm:$0xff]
  %v4495 = vld [vmem:[#allocation2 + $0x1b3] sm:$0xff]
  %v4496 = vld [vmem:[#allocation2 + $0x1bb] sm:$0xff]
  %v4497 = vld [vmem:[#allocation2 + $0x1c3] sm:$0xff]
  %v4498 = vld [vmem:[#allocation2 + $0x1cb] sm:$0xff]
  %v4499 = vld [vmem:[#allocation2 + $0x1d3] sm:$0xff]
  %v4500 = vld [vmem:[#allocation2 + $0x1db] sm:$0xff]
  %v4501 = vld [vmem:[#allocation2 + $0x1e3] sm:$0xff]
  %v4502 = vld [vmem:[#allocation2 + $0x1eb] sm:$0xff]
  %v4503 = vld [vmem:[#allocation2 + $0x1f3] sm:$0xff]
  %v4504 = vld [vmem:[#allocation2 + $0x1fb] sm:$0xff]
  %v4505 = vld [vmem:[#allocation2 + $0x203] sm:$0xff]
  %v4506 = vld [vmem:[#allocation2 + $0x20b] sm:$0xff]
  %v4507 = vld [vmem:[%s1304] sm:$0xff]
  %v4508 = vld [vmem:[%s1304 + $0x8] sm:$0xff]
  %v4509 = vld [vmem:[%s1304 + $0x10] sm:$0xff]
  %v4510 = vld [vmem:[%s1304 + $0x18] sm:$0xff]
  %v4511 = vld [vmem:[%s1304 + $0x20] sm:$0xff]
  %v4512 = vld [vmem:[%s1304 + $0x28] sm:$0xff]
  %v4513 = vld [vmem:[%s1304 + $0x30] sm:$0xff]
  %v4514 = vld [vmem:[%s1304 + $0x38] sm:$0xff]
  %v4515 = vld [vmem:[%s1304 + $0x40] sm:$0xff]
  %v4516 = vld [vmem:[%s1304 + $0x48] sm:$0xff]
  %v4517 = vld [vmem:[%s1304 + $0x50] sm:$0xff]
  %v4518 = vld [vmem:[%s1304 + $0x58] sm:$0xff]
  %v4519 = vld [vmem:[%s1304 + $0x60] sm:$0xff]
  %v4520 = vld [vmem:[%s1304 + $0x68] sm:$0xff]
  %v4521 = vld [vmem:[%s1304 + $0x70] sm:$0xff]
  %v4522 = vld [vmem:[%s1304 + $0x78] sm:$0xff]
  %4523 = vmatpush.msra.mxu0 %v4522
  %4524 = vmatpush.msra.mxu0 %v4521
  %4525 = vmatpush.msra.mxu0 %v4520
  %4526 = vmatpush.msra.mxu0 %v4519
  %4527 = vmatpush.msra.mxu0 %v4518
  %4528 = vmatpush.msra.mxu0 %v4517
  %4529 = vmatpush.msra.mxu0 %v4516
  %4530 = vmatpush.msra.mxu0 %v4515
  %4531 = vmatpush.msra.mxu0 %v4514
  %4532 = vmatpush.msra.mxu0 %v4513
  %4533 = vmatpush.msra.mxu0 %v4512
  %4534 = vmatpush.msra.mxu0 %v4511
  %4535 = vmatpush.msra.mxu0 %v4510
  %4536 = vmatpush.msra.mxu0 %v4509
  %4537 = vmatpush.msra.mxu0 %v4508
  %4538 = vmatpush.msra.mxu0 %v4507
  %4539 = vmatmul.f32.gmra.mxu0 %v4491
  %v4540 = vpop.f32.mrf.mxu0
  %v4541 = vadd.f32 0.0, %v4540
  %4542 = vmatmul.f32.gmra.mxu0 %v4492
  %v4543 = vpop.f32.mrf.mxu0
  %v4544 = vadd.f32 0.0, %v4543
  %4545 = vmatmul.f32.gmra.mxu0 %v4493
  %v4546 = vpop.f32.mrf.mxu0
  %v4547 = vadd.f32 0.0, %v4546
  %4548 = vmatmul.f32.gmra.mxu0 %v4494
  %v4549 = vpop.f32.mrf.mxu0
  %v4550 = vadd.f32 0.0, %v4549
  %4551 = vmatmul.f32.gmra.mxu0 %v4495
  %v4552 = vpop.f32.mrf.mxu0
  %v4553 = vadd.f32 0.0, %v4552
  %4554 = vmatmul.f32.gmra.mxu0 %v4496
  %v4555 = vpop.f32.mrf.mxu0
  %v4556 = vadd.f32 0.0, %v4555
  %4557 = vmatmul.f32.gmra.mxu0 %v4497
  %v4558 = vpop.f32.mrf.mxu0
  %v4559 = vadd.f32 0.0, %v4558
  %4560 = vmatmul.f32.gmra.mxu0 %v4498
  %v4561 = vpop.f32.mrf.mxu0
  %v4562 = vadd.f32 0.0, %v4561
  %4563 = vmatmul.f32.gmra.mxu0 %v4499
  %v4564 = vpop.f32.mrf.mxu0
  %v4565 = vadd.f32 0.0, %v4564
  %4566 = vmatmul.f32.gmra.mxu0 %v4500
  %v4567 = vpop.f32.mrf.mxu0
  %v4568 = vadd.f32 0.0, %v4567
  %4569 = vmatmul.f32.gmra.mxu0 %v4501
  %v4570 = vpop.f32.mrf.mxu0
  %v4571 = vadd.f32 0.0, %v4570
  %4572 = vmatmul.f32.gmra.mxu0 %v4502
  %v4573 = vpop.f32.mrf.mxu0
  %v4574 = vadd.f32 0.0, %v4573
  %4575 = vmatmul.f32.gmra.mxu0 %v4503
  %v4576 = vpop.f32.mrf.mxu0
  %v4577 = vadd.f32 0.0, %v4576
  %4578 = vmatmul.f32.gmra.mxu0 %v4504
  %v4579 = vpop.f32.mrf.mxu0
  %v4580 = vadd.f32 0.0, %v4579
  %4581 = vmatmul.f32.gmra.mxu0 %v4505
  %v4582 = vpop.f32.mrf.mxu0
  %v4583 = vadd.f32 0.0, %v4582
  %4584 = vmatmul.f32.gmra.mxu0 %v4506
  %v4585 = vpop.f32.mrf.mxu0
  %v4586 = vadd.f32 0.0, %v4585
  %4587 = vdwg.mxu0
  %v4588 = vadd.f32 %v4475, %v4541
  %v4589 = vadd.f32 %v4476, %v4544
  %v4590 = vadd.f32 %v4477, %v4547
  %v4591 = vadd.f32 %v4478, %v4550
  %v4592 = vadd.f32 %v4479, %v4553
  %v4593 = vadd.f32 %v4480, %v4556
  %v4594 = vadd.f32 %v4481, %v4559
  %v4595 = vadd.f32 %v4482, %v4562
  %v4596 = vadd.f32 %v4483, %v4565
  %v4597 = vadd.f32 %v4484, %v4568
  %v4598 = vadd.f32 %v4485, %v4571
  %v4599 = vadd.f32 %v4486, %v4574
  %v4600 = vadd.f32 %v4487, %v4577
  %v4601 = vadd.f32 %v4488, %v4580
  %v4602 = vadd.f32 %v4489, %v4583
  %v4603 = vadd.f32 %v4490, %v4586
  %v4604 = vld [vmem:[#allocation2 + $0x194] sm:$0xff]
  %v4605 = vld [vmem:[#allocation2 + $0x19c] sm:$0xff]
  %v4606 = vld [vmem:[#allocation2 + $0x1a4] sm:$0xff]
  %v4607 = vld [vmem:[#allocation2 + $0x1ac] sm:$0xff]
  %v4608 = vld [vmem:[#allocation2 + $0x1b4] sm:$0xff]
  %v4609 = vld [vmem:[#allocation2 + $0x1bc] sm:$0xff]
  %v4610 = vld [vmem:[#allocation2 + $0x1c4] sm:$0xff]
  %v4611 = vld [vmem:[#allocation2 + $0x1cc] sm:$0xff]
  %v4612 = vld [vmem:[#allocation2 + $0x1d4] sm:$0xff]
  %v4613 = vld [vmem:[#allocation2 + $0x1dc] sm:$0xff]
  %v4614 = vld [vmem:[#allocation2 + $0x1e4] sm:$0xff]
  %v4615 = vld [vmem:[#allocation2 + $0x1ec] sm:$0xff]
  %v4616 = vld [vmem:[#allocation2 + $0x1f4] sm:$0xff]
  %v4617 = vld [vmem:[#allocation2 + $0x1fc] sm:$0xff]
  %v4618 = vld [vmem:[#allocation2 + $0x204] sm:$0xff]
  %v4619 = vld [vmem:[#allocation2 + $0x20c] sm:$0xff]
  %v4620 = vld [vmem:[%s1418] sm:$0xff]
  %v4621 = vld [vmem:[%s1418 + $0x8] sm:$0xff]
  %v4622 = vld [vmem:[%s1418 + $0x10] sm:$0xff]
  %v4623 = vld [vmem:[%s1418 + $0x18] sm:$0xff]
  %v4624 = vld [vmem:[%s1418 + $0x20] sm:$0xff]
  %v4625 = vld [vmem:[%s1418 + $0x28] sm:$0xff]
  %v4626 = vld [vmem:[%s1418 + $0x30] sm:$0xff]
  %v4627 = vld [vmem:[%s1418 + $0x38] sm:$0xff]
  %v4628 = vld [vmem:[%s1418 + $0x40] sm:$0xff]
  %v4629 = vld [vmem:[%s1418 + $0x48] sm:$0xff]
  %v4630 = vld [vmem:[%s1418 + $0x50] sm:$0xff]
  %v4631 = vld [vmem:[%s1418 + $0x58] sm:$0xff]
  %v4632 = vld [vmem:[%s1418 + $0x60] sm:$0xff]
  %v4633 = vld [vmem:[%s1418 + $0x68] sm:$0xff]
  %v4634 = vld [vmem:[%s1418 + $0x70] sm:$0xff]
  %v4635 = vld [vmem:[%s1418 + $0x78] sm:$0xff]
  %4636 = vmatpush.msra.mxu0 %v4635
  %4637 = vmatpush.msra.mxu0 %v4634
  %4638 = vmatpush.msra.mxu0 %v4633
  %4639 = vmatpush.msra.mxu0 %v4632
  %4640 = vmatpush.msra.mxu0 %v4631
  %4641 = vmatpush.msra.mxu0 %v4630
  %4642 = vmatpush.msra.mxu0 %v4629
  %4643 = vmatpush.msra.mxu0 %v4628
  %4644 = vmatpush.msra.mxu0 %v4627
  %4645 = vmatpush.msra.mxu0 %v4626
  %4646 = vmatpush.msra.mxu0 %v4625
  %4647 = vmatpush.msra.mxu0 %v4624
  %4648 = vmatpush.msra.mxu0 %v4623
  %4649 = vmatpush.msra.mxu0 %v4622
  %4650 = vmatpush.msra.mxu0 %v4621
  %4651 = vmatpush.msra.mxu0 %v4620
  %4652 = vmatmul.f32.gmra.mxu0 %v4604
  %v4653 = vpop.f32.mrf.mxu0
  %v4654 = vadd.f32 0.0, %v4653
  %4655 = vmatmul.f32.gmra.mxu0 %v4605
  %v4656 = vpop.f32.mrf.mxu0
  %v4657 = vadd.f32 0.0, %v4656
  %4658 = vmatmul.f32.gmra.mxu0 %v4606
  %v4659 = vpop.f32.mrf.mxu0
  %v4660 = vadd.f32 0.0, %v4659
  %4661 = vmatmul.f32.gmra.mxu0 %v4607
  %v4662 = vpop.f32.mrf.mxu0
  %v4663 = vadd.f32 0.0, %v4662
  %4664 = vmatmul.f32.gmra.mxu0 %v4608
  %v4665 = vpop.f32.mrf.mxu0
  %v4666 = vadd.f32 0.0, %v4665
  %4667 = vmatmul.f32.gmra.mxu0 %v4609
  %v4668 = vpop.f32.mrf.mxu0
  %v4669 = vadd.f32 0.0, %v4668
  %4670 = vmatmul.f32.gmra.mxu0 %v4610
  %v4671 = vpop.f32.mrf.mxu0
  %v4672 = vadd.f32 0.0, %v4671
  %4673 = vmatmul.f32.gmra.mxu0 %v4611
  %v4674 = vpop.f32.mrf.mxu0
  %v4675 = vadd.f32 0.0, %v4674
  %4676 = vmatmul.f32.gmra.mxu0 %v4612
  %v4677 = vpop.f32.mrf.mxu0
  %v4678 = vadd.f32 0.0, %v4677
  %4679 = vmatmul.f32.gmra.mxu0 %v4613
  %v4680 = vpop.f32.mrf.mxu0
  %v4681 = vadd.f32 0.0, %v4680
  %4682 = vmatmul.f32.gmra.mxu0 %v4614
  %v4683 = vpop.f32.mrf.mxu0
  %v4684 = vadd.f32 0.0, %v4683
  %4685 = vmatmul.f32.gmra.mxu0 %v4615
  %v4686 = vpop.f32.mrf.mxu0
  %v4687 = vadd.f32 0.0, %v4686
  %4688 = vmatmul.f32.gmra.mxu0 %v4616
  %v4689 = vpop.f32.mrf.mxu0
  %v4690 = vadd.f32 0.0, %v4689
  %4691 = vmatmul.f32.gmra.mxu0 %v4617
  %v4692 = vpop.f32.mrf.mxu0
  %v4693 = vadd.f32 0.0, %v4692
  %4694 = vmatmul.f32.gmra.mxu0 %v4618
  %v4695 = vpop.f32.mrf.mxu0
  %v4696 = vadd.f32 0.0, %v4695
  %4697 = vmatmul.f32.gmra.mxu0 %v4619
  %v4698 = vpop.f32.mrf.mxu0
  %v4699 = vadd.f32 0.0, %v4698
  %4700 = vdwg.mxu0
  %v4701 = vadd.f32 %v4588, %v4654
  %v4702 = vadd.f32 %v4589, %v4657
  %v4703 = vadd.f32 %v4590, %v4660
  %v4704 = vadd.f32 %v4591, %v4663
  %v4705 = vadd.f32 %v4592, %v4666
  %v4706 = vadd.f32 %v4593, %v4669
  %v4707 = vadd.f32 %v4594, %v4672
  %v4708 = vadd.f32 %v4595, %v4675
  %v4709 = vadd.f32 %v4596, %v4678
  %v4710 = vadd.f32 %v4597, %v4681
  %v4711 = vadd.f32 %v4598, %v4684
  %v4712 = vadd.f32 %v4599, %v4687
  %v4713 = vadd.f32 %v4600, %v4690
  %v4714 = vadd.f32 %v4601, %v4693
  %v4715 = vadd.f32 %v4602, %v4696
  %v4716 = vadd.f32 %v4603, %v4699
  %v4717 = vld [vmem:[#allocation2 + $0x1a4] sm:$0xff]
  %v4718 = vld [vmem:[#allocation2 + $0x1ac] sm:$0xff]
  %v4719 = vld [vmem:[#allocation2 + $0x1b4] sm:$0xff]
  %v4720 = vld [vmem:[#allocation2 + $0x1bc] sm:$0xff]
  %v4721 = vld [vmem:[#allocation2 + $0x1c4] sm:$0xff]
  %v4722 = vld [vmem:[#allocation2 + $0x1cc] sm:$0xff]
  %v4723 = vld [vmem:[#allocation2 + $0x1d4] sm:$0xff]
  %v4724 = vld [vmem:[#allocation2 + $0x1dc] sm:$0xff]
  %v4725 = vld [vmem:[#allocation2 + $0x1e4] sm:$0xff]
  %v4726 = vld [vmem:[#allocation2 + $0x1ec] sm:$0xff]
  %v4727 = vld [vmem:[#allocation2 + $0x1f4] sm:$0xff]
  %v4728 = vld [vmem:[#allocation2 + $0x1fc] sm:$0xff]
  %v4729 = vld [vmem:[#allocation2 + $0x204] sm:$0xff]
  %v4730 = vld [vmem:[#allocation2 + $0x20c] sm:$0xff]
  %v4731 = vld [vmem:[#allocation2 + $0x214] sm:$0xff]
  %v4732 = vld [vmem:[#allocation2 + $0x21c] sm:$0xff]
  %v4733 = vld [vmem:[%s1532] sm:$0xff]
  %v4734 = vld [vmem:[%s1532 + $0x8] sm:$0xff]
  %v4735 = vld [vmem:[%s1532 + $0x10] sm:$0xff]
  %v4736 = vld [vmem:[%s1532 + $0x18] sm:$0xff]
  %v4737 = vld [vmem:[%s1532 + $0x20] sm:$0xff]
  %v4738 = vld [vmem:[%s1532 + $0x28] sm:$0xff]
  %v4739 = vld [vmem:[%s1532 + $0x30] sm:$0xff]
  %v4740 = vld [vmem:[%s1532 + $0x38] sm:$0xff]
  %v4741 = vld [vmem:[%s1532 + $0x40] sm:$0xff]
  %v4742 = vld [vmem:[%s1532 + $0x48] sm:$0xff]
  %v4743 = vld [vmem:[%s1532 + $0x50] sm:$0xff]
  %v4744 = vld [vmem:[%s1532 + $0x58] sm:$0xff]
  %v4745 = vld [vmem:[%s1532 + $0x60] sm:$0xff]
  %v4746 = vld [vmem:[%s1532 + $0x68] sm:$0xff]
  %v4747 = vld [vmem:[%s1532 + $0x70] sm:$0xff]
  %v4748 = vld [vmem:[%s1532 + $0x78] sm:$0xff]
  %4749 = vmatpush.msra.mxu0 %v4748
  %4750 = vmatpush.msra.mxu0 %v4747
  %4751 = vmatpush.msra.mxu0 %v4746
  %4752 = vmatpush.msra.mxu0 %v4745
  %4753 = vmatpush.msra.mxu0 %v4744
  %4754 = vmatpush.msra.mxu0 %v4743
  %4755 = vmatpush.msra.mxu0 %v4742
  %4756 = vmatpush.msra.mxu0 %v4741
  %4757 = vmatpush.msra.mxu0 %v4740
  %4758 = vmatpush.msra.mxu0 %v4739
  %4759 = vmatpush.msra.mxu0 %v4738
  %4760 = vmatpush.msra.mxu0 %v4737
  %4761 = vmatpush.msra.mxu0 %v4736
  %4762 = vmatpush.msra.mxu0 %v4735
  %4763 = vmatpush.msra.mxu0 %v4734
  %4764 = vmatpush.msra.mxu0 %v4733
  %4765 = vmatmul.f32.gmra.mxu0 %v4717
  %v4766 = vpop.f32.mrf.mxu0
  %v4767 = vadd.f32 0.0, %v4766
  %4768 = vmatmul.f32.gmra.mxu0 %v4718
  %v4769 = vpop.f32.mrf.mxu0
  %v4770 = vadd.f32 0.0, %v4769
  %4771 = vmatmul.f32.gmra.mxu0 %v4719
  %v4772 = vpop.f32.mrf.mxu0
  %v4773 = vadd.f32 0.0, %v4772
  %4774 = vmatmul.f32.gmra.mxu0 %v4720
  %v4775 = vpop.f32.mrf.mxu0
  %v4776 = vadd.f32 0.0, %v4775
  %4777 = vmatmul.f32.gmra.mxu0 %v4721
  %v4778 = vpop.f32.mrf.mxu0
  %v4779 = vadd.f32 0.0, %v4778
  %4780 = vmatmul.f32.gmra.mxu0 %v4722
  %v4781 = vpop.f32.mrf.mxu0
  %v4782 = vadd.f32 0.0, %v4781
  %4783 = vmatmul.f32.gmra.mxu0 %v4723
  %v4784 = vpop.f32.mrf.mxu0
  %v4785 = vadd.f32 0.0, %v4784
  %4786 = vmatmul.f32.gmra.mxu0 %v4724
  %v4787 = vpop.f32.mrf.mxu0
  %v4788 = vadd.f32 0.0, %v4787
  %4789 = vmatmul.f32.gmra.mxu0 %v4725
  %v4790 = vpop.f32.mrf.mxu0
  %v4791 = vadd.f32 0.0, %v4790
  %4792 = vmatmul.f32.gmra.mxu0 %v4726
  %v4793 = vpop.f32.mrf.mxu0
  %v4794 = vadd.f32 0.0, %v4793
  %4795 = vmatmul.f32.gmra.mxu0 %v4727
  %v4796 = vpop.f32.mrf.mxu0
  %v4797 = vadd.f32 0.0, %v4796
  %4798 = vmatmul.f32.gmra.mxu0 %v4728
  %v4799 = vpop.f32.mrf.mxu0
  %v4800 = vadd.f32 0.0, %v4799
  %4801 = vmatmul.f32.gmra.mxu0 %v4729
  %v4802 = vpop.f32.mrf.mxu0
  %v4803 = vadd.f32 0.0, %v4802
  %4804 = vmatmul.f32.gmra.mxu0 %v4730
  %v4805 = vpop.f32.mrf.mxu0
  %v4806 = vadd.f32 0.0, %v4805
  %4807 = vmatmul.f32.gmra.mxu0 %v4731
  %v4808 = vpop.f32.mrf.mxu0
  %v4809 = vadd.f32 0.0, %v4808
  %4810 = vmatmul.f32.gmra.mxu0 %v4732
  %v4811 = vpop.f32.mrf.mxu0
  %v4812 = vadd.f32 0.0, %v4811
  %4813 = vdwg.mxu0
  %v4814 = vadd.f32 %v4701, %v4767
  %v4815 = vadd.f32 %v4702, %v4770
  %v4816 = vadd.f32 %v4703, %v4773
  %v4817 = vadd.f32 %v4704, %v4776
  %v4818 = vadd.f32 %v4705, %v4779
  %v4819 = vadd.f32 %v4706, %v4782
  %v4820 = vadd.f32 %v4707, %v4785
  %v4821 = vadd.f32 %v4708, %v4788
  %v4822 = vadd.f32 %v4709, %v4791
  %v4823 = vadd.f32 %v4710, %v4794
  %v4824 = vadd.f32 %v4711, %v4797
  %v4825 = vadd.f32 %v4712, %v4800
  %v4826 = vadd.f32 %v4713, %v4803
  %v4827 = vadd.f32 %v4714, %v4806
  %v4828 = vadd.f32 %v4715, %v4809
  %v4829 = vadd.f32 %v4716, %v4812
  %v4830 = vld [vmem:[#allocation2 + $0x1a5] sm:$0xff]
  %v4831 = vld [vmem:[#allocation2 + $0x1ad] sm:$0xff]
  %v4832 = vld [vmem:[#allocation2 + $0x1b5] sm:$0xff]
  %v4833 = vld [vmem:[#allocation2 + $0x1bd] sm:$0xff]
  %v4834 = vld [vmem:[#allocation2 + $0x1c5] sm:$0xff]
  %v4835 = vld [vmem:[#allocation2 + $0x1cd] sm:$0xff]
  %v4836 = vld [vmem:[#allocation2 + $0x1d5] sm:$0xff]
  %v4837 = vld [vmem:[#allocation2 + $0x1dd] sm:$0xff]
  %v4838 = vld [vmem:[#allocation2 + $0x1e5] sm:$0xff]
  %v4839 = vld [vmem:[#allocation2 + $0x1ed] sm:$0xff]
  %v4840 = vld [vmem:[#allocation2 + $0x1f5] sm:$0xff]
  %v4841 = vld [vmem:[#allocation2 + $0x1fd] sm:$0xff]
  %v4842 = vld [vmem:[#allocation2 + $0x205] sm:$0xff]
  %v4843 = vld [vmem:[#allocation2 + $0x20d] sm:$0xff]
  %v4844 = vld [vmem:[#allocation2 + $0x215] sm:$0xff]
  %v4845 = vld [vmem:[#allocation2 + $0x21d] sm:$0xff]
  %v4846 = vld [vmem:[%s1646] sm:$0xff]
  %v4847 = vld [vmem:[%s1646 + $0x8] sm:$0xff]
  %v4848 = vld [vmem:[%s1646 + $0x10] sm:$0xff]
  %v4849 = vld [vmem:[%s1646 + $0x18] sm:$0xff]
  %v4850 = vld [vmem:[%s1646 + $0x20] sm:$0xff]
  %v4851 = vld [vmem:[%s1646 + $0x28] sm:$0xff]
  %v4852 = vld [vmem:[%s1646 + $0x30] sm:$0xff]
  %v4853 = vld [vmem:[%s1646 + $0x38] sm:$0xff]
  %v4854 = vld [vmem:[%s1646 + $0x40] sm:$0xff]
  %v4855 = vld [vmem:[%s1646 + $0x48] sm:$0xff]
  %v4856 = vld [vmem:[%s1646 + $0x50] sm:$0xff]
  %v4857 = vld [vmem:[%s1646 + $0x58] sm:$0xff]
  %v4858 = vld [vmem:[%s1646 + $0x60] sm:$0xff]
  %v4859 = vld [vmem:[%s1646 + $0x68] sm:$0xff]
  %v4860 = vld [vmem:[%s1646 + $0x70] sm:$0xff]
  %v4861 = vld [vmem:[%s1646 + $0x78] sm:$0xff]
  %4862 = vmatpush.msra.mxu0 %v4861
  %4863 = vmatpush.msra.mxu0 %v4860
  %4864 = vmatpush.msra.mxu0 %v4859
  %4865 = vmatpush.msra.mxu0 %v4858
  %4866 = vmatpush.msra.mxu0 %v4857
  %4867 = vmatpush.msra.mxu0 %v4856
  %4868 = vmatpush.msra.mxu0 %v4855
  %4869 = vmatpush.msra.mxu0 %v4854
  %4870 = vmatpush.msra.mxu0 %v4853
  %4871 = vmatpush.msra.mxu0 %v4852
  %4872 = vmatpush.msra.mxu0 %v4851
  %4873 = vmatpush.msra.mxu0 %v4850
  %4874 = vmatpush.msra.mxu0 %v4849
  %4875 = vmatpush.msra.mxu0 %v4848
  %4876 = vmatpush.msra.mxu0 %v4847
  %4877 = vmatpush.msra.mxu0 %v4846
  %4878 = vmatmul.f32.gmra.mxu0 %v4830
  %v4879 = vpop.f32.mrf.mxu0
  %v4880 = vadd.f32 0.0, %v4879
  %4881 = vmatmul.f32.gmra.mxu0 %v4831
  %v4882 = vpop.f32.mrf.mxu0
  %v4883 = vadd.f32 0.0, %v4882
  %4884 = vmatmul.f32.gmra.mxu0 %v4832
  %v4885 = vpop.f32.mrf.mxu0
  %v4886 = vadd.f32 0.0, %v4885
  %4887 = vmatmul.f32.gmra.mxu0 %v4833
  %v4888 = vpop.f32.mrf.mxu0
  %v4889 = vadd.f32 0.0, %v4888
  %4890 = vmatmul.f32.gmra.mxu0 %v4834
  %v4891 = vpop.f32.mrf.mxu0
  %v4892 = vadd.f32 0.0, %v4891
  %4893 = vmatmul.f32.gmra.mxu0 %v4835
  %v4894 = vpop.f32.mrf.mxu0
  %v4895 = vadd.f32 0.0, %v4894
  %4896 = vmatmul.f32.gmra.mxu0 %v4836
  %v4897 = vpop.f32.mrf.mxu0
  %v4898 = vadd.f32 0.0, %v4897
  %4899 = vmatmul.f32.gmra.mxu0 %v4837
  %v4900 = vpop.f32.mrf.mxu0
  %v4901 = vadd.f32 0.0, %v4900
  %4902 = vmatmul.f32.gmra.mxu0 %v4838
  %v4903 = vpop.f32.mrf.mxu0
  %v4904 = vadd.f32 0.0, %v4903
  %4905 = vmatmul.f32.gmra.mxu0 %v4839
  %v4906 = vpop.f32.mrf.mxu0
  %v4907 = vadd.f32 0.0, %v4906
  %4908 = vmatmul.f32.gmra.mxu0 %v4840
  %v4909 = vpop.f32.mrf.mxu0
  %v4910 = vadd.f32 0.0, %v4909
  %4911 = vmatmul.f32.gmra.mxu0 %v4841
  %v4912 = vpop.f32.mrf.mxu0
  %v4913 = vadd.f32 0.0, %v4912
  %4914 = vmatmul.f32.gmra.mxu0 %v4842
  %v4915 = vpop.f32.mrf.mxu0
  %v4916 = vadd.f32 0.0, %v4915
  %4917 = vmatmul.f32.gmra.mxu0 %v4843
  %v4918 = vpop.f32.mrf.mxu0
  %v4919 = vadd.f32 0.0, %v4918
  %4920 = vmatmul.f32.gmra.mxu0 %v4844
  %v4921 = vpop.f32.mrf.mxu0
  %v4922 = vadd.f32 0.0, %v4921
  %4923 = vmatmul.f32.gmra.mxu0 %v4845
  %v4924 = vpop.f32.mrf.mxu0
  %v4925 = vadd.f32 0.0, %v4924
  %4926 = vdwg.mxu0
  %v4927 = vadd.f32 %v4814, %v4880
  %v4928 = vadd.f32 %v4815, %v4883
  %v4929 = vadd.f32 %v4816, %v4886
  %v4930 = vadd.f32 %v4817, %v4889
  %v4931 = vadd.f32 %v4818, %v4892
  %v4932 = vadd.f32 %v4819, %v4895
  %v4933 = vadd.f32 %v4820, %v4898
  %v4934 = vadd.f32 %v4821, %v4901
  %v4935 = vadd.f32 %v4822, %v4904
  %v4936 = vadd.f32 %v4823, %v4907
  %v4937 = vadd.f32 %v4824, %v4910
  %v4938 = vadd.f32 %v4825, %v4913
  %v4939 = vadd.f32 %v4826, %v4916
  %v4940 = vadd.f32 %v4827, %v4919
  %v4941 = vadd.f32 %v4828, %v4922
  %v4942 = vadd.f32 %v4829, %v4925
  %v4943 = vld [vmem:[#allocation2 + $0x1a6] sm:$0xff]
  %v4944 = vld [vmem:[#allocation2 + $0x1ae] sm:$0xff]
  %v4945 = vld [vmem:[#allocation2 + $0x1b6] sm:$0xff]
  %v4946 = vld [vmem:[#allocation2 + $0x1be] sm:$0xff]
  %v4947 = vld [vmem:[#allocation2 + $0x1c6] sm:$0xff]
  %v4948 = vld [vmem:[#allocation2 + $0x1ce] sm:$0xff]
  %v4949 = vld [vmem:[#allocation2 + $0x1d6] sm:$0xff]
  %v4950 = vld [vmem:[#allocation2 + $0x1de] sm:$0xff]
  %v4951 = vld [vmem:[#allocation2 + $0x1e6] sm:$0xff]
  %v4952 = vld [vmem:[#allocation2 + $0x1ee] sm:$0xff]
  %v4953 = vld [vmem:[#allocation2 + $0x1f6] sm:$0xff]
  %v4954 = vld [vmem:[#allocation2 + $0x1fe] sm:$0xff]
  %v4955 = vld [vmem:[#allocation2 + $0x206] sm:$0xff]
  %v4956 = vld [vmem:[#allocation2 + $0x20e] sm:$0xff]
  %v4957 = vld [vmem:[#allocation2 + $0x216] sm:$0xff]
  %v4958 = vld [vmem:[#allocation2 + $0x21e] sm:$0xff]
  %v4959 = vld [vmem:[%s1760] sm:$0xff]
  %v4960 = vld [vmem:[%s1760 + $0x8] sm:$0xff]
  %v4961 = vld [vmem:[%s1760 + $0x10] sm:$0xff]
  %v4962 = vld [vmem:[%s1760 + $0x18] sm:$0xff]
  %v4963 = vld [vmem:[%s1760 + $0x20] sm:$0xff]
  %v4964 = vld [vmem:[%s1760 + $0x28] sm:$0xff]
  %v4965 = vld [vmem:[%s1760 + $0x30] sm:$0xff]
  %v4966 = vld [vmem:[%s1760 + $0x38] sm:$0xff]
  %v4967 = vld [vmem:[%s1760 + $0x40] sm:$0xff]
  %v4968 = vld [vmem:[%s1760 + $0x48] sm:$0xff]
  %v4969 = vld [vmem:[%s1760 + $0x50] sm:$0xff]
  %v4970 = vld [vmem:[%s1760 + $0x58] sm:$0xff]
  %v4971 = vld [vmem:[%s1760 + $0x60] sm:$0xff]
  %v4972 = vld [vmem:[%s1760 + $0x68] sm:$0xff]
  %v4973 = vld [vmem:[%s1760 + $0x70] sm:$0xff]
  %v4974 = vld [vmem:[%s1760 + $0x78] sm:$0xff]
  %4975 = vmatpush.msra.mxu0 %v4974
  %4976 = vmatpush.msra.mxu0 %v4973
  %4977 = vmatpush.msra.mxu0 %v4972
  %4978 = vmatpush.msra.mxu0 %v4971
  %4979 = vmatpush.msra.mxu0 %v4970
  %4980 = vmatpush.msra.mxu0 %v4969
  %4981 = vmatpush.msra.mxu0 %v4968
  %4982 = vmatpush.msra.mxu0 %v4967
  %4983 = vmatpush.msra.mxu0 %v4966
  %4984 = vmatpush.msra.mxu0 %v4965
  %4985 = vmatpush.msra.mxu0 %v4964
  %4986 = vmatpush.msra.mxu0 %v4963
  %4987 = vmatpush.msra.mxu0 %v4962
  %4988 = vmatpush.msra.mxu0 %v4961
  %4989 = vmatpush.msra.mxu0 %v4960
  %4990 = vmatpush.msra.mxu0 %v4959
  %4991 = vmatmul.f32.gmra.mxu0 %v4943
  %v4992 = vpop.f32.mrf.mxu0
  %v4993 = vadd.f32 0.0, %v4992
  %4994 = vmatmul.f32.gmra.mxu0 %v4944
  %v4995 = vpop.f32.mrf.mxu0
  %v4996 = vadd.f32 0.0, %v4995
  %4997 = vmatmul.f32.gmra.mxu0 %v4945
  %v4998 = vpop.f32.mrf.mxu0
  %v4999 = vadd.f32 0.0, %v4998
  %5000 = vmatmul.f32.gmra.mxu0 %v4946
  %v5001 = vpop.f32.mrf.mxu0
  %v5002 = vadd.f32 0.0, %v5001
  %5003 = vmatmul.f32.gmra.mxu0 %v4947
  %v5004 = vpop.f32.mrf.mxu0
  %v5005 = vadd.f32 0.0, %v5004
  %5006 = vmatmul.f32.gmra.mxu0 %v4948
  %v5007 = vpop.f32.mrf.mxu0
  %v5008 = vadd.f32 0.0, %v5007
  %5009 = vmatmul.f32.gmra.mxu0 %v4949
  %v5010 = vpop.f32.mrf.mxu0
  %v5011 = vadd.f32 0.0, %v5010
  %5012 = vmatmul.f32.gmra.mxu0 %v4950
  %v5013 = vpop.f32.mrf.mxu0
  %v5014 = vadd.f32 0.0, %v5013
  %5015 = vmatmul.f32.gmra.mxu0 %v4951
  %v5016 = vpop.f32.mrf.mxu0
  %v5017 = vadd.f32 0.0, %v5016
  %5018 = vmatmul.f32.gmra.mxu0 %v4952
  %v5019 = vpop.f32.mrf.mxu0
  %v5020 = vadd.f32 0.0, %v5019
  %5021 = vmatmul.f32.gmra.mxu0 %v4953
  %v5022 = vpop.f32.mrf.mxu0
  %v5023 = vadd.f32 0.0, %v5022
  %5024 = vmatmul.f32.gmra.mxu0 %v4954
  %v5025 = vpop.f32.mrf.mxu0
  %v5026 = vadd.f32 0.0, %v5025
  %5027 = vmatmul.f32.gmra.mxu0 %v4955
  %v5028 = vpop.f32.mrf.mxu0
  %v5029 = vadd.f32 0.0, %v5028
  %5030 = vmatmul.f32.gmra.mxu0 %v4956
  %v5031 = vpop.f32.mrf.mxu0
  %v5032 = vadd.f32 0.0, %v5031
  %5033 = vmatmul.f32.gmra.mxu0 %v4957
  %v5034 = vpop.f32.mrf.mxu0
  %v5035 = vadd.f32 0.0, %v5034
  %5036 = vmatmul.f32.gmra.mxu0 %v4958
  %v5037 = vpop.f32.mrf.mxu0
  %v5038 = vadd.f32 0.0, %v5037
  %5039 = vdwg.mxu0
  %v5040 = vadd.f32 %v4927, %v4993
  %v5041 = vadd.f32 %v4928, %v4996
  %v5042 = vadd.f32 %v4929, %v4999
  %v5043 = vadd.f32 %v4930, %v5002
  %v5044 = vadd.f32 %v4931, %v5005
  %v5045 = vadd.f32 %v4932, %v5008
  %v5046 = vadd.f32 %v4933, %v5011
  %v5047 = vadd.f32 %v4934, %v5014
  %v5048 = vadd.f32 %v4935, %v5017
  %v5049 = vadd.f32 %v4936, %v5020
  %v5050 = vadd.f32 %v4937, %v5023
  %v5051 = vadd.f32 %v4938, %v5026
  %v5052 = vadd.f32 %v4939, %v5029
  %v5053 = vadd.f32 %v4940, %v5032
  %v5054 = vadd.f32 %v4941, %v5035
  %v5055 = vadd.f32 %v4942, %v5038
  %v5056 = vadd.f32 %v5040, %v1859
  %v5057 = vadd.f32 %v5041, %v1859
  %v5058 = vadd.f32 %v5042, %v1859
  %v5059 = vadd.f32 %v5043, %v1859
  %v5060 = vadd.f32 %v5044, %v1859
  %v5061 = vadd.f32 %v5045, %v1859
  %v5062 = vadd.f32 %v5046, %v1859
  %v5063 = vadd.f32 %v5047, %v1859
  %v5064 = vadd.f32 %v5048, %v1859
  %v5065 = vadd.f32 %v5049, %v1859
  %v5066 = vadd.f32 %v5050, %v1859
  %v5067 = vadd.f32 %v5051, %v1859
  %v5068 = vadd.f32 %v5052, %v1859
  %v5069 = vadd.f32 %v5053, %v1859
  %v5070 = vadd.f32 %v5054, %v1859
  %v5071 = vadd.f32 %v5055, %v1859
  %vm5072 = vcmp.gt.f32.partialorder %v5056, 0.0
  %vm5073 = vcmp.gt.f32.partialorder %v5057, 0.0
  %vm5074 = vcmp.gt.f32.partialorder %v5058, 0.0
  %vm5075 = vcmp.gt.f32.partialorder %v5059, 0.0
  %vm5076 = vcmp.gt.f32.partialorder %v5060, 0.0
  %vm5077 = vcmp.gt.f32.partialorder %v5061, 0.0
  %vm5078 = vcmp.gt.f32.partialorder %v5062, 0.0
  %vm5079 = vcmp.gt.f32.partialorder %v5063, 0.0
  %vm5080 = vcmp.gt.f32.partialorder %v5064, 0.0
  %vm5081 = vcmp.gt.f32.partialorder %v5065, 0.0
  %vm5082 = vcmp.gt.f32.partialorder %v5066, 0.0
  %vm5083 = vcmp.gt.f32.partialorder %v5067, 0.0
  %vm5084 = vcmp.gt.f32.partialorder %v5068, 0.0
  %vm5085 = vcmp.gt.f32.partialorder %v5069, 0.0
  %vm5086 = vcmp.gt.f32.partialorder %v5070, 0.0
  %vm5087 = vcmp.gt.f32.partialorder %v5071, 0.0
  %v5088 = vmul.f32 %v5056, 0.01
  %v5089 = vmul.f32 %v5057, 0.01
  %v5090 = vmul.f32 %v5058, 0.01
  %v5091 = vmul.f32 %v5059, 0.01
  %v5092 = vmul.f32 %v5060, 0.01
  %v5093 = vmul.f32 %v5061, 0.01
  %v5094 = vmul.f32 %v5062, 0.01
  %v5095 = vmul.f32 %v5063, 0.01
  %v5096 = vmul.f32 %v5064, 0.01
  %v5097 = vmul.f32 %v5065, 0.01
  %v5098 = vmul.f32 %v5066, 0.01
  %v5099 = vmul.f32 %v5067, 0.01
  %v5100 = vmul.f32 %v5068, 0.01
  %v5101 = vmul.f32 %v5069, 0.01
  %v5102 = vmul.f32 %v5070, 0.01
  %v5103 = vmul.f32 %v5071, 0.01
  %v5104 = vsel %vm5072, %v5056, %v5088
  %v5105 = vsel %vm5073, %v5057, %v5089
  %v5106 = vsel %vm5074, %v5058, %v5090
  %v5107 = vsel %vm5075, %v5059, %v5091
  %v5108 = vsel %vm5076, %v5060, %v5092
  %v5109 = vsel %vm5077, %v5061, %v5093
  %v5110 = vsel %vm5078, %v5062, %v5094
  %v5111 = vsel %vm5079, %v5063, %v5095
  %v5112 = vsel %vm5080, %v5064, %v5096
  %v5113 = vsel %vm5081, %v5065, %v5097
  %v5114 = vsel %vm5082, %v5066, %v5098
  %v5115 = vsel %vm5083, %v5067, %v5099
  %v5116 = vsel %vm5084, %v5068, %v5100
  %v5117 = vsel %vm5085, %v5069, %v5101
  %v5118 = vsel %vm5086, %v5070, %v5102
  %v5119 = vsel %vm5087, %v5071, %v5103
  %5120 = vst [vmem:[#allocation3 + $0x180] sm:$0xff] %v5104
  %5121 = vst [vmem:[#allocation3 + $0x188] sm:$0xff] %v5105
  %5122 = vst [vmem:[#allocation3 + $0x190] sm:$0xff] %v5106
  %5123 = vst [vmem:[#allocation3 + $0x198] sm:$0xff] %v5107
  %5124 = vst [vmem:[#allocation3 + $0x1a0] sm:$0xff] %v5108
  %5125 = vst [vmem:[#allocation3 + $0x1a8] sm:$0xff] %v5109
  %5126 = vst [vmem:[#allocation3 + $0x1b0] sm:$0xff] %v5110
  %5127 = vst [vmem:[#allocation3 + $0x1b8] sm:$0xff] %v5111
  %5128 = vst [vmem:[#allocation3 + $0x1c0] sm:$0xff] %v5112
  %5129 = vst [vmem:[#allocation3 + $0x1c8] sm:$0xff] %v5113
  %5130 = vst [vmem:[#allocation3 + $0x1d0] sm:$0xff] %v5114
  %5131 = vst [vmem:[#allocation3 + $0x1d8] sm:$0xff] %v5115
  %5132 = vst [vmem:[#allocation3 + $0x1e0] sm:$0xff] %v5116
  %5133 = vst [vmem:[#allocation3 + $0x1e8] sm:$0xff] %v5117
  %5134 = vst [vmem:[#allocation3 + $0x1f0] sm:$0xff] %v5118
  %5135 = vst [vmem:[#allocation3 + $0x1f8] sm:$0xff] %v5119
  %v5136 = vld [vmem:[#allocation2 + $0x200] sm:$0xff]
  %v5137 = vld [vmem:[#allocation2 + $0x208] sm:$0xff]
  %v5138 = vld [vmem:[#allocation2 + $0x210] sm:$0xff]
  %v5139 = vld [vmem:[#allocation2 + $0x218] sm:$0xff]
  %v5140 = vld [vmem:[#allocation2 + $0x220] sm:$0xff]
  %v5141 = vld [vmem:[#allocation2 + $0x228] sm:$0xff]
  %v5142 = vld [vmem:[#allocation2 + $0x230] sm:$0xff]
  %v5143 = vld [vmem:[#allocation2 + $0x238] sm:$0xff]
  %v5144 = vld [vmem:[#allocation2 + $0x240] sm:$0xff]
  %v5145 = vld [vmem:[#allocation2 + $0x248] sm:$0xff]
  %v5146 = vld [vmem:[#allocation2 + $0x250] sm:$0xff]
  %v5147 = vld [vmem:[#allocation2 + $0x258] sm:$0xff]
  %v5148 = vld [vmem:[#allocation2 + $0x260] sm:$0xff]
  %v5149 = vld [vmem:[%s2] sm:$0xff]
  %v5150 = vld [vmem:[%s2 + $0x8] sm:$0xff]
  %v5151 = vld [vmem:[%s2 + $0x10] sm:$0xff]
  %v5152 = vld [vmem:[%s2 + $0x18] sm:$0xff]
  %v5153 = vld [vmem:[%s2 + $0x20] sm:$0xff]
  %v5154 = vld [vmem:[%s2 + $0x28] sm:$0xff]
  %v5155 = vld [vmem:[%s2 + $0x30] sm:$0xff]
  %v5156 = vld [vmem:[%s2 + $0x38] sm:$0xff]
  %v5157 = vld [vmem:[%s2 + $0x40] sm:$0xff]
  %v5158 = vld [vmem:[%s2 + $0x48] sm:$0xff]
  %v5159 = vld [vmem:[%s2 + $0x50] sm:$0xff]
  %v5160 = vld [vmem:[%s2 + $0x58] sm:$0xff]
  %v5161 = vld [vmem:[%s2 + $0x60] sm:$0xff]
  %v5162 = vld [vmem:[%s2 + $0x68] sm:$0xff]
  %v5163 = vld [vmem:[%s2 + $0x70] sm:$0xff]
  %v5164 = vld [vmem:[%s2 + $0x78] sm:$0xff]
  %v5165 = vld [vmem:[#allocation2 + $0x201] sm:$0xff]
  %v5166 = vld [vmem:[#allocation2 + $0x209] sm:$0xff]
  %v5167 = vld [vmem:[#allocation2 + $0x211] sm:$0xff]
  %v5168 = vld [vmem:[#allocation2 + $0x219] sm:$0xff]
  %v5169 = vld [vmem:[#allocation2 + $0x221] sm:$0xff]
  %v5170 = vld [vmem:[#allocation2 + $0x229] sm:$0xff]
  %v5171 = vld [vmem:[#allocation2 + $0x231] sm:$0xff]
  %v5172 = vld [vmem:[#allocation2 + $0x239] sm:$0xff]
  %v5173 = vld [vmem:[#allocation2 + $0x241] sm:$0xff]
  %v5174 = vld [vmem:[#allocation2 + $0x249] sm:$0xff]
  %v5175 = vld [vmem:[#allocation2 + $0x251] sm:$0xff]
  %v5176 = vld [vmem:[#allocation2 + $0x259] sm:$0xff]
  %v5177 = vld [vmem:[#allocation2 + $0x261] sm:$0xff]
  %v5178 = vld [vmem:[%s913] sm:$0xff]
  %v5179 = vld [vmem:[%s913 + $0x8] sm:$0xff]
  %v5180 = vld [vmem:[%s913 + $0x10] sm:$0xff]
  %v5181 = vld [vmem:[%s913 + $0x18] sm:$0xff]
  %v5182 = vld [vmem:[%s913 + $0x20] sm:$0xff]
  %v5183 = vld [vmem:[%s913 + $0x28] sm:$0xff]
  %v5184 = vld [vmem:[%s913 + $0x30] sm:$0xff]
  %v5185 = vld [vmem:[%s913 + $0x38] sm:$0xff]
  %v5186 = vld [vmem:[%s913 + $0x40] sm:$0xff]
  %v5187 = vld [vmem:[%s913 + $0x48] sm:$0xff]
  %v5188 = vld [vmem:[%s913 + $0x50] sm:$0xff]
  %v5189 = vld [vmem:[%s913 + $0x58] sm:$0xff]
  %v5190 = vld [vmem:[%s913 + $0x60] sm:$0xff]
  %v5191 = vld [vmem:[%s913 + $0x68] sm:$0xff]
  %v5192 = vld [vmem:[%s913 + $0x70] sm:$0xff]
  %v5193 = vld [vmem:[%s913 + $0x78] sm:$0xff]
  %5194 = vmatpush.msra.mxu0 %v5193
  %5195 = vmatpush.msra.mxu0 %v5192
  %5196 = vmatpush.msra.mxu0 %v5191
  %5197 = vmatpush.msra.mxu0 %v5190
  %5198 = vmatpush.msra.mxu0 %v5189
  %5199 = vmatpush.msra.mxu0 %v5188
  %5200 = vmatpush.msra.mxu0 %v5187
  %5201 = vmatpush.msra.mxu0 %v5186
  %5202 = vmatpush.msra.mxu0 %v5185
  %5203 = vmatpush.msra.mxu0 %v5184
  %5204 = vmatpush.msra.mxu0 %v5183
  %5205 = vmatpush.msra.mxu0 %v5182
  %5206 = vmatpush.msra.mxu0 %v5181
  %5207 = vmatpush.msra.mxu0 %v5180
  %5208 = vmatpush.msra.mxu0 %v5179
  %5209 = vmatpush.msra.mxu0 %v5178
  %5210 = vmatmul.f32.gmra.mxu0 %v5165
  %v5211 = vpop.f32.mrf.mxu0
  %v5212 = vadd.f32 0.0, %v5211
  %5213 = vmatmul.f32.gmra.mxu0 %v5166
  %v5214 = vpop.f32.mrf.mxu0
  %v5215 = vadd.f32 0.0, %v5214
  %5216 = vmatmul.f32.gmra.mxu0 %v5167
  %v5217 = vpop.f32.mrf.mxu0
  %v5218 = vadd.f32 0.0, %v5217
  %5219 = vmatmul.f32.gmra.mxu0 %v5168
  %v5220 = vpop.f32.mrf.mxu0
  %v5221 = vadd.f32 0.0, %v5220
  %5222 = vmatmul.f32.gmra.mxu0 %v5169
  %v5223 = vpop.f32.mrf.mxu0
  %v5224 = vadd.f32 0.0, %v5223
  %5225 = vmatmul.f32.gmra.mxu0 %v5170
  %v5226 = vpop.f32.mrf.mxu0
  %v5227 = vadd.f32 0.0, %v5226
  %5228 = vmatmul.f32.gmra.mxu0 %v5171
  %v5229 = vpop.f32.mrf.mxu0
  %v5230 = vadd.f32 0.0, %v5229
  %5231 = vmatmul.f32.gmra.mxu0 %v5172
  %v5232 = vpop.f32.mrf.mxu0
  %v5233 = vadd.f32 0.0, %v5232
  %5234 = vmatmul.f32.gmra.mxu0 %v5173
  %v5235 = vpop.f32.mrf.mxu0
  %v5236 = vadd.f32 0.0, %v5235
  %5237 = vmatmul.f32.gmra.mxu0 %v5174
  %v5238 = vpop.f32.mrf.mxu0
  %v5239 = vadd.f32 0.0, %v5238
  %5240 = vmatmul.f32.gmra.mxu0 %v5175
  %v5241 = vpop.f32.mrf.mxu0
  %v5242 = vadd.f32 0.0, %v5241
  %5243 = vmatmul.f32.gmra.mxu0 %v5176
  %v5244 = vpop.f32.mrf.mxu0
  %v5245 = vadd.f32 0.0, %v5244
  %5246 = vmatmul.f32.gmra.mxu0 %v5177
  %v5247 = vpop.f32.mrf.mxu0
  %v5248 = vadd.f32 0.0, %v5247
  %5249 = vdwg.mxu0
  %5250 = vmatpush.msra.mxu0 %v5164
  %5251 = vmatpush.msra.mxu0 %v5163
  %5252 = vmatpush.msra.mxu0 %v5162
  %5253 = vmatpush.msra.mxu0 %v5161
  %5254 = vmatpush.msra.mxu0 %v5160
  %5255 = vmatpush.msra.mxu0 %v5159
  %5256 = vmatpush.msra.mxu0 %v5158
  %5257 = vmatpush.msra.mxu0 %v5157
  %5258 = vmatpush.msra.mxu0 %v5156
  %5259 = vmatpush.msra.mxu0 %v5155
  %5260 = vmatpush.msra.mxu0 %v5154
  %5261 = vmatpush.msra.mxu0 %v5153
  %5262 = vmatpush.msra.mxu0 %v5152
  %5263 = vmatpush.msra.mxu0 %v5151
  %5264 = vmatpush.msra.mxu0 %v5150
  %5265 = vmatpush.msra.mxu0 %v5149
  %5266 = vmatmul.f32.gmra.mxu0 %v5136
  %v5267 = vpop.f32.mrf.mxu0
  %v5268 = vadd.f32 %v5212, %v5267
  %5269 = vmatmul.f32.gmra.mxu0 %v5137
  %v5270 = vpop.f32.mrf.mxu0
  %v5271 = vadd.f32 %v5215, %v5270
  %5272 = vmatmul.f32.gmra.mxu0 %v5138
  %v5273 = vpop.f32.mrf.mxu0
  %v5274 = vadd.f32 %v5218, %v5273
  %5275 = vmatmul.f32.gmra.mxu0 %v5139
  %v5276 = vpop.f32.mrf.mxu0
  %v5277 = vadd.f32 %v5221, %v5276
  %5278 = vmatmul.f32.gmra.mxu0 %v5140
  %v5279 = vpop.f32.mrf.mxu0
  %v5280 = vadd.f32 %v5224, %v5279
  %5281 = vmatmul.f32.gmra.mxu0 %v5141
  %v5282 = vpop.f32.mrf.mxu0
  %v5283 = vadd.f32 %v5227, %v5282
  %5284 = vmatmul.f32.gmra.mxu0 %v5142
  %v5285 = vpop.f32.mrf.mxu0
  %v5286 = vadd.f32 %v5230, %v5285
  %5287 = vmatmul.f32.gmra.mxu0 %v5143
  %v5288 = vpop.f32.mrf.mxu0
  %v5289 = vadd.f32 %v5233, %v5288
  %5290 = vmatmul.f32.gmra.mxu0 %v5144
  %v5291 = vpop.f32.mrf.mxu0
  %v5292 = vadd.f32 %v5236, %v5291
  %5293 = vmatmul.f32.gmra.mxu0 %v5145
  %v5294 = vpop.f32.mrf.mxu0
  %v5295 = vadd.f32 %v5239, %v5294
  %5296 = vmatmul.f32.gmra.mxu0 %v5146
  %v5297 = vpop.f32.mrf.mxu0
  %v5298 = vadd.f32 %v5242, %v5297
  %5299 = vmatmul.f32.gmra.mxu0 %v5147
  %v5300 = vpop.f32.mrf.mxu0
  %v5301 = vadd.f32 %v5245, %v5300
  %5302 = vmatmul.f32.gmra.mxu0 %v5148
  %v5303 = vpop.f32.mrf.mxu0
  %v5304 = vadd.f32 %v5248, %v5303
  %5305 = vdwg.mxu0
  %v5306 = vld [vmem:[#allocation2 + $0x202] sm:$0xff]
  %v5307 = vld [vmem:[#allocation2 + $0x20a] sm:$0xff]
  %v5308 = vld [vmem:[#allocation2 + $0x212] sm:$0xff]
  %v5309 = vld [vmem:[#allocation2 + $0x21a] sm:$0xff]
  %v5310 = vld [vmem:[#allocation2 + $0x222] sm:$0xff]
  %v5311 = vld [vmem:[#allocation2 + $0x22a] sm:$0xff]
  %v5312 = vld [vmem:[#allocation2 + $0x232] sm:$0xff]
  %v5313 = vld [vmem:[#allocation2 + $0x23a] sm:$0xff]
  %v5314 = vld [vmem:[#allocation2 + $0x242] sm:$0xff]
  %v5315 = vld [vmem:[#allocation2 + $0x24a] sm:$0xff]
  %v5316 = vld [vmem:[#allocation2 + $0x252] sm:$0xff]
  %v5317 = vld [vmem:[#allocation2 + $0x25a] sm:$0xff]
  %v5318 = vld [vmem:[#allocation2 + $0x262] sm:$0xff]
  %v5319 = vld [vmem:[%s1076] sm:$0xff]
  %v5320 = vld [vmem:[%s1076 + $0x8] sm:$0xff]
  %v5321 = vld [vmem:[%s1076 + $0x10] sm:$0xff]
  %v5322 = vld [vmem:[%s1076 + $0x18] sm:$0xff]
  %v5323 = vld [vmem:[%s1076 + $0x20] sm:$0xff]
  %v5324 = vld [vmem:[%s1076 + $0x28] sm:$0xff]
  %v5325 = vld [vmem:[%s1076 + $0x30] sm:$0xff]
  %v5326 = vld [vmem:[%s1076 + $0x38] sm:$0xff]
  %v5327 = vld [vmem:[%s1076 + $0x40] sm:$0xff]
  %v5328 = vld [vmem:[%s1076 + $0x48] sm:$0xff]
  %v5329 = vld [vmem:[%s1076 + $0x50] sm:$0xff]
  %v5330 = vld [vmem:[%s1076 + $0x58] sm:$0xff]
  %v5331 = vld [vmem:[%s1076 + $0x60] sm:$0xff]
  %v5332 = vld [vmem:[%s1076 + $0x68] sm:$0xff]
  %v5333 = vld [vmem:[%s1076 + $0x70] sm:$0xff]
  %v5334 = vld [vmem:[%s1076 + $0x78] sm:$0xff]
  %5335 = vmatpush.msra.mxu0 %v5334
  %5336 = vmatpush.msra.mxu0 %v5333
  %5337 = vmatpush.msra.mxu0 %v5332
  %5338 = vmatpush.msra.mxu0 %v5331
  %5339 = vmatpush.msra.mxu0 %v5330
  %5340 = vmatpush.msra.mxu0 %v5329
  %5341 = vmatpush.msra.mxu0 %v5328
  %5342 = vmatpush.msra.mxu0 %v5327
  %5343 = vmatpush.msra.mxu0 %v5326
  %5344 = vmatpush.msra.mxu0 %v5325
  %5345 = vmatpush.msra.mxu0 %v5324
  %5346 = vmatpush.msra.mxu0 %v5323
  %5347 = vmatpush.msra.mxu0 %v5322
  %5348 = vmatpush.msra.mxu0 %v5321
  %5349 = vmatpush.msra.mxu0 %v5320
  %5350 = vmatpush.msra.mxu0 %v5319
  %5351 = vmatmul.f32.gmra.mxu0 %v5306
  %v5352 = vpop.f32.mrf.mxu0
  %v5353 = vadd.f32 0.0, %v5352
  %5354 = vmatmul.f32.gmra.mxu0 %v5307
  %v5355 = vpop.f32.mrf.mxu0
  %v5356 = vadd.f32 0.0, %v5355
  %5357 = vmatmul.f32.gmra.mxu0 %v5308
  %v5358 = vpop.f32.mrf.mxu0
  %v5359 = vadd.f32 0.0, %v5358
  %5360 = vmatmul.f32.gmra.mxu0 %v5309
  %v5361 = vpop.f32.mrf.mxu0
  %v5362 = vadd.f32 0.0, %v5361
  %5363 = vmatmul.f32.gmra.mxu0 %v5310
  %v5364 = vpop.f32.mrf.mxu0
  %v5365 = vadd.f32 0.0, %v5364
  %5366 = vmatmul.f32.gmra.mxu0 %v5311
  %v5367 = vpop.f32.mrf.mxu0
  %v5368 = vadd.f32 0.0, %v5367
  %5369 = vmatmul.f32.gmra.mxu0 %v5312
  %v5370 = vpop.f32.mrf.mxu0
  %v5371 = vadd.f32 0.0, %v5370
  %5372 = vmatmul.f32.gmra.mxu0 %v5313
  %v5373 = vpop.f32.mrf.mxu0
  %v5374 = vadd.f32 0.0, %v5373
  %5375 = vmatmul.f32.gmra.mxu0 %v5314
  %v5376 = vpop.f32.mrf.mxu0
  %v5377 = vadd.f32 0.0, %v5376
  %5378 = vmatmul.f32.gmra.mxu0 %v5315
  %v5379 = vpop.f32.mrf.mxu0
  %v5380 = vadd.f32 0.0, %v5379
  %5381 = vmatmul.f32.gmra.mxu0 %v5316
  %v5382 = vpop.f32.mrf.mxu0
  %v5383 = vadd.f32 0.0, %v5382
  %5384 = vmatmul.f32.gmra.mxu0 %v5317
  %v5385 = vpop.f32.mrf.mxu0
  %v5386 = vadd.f32 0.0, %v5385
  %5387 = vmatmul.f32.gmra.mxu0 %v5318
  %v5388 = vpop.f32.mrf.mxu0
  %v5389 = vadd.f32 0.0, %v5388
  %5390 = vdwg.mxu0
  %v5391 = vadd.f32 %v5268, %v5353
  %v5392 = vadd.f32 %v5271, %v5356
  %v5393 = vadd.f32 %v5274, %v5359
  %v5394 = vadd.f32 %v5277, %v5362
  %v5395 = vadd.f32 %v5280, %v5365
  %v5396 = vadd.f32 %v5283, %v5368
  %v5397 = vadd.f32 %v5286, %v5371
  %v5398 = vadd.f32 %v5289, %v5374
  %v5399 = vadd.f32 %v5292, %v5377
  %v5400 = vadd.f32 %v5295, %v5380
  %v5401 = vadd.f32 %v5298, %v5383
  %v5402 = vadd.f32 %v5301, %v5386
  %v5403 = vadd.f32 %v5304, %v5389
  %v5404 = vld [vmem:[#allocation2 + $0x212] sm:$0xff]
  %v5405 = vld [vmem:[#allocation2 + $0x21a] sm:$0xff]
  %v5406 = vld [vmem:[#allocation2 + $0x222] sm:$0xff]
  %v5407 = vld [vmem:[#allocation2 + $0x22a] sm:$0xff]
  %v5408 = vld [vmem:[#allocation2 + $0x232] sm:$0xff]
  %v5409 = vld [vmem:[#allocation2 + $0x23a] sm:$0xff]
  %v5410 = vld [vmem:[#allocation2 + $0x242] sm:$0xff]
  %v5411 = vld [vmem:[#allocation2 + $0x24a] sm:$0xff]
  %v5412 = vld [vmem:[#allocation2 + $0x252] sm:$0xff]
  %v5413 = vld [vmem:[#allocation2 + $0x25a] sm:$0xff]
  %v5414 = vld [vmem:[#allocation2 + $0x262] sm:$0xff]
  %v5415 = vld [vmem:[#allocation2 + $0x26a] sm:$0xff]
  %v5416 = vld [vmem:[#allocation2 + $0x272] sm:$0xff]
  %v5417 = vld [vmem:[%s1190] sm:$0xff]
  %v5418 = vld [vmem:[%s1190 + $0x8] sm:$0xff]
  %v5419 = vld [vmem:[%s1190 + $0x10] sm:$0xff]
  %v5420 = vld [vmem:[%s1190 + $0x18] sm:$0xff]
  %v5421 = vld [vmem:[%s1190 + $0x20] sm:$0xff]
  %v5422 = vld [vmem:[%s1190 + $0x28] sm:$0xff]
  %v5423 = vld [vmem:[%s1190 + $0x30] sm:$0xff]
  %v5424 = vld [vmem:[%s1190 + $0x38] sm:$0xff]
  %v5425 = vld [vmem:[%s1190 + $0x40] sm:$0xff]
  %v5426 = vld [vmem:[%s1190 + $0x48] sm:$0xff]
  %v5427 = vld [vmem:[%s1190 + $0x50] sm:$0xff]
  %v5428 = vld [vmem:[%s1190 + $0x58] sm:$0xff]
  %v5429 = vld [vmem:[%s1190 + $0x60] sm:$0xff]
  %v5430 = vld [vmem:[%s1190 + $0x68] sm:$0xff]
  %v5431 = vld [vmem:[%s1190 + $0x70] sm:$0xff]
  %v5432 = vld [vmem:[%s1190 + $0x78] sm:$0xff]
  %5433 = vmatpush.msra.mxu0 %v5432
  %5434 = vmatpush.msra.mxu0 %v5431
  %5435 = vmatpush.msra.mxu0 %v5430
  %5436 = vmatpush.msra.mxu0 %v5429
  %5437 = vmatpush.msra.mxu0 %v5428
  %5438 = vmatpush.msra.mxu0 %v5427
  %5439 = vmatpush.msra.mxu0 %v5426
  %5440 = vmatpush.msra.mxu0 %v5425
  %5441 = vmatpush.msra.mxu0 %v5424
  %5442 = vmatpush.msra.mxu0 %v5423
  %5443 = vmatpush.msra.mxu0 %v5422
  %5444 = vmatpush.msra.mxu0 %v5421
  %5445 = vmatpush.msra.mxu0 %v5420
  %5446 = vmatpush.msra.mxu0 %v5419
  %5447 = vmatpush.msra.mxu0 %v5418
  %5448 = vmatpush.msra.mxu0 %v5417
  %5449 = vmatmul.f32.gmra.mxu0 %v5404
  %v5450 = vpop.f32.mrf.mxu0
  %v5451 = vadd.f32 0.0, %v5450
  %5452 = vmatmul.f32.gmra.mxu0 %v5405
  %v5453 = vpop.f32.mrf.mxu0
  %v5454 = vadd.f32 0.0, %v5453
  %5455 = vmatmul.f32.gmra.mxu0 %v5406
  %v5456 = vpop.f32.mrf.mxu0
  %v5457 = vadd.f32 0.0, %v5456
  %5458 = vmatmul.f32.gmra.mxu0 %v5407
  %v5459 = vpop.f32.mrf.mxu0
  %v5460 = vadd.f32 0.0, %v5459
  %5461 = vmatmul.f32.gmra.mxu0 %v5408
  %v5462 = vpop.f32.mrf.mxu0
  %v5463 = vadd.f32 0.0, %v5462
  %5464 = vmatmul.f32.gmra.mxu0 %v5409
  %v5465 = vpop.f32.mrf.mxu0
  %v5466 = vadd.f32 0.0, %v5465
  %5467 = vmatmul.f32.gmra.mxu0 %v5410
  %v5468 = vpop.f32.mrf.mxu0
  %v5469 = vadd.f32 0.0, %v5468
  %5470 = vmatmul.f32.gmra.mxu0 %v5411
  %v5471 = vpop.f32.mrf.mxu0
  %v5472 = vadd.f32 0.0, %v5471
  %5473 = vmatmul.f32.gmra.mxu0 %v5412
  %v5474 = vpop.f32.mrf.mxu0
  %v5475 = vadd.f32 0.0, %v5474
  %5476 = vmatmul.f32.gmra.mxu0 %v5413
  %v5477 = vpop.f32.mrf.mxu0
  %v5478 = vadd.f32 0.0, %v5477
  %5479 = vmatmul.f32.gmra.mxu0 %v5414
  %v5480 = vpop.f32.mrf.mxu0
  %v5481 = vadd.f32 0.0, %v5480
  %5482 = vmatmul.f32.gmra.mxu0 %v5415
  %v5483 = vpop.f32.mrf.mxu0
  %v5484 = vadd.f32 0.0, %v5483
  %5485 = vmatmul.f32.gmra.mxu0 %v5416
  %v5486 = vpop.f32.mrf.mxu0
  %v5487 = vadd.f32 0.0, %v5486
  %5488 = vdwg.mxu0
  %v5489 = vadd.f32 %v5391, %v5451
  %v5490 = vadd.f32 %v5392, %v5454
  %v5491 = vadd.f32 %v5393, %v5457
  %v5492 = vadd.f32 %v5394, %v5460
  %v5493 = vadd.f32 %v5395, %v5463
  %v5494 = vadd.f32 %v5396, %v5466
  %v5495 = vadd.f32 %v5397, %v5469
  %v5496 = vadd.f32 %v5398, %v5472
  %v5497 = vadd.f32 %v5399, %v5475
  %v5498 = vadd.f32 %v5400, %v5478
  %v5499 = vadd.f32 %v5401, %v5481
  %v5500 = vadd.f32 %v5402, %v5484
  %v5501 = vadd.f32 %v5403, %v5487
  %v5502 = vld [vmem:[#allocation2 + $0x213] sm:$0xff]
  %v5503 = vld [vmem:[#allocation2 + $0x21b] sm:$0xff]
  %v5504 = vld [vmem:[#allocation2 + $0x223] sm:$0xff]
  %v5505 = vld [vmem:[#allocation2 + $0x22b] sm:$0xff]
  %v5506 = vld [vmem:[#allocation2 + $0x233] sm:$0xff]
  %v5507 = vld [vmem:[#allocation2 + $0x23b] sm:$0xff]
  %v5508 = vld [vmem:[#allocation2 + $0x243] sm:$0xff]
  %v5509 = vld [vmem:[#allocation2 + $0x24b] sm:$0xff]
  %v5510 = vld [vmem:[#allocation2 + $0x253] sm:$0xff]
  %v5511 = vld [vmem:[#allocation2 + $0x25b] sm:$0xff]
  %v5512 = vld [vmem:[#allocation2 + $0x263] sm:$0xff]
  %v5513 = vld [vmem:[#allocation2 + $0x26b] sm:$0xff]
  %v5514 = vld [vmem:[#allocation2 + $0x273] sm:$0xff]
  %v5515 = vld [vmem:[%s1304] sm:$0xff]
  %v5516 = vld [vmem:[%s1304 + $0x8] sm:$0xff]
  %v5517 = vld [vmem:[%s1304 + $0x10] sm:$0xff]
  %v5518 = vld [vmem:[%s1304 + $0x18] sm:$0xff]
  %v5519 = vld [vmem:[%s1304 + $0x20] sm:$0xff]
  %v5520 = vld [vmem:[%s1304 + $0x28] sm:$0xff]
  %v5521 = vld [vmem:[%s1304 + $0x30] sm:$0xff]
  %v5522 = vld [vmem:[%s1304 + $0x38] sm:$0xff]
  %v5523 = vld [vmem:[%s1304 + $0x40] sm:$0xff]
  %v5524 = vld [vmem:[%s1304 + $0x48] sm:$0xff]
  %v5525 = vld [vmem:[%s1304 + $0x50] sm:$0xff]
  %v5526 = vld [vmem:[%s1304 + $0x58] sm:$0xff]
  %v5527 = vld [vmem:[%s1304 + $0x60] sm:$0xff]
  %v5528 = vld [vmem:[%s1304 + $0x68] sm:$0xff]
  %v5529 = vld [vmem:[%s1304 + $0x70] sm:$0xff]
  %v5530 = vld [vmem:[%s1304 + $0x78] sm:$0xff]
  %5531 = vmatpush.msra.mxu0 %v5530
  %5532 = vmatpush.msra.mxu0 %v5529
  %5533 = vmatpush.msra.mxu0 %v5528
  %5534 = vmatpush.msra.mxu0 %v5527
  %5535 = vmatpush.msra.mxu0 %v5526
  %5536 = vmatpush.msra.mxu0 %v5525
  %5537 = vmatpush.msra.mxu0 %v5524
  %5538 = vmatpush.msra.mxu0 %v5523
  %5539 = vmatpush.msra.mxu0 %v5522
  %5540 = vmatpush.msra.mxu0 %v5521
  %5541 = vmatpush.msra.mxu0 %v5520
  %5542 = vmatpush.msra.mxu0 %v5519
  %5543 = vmatpush.msra.mxu0 %v5518
  %5544 = vmatpush.msra.mxu0 %v5517
  %5545 = vmatpush.msra.mxu0 %v5516
  %5546 = vmatpush.msra.mxu0 %v5515
  %5547 = vmatmul.f32.gmra.mxu0 %v5502
  %v5548 = vpop.f32.mrf.mxu0
  %v5549 = vadd.f32 0.0, %v5548
  %5550 = vmatmul.f32.gmra.mxu0 %v5503
  %v5551 = vpop.f32.mrf.mxu0
  %v5552 = vadd.f32 0.0, %v5551
  %5553 = vmatmul.f32.gmra.mxu0 %v5504
  %v5554 = vpop.f32.mrf.mxu0
  %v5555 = vadd.f32 0.0, %v5554
  %5556 = vmatmul.f32.gmra.mxu0 %v5505
  %v5557 = vpop.f32.mrf.mxu0
  %v5558 = vadd.f32 0.0, %v5557
  %5559 = vmatmul.f32.gmra.mxu0 %v5506
  %v5560 = vpop.f32.mrf.mxu0
  %v5561 = vadd.f32 0.0, %v5560
  %5562 = vmatmul.f32.gmra.mxu0 %v5507
  %v5563 = vpop.f32.mrf.mxu0
  %v5564 = vadd.f32 0.0, %v5563
  %5565 = vmatmul.f32.gmra.mxu0 %v5508
  %v5566 = vpop.f32.mrf.mxu0
  %v5567 = vadd.f32 0.0, %v5566
  %5568 = vmatmul.f32.gmra.mxu0 %v5509
  %v5569 = vpop.f32.mrf.mxu0
  %v5570 = vadd.f32 0.0, %v5569
  %5571 = vmatmul.f32.gmra.mxu0 %v5510
  %v5572 = vpop.f32.mrf.mxu0
  %v5573 = vadd.f32 0.0, %v5572
  %5574 = vmatmul.f32.gmra.mxu0 %v5511
  %v5575 = vpop.f32.mrf.mxu0
  %v5576 = vadd.f32 0.0, %v5575
  %5577 = vmatmul.f32.gmra.mxu0 %v5512
  %v5578 = vpop.f32.mrf.mxu0
  %v5579 = vadd.f32 0.0, %v5578
  %5580 = vmatmul.f32.gmra.mxu0 %v5513
  %v5581 = vpop.f32.mrf.mxu0
  %v5582 = vadd.f32 0.0, %v5581
  %5583 = vmatmul.f32.gmra.mxu0 %v5514
  %v5584 = vpop.f32.mrf.mxu0
  %v5585 = vadd.f32 0.0, %v5584
  %5586 = vdwg.mxu0
  %v5587 = vadd.f32 %v5489, %v5549
  %v5588 = vadd.f32 %v5490, %v5552
  %v5589 = vadd.f32 %v5491, %v5555
  %v5590 = vadd.f32 %v5492, %v5558
  %v5591 = vadd.f32 %v5493, %v5561
  %v5592 = vadd.f32 %v5494, %v5564
  %v5593 = vadd.f32 %v5495, %v5567
  %v5594 = vadd.f32 %v5496, %v5570
  %v5595 = vadd.f32 %v5497, %v5573
  %v5596 = vadd.f32 %v5498, %v5576
  %v5597 = vadd.f32 %v5499, %v5579
  %v5598 = vadd.f32 %v5500, %v5582
  %v5599 = vadd.f32 %v5501, %v5585
  %v5600 = vld [vmem:[#allocation2 + $0x214] sm:$0xff]
  %v5601 = vld [vmem:[#allocation2 + $0x21c] sm:$0xff]
  %v5602 = vld [vmem:[#allocation2 + $0x224] sm:$0xff]
  %v5603 = vld [vmem:[#allocation2 + $0x22c] sm:$0xff]
  %v5604 = vld [vmem:[#allocation2 + $0x234] sm:$0xff]
  %v5605 = vld [vmem:[#allocation2 + $0x23c] sm:$0xff]
  %v5606 = vld [vmem:[#allocation2 + $0x244] sm:$0xff]
  %v5607 = vld [vmem:[#allocation2 + $0x24c] sm:$0xff]
  %v5608 = vld [vmem:[#allocation2 + $0x254] sm:$0xff]
  %v5609 = vld [vmem:[#allocation2 + $0x25c] sm:$0xff]
  %v5610 = vld [vmem:[#allocation2 + $0x264] sm:$0xff]
  %v5611 = vld [vmem:[#allocation2 + $0x26c] sm:$0xff]
  %v5612 = vld [vmem:[#allocation2 + $0x274] sm:$0xff]
  %v5613 = vld [vmem:[%s1418] sm:$0xff]
  %v5614 = vld [vmem:[%s1418 + $0x8] sm:$0xff]
  %v5615 = vld [vmem:[%s1418 + $0x10] sm:$0xff]
  %v5616 = vld [vmem:[%s1418 + $0x18] sm:$0xff]
  %v5617 = vld [vmem:[%s1418 + $0x20] sm:$0xff]
  %v5618 = vld [vmem:[%s1418 + $0x28] sm:$0xff]
  %v5619 = vld [vmem:[%s1418 + $0x30] sm:$0xff]
  %v5620 = vld [vmem:[%s1418 + $0x38] sm:$0xff]
  %v5621 = vld [vmem:[%s1418 + $0x40] sm:$0xff]
  %v5622 = vld [vmem:[%s1418 + $0x48] sm:$0xff]
  %v5623 = vld [vmem:[%s1418 + $0x50] sm:$0xff]
  %v5624 = vld [vmem:[%s1418 + $0x58] sm:$0xff]
  %v5625 = vld [vmem:[%s1418 + $0x60] sm:$0xff]
  %v5626 = vld [vmem:[%s1418 + $0x68] sm:$0xff]
  %v5627 = vld [vmem:[%s1418 + $0x70] sm:$0xff]
  %v5628 = vld [vmem:[%s1418 + $0x78] sm:$0xff]
  %5629 = vmatpush.msra.mxu0 %v5628
  %5630 = vmatpush.msra.mxu0 %v5627
  %5631 = vmatpush.msra.mxu0 %v5626
  %5632 = vmatpush.msra.mxu0 %v5625
  %5633 = vmatpush.msra.mxu0 %v5624
  %5634 = vmatpush.msra.mxu0 %v5623
  %5635 = vmatpush.msra.mxu0 %v5622
  %5636 = vmatpush.msra.mxu0 %v5621
  %5637 = vmatpush.msra.mxu0 %v5620
  %5638 = vmatpush.msra.mxu0 %v5619
  %5639 = vmatpush.msra.mxu0 %v5618
  %5640 = vmatpush.msra.mxu0 %v5617
  %5641 = vmatpush.msra.mxu0 %v5616
  %5642 = vmatpush.msra.mxu0 %v5615
  %5643 = vmatpush.msra.mxu0 %v5614
  %5644 = vmatpush.msra.mxu0 %v5613
  %5645 = vmatmul.f32.gmra.mxu0 %v5600
  %v5646 = vpop.f32.mrf.mxu0
  %v5647 = vadd.f32 0.0, %v5646
  %5648 = vmatmul.f32.gmra.mxu0 %v5601
  %v5649 = vpop.f32.mrf.mxu0
  %v5650 = vadd.f32 0.0, %v5649
  %5651 = vmatmul.f32.gmra.mxu0 %v5602
  %v5652 = vpop.f32.mrf.mxu0
  %v5653 = vadd.f32 0.0, %v5652
  %5654 = vmatmul.f32.gmra.mxu0 %v5603
  %v5655 = vpop.f32.mrf.mxu0
  %v5656 = vadd.f32 0.0, %v5655
  %5657 = vmatmul.f32.gmra.mxu0 %v5604
  %v5658 = vpop.f32.mrf.mxu0
  %v5659 = vadd.f32 0.0, %v5658
  %5660 = vmatmul.f32.gmra.mxu0 %v5605
  %v5661 = vpop.f32.mrf.mxu0
  %v5662 = vadd.f32 0.0, %v5661
  %5663 = vmatmul.f32.gmra.mxu0 %v5606
  %v5664 = vpop.f32.mrf.mxu0
  %v5665 = vadd.f32 0.0, %v5664
  %5666 = vmatmul.f32.gmra.mxu0 %v5607
  %v5667 = vpop.f32.mrf.mxu0
  %v5668 = vadd.f32 0.0, %v5667
  %5669 = vmatmul.f32.gmra.mxu0 %v5608
  %v5670 = vpop.f32.mrf.mxu0
  %v5671 = vadd.f32 0.0, %v5670
  %5672 = vmatmul.f32.gmra.mxu0 %v5609
  %v5673 = vpop.f32.mrf.mxu0
  %v5674 = vadd.f32 0.0, %v5673
  %5675 = vmatmul.f32.gmra.mxu0 %v5610
  %v5676 = vpop.f32.mrf.mxu0
  %v5677 = vadd.f32 0.0, %v5676
  %5678 = vmatmul.f32.gmra.mxu0 %v5611
  %v5679 = vpop.f32.mrf.mxu0
  %v5680 = vadd.f32 0.0, %v5679
  %5681 = vmatmul.f32.gmra.mxu0 %v5612
  %v5682 = vpop.f32.mrf.mxu0
  %v5683 = vadd.f32 0.0, %v5682
  %5684 = vdwg.mxu0
  %v5685 = vadd.f32 %v5587, %v5647
  %v5686 = vadd.f32 %v5588, %v5650
  %v5687 = vadd.f32 %v5589, %v5653
  %v5688 = vadd.f32 %v5590, %v5656
  %v5689 = vadd.f32 %v5591, %v5659
  %v5690 = vadd.f32 %v5592, %v5662
  %v5691 = vadd.f32 %v5593, %v5665
  %v5692 = vadd.f32 %v5594, %v5668
  %v5693 = vadd.f32 %v5595, %v5671
  %v5694 = vadd.f32 %v5596, %v5674
  %v5695 = vadd.f32 %v5597, %v5677
  %v5696 = vadd.f32 %v5598, %v5680
  %v5697 = vadd.f32 %v5599, %v5683
  %v5698 = vld [vmem:[#allocation2 + $0x224] sm:$0xff]
  %v5699 = vld [vmem:[#allocation2 + $0x22c] sm:$0xff]
  %v5700 = vld [vmem:[#allocation2 + $0x234] sm:$0xff]
  %v5701 = vld [vmem:[#allocation2 + $0x23c] sm:$0xff]
  %v5702 = vld [vmem:[#allocation2 + $0x244] sm:$0xff]
  %v5703 = vld [vmem:[#allocation2 + $0x24c] sm:$0xff]
  %v5704 = vld [vmem:[#allocation2 + $0x254] sm:$0xff]
  %v5705 = vld [vmem:[#allocation2 + $0x25c] sm:$0xff]
  %v5706 = vld [vmem:[#allocation2 + $0x264] sm:$0xff]
  %v5707 = vld [vmem:[#allocation2 + $0x26c] sm:$0xff]
  %v5708 = vld [vmem:[#allocation2 + $0x274] sm:$0xff]
  %v5709 = vld [vmem:[#allocation2 + $0x27c] sm:$0xff]
  %v5710 = vld [vmem:[#allocation2 + $0x284] sm:$0xff]
  %v5711 = vld [vmem:[%s1532] sm:$0xff]
  %v5712 = vld [vmem:[%s1532 + $0x8] sm:$0xff]
  %v5713 = vld [vmem:[%s1532 + $0x10] sm:$0xff]
  %v5714 = vld [vmem:[%s1532 + $0x18] sm:$0xff]
  %v5715 = vld [vmem:[%s1532 + $0x20] sm:$0xff]
  %v5716 = vld [vmem:[%s1532 + $0x28] sm:$0xff]
  %v5717 = vld [vmem:[%s1532 + $0x30] sm:$0xff]
  %v5718 = vld [vmem:[%s1532 + $0x38] sm:$0xff]
  %v5719 = vld [vmem:[%s1532 + $0x40] sm:$0xff]
  %v5720 = vld [vmem:[%s1532 + $0x48] sm:$0xff]
  %v5721 = vld [vmem:[%s1532 + $0x50] sm:$0xff]
  %v5722 = vld [vmem:[%s1532 + $0x58] sm:$0xff]
  %v5723 = vld [vmem:[%s1532 + $0x60] sm:$0xff]
  %v5724 = vld [vmem:[%s1532 + $0x68] sm:$0xff]
  %v5725 = vld [vmem:[%s1532 + $0x70] sm:$0xff]
  %v5726 = vld [vmem:[%s1532 + $0x78] sm:$0xff]
  %5727 = vmatpush.msra.mxu0 %v5726
  %5728 = vmatpush.msra.mxu0 %v5725
  %5729 = vmatpush.msra.mxu0 %v5724
  %5730 = vmatpush.msra.mxu0 %v5723
  %5731 = vmatpush.msra.mxu0 %v5722
  %5732 = vmatpush.msra.mxu0 %v5721
  %5733 = vmatpush.msra.mxu0 %v5720
  %5734 = vmatpush.msra.mxu0 %v5719
  %5735 = vmatpush.msra.mxu0 %v5718
  %5736 = vmatpush.msra.mxu0 %v5717
  %5737 = vmatpush.msra.mxu0 %v5716
  %5738 = vmatpush.msra.mxu0 %v5715
  %5739 = vmatpush.msra.mxu0 %v5714
  %5740 = vmatpush.msra.mxu0 %v5713
  %5741 = vmatpush.msra.mxu0 %v5712
  %5742 = vmatpush.msra.mxu0 %v5711
  %5743 = vmatmul.f32.gmra.mxu0 %v5698
  %v5744 = vpop.f32.mrf.mxu0
  %v5745 = vadd.f32 0.0, %v5744
  %5746 = vmatmul.f32.gmra.mxu0 %v5699
  %v5747 = vpop.f32.mrf.mxu0
  %v5748 = vadd.f32 0.0, %v5747
  %5749 = vmatmul.f32.gmra.mxu0 %v5700
  %v5750 = vpop.f32.mrf.mxu0
  %v5751 = vadd.f32 0.0, %v5750
  %5752 = vmatmul.f32.gmra.mxu0 %v5701
  %v5753 = vpop.f32.mrf.mxu0
  %v5754 = vadd.f32 0.0, %v5753
  %5755 = vmatmul.f32.gmra.mxu0 %v5702
  %v5756 = vpop.f32.mrf.mxu0
  %v5757 = vadd.f32 0.0, %v5756
  %5758 = vmatmul.f32.gmra.mxu0 %v5703
  %v5759 = vpop.f32.mrf.mxu0
  %v5760 = vadd.f32 0.0, %v5759
  %5761 = vmatmul.f32.gmra.mxu0 %v5704
  %v5762 = vpop.f32.mrf.mxu0
  %v5763 = vadd.f32 0.0, %v5762
  %5764 = vmatmul.f32.gmra.mxu0 %v5705
  %v5765 = vpop.f32.mrf.mxu0
  %v5766 = vadd.f32 0.0, %v5765
  %5767 = vmatmul.f32.gmra.mxu0 %v5706
  %v5768 = vpop.f32.mrf.mxu0
  %v5769 = vadd.f32 0.0, %v5768
  %5770 = vmatmul.f32.gmra.mxu0 %v5707
  %v5771 = vpop.f32.mrf.mxu0
  %v5772 = vadd.f32 0.0, %v5771
  %5773 = vmatmul.f32.gmra.mxu0 %v5708
  %v5774 = vpop.f32.mrf.mxu0
  %v5775 = vadd.f32 0.0, %v5774
  %5776 = vmatmul.f32.gmra.mxu0 %v5709
  %v5777 = vpop.f32.mrf.mxu0
  %v5778 = vadd.f32 0.0, %v5777
  %5779 = vmatmul.f32.gmra.mxu0 %v5710
  %v5780 = vpop.f32.mrf.mxu0
  %v5781 = vadd.f32 0.0, %v5780
  %5782 = vdwg.mxu0
  %v5783 = vadd.f32 %v5685, %v5745
  %v5784 = vadd.f32 %v5686, %v5748
  %v5785 = vadd.f32 %v5687, %v5751
  %v5786 = vadd.f32 %v5688, %v5754
  %v5787 = vadd.f32 %v5689, %v5757
  %v5788 = vadd.f32 %v5690, %v5760
  %v5789 = vadd.f32 %v5691, %v5763
  %v5790 = vadd.f32 %v5692, %v5766
  %v5791 = vadd.f32 %v5693, %v5769
  %v5792 = vadd.f32 %v5694, %v5772
  %v5793 = vadd.f32 %v5695, %v5775
  %v5794 = vadd.f32 %v5696, %v5778
  %v5795 = vadd.f32 %v5697, %v5781
  %v5796 = vld [vmem:[#allocation2 + $0x225] sm:$0xff]
  %v5797 = vld [vmem:[#allocation2 + $0x22d] sm:$0xff]
  %v5798 = vld [vmem:[#allocation2 + $0x235] sm:$0xff]
  %v5799 = vld [vmem:[#allocation2 + $0x23d] sm:$0xff]
  %v5800 = vld [vmem:[#allocation2 + $0x245] sm:$0xff]
  %v5801 = vld [vmem:[#allocation2 + $0x24d] sm:$0xff]
  %v5802 = vld [vmem:[#allocation2 + $0x255] sm:$0xff]
  %v5803 = vld [vmem:[#allocation2 + $0x25d] sm:$0xff]
  %v5804 = vld [vmem:[#allocation2 + $0x265] sm:$0xff]
  %v5805 = vld [vmem:[#allocation2 + $0x26d] sm:$0xff]
  %v5806 = vld [vmem:[#allocation2 + $0x275] sm:$0xff]
  %v5807 = vld [vmem:[#allocation2 + $0x27d] sm:$0xff]
  %v5808 = vld [vmem:[#allocation2 + $0x285] sm:$0xff]
  %v5809 = vld [vmem:[%s1646] sm:$0xff]
  %v5810 = vld [vmem:[%s1646 + $0x8] sm:$0xff]
  %v5811 = vld [vmem:[%s1646 + $0x10] sm:$0xff]
  %v5812 = vld [vmem:[%s1646 + $0x18] sm:$0xff]
  %v5813 = vld [vmem:[%s1646 + $0x20] sm:$0xff]
  %v5814 = vld [vmem:[%s1646 + $0x28] sm:$0xff]
  %v5815 = vld [vmem:[%s1646 + $0x30] sm:$0xff]
  %v5816 = vld [vmem:[%s1646 + $0x38] sm:$0xff]
  %v5817 = vld [vmem:[%s1646 + $0x40] sm:$0xff]
  %v5818 = vld [vmem:[%s1646 + $0x48] sm:$0xff]
  %v5819 = vld [vmem:[%s1646 + $0x50] sm:$0xff]
  %v5820 = vld [vmem:[%s1646 + $0x58] sm:$0xff]
  %v5821 = vld [vmem:[%s1646 + $0x60] sm:$0xff]
  %v5822 = vld [vmem:[%s1646 + $0x68] sm:$0xff]
  %v5823 = vld [vmem:[%s1646 + $0x70] sm:$0xff]
  %v5824 = vld [vmem:[%s1646 + $0x78] sm:$0xff]
  %5825 = vmatpush.msra.mxu0 %v5824
  %5826 = vmatpush.msra.mxu0 %v5823
  %5827 = vmatpush.msra.mxu0 %v5822
  %5828 = vmatpush.msra.mxu0 %v5821
  %5829 = vmatpush.msra.mxu0 %v5820
  %5830 = vmatpush.msra.mxu0 %v5819
  %5831 = vmatpush.msra.mxu0 %v5818
  %5832 = vmatpush.msra.mxu0 %v5817
  %5833 = vmatpush.msra.mxu0 %v5816
  %5834 = vmatpush.msra.mxu0 %v5815
  %5835 = vmatpush.msra.mxu0 %v5814
  %5836 = vmatpush.msra.mxu0 %v5813
  %5837 = vmatpush.msra.mxu0 %v5812
  %5838 = vmatpush.msra.mxu0 %v5811
  %5839 = vmatpush.msra.mxu0 %v5810
  %5840 = vmatpush.msra.mxu0 %v5809
  %5841 = vmatmul.f32.gmra.mxu0 %v5796
  %v5842 = vpop.f32.mrf.mxu0
  %v5843 = vadd.f32 0.0, %v5842
  %5844 = vmatmul.f32.gmra.mxu0 %v5797
  %v5845 = vpop.f32.mrf.mxu0
  %v5846 = vadd.f32 0.0, %v5845
  %5847 = vmatmul.f32.gmra.mxu0 %v5798
  %v5848 = vpop.f32.mrf.mxu0
  %v5849 = vadd.f32 0.0, %v5848
  %5850 = vmatmul.f32.gmra.mxu0 %v5799
  %v5851 = vpop.f32.mrf.mxu0
  %v5852 = vadd.f32 0.0, %v5851
  %5853 = vmatmul.f32.gmra.mxu0 %v5800
  %v5854 = vpop.f32.mrf.mxu0
  %v5855 = vadd.f32 0.0, %v5854
  %5856 = vmatmul.f32.gmra.mxu0 %v5801
  %v5857 = vpop.f32.mrf.mxu0
  %v5858 = vadd.f32 0.0, %v5857
  %5859 = vmatmul.f32.gmra.mxu0 %v5802
  %v5860 = vpop.f32.mrf.mxu0
  %v5861 = vadd.f32 0.0, %v5860
  %5862 = vmatmul.f32.gmra.mxu0 %v5803
  %v5863 = vpop.f32.mrf.mxu0
  %v5864 = vadd.f32 0.0, %v5863
  %5865 = vmatmul.f32.gmra.mxu0 %v5804
  %v5866 = vpop.f32.mrf.mxu0
  %v5867 = vadd.f32 0.0, %v5866
  %5868 = vmatmul.f32.gmra.mxu0 %v5805
  %v5869 = vpop.f32.mrf.mxu0
  %v5870 = vadd.f32 0.0, %v5869
  %5871 = vmatmul.f32.gmra.mxu0 %v5806
  %v5872 = vpop.f32.mrf.mxu0
  %v5873 = vadd.f32 0.0, %v5872
  %5874 = vmatmul.f32.gmra.mxu0 %v5807
  %v5875 = vpop.f32.mrf.mxu0
  %v5876 = vadd.f32 0.0, %v5875
  %5877 = vmatmul.f32.gmra.mxu0 %v5808
  %v5878 = vpop.f32.mrf.mxu0
  %v5879 = vadd.f32 0.0, %v5878
  %5880 = vdwg.mxu0
  %v5881 = vadd.f32 %v5783, %v5843
  %v5882 = vadd.f32 %v5784, %v5846
  %v5883 = vadd.f32 %v5785, %v5849
  %v5884 = vadd.f32 %v5786, %v5852
  %v5885 = vadd.f32 %v5787, %v5855
  %v5886 = vadd.f32 %v5788, %v5858
  %v5887 = vadd.f32 %v5789, %v5861
  %v5888 = vadd.f32 %v5790, %v5864
  %v5889 = vadd.f32 %v5791, %v5867
  %v5890 = vadd.f32 %v5792, %v5870
  %v5891 = vadd.f32 %v5793, %v5873
  %v5892 = vadd.f32 %v5794, %v5876
  %v5893 = vadd.f32 %v5795, %v5879
  %v5894 = vld [vmem:[#allocation2 + $0x226] sm:$0xff]
  %v5895 = vld [vmem:[#allocation2 + $0x22e] sm:$0xff]
  %v5896 = vld [vmem:[#allocation2 + $0x236] sm:$0xff]
  %v5897 = vld [vmem:[#allocation2 + $0x23e] sm:$0xff]
  %v5898 = vld [vmem:[#allocation2 + $0x246] sm:$0xff]
  %v5899 = vld [vmem:[#allocation2 + $0x24e] sm:$0xff]
  %v5900 = vld [vmem:[#allocation2 + $0x256] sm:$0xff]
  %v5901 = vld [vmem:[#allocation2 + $0x25e] sm:$0xff]
  %v5902 = vld [vmem:[#allocation2 + $0x266] sm:$0xff]
  %v5903 = vld [vmem:[#allocation2 + $0x26e] sm:$0xff]
  %v5904 = vld [vmem:[#allocation2 + $0x276] sm:$0xff]
  %v5905 = vld [vmem:[#allocation2 + $0x27e] sm:$0xff]
  %v5906 = vld [vmem:[#allocation2 + $0x286] sm:$0xff]
  %v5907 = vld [vmem:[%s1760] sm:$0xff]
  %v5908 = vld [vmem:[%s1760 + $0x8] sm:$0xff]
  %v5909 = vld [vmem:[%s1760 + $0x10] sm:$0xff]
  %v5910 = vld [vmem:[%s1760 + $0x18] sm:$0xff]
  %v5911 = vld [vmem:[%s1760 + $0x20] sm:$0xff]
  %v5912 = vld [vmem:[%s1760 + $0x28] sm:$0xff]
  %v5913 = vld [vmem:[%s1760 + $0x30] sm:$0xff]
  %v5914 = vld [vmem:[%s1760 + $0x38] sm:$0xff]
  %v5915 = vld [vmem:[%s1760 + $0x40] sm:$0xff]
  %v5916 = vld [vmem:[%s1760 + $0x48] sm:$0xff]
  %v5917 = vld [vmem:[%s1760 + $0x50] sm:$0xff]
  %v5918 = vld [vmem:[%s1760 + $0x58] sm:$0xff]
  %v5919 = vld [vmem:[%s1760 + $0x60] sm:$0xff]
  %v5920 = vld [vmem:[%s1760 + $0x68] sm:$0xff]
  %v5921 = vld [vmem:[%s1760 + $0x70] sm:$0xff]
  %v5922 = vld [vmem:[%s1760 + $0x78] sm:$0xff]
  %5923 = vmatpush.msra.mxu0 %v5922
  %5924 = vmatpush.msra.mxu0 %v5921
  %5925 = vmatpush.msra.mxu0 %v5920
  %5926 = vmatpush.msra.mxu0 %v5919
  %5927 = vmatpush.msra.mxu0 %v5918
  %5928 = vmatpush.msra.mxu0 %v5917
  %5929 = vmatpush.msra.mxu0 %v5916
  %5930 = vmatpush.msra.mxu0 %v5915
  %5931 = vmatpush.msra.mxu0 %v5914
  %5932 = vmatpush.msra.mxu0 %v5913
  %5933 = vmatpush.msra.mxu0 %v5912
  %5934 = vmatpush.msra.mxu0 %v5911
  %5935 = vmatpush.msra.mxu0 %v5910
  %5936 = vmatpush.msra.mxu0 %v5909
  %5937 = vmatpush.msra.mxu0 %v5908
  %5938 = vmatpush.msra.mxu0 %v5907
  %5939 = vmatmul.f32.gmra.mxu0 %v5894
  %v5940 = vpop.f32.mrf.mxu0
  %v5941 = vadd.f32 0.0, %v5940
  %5942 = vmatmul.f32.gmra.mxu0 %v5895
  %v5943 = vpop.f32.mrf.mxu0
  %v5944 = vadd.f32 0.0, %v5943
  %5945 = vmatmul.f32.gmra.mxu0 %v5896
  %v5946 = vpop.f32.mrf.mxu0
  %v5947 = vadd.f32 0.0, %v5946
  %5948 = vmatmul.f32.gmra.mxu0 %v5897
  %v5949 = vpop.f32.mrf.mxu0
  %v5950 = vadd.f32 0.0, %v5949
  %5951 = vmatmul.f32.gmra.mxu0 %v5898
  %v5952 = vpop.f32.mrf.mxu0
  %v5953 = vadd.f32 0.0, %v5952
  %5954 = vmatmul.f32.gmra.mxu0 %v5899
  %v5955 = vpop.f32.mrf.mxu0
  %v5956 = vadd.f32 0.0, %v5955
  %5957 = vmatmul.f32.gmra.mxu0 %v5900
  %v5958 = vpop.f32.mrf.mxu0
  %v5959 = vadd.f32 0.0, %v5958
  %5960 = vmatmul.f32.gmra.mxu0 %v5901
  %v5961 = vpop.f32.mrf.mxu0
  %v5962 = vadd.f32 0.0, %v5961
  %5963 = vmatmul.f32.gmra.mxu0 %v5902
  %v5964 = vpop.f32.mrf.mxu0
  %v5965 = vadd.f32 0.0, %v5964
  %5966 = vmatmul.f32.gmra.mxu0 %v5903
  %v5967 = vpop.f32.mrf.mxu0
  %v5968 = vadd.f32 0.0, %v5967
  %5969 = vmatmul.f32.gmra.mxu0 %v5904
  %v5970 = vpop.f32.mrf.mxu0
  %v5971 = vadd.f32 0.0, %v5970
  %5972 = vmatmul.f32.gmra.mxu0 %v5905
  %v5973 = vpop.f32.mrf.mxu0
  %v5974 = vadd.f32 0.0, %v5973
  %5975 = vmatmul.f32.gmra.mxu0 %v5906
  %v5976 = vpop.f32.mrf.mxu0
  %v5977 = vadd.f32 0.0, %v5976
  %5978 = vdwg.mxu0
  %v5979 = vadd.f32 %v5881, %v5941
  %v5980 = vadd.f32 %v5882, %v5944
  %v5981 = vadd.f32 %v5883, %v5947
  %v5982 = vadd.f32 %v5884, %v5950
  %v5983 = vadd.f32 %v5885, %v5953
  %v5984 = vadd.f32 %v5886, %v5956
  %v5985 = vadd.f32 %v5887, %v5959
  %v5986 = vadd.f32 %v5888, %v5962
  %v5987 = vadd.f32 %v5889, %v5965
  %v5988 = vadd.f32 %v5890, %v5968
  %v5989 = vadd.f32 %v5891, %v5971
  %v5990 = vadd.f32 %v5892, %v5974
  %v5991 = vadd.f32 %v5893, %v5977
  %v5992 = vadd.f32 %v5979, %v1859
  %v5993 = vadd.f32 %v5980, %v1859
  %v5994 = vadd.f32 %v5981, %v1859
  %v5995 = vadd.f32 %v5982, %v1859
  %v5996 = vadd.f32 %v5983, %v1859
  %v5997 = vadd.f32 %v5984, %v1859
  %v5998 = vadd.f32 %v5985, %v1859
  %v5999 = vadd.f32 %v5986, %v1859
  %v6000 = vadd.f32 %v5987, %v1859
  %v6001 = vadd.f32 %v5988, %v1859
  %v6002 = vadd.f32 %v5989, %v1859
  %v6003 = vadd.f32 %v5990, %v1859
  %v6004 = vadd.f32 %v5991, %v1859
  %vm6005 = vcmp.gt.f32.partialorder %v5992, 0.0
  %vm6006 = vcmp.gt.f32.partialorder %v5993, 0.0
  %vm6007 = vcmp.gt.f32.partialorder %v5994, 0.0
  %vm6008 = vcmp.gt.f32.partialorder %v5995, 0.0
  %vm6009 = vcmp.gt.f32.partialorder %v5996, 0.0
  %vm6010 = vcmp.gt.f32.partialorder %v5997, 0.0
  %vm6011 = vcmp.gt.f32.partialorder %v5998, 0.0
  %vm6012 = vcmp.gt.f32.partialorder %v5999, 0.0
  %vm6013 = vcmp.gt.f32.partialorder %v6000, 0.0
  %vm6014 = vcmp.gt.f32.partialorder %v6001, 0.0
  %vm6015 = vcmp.gt.f32.partialorder %v6002, 0.0
  %vm6016 = vcmp.gt.f32.partialorder %v6003, 0.0
  %vm6017 = vcmp.gt.f32.partialorder %v6004, 0.0
  %v6018 = vmul.f32 %v5992, 0.01
  %v6019 = vmul.f32 %v5993, 0.01
  %v6020 = vmul.f32 %v5994, 0.01
  %v6021 = vmul.f32 %v5995, 0.01
  %v6022 = vmul.f32 %v5996, 0.01
  %v6023 = vmul.f32 %v5997, 0.01
  %v6024 = vmul.f32 %v5998, 0.01
  %v6025 = vmul.f32 %v5999, 0.01
  %v6026 = vmul.f32 %v6000, 0.01
  %v6027 = vmul.f32 %v6001, 0.01
  %v6028 = vmul.f32 %v6002, 0.01
  %v6029 = vmul.f32 %v6003, 0.01
  %v6030 = vmul.f32 %v6004, 0.01
  %v6031 = vsel %vm6005, %v5992, %v6018
  %v6032 = vsel %vm6006, %v5993, %v6019
  %v6033 = vsel %vm6007, %v5994, %v6020
  %v6034 = vsel %vm6008, %v5995, %v6021
  %v6035 = vsel %vm6009, %v5996, %v6022
  %v6036 = vsel %vm6010, %v5997, %v6023
  %v6037 = vsel %vm6011, %v5998, %v6024
  %v6038 = vsel %vm6012, %v5999, %v6025
  %v6039 = vsel %vm6013, %v6000, %v6026
  %v6040 = vsel %vm6014, %v6001, %v6027
  %v6041 = vsel %vm6015, %v6002, %v6028
  %v6042 = vsel %vm6016, %v6003, %v6029
  %v6043 = vsel %vm6017, %v6004, %v6030
  %6044 = vst [vmem:[#allocation3 + $0x200] sm:$0xff] %v6031
  %6045 = vst [vmem:[#allocation3 + $0x208] sm:$0xff] %v6032
  %6046 = vst [vmem:[#allocation3 + $0x210] sm:$0xff] %v6033
  %6047 = vst [vmem:[#allocation3 + $0x218] sm:$0xff] %v6034
  %6048 = vst [vmem:[#allocation3 + $0x220] sm:$0xff] %v6035
  %6049 = vst [vmem:[#allocation3 + $0x228] sm:$0xff] %v6036
  %6050 = vst [vmem:[#allocation3 + $0x230] sm:$0xff] %v6037
  %6051 = vst [vmem:[#allocation3 + $0x238] sm:$0xff] %v6038
  %6052 = vst [vmem:[#allocation3 + $0x240] sm:$0xff] %v6039
  %6053 = vst [vmem:[#allocation3 + $0x248] sm:$0xff] %v6040
  %6054 = vst [vmem:[#allocation3 + $0x250] sm:$0xff] %v6041
  %6055 = vst [vmem:[#allocation3 + $0x258] sm:$0xff] %v6042
  %6056 = vst [vmem:[#allocation3 + $0x260] sm:$0xff] %v6043
  %v6057 = vld [vmem:[#allocation3] sm:$0xff]
  %v6058 = vld [vmem:[#allocation3 + $0x8] sm:$0xff]
  %v6059 = vld [vmem:[#allocation3 + $0x12] sm:$0xff]
  %v6060 = vld [vmem:[#allocation3 + $0x1a] sm:$0xff]
  %v6061 = vmax.f32 %v6057, %v6059
  %v6062 = vmax.f32 %v6058, %v6060
  %v6063 = vld [vmem:[#allocation3 + $0x24] sm:$0xff]
  %v6064 = vld [vmem:[#allocation3 + $0x2c] sm:$0xff]
  %v6065 = vmax.f32 %v6061, %v6063
  %v6066 = vmax.f32 %v6062, %v6064
  %vm6069 = vcmask 1046528
  %v6070 = vrot.slane %v6065, 1
  %v6071 = vrot.slane %v6066, 1
  %v6072 = vsel %vm6069, %v6070, %v6071
  %v6075 = vmax.f32 %v6065, %v6072
  %v6076 = vmax.f32 %v6066, %v6071
  %6077 = vst [vmem:[%s4] sm:$0xff] %v6075
  %6078 = vst [vmem:[%s4 + $0x8] sm:$0x7f] %v6076
  %v6079 = vld [vmem:[#allocation3 + $0x36] sm:$0xff]
  %v6080 = vld [vmem:[#allocation3 + $0x3e] sm:$0xff]
  %v6081 = vld [vmem:[#allocation3 + $0x48] sm:$0xff]
  %v6082 = vld [vmem:[#allocation3 + $0x50] sm:$0xff]
  %v6083 = vmax.f32 %v6079, %v6081
  %v6084 = vmax.f32 %v6080, %v6082
  %v6085 = vld [vmem:[#allocation3 + $0x5a] sm:$0xff]
  %v6086 = vld [vmem:[#allocation3 + $0x62] sm:$0xff]
  %v6087 = vmax.f32 %v6083, %v6085
  %v6088 = vmax.f32 %v6084, %v6086
  %v6091 = vrot.slane %v6087, 1
  %v6092 = vrot.slane %v6088, 1
  %v6093 = vsel %vm6069, %v6091, %v6092
  %v6096 = vmax.f32 %v6087, %v6093
  %v6097 = vmax.f32 %v6088, %v6092
  %s6098 = scalar_lea.vmem %s4, 16
  %6099 = vst [vmem:[%s6098] sm:$0xff] %v6096
  %6100 = vst [vmem:[%s6098 + $0x8] sm:$0x7f] %v6097
  %v6101 = vld [vmem:[#allocation3 + $0x6c] sm:$0xff]
  %v6102 = vld [vmem:[#allocation3 + $0x74] sm:$0xff]
  %v6103 = vld [vmem:[#allocation3 + $0x7e] sm:$0xff]
  %v6104 = vld [vmem:[#allocation3 + $0x86] sm:$0xff]
  %v6105 = vmax.f32 %v6101, %v6103
  %v6106 = vmax.f32 %v6102, %v6104
  %v6107 = vld [vmem:[#allocation3 + $0x90] sm:$0xff]
  %v6108 = vld [vmem:[#allocation3 + $0x98] sm:$0xff]
  %v6109 = vmax.f32 %v6105, %v6107
  %v6110 = vmax.f32 %v6106, %v6108
  %v6113 = vrot.slane %v6109, 1
  %v6114 = vrot.slane %v6110, 1
  %v6115 = vsel %vm6069, %v6113, %v6114
  %v6118 = vmax.f32 %v6109, %v6115
  %v6119 = vmax.f32 %v6110, %v6114
  %s6120 = scalar_lea.vmem %s4, 32
  %6121 = vst [vmem:[%s6120] sm:$0xff] %v6118
  %6122 = vst [vmem:[%s6120 + $0x8] sm:$0x7f] %v6119
  %v6123 = vld [vmem:[#allocation3 + $0xa2] sm:$0xff]
  %v6124 = vld [vmem:[#allocation3 + $0xaa] sm:$0xff]
  %v6125 = vld [vmem:[#allocation3 + $0xb4] sm:$0xff]
  %v6126 = vld [vmem:[#allocation3 + $0xbc] sm:$0xff]
  %v6127 = vmax.f32 %v6123, %v6125
  %v6128 = vmax.f32 %v6124, %v6126
  %v6129 = vld [vmem:[#allocation3 + $0xc6] sm:$0xff]
  %v6130 = vld [vmem:[#allocation3 + $0xce] sm:$0xff]
  %v6131 = vmax.f32 %v6127, %v6129
  %v6132 = vmax.f32 %v6128, %v6130
  %v6135 = vrot.slane %v6131, 1
  %v6136 = vrot.slane %v6132, 1
  %v6137 = vsel %vm6069, %v6135, %v6136
  %v6140 = vmax.f32 %v6131, %v6137
  %v6141 = vmax.f32 %v6132, %v6136
  %s6142 = scalar_lea.vmem %s4, 48
  %6143 = vst [vmem:[%s6142] sm:$0xff] %v6140
  %6144 = vst [vmem:[%s6142 + $0x8] sm:$0x7f] %v6141
  %v6145 = vld [vmem:[#allocation3 + $0xd8] sm:$0xff]
  %v6146 = vld [vmem:[#allocation3 + $0xe0] sm:$0xff]
  %v6147 = vld [vmem:[#allocation3 + $0xea] sm:$0xff]
  %v6148 = vld [vmem:[#allocation3 + $0xf2] sm:$0xff]
  %v6149 = vmax.f32 %v6145, %v6147
  %v6150 = vmax.f32 %v6146, %v6148
  %v6151 = vld [vmem:[#allocation3 + $0xfc] sm:$0xff]
  %v6152 = vld [vmem:[#allocation3 + $0x104] sm:$0xff]
  %v6153 = vmax.f32 %v6149, %v6151
  %v6154 = vmax.f32 %v6150, %v6152
  %v6157 = vrot.slane %v6153, 1
  %v6158 = vrot.slane %v6154, 1
  %v6159 = vsel %vm6069, %v6157, %v6158
  %v6162 = vmax.f32 %v6153, %v6159
  %v6163 = vmax.f32 %v6154, %v6158
  %s6164 = scalar_lea.vmem %s4, 64
  %6165 = vst [vmem:[%s6164] sm:$0xff] %v6162
  %6166 = vst [vmem:[%s6164 + $0x8] sm:$0x7f] %v6163
  %v6167 = vld [vmem:[#allocation3 + $0x144] sm:$0xff]
  %v6168 = vld [vmem:[#allocation3 + $0x14c] sm:$0xff]
  %v6169 = vld [vmem:[#allocation3 + $0x156] sm:$0xff]
  %v6170 = vld [vmem:[#allocation3 + $0x15e] sm:$0xff]
  %v6171 = vmax.f32 %v6167, %v6169
  %v6172 = vmax.f32 %v6168, %v6170
  %v6173 = vld [vmem:[#allocation3 + $0x168] sm:$0xff]
  %v6174 = vld [vmem:[#allocation3 + $0x170] sm:$0xff]
  %v6175 = vmax.f32 %v6171, %v6173
  %v6176 = vmax.f32 %v6172, %v6174
  %v6179 = vrot.slane %v6175, 1
  %v6180 = vrot.slane %v6176, 1
  %v6181 = vsel %vm6069, %v6179, %v6180
  %v6184 = vmax.f32 %v6175, %v6181
  %v6185 = vmax.f32 %v6176, %v6180
  %s6186 = scalar_lea.vmem %s4, 80
  %6187 = vst [vmem:[%s6186] sm:$0xff] %v6184
  %6188 = vst [vmem:[%s6186 + $0x8] sm:$0x7f] %v6185
  %v6189 = vld [vmem:[#allocation3 + $0x17a] sm:$0xff]
  %v6190 = vld [vmem:[#allocation3 + $0x182] sm:$0xff]
  %v6191 = vld [vmem:[#allocation3 + $0x18c] sm:$0xff]
  %v6192 = vld [vmem:[#allocation3 + $0x194] sm:$0xff]
  %v6193 = vmax.f32 %v6189, %v6191
  %v6194 = vmax.f32 %v6190, %v6192
  %v6195 = vld [vmem:[#allocation3 + $0x19e] sm:$0xff]
  %v6196 = vld [vmem:[#allocation3 + $0x1a6] sm:$0xff]
  %v6197 = vmax.f32 %v6193, %v6195
  %v6198 = vmax.f32 %v6194, %v6196
  %v6201 = vrot.slane %v6197, 1
  %v6202 = vrot.slane %v6198, 1
  %v6203 = vsel %vm6069, %v6201, %v6202
  %v6206 = vmax.f32 %v6197, %v6203
  %v6207 = vmax.f32 %v6198, %v6202
  %s6208 = scalar_lea.vmem %s4, 96
  %6209 = vst [vmem:[%s6208] sm:$0xff] %v6206
  %6210 = vst [vmem:[%s6208 + $0x8] sm:$0x7f] %v6207
  %v6211 = vld [vmem:[#allocation3 + $0x1b0] sm:$0xff]
  %v6212 = vld [vmem:[#allocation3 + $0x1b8] sm:$0xff]
  %v6213 = vld [vmem:[#allocation3 + $0x1c2] sm:$0xff]
  %v6214 = vld [vmem:[#allocation3 + $0x1ca] sm:$0xff]
  %v6215 = vmax.f32 %v6211, %v6213
  %v6216 = vmax.f32 %v6212, %v6214
  %v6217 = vld [vmem:[#allocation3 + $0x1d4] sm:$0xff]
  %v6218 = vld [vmem:[#allocation3 + $0x1dc] sm:$0xff]
  %v6219 = vmax.f32 %v6215, %v6217
  %v6220 = vmax.f32 %v6216, %v6218
  %v6223 = vrot.slane %v6219, 1
  %v6224 = vrot.slane %v6220, 1
  %v6225 = vsel %vm6069, %v6223, %v6224
  %v6228 = vmax.f32 %v6219, %v6225
  %v6229 = vmax.f32 %v6220, %v6224
  %s6230 = scalar_lea.vmem %s4, 112
  %6231 = vst [vmem:[%s6230] sm:$0xff] %v6228
  %6232 = vst [vmem:[%s6230 + $0x8] sm:$0x7f] %v6229
  %v6233 = vld [vmem:[#allocation3 + $0x1e6] sm:$0xff]
  %v6234 = vld [vmem:[#allocation3 + $0x1ee] sm:$0xff]
  %v6235 = vld [vmem:[#allocation3 + $0x1f8] sm:$0xff]
  %v6236 = vld [vmem:[#allocation3 + $0x200] sm:$0xff]
  %v6237 = vmax.f32 %v6233, %v6235
  %v6238 = vmax.f32 %v6234, %v6236
  %v6239 = vld [vmem:[#allocation3 + $0x20a] sm:$0xff]
  %v6240 = vld [vmem:[#allocation3 + $0x212] sm:$0xff]
  %v6241 = vmax.f32 %v6237, %v6239
  %v6242 = vmax.f32 %v6238, %v6240
  %v6245 = vrot.slane %v6241, 1
  %v6246 = vrot.slane %v6242, 1
  %v6247 = vsel %vm6069, %v6245, %v6246
  %v6250 = vmax.f32 %v6241, %v6247
  %v6251 = vmax.f32 %v6242, %v6246
  %s6252 = scalar_lea.vmem %s4, 128
  %6253 = vst [vmem:[%s6252] sm:$0xff] %v6250
  %6254 = vst [vmem:[%s6252 + $0x8] sm:$0x7f] %v6251
  %v6255 = vld [vmem:[#allocation3 + $0x21c] sm:$0xff]
  %v6256 = vld [vmem:[#allocation3 + $0x224] sm:$0xff]
  %v6257 = vld [vmem:[#allocation3 + $0x22e] sm:$0xff]
  %v6258 = vld [vmem:[#allocation3 + $0x236] sm:$0xff]
  %v6259 = vmax.f32 %v6255, %v6257
  %v6260 = vmax.f32 %v6256, %v6258
  %v6261 = vld [vmem:[#allocation3 + $0x240] sm:$0xff]
  %v6262 = vld [vmem:[#allocation3 + $0x248] sm:$0xff]
  %v6263 = vmax.f32 %v6259, %v6261
  %v6264 = vmax.f32 %v6260, %v6262
  %v6267 = vrot.slane %v6263, 1
  %v6268 = vrot.slane %v6264, 1
  %v6269 = vsel %vm6069, %v6267, %v6268
  %v6272 = vmax.f32 %v6263, %v6269
  %v6273 = vmax.f32 %v6264, %v6268
  %s6274 = scalar_lea.vmem %s4, 144
  %6275 = vst [vmem:[%s6274] sm:$0xff] %v6272
  %6276 = vst [vmem:[%s6274 + $0x8] sm:$0x7f] %v6273
  // Predicated region
  $region18: #{last_conv_layer.1} parent=0 // pred_check
    _
  $region19: #{last_conv_layer.1} parent=0 // pred_check_branch
    %6278 = sbr.rel (0) target = $region21
  $region20: #{last_conv_layer.1} parent=0 // pred_region
    _
  $region21: #{last_conv_layer.1} parent=0 // pred_fallthru
    _
  // Predicated region
  $region22: #{last_conv_layer.1} parent=0 // pred_check
    _
  $region23: #{last_conv_layer.1} parent=0 // pred_check_branch
    %6280 = sbr.rel (0) target = $region25
  $region24: #{last_conv_layer.1} parent=0 // pred_region
    _
  $region25: #{last_conv_layer.1} parent=0 // pred_fallthru
    _

</llo_original>
